<compile_context>
chip_gen: v7x
topology: tpu7x:2x2x1
jax: 0.10.0
libtpu: 0.0.40
codegen_flags: <defaults>
</compile_context>

<pallas_src>
import functools
import math

import jax
import jax.numpy as jnp
from jax.experimental import pallas as pl
from jax.experimental.pallas import tpu as pltpu


_WEIGHT_KEYS = (
    "e_wqkv", "e_bqkv", "e_wo", "e_bo", "e_w1", "e_b1", "e_w2", "e_b2", "e_ln",
    "d_wqkv", "d_bqkv", "d_wo", "d_bo",
    "d_cwq", "d_cbq", "d_cwkv", "d_cbkv", "d_cwo", "d_cbo",
    "d_w1", "d_b1", "d_w2", "d_b2", "d_ln",
)


def _round_up(x, m):
    return ((x + m - 1) // m) * m


# ----------------------------- fused Pallas kernel -----------------------------

def _transformer_kernel(*refs, B, H, D, Dp, n_layers):
    (enc_in_ref, dec_in_ref, causal_ref,
     e_wqkv, e_bqkv, e_wo, e_bo, e_w1, e_b1, e_w2, e_b2, e_ln,
     d_wqkv, d_bqkv, d_wo, d_bo,
     d_cwq, d_cbq, d_cwkv, d_cbkv, d_cwo, d_cbo,
     d_w1, d_b1, d_w2, d_b2, d_ln,
     enc_out_ref, dec_out_ref) = refs

    dkp = Dp // H                                    # padded per-head width (lane aligned)
    scale = 1.0 / math.sqrt(D // H)                  # softmax scale uses the REAL head dim
    causal = causal_ref[...]                         # (Sd, Sd) additive mask
    # 1.0 on the D real feature lanes, 0.0 on zero-padded lanes (for LayerNorm variance).
    lane_mask = (jax.lax.broadcasted_iota(jnp.int32, (1, Dp), 1) < D).astype(jnp.float32)

    def mm(a, w_bf16):
        # bf16 matmul, f32 accumulation (weights stored bf16)
        return jnp.dot(a.astype(jnp.bfloat16), w_bf16, preferred_element_type=jnp.float32)

    def layer_norm(x, g, b):
        mu = jnp.sum(x, axis=-1, keepdims=True) * (1.0 / D)      # padded lanes are zero
        xc = (x - mu) * lane_mask
        var = jnp.sum(xc * xc, axis=-1, keepdims=True) * (1.0 / D)
        return xc * jax.lax.rsqrt(var + 1e-5) * g + b            # padded g/b are zero

    def split_heads(t):
        # (B*S, Dp) bf16 -> (H*B, S, dkp); dkp(=64)-lane-aligned slices + leading-axis
        # stack + reshape only (no transposes, rows stay in (b, s) order).
        s = t.shape[0] // B
        parts = [t[:, h * dkp:(h + 1) * dkp].reshape(B, s, dkp) for h in range(H)]
        return jnp.concatenate(parts, axis=0)

    def merge_heads(o):
        # (H*B, S, dkp) f32 -> (B*S, Dp) in the per-head lane layout (inverse of split).
        s = o.shape[1]
        o = o.reshape(H, B * s, dkp)
        return jnp.concatenate([o[h] for h in range(H)], axis=1)

    def mha(q, k, v, mask_add):
        # q: (B*Sq, Dp), k/v: (B*Sk, Dp), all already bf16; single batched einsums
        # over the H*B leading axis (no per-head MXU pushes, no lane-sliced concat).
        qh, kh, vh = split_heads(q), split_heads(k), split_heads(v)
        s = jnp.einsum('bqd,bkd->bqk', qh, kh,
                       preferred_element_type=jnp.float32) * scale
        if mask_add is not None:
            s = s + mask_add
        m = jnp.max(s, axis=-1, keepdims=True)
        e = jnp.exp(s - m)
        p = e * pl.reciprocal(jnp.sum(e, axis=-1, keepdims=True), approx=True)
        o = jnp.einsum('bqk,bkd->bqd', p.astype(jnp.bfloat16), vh,
                       preferred_element_type=jnp.float32)
        return merge_heads(o)

    # ----- encoder stack (post-LN, ReLU FFN), batch folded into rows -----
    x = enc_in_ref[...]                              # (B*Se, Dp) f32, padded lanes zero
    for l in range(n_layers):
        ln = e_ln[l]                                 # (4, Dp)
        qkv = (mm(x, e_wqkv[l]) + e_bqkv[l]).astype(jnp.bfloat16)   # cast once, then slice
        a = mha(qkv[:, :Dp], qkv[:, Dp:2 * Dp], qkv[:, 2 * Dp:], None)
        a = mm(a, e_wo[l]) + e_bo[l]
        x = layer_norm(x + a, ln[0:1, :], ln[1:2, :])
        hdn = jnp.maximum(mm(x, e_w1[l]) + e_b1[l], 0.0)
        f = mm(hdn, e_w2[l]) + e_b2[l]
        x = layer_norm(x + f, ln[2:3, :], ln[3:4, :])
    enc_out_ref[...] = x                             # (B*Se, Dp): 128-lane-dense store

    # ----- decoder stack -----
    y = dec_in_ref[...]                              # (B*Sd, Dp) f32
    for l in range(n_layers):
        ln = d_ln[l]                                 # (6, Dp)
        # masked self-attention
        qkv = (mm(y, d_wqkv[l]) + d_bqkv[l]).astype(jnp.bfloat16)
        a = mha(qkv[:, :Dp], qkv[:, Dp:2 * Dp], qkv[:, 2 * Dp:], causal)
        a = mm(a, d_wo[l]) + d_bo[l]
        y = layer_norm(y + a, ln[0:1, :], ln[1:2, :])
        # cross-attention over encoder output (K|V fused)
        q = (mm(y, d_cwq[l]) + d_cbq[l]).astype(jnp.bfloat16)
        kv = (mm(x, d_cwkv[l]) + d_cbkv[l]).astype(jnp.bfloat16)    # x = encoder output
        a = mha(q, kv[:, :Dp], kv[:, Dp:], None)
        a = mm(a, d_cwo[l]) + d_cbo[l]
        y = layer_norm(y + a, ln[2:3, :], ln[3:4, :])
        # feed-forward
        hdn = jnp.maximum(mm(y, d_w1[l]) + d_b1[l], 0.0)
        f = mm(hdn, d_w2[l]) + d_b2[l]
        y = layer_norm(y + f, ln[4:5, :], ln[5:6, :])
    dec_out_ref[...] = y


# ----------------------------- wrapper -----------------------------

def transformer_forward(packed, enc_tokens, dec_tokens, pe_enc, pe_dec, causal_add,
                        *, n_heads, d_real):
    B, Se, src = enc_tokens.shape
    Sd = dec_tokens.shape[1]
    D = d_real
    Dp = packed["e_wo"].shape[1]                     # lane-padded model dim
    Dffp = packed["e_w1"].shape[2]
    n_layers = packed["e_wqkv"].shape[0]

    # TODO(synk): embedding gather + flatten(start_dim=2) + PE add + zero-pad are left to
    # XLA (one small fused gather/elementwise op); everything else is ONE pallas_call.
    enc_x = jnp.take(packed["enc_emb"], enc_tokens, axis=0).reshape(B, Se, D) + pe_enc[None]
    dec_x = jnp.take(packed["dec_emb"], dec_tokens, axis=0).reshape(B, Sd, D) + pe_dec[None]
    enc_x = jnp.pad(enc_x, ((0, 0), (0, 0), (0, Dp - D))).reshape(B * Se, Dp)
    dec_x = jnp.pad(dec_x, ((0, 0), (0, 0), (0, Dp - D))).reshape(B * Sd, Dp)

    kernel = functools.partial(_transformer_kernel,
                               B=B, H=n_heads, D=D, Dp=Dp, n_layers=n_layers)

    w_args = [packed[k] for k in _WEIGHT_KEYS]
    ins = [enc_x, dec_x, causal_add] + w_args

    # Gridless call: every operand is a single untiled VMEM-resident block
    # (weights are fetched exactly once -> no double-buffer 2x on VMEM).
    vmem_spec = pl.BlockSpec(memory_space=pltpu.MemorySpace.VMEM)

    in_bytes = sum(int(a.size) * a.dtype.itemsize for a in ins)
    out_bytes = (B * Se + B * Sd) * Dp * 4
    vmem_limit = int(min(100 * 1024 * 1024,
                         max(32 * 1024 * 1024, 2 * (in_bytes + out_bytes) + (8 << 20))))

    HB = n_heads * B
    dkp = Dp // n_heads
    flops = n_layers * (2 * B * Se * Dp * 3 * Dp + 4 * HB * Se * Se * dkp
                        + 2 * B * Se * Dp * Dp + 4 * B * Se * Dp * Dffp)
    flops += n_layers * (2 * B * Sd * Dp * 3 * Dp + 4 * HB * Sd * Sd * dkp
                         + 2 * B * Sd * Dp * Dp
                         + 2 * B * Sd * Dp * Dp + 2 * B * Se * Dp * 2 * Dp
                         + 4 * HB * Sd * Se * dkp + 2 * B * Sd * Dp * Dp
                         + 4 * B * Sd * Dp * Dffp)
    transcendentals = n_layers * HB * (Se * Se + Sd * Sd + Sd * Se)
    cost = pl.CostEstimate(flops=int(flops), transcendentals=int(transcendentals),
                           bytes_accessed=int(in_bytes + out_bytes))

    enc_out, dec_out = pl.pallas_call(
        kernel,
        out_shape=(jax.ShapeDtypeStruct((B * Se, Dp), jnp.float32),
                   jax.ShapeDtypeStruct((B * Sd, Dp), jnp.float32)),
        in_specs=[vmem_spec] * len(ins),
        out_specs=(vmem_spec, vmem_spec),
        compiler_params=pltpu.CompilerParams(vmem_limit_bytes=vmem_limit),
        cost_estimate=cost,
    )(*ins)

    # strip the lane padding outside the kernel (cheap XLA slice)
    enc_out = enc_out.reshape(B, Se, Dp)[..., :D]
    dec_out = dec_out.reshape(B, Sd, Dp)[..., :D]
    return enc_out, dec_out


# ----------------------------- constants (hoisted out of the traced fwd) -----------------------------

def positional_encoding(seq_len, d):
    pos = jnp.arange(seq_len, dtype=jnp.float32)[:, None]
    i = jnp.arange(d)[None, :]
    angle = pos / jnp.power(10000.0, (2.0 * (i // 2)).astype(jnp.float32) / d)
    return jnp.where(i % 2 == 0, jnp.sin(angle), jnp.cos(angle)).astype(jnp.float32)


def causal_additive_mask(s):
    row = jnp.arange(s)[:, None]
    col = jnp.arange(s)[None, :]
    return jnp.where(col > row, jnp.float32(-1e9), jnp.float32(0.0))


# ----------------------------- parameter init & packing -----------------------------

def _init_attn(key, D):
    ks = jax.random.split(key, 4)
    return {
        "wq": 0.02 * jax.random.normal(ks[0], (D, D), jnp.float32), "bq": jnp.zeros((D,), jnp.float32),
        "wk": 0.02 * jax.random.normal(ks[1], (D, D), jnp.float32), "bk": jnp.zeros((D,), jnp.float32),
        "wv": 0.02 * jax.random.normal(ks[2], (D, D), jnp.float32), "bv": jnp.zeros((D,), jnp.float32),
        "wo": 0.02 * jax.random.normal(ks[3], (D, D), jnp.float32), "bo": jnp.zeros((D,), jnp.float32),
    }


def _init_ffn(key, D, d_ff):
    k1, k2 = jax.random.split(key)
    return {
        "w1": 0.02 * jax.random.normal(k1, (D, d_ff), jnp.float32), "b1": jnp.zeros((d_ff,), jnp.float32),
        "w2": 0.02 * jax.random.normal(k2, (d_ff, D), jnp.float32), "b2": jnp.zeros((D,), jnp.float32),
    }


def init_params(seed, vocab_size, src_input_size, d_model, n_layers):
    D = d_model * src_input_size
    d_ff = 4 * D
    key = jax.random.PRNGKey(seed)
    k_emb_e, k_emb_d, key = jax.random.split(key, 3)

    params = {
        "enc_emb": jax.random.normal(k_emb_e, (vocab_size, d_model), jnp.float32),
        "dec_emb": jax.random.normal(k_emb_d, (vocab_size, d_model), jnp.float32),
        "enc_layers": [], "dec_layers": [],
    }
    for _ in range(n_layers):
        ka, kf, key = jax.random.split(key, 3)
        params["enc_layers"].append({
            "attn": _init_attn(ka, D), "ffn": _init_ffn(kf, D, d_ff),
            "ln1_g": jnp.ones((D,), jnp.float32), "ln1_b": jnp.zeros((D,), jnp.float32),
            "ln2_g": jnp.ones((D,), jnp.float32), "ln2_b": jnp.zeros((D,), jnp.float32),
        })
    for _ in range(n_layers):
        ks, kc, kf, key = jax.random.split(key, 4)
        params["dec_layers"].append({
            "self_attn": _init_attn(ks, D), "cross_attn": _init_attn(kc, D),
            "ffn": _init_ffn(kf, D, d_ff),
            "ln1_g": jnp.ones((D,), jnp.float32), "ln1_b": jnp.zeros((D,), jnp.float32),
            "ln2_g": jnp.ones((D,), jnp.float32), "ln2_b": jnp.zeros((D,), jnp.float32),
            "ln3_g": jnp.ones((D,), jnp.float32), "ln3_b": jnp.zeros((D,), jnp.float32),
        })
    return params


def pack_params(params, n_heads):
    """Stack per-layer weights, fuse QKV / KV, zero-pad the model dim to 128 lanes
    (per-head scattered so head slices are 64-lane aligned) and cast MXU weights to bf16."""
    enc, dec = params["enc_layers"], params["dec_layers"]
    D = enc[0]["attn"]["wq"].shape[0]
    d_ff = enc[0]["ffn"]["w1"].shape[1]
    H = n_heads
    dk = D // H
    Dp = max(_round_up(D, 128), 128)
    dkp = Dp // H
    Dffp = max(_round_up(d_ff, 128), 128)
    bf = lambda x: x.astype(jnp.bfloat16)

    def pad2(w, r, c):
        return jnp.zeros((r, c), w.dtype).at[:w.shape[0], :w.shape[1]].set(w)

    def pad1(v, n):
        return jnp.zeros((n,), v.dtype).at[:v.shape[0]].set(v)

    def head_cols(w):
        # (D, D) producing head-split outputs: scatter head h's dk output cols to
        # lanes [h*dkp, h*dkp+dk); zero-pad input rows to Dp.
        out = jnp.zeros((Dp, Dp), w.dtype)
        for h in range(H):
            out = out.at[:D, h * dkp:h * dkp + dk].set(w[:, h * dk:(h + 1) * dk])
        return out

    def head_bias(b):
        out = jnp.zeros((Dp,), b.dtype)
        for h in range(H):
            out = out.at[h * dkp:h * dkp + dk].set(b[h * dk:(h + 1) * dk])
        return out

    def head_rows(w):
        # (D, D) consuming head-merged inputs (wo): scatter head h's dk input rows.
        out = jnp.zeros((Dp, Dp), w.dtype)
        for h in range(H):
            out = out.at[h * dkp:h * dkp + dk, :D].set(w[h * dk:(h + 1) * dk, :])
        return out

    def qkv_w(a):
        return jnp.concatenate([head_cols(a["wq"]), head_cols(a["wk"]), head_cols(a["wv"])], axis=1)

    def qkv_b(a):
        return jnp.concatenate([head_bias(a["bq"]), head_bias(a["bk"]), head_bias(a["bv"])])[None, :]

    def stack(layers, fn):
        return jnp.stack([fn(lp) for lp in layers], axis=0)

    return {
        "enc_emb": params["enc_emb"], "dec_emb": params["dec_emb"],
        # encoder
        "e_wqkv": bf(stack(enc, lambda p: qkv_w(p["attn"]))),
        "e_bqkv": stack(enc, lambda p: qkv_b(p["attn"])),
        "e_wo": bf(stack(enc, lambda p: head_rows(p["attn"]["wo"]))),
        "e_bo": stack(enc, lambda p: pad1(p["attn"]["bo"], Dp)[None, :]),
        "e_w1": bf(stack(enc, lambda p: pad2(p["ffn"]["w1"], Dp, Dffp))),
        "e_b1": stack(enc, lambda p: pad1(p["ffn"]["b1"], Dffp)[None, :]),
        "e_w2": bf(stack(enc, lambda p: pad2(p["ffn"]["w2"], Dffp, Dp))),
        "e_b2": stack(enc, lambda p: pad1(p["ffn"]["b2"], Dp)[None, :]),
        "e_ln": stack(enc, lambda p: jnp.stack([pad1(p["ln1_g"], Dp), pad1(p["ln1_b"], Dp),
                                                pad1(p["ln2_g"], Dp), pad1(p["ln2_b"], Dp)])),
        # decoder self-attention
        "d_wqkv": bf(stack(dec, lambda p: qkv_w(p["self_attn"]))),
        "d_bqkv": stack(dec, lambda p: qkv_b(p["self_attn"])),
        "d_wo": bf(stack(dec, lambda p: head_rows(p["self_attn"]["wo"]))),
        "d_bo": stack(dec, lambda p: pad1(p["self_attn"]["bo"], Dp)[None, :]),
        # decoder cross-attention
        "d_cwq": bf(stack(dec, lambda p: head_cols(p["cross_attn"]["wq"]))),
        "d_cbq": stack(dec, lambda p: head_bias(p["cross_attn"]["bq"])[None, :]),
        "d_cwkv": bf(stack(dec, lambda p: jnp.concatenate(
            [head_cols(p["cross_attn"]["wk"]), head_cols(p["cross_attn"]["wv"])], axis=1))),
        "d_cbkv": stack(dec, lambda p: jnp.concatenate(
            [head_bias(p["cross_attn"]["bk"]), head_bias(p["cross_attn"]["bv"])])[None, :]),
        "d_cwo": bf(stack(dec, lambda p: head_rows(p["cross_attn"]["wo"]))),
        "d_cbo": stack(dec, lambda p: pad1(p["cross_attn"]["bo"], Dp)[None, :]),
        # decoder FFN + LN
        "d_w1": bf(stack(dec, lambda p: pad2(p["ffn"]["w1"], Dp, Dffp))),
        "d_b1": stack(dec, lambda p: pad1(p["ffn"]["b1"], Dffp)[None, :]),
        "d_w2": bf(stack(dec, lambda p: pad2(p["ffn"]["w2"], Dffp, Dp))),
        "d_b2": stack(dec, lambda p: pad1(p["ffn"]["b2"], Dp)[None, :]),
        "d_ln": stack(dec, lambda p: jnp.stack([pad1(p["ln1_g"], Dp), pad1(p["ln1_b"], Dp),
                                                pad1(p["ln2_g"], Dp), pad1(p["ln2_b"], Dp),
                                                pad1(p["ln3_g"], Dp), pad1(p["ln3_b"], Dp)])),
    }


# ----------------------------- pure-JAX reference (f32, unpadded) -----------------------------

def reference_forward(params, enc_tokens, dec_tokens, pe_enc, pe_dec, causal_add, n_heads):
    enc_layers, dec_layers = params["enc_layers"], params["dec_layers"]
    D = enc_layers[0]["attn"]["wq"].shape[0]
    B, Se, _ = enc_tokens.shape
    Sd = dec_tokens.shape[1]
    H = n_heads
    dk = D // H

    def mha(q, k, v, mask):
        Sq, Sk = q.shape[1], k.shape[1]
        qh = q.reshape(B, Sq, H, dk).transpose(0, 2, 1, 3)
        kh = k.reshape(B, Sk, H, dk).transpose(0, 2, 1, 3)
        vh = v.reshape(B, Sk, H, dk).transpose(0, 2, 1, 3)
        s = jnp.einsum('bhqd,bhkd->bhqk', qh, kh) / math.sqrt(dk)
        if mask is not None:
            s = s + mask
        p = jax.nn.softmax(s, axis=-1)
        o = jnp.einsum('bhqk,bhkd->bhqd', p, vh)
        return o.transpose(0, 2, 1, 3).reshape(B, Sq, D)

    def attn(x_q, x_kv, a, mask):
        q = x_q @ a["wq"] + a["bq"]
        k = x_kv @ a["wk"] + a["bk"]
        v = x_kv @ a["wv"] + a["bv"]
        return mha(q, k, v, mask) @ a["wo"] + a["bo"]

    def ln(x, g, b):
        mu = jnp.mean(x, -1, keepdims=True)
        var = jnp.mean((x - mu) ** 2, -1, keepdims=True)
        return (x - mu) * jax.lax.rsqrt(var + 1e-5) * g + b

    x = jnp.take(params["enc_emb"], enc_tokens, axis=0).reshape(B, Se, D) + pe_enc[None]
    y = jnp.take(params["dec_emb"], dec_tokens, axis=0).reshape(B, Sd, D) + pe_dec[None]

    for lp in enc_layers:
        x = ln(x + attn(x, x, lp["attn"], None), lp["ln1_g"], lp["ln1_b"])
        h = jnp.maximum(x @ lp["ffn"]["w1"] + lp["ffn"]["b1"], 0.0)
        x = ln(x + h @ lp["ffn"]["w2"] + lp["ffn"]["b2"], lp["ln2_g"], lp["ln2_b"])
    for lp in dec_layers:
        y = ln(y + attn(y, y, lp["self_attn"], causal_add), lp["ln1_g"], lp["ln1_b"])
        y = ln(y + attn(y, x, lp["cross_attn"], None), lp["ln2_g"], lp["ln2_b"])
        h = jnp.maximum(y @ lp["ffn"]["w1"] + lp["ffn"]["b1"], 0.0)
        y = ln(y + h @ lp["ffn"]["w2"] + lp["ffn"]["b2"], lp["ln3_g"], lp["ln3_b"])
    return x, y


# ----------------------------- main -----------------------------

if __name__ == "__main__":
    vocab_size = 16
    src_input_size = 4
    pred_len = 4            # stored by the torch module; not used in forward
    d_model = 8
    n_heads = 2
    n_layers = 2
    seed = 0

    batch = 2
    seq = 8                 # encoder and decoder sequence lengths
    D = d_model * src_input_size

    params = init_params(seed, vocab_size, src_input_size, d_model, n_layers)
    packed = pack_params(params, n_heads)

    # constants hoisted out of the traced forward
    pe_enc = positional_encoding(seq, D)
    pe_dec = positional_encoding(seq, D)
    causal_add = causal_additive_mask(seq)

    key = jax.random.PRNGKey(0)
    k1, k2 = jax.random.split(key)
    enc_tokens = jax.random.randint(k1, (batch, seq, src_input_size), 0, vocab_size, dtype=jnp.int32)
    dec_tokens = jax.random.randint(k2, (batch, seq, src_input_size), 0, vocab_size, dtype=jnp.int32)

    fwd = jax.jit(functools.partial(transformer_forward, n_heads=n_heads, d_real=D))
    enc_out, dec_out = fwd(packed, enc_tokens, dec_tokens, pe_enc, pe_dec, causal_add)
    jax.block_until_ready((enc_out, dec_out))

    assert enc_out.shape == (batch, seq, D)
    assert dec_out.shape == (batch, seq, D)
    assert bool(jnp.all(jnp.isfinite(enc_out))) and bool(jnp.all(jnp.isfinite(dec_out)))

    # numerical sanity check against the unpadded pure-JAX f32 reference
    enc_ref, dec_ref = reference_forward(params, enc_tokens, dec_tokens,
                                         pe_enc, pe_dec, causal_add, n_heads)
    assert float(jnp.max(jnp.abs(enc_out - enc_ref))) < 0.1
    assert float(jnp.max(jnp.abs(dec_out - dec_ref))) < 0.1

    print("KERNEL_OK")
</pallas_src>

<mosaic_0001>
module attributes {stable_mosaic.version = 11 : i64} {
  func.func @_transformer_kernel(%arg0: memref<16x128xf32, #tpu.memory_space<vmem>>, %arg1: memref<16x128xf32, #tpu.memory_space<vmem>>, %arg2: memref<8x8xf32, #tpu.memory_space<vmem>>, %arg3: memref<2x128x384xbf16, #tpu.memory_space<vmem>>, %arg4: memref<2x1x384xf32, #tpu.memory_space<vmem>>, %arg5: memref<2x128x128xbf16, #tpu.memory_space<vmem>>, %arg6: memref<2x1x128xf32, #tpu.memory_space<vmem>>, %arg7: memref<2x128x128xbf16, #tpu.memory_space<vmem>>, %arg8: memref<2x1x128xf32, #tpu.memory_space<vmem>>, %arg9: memref<2x128x128xbf16, #tpu.memory_space<vmem>>, %arg10: memref<2x1x128xf32, #tpu.memory_space<vmem>>, %arg11: memref<2x4x128xf32, #tpu.memory_space<vmem>>, %arg12: memref<2x128x384xbf16, #tpu.memory_space<vmem>>, %arg13: memref<2x1x384xf32, #tpu.memory_space<vmem>>, %arg14: memref<2x128x128xbf16, #tpu.memory_space<vmem>>, %arg15: memref<2x1x128xf32, #tpu.memory_space<vmem>>, %arg16: memref<2x128x128xbf16, #tpu.memory_space<vmem>>, %arg17: memref<2x1x128xf32, #tpu.memory_space<vmem>>, %arg18: memref<2x128x256xbf16, #tpu.memory_space<vmem>>, %arg19: memref<2x1x256xf32, #tpu.memory_space<vmem>>, %arg20: memref<2x128x128xbf16, #tpu.memory_space<vmem>>, %arg21: memref<2x1x128xf32, #tpu.memory_space<vmem>>, %arg22: memref<2x128x128xbf16, #tpu.memory_space<vmem>>, %arg23: memref<2x1x128xf32, #tpu.memory_space<vmem>>, %arg24: memref<2x128x128xbf16, #tpu.memory_space<vmem>>, %arg25: memref<2x1x128xf32, #tpu.memory_space<vmem>>, %arg26: memref<2x6x128xf32, #tpu.memory_space<vmem>>, %arg27: memref<16x128xf32, #tpu.memory_space<vmem>>, %arg28: memref<16x128xf32, #tpu.memory_space<vmem>>) attributes {dimension_semantics = [], scalar_prefetch = 0 : i64, scratch_operands = 0 : i64, tpu.core_type = #tpu.core_type<tc>} {
    %c0 = arith.constant 0 : index
    %c0_0 = arith.constant 0 : index
    %0 = vector.load %arg2[%c0, %c0_0] : memref<8x8xf32, #tpu.memory_space<vmem>>, vector<8x8xf32>
    %1 = tpu.iota {dimensions = array<i32: 1>} : vector<1x128xi32>
    %c32_i32 = arith.constant 32 : i32
    %2 = vector.broadcast %c32_i32 : i32 to vector<1x128xi32>
    %3 = arith.cmpi slt, %1, %2 : vector<1x128xi32>
    %4 = arith.extui %3 : vector<1x128xi1> to vector<1x128xi32>
    %5 = arith.sitofp %4 : vector<1x128xi32> to vector<1x128xf32>
    %c0_1 = arith.constant 0 : index
    %c0_2 = arith.constant 0 : index
    %6 = vector.load %arg0[%c0_1, %c0_2] : memref<16x128xf32, #tpu.memory_space<vmem>>, vector<16x128xf32>
    %c0_3 = arith.constant 0 : index
    %c0_4 = arith.constant 0 : index
    %c0_5 = arith.constant 0 : index
    %7 = vector.load %arg11[%c0_3, %c0_4, %c0_5] : memref<2x4x128xf32, #tpu.memory_space<vmem>>, vector<1x4x128xf32>
    %8 = vector.shape_cast %7 : vector<1x4x128xf32> to vector<4x128xf32>
    %c0_6 = arith.constant 0 : index
    %c0_7 = arith.constant 0 : index
    %c0_8 = arith.constant 0 : index
    %9 = vector.load %arg3[%c0_6, %c0_7, %c0_8] : memref<2x128x384xbf16, #tpu.memory_space<vmem>>, vector<1x128x384xbf16>
    %10 = vector.shape_cast %9 : vector<1x128x384xbf16> to vector<128x384xbf16>
    %11 = arith.truncf %6 : vector<16x128xf32> to vector<16x128xbf16>
    %cst = arith.constant dense<0.000000e+00> : vector<16x384xf32>
    %12 = tpu.matmul %11, %10, %cst {dimension_numbers = #tpu.dot_dimension_numbers<[1], [0], [0], [1], [0, 0, 1, 1], [], []>} : vector<16x128xbf16>, vector<128x384xbf16>, vector<16x384xf32> -> vector<16x384xf32>
    %c0_9 = arith.constant 0 : index
    %c0_10 = arith.constant 0 : index
    %c0_11 = arith.constant 0 : index
    %13 = vector.load %arg4[%c0_9, %c0_10, %c0_11] : memref<2x1x384xf32, #tpu.memory_space<vmem>>, vector<1x1x384xf32>
    %14 = vector.shape_cast %13 : vector<1x1x384xf32> to vector<1x384xf32>
    %15 = vector.broadcast %14 : vector<1x384xf32> to vector<16x384xf32>
    %16 = arith.addf %12, %15 : vector<16x384xf32>
    %17 = arith.truncf %16 : vector<16x384xf32> to vector<16x384xbf16>
    %18 = vector.extract_strided_slice %17 {offsets = [0, 0], sizes = [16, 128], strides = [1, 1]} : vector<16x384xbf16> to vector<16x128xbf16>
    %19 = vector.extract_strided_slice %17 {offsets = [0, 128], sizes = [16, 128], strides = [1, 1]} : vector<16x384xbf16> to vector<16x128xbf16>
    %20 = vector.extract_strided_slice %17 {offsets = [0, 256], sizes = [16, 128], strides = [1, 1]} : vector<16x384xbf16> to vector<16x128xbf16>
    %21 = vector.extract_strided_slice %18 {offsets = [0, 0], sizes = [16, 64], strides = [1, 1]} : vector<16x128xbf16> to vector<16x64xbf16>
    %22 = vector.shape_cast %21 : vector<16x64xbf16> to vector<2x8x64xbf16>
    %23 = vector.extract_strided_slice %18 {offsets = [0, 64], sizes = [16, 64], strides = [1, 1]} : vector<16x128xbf16> to vector<16x64xbf16>
    %24 = vector.shape_cast %23 : vector<16x64xbf16> to vector<2x8x64xbf16>
    %25 = tpu.concatenate %22, %24 in 0 : vector<2x8x64xbf16>, vector<2x8x64xbf16> -> vector<4x8x64xbf16>
    %26 = vector.extract_strided_slice %19 {offsets = [0, 0], sizes = [16, 64], strides = [1, 1]} : vector<16x128xbf16> to vector<16x64xbf16>
    %27 = vector.shape_cast %26 : vector<16x64xbf16> to vector<2x8x64xbf16>
    %28 = vector.extract_strided_slice %19 {offsets = [0, 64], sizes = [16, 64], strides = [1, 1]} : vector<16x128xbf16> to vector<16x64xbf16>
    %29 = vector.shape_cast %28 : vector<16x64xbf16> to vector<2x8x64xbf16>
    %30 = tpu.concatenate %27, %29 in 0 : vector<2x8x64xbf16>, vector<2x8x64xbf16> -> vector<4x8x64xbf16>
    %31 = vector.extract_strided_slice %20 {offsets = [0, 0], sizes = [16, 64], strides = [1, 1]} : vector<16x128xbf16> to vector<16x64xbf16>
    %32 = vector.shape_cast %31 : vector<16x64xbf16> to vector<2x8x64xbf16>
    %33 = vector.extract_strided_slice %20 {offsets = [0, 64], sizes = [16, 64], strides = [1, 1]} : vector<16x128xbf16> to vector<16x64xbf16>
    %34 = vector.shape_cast %33 : vector<16x64xbf16> to vector<2x8x64xbf16>
    %35 = tpu.concatenate %32, %34 in 0 : vector<2x8x64xbf16>, vector<2x8x64xbf16> -> vector<4x8x64xbf16>
    "tpu.trace_start"() <{level = 10 : i32, message = "bqd,bkd->bqk"}> : () -> ()
    %cst_12 = arith.constant dense<0.000000e+00> : vector<4x8x8xf32>
    %36 = tpu.matmul %25, %30, %cst_12 {dimension_numbers = #tpu.dot_dimension_numbers<[2], [2], [1], [1], [0, 0, 0, 1, 1, 1], [0], [0]>} : vector<4x8x64xbf16>, vector<4x8x64xbf16>, vector<4x8x8xf32> -> vector<4x8x8xf32>
    "tpu.trace_stop"() : () -> ()
    %cst_13 = arith.constant 2.500000e-01 : f32
    %37 = vector.broadcast %cst_13 : f32 to vector<4x8x8xf32>
    %38 = arith.mulf %36, %37 : vector<4x8x8xf32>
    %cst_14 = arith.constant dense<0xFF800000> : vector<4x8xf32>
    %39 = vector.multi_reduction <maximumf>, %38, %cst_14 [2] : vector<4x8x8xf32> to vector<4x8xf32>
    %40 = vector.shape_cast %39 : vector<4x8xf32> to vector<4x8x1xf32>
    %41 = vector.broadcast %40 : vector<4x8x1xf32> to vector<4x8x8xf32>
    %42 = arith.subf %38, %41 : vector<4x8x8xf32>
    %43 = math.exp %42 : vector<4x8x8xf32>
    %cst_15 = arith.constant dense<0.000000e+00> : vector<4x8xf32>
    %44 = vector.multi_reduction <add>, %43, %cst_15 [2] : vector<4x8x8xf32> to vector<4x8xf32>
    %45 = vector.shape_cast %44 : vector<4x8xf32> to vector<4x8x1xf32>
    %46 = tpu.reciprocal %45 {approx = true} : vector<4x8x1xf32> -> vector<4x8x1xf32>
    %47 = vector.broadcast %46 : vector<4x8x1xf32> to vector<4x8x8xf32>
    %48 = arith.mulf %43, %47 : vector<4x8x8xf32>
    %49 = arith.truncf %48 : vector<4x8x8xf32> to vector<4x8x8xbf16>
    "tpu.trace_start"() <{level = 10 : i32, message = "bqk,bkd->bqd"}> : () -> ()
    %cst_16 = arith.constant dense<0.000000e+00> : vector<4x8x64xf32>
    %50 = tpu.matmul %49, %35, %cst_16 {dimension_numbers = #tpu.dot_dimension_numbers<[2], [1], [1], [2], [0, 0, 0, 1, 1, 2], [0], [0]>} : vector<4x8x8xbf16>, vector<4x8x64xbf16>, vector<4x8x64xf32> -> vector<4x8x64xf32>
    "tpu.trace_stop"() : () -> ()
    %51 = vector.shape_cast %50 : vector<4x8x64xf32> to vector<2x16x64xf32>
    %52 = vector.extract_strided_slice %51 {offsets = [0, 0, 0], sizes = [1, 16, 64], strides = [1, 1, 1]} : vector<2x16x64xf32> to vector<1x16x64xf32>
    %53 = vector.shape_cast %52 : vector<1x16x64xf32> to vector<16x64xf32>
    %54 = vector.extract_strided_slice %51 {offsets = [1, 0, 0], sizes = [1, 16, 64], strides = [1, 1, 1]} : vector<2x16x64xf32> to vector<1x16x64xf32>
    %55 = vector.shape_cast %54 : vector<1x16x64xf32> to vector<16x64xf32>
    %56 = tpu.concatenate %53, %55 in 1 : vector<16x64xf32>, vector<16x64xf32> -> vector<16x128xf32>
    %c0_17 = arith.constant 0 : index
    %c0_18 = arith.constant 0 : index
    %c0_19 = arith.constant 0 : index
    %57 = vector.load %arg5[%c0_17, %c0_18, %c0_19] : memref<2x128x128xbf16, #tpu.memory_space<vmem>>, vector<1x128x128xbf16>
    %58 = vector.shape_cast %57 : vector<1x128x128xbf16> to vector<128x128xbf16>
    %59 = arith.truncf %56 : vector<16x128xf32> to vector<16x128xbf16>
    %cst_20 = arith.constant dense<0.000000e+00> : vector<16x128xf32>
    %60 = tpu.matmul %59, %58, %cst_20 {dimension_numbers = #tpu.dot_dimension_numbers<[1], [0], [0], [1], [0, 0, 1, 1], [], []>} : vector<16x128xbf16>, vector<128x128xbf16>, vector<16x128xf32> -> vector<16x128xf32>
    %c0_21 = arith.constant 0 : index
    %c0_22 = arith.constant 0 : index
    %c0_23 = arith.constant 0 : index
    %61 = vector.load %arg6[%c0_21, %c0_22, %c0_23] : memref<2x1x128xf32, #tpu.memory_space<vmem>>, vector<1x1x128xf32>
    %62 = vector.shape_cast %61 : vector<1x1x128xf32> to vector<1x128xf32>
    %63 = vector.broadcast %62 : vector<1x128xf32> to vector<16x128xf32>
    %64 = arith.addf %60, %63 : vector<16x128xf32>
    %65 = arith.addf %6, %64 : vector<16x128xf32>
    %66 = vector.extract_strided_slice %8 {offsets = [0, 0], sizes = [1, 128], strides = [1, 1]} : vector<4x128xf32> to vector<1x128xf32>
    %67 = vector.extract_strided_slice %8 {offsets = [1, 0], sizes = [1, 128], strides = [1, 1]} : vector<4x128xf32> to vector<1x128xf32>
    %cst_24 = arith.constant dense<0.000000e+00> : vector<16xf32>
    %68 = vector.multi_reduction <add>, %65, %cst_24 [1] : vector<16x128xf32> to vector<16xf32>
    %69 = vector.shape_cast %68 : vector<16xf32> to vector<16x1xf32>
    %cst_25 = arith.constant 3.125000e-02 : f32
    %70 = vector.broadcast %cst_25 : f32 to vector<16x1xf32>
    %71 = arith.mulf %69, %70 : vector<16x1xf32>
    %72 = vector.broadcast %71 : vector<16x1xf32> to vector<16x128xf32>
    %73 = arith.subf %65, %72 : vector<16x128xf32>
    %74 = vector.broadcast %5 : vector<1x128xf32> to vector<16x128xf32>
    %75 = arith.mulf %73, %74 : vector<16x128xf32>
    %76 = arith.mulf %75, %75 : vector<16x128xf32>
    %cst_26 = arith.constant dense<0.000000e+00> : vector<16xf32>
    %77 = vector.multi_reduction <add>, %76, %cst_26 [1] : vector<16x128xf32> to vector<16xf32>
    %78 = vector.shape_cast %77 : vector<16xf32> to vector<16x1xf32>
    %cst_27 = arith.constant 3.125000e-02 : f32
    %79 = vector.broadcast %cst_27 : f32 to vector<16x1xf32>
    %80 = arith.mulf %78, %79 : vector<16x1xf32>
    %cst_28 = arith.constant 9.99999974E-6 : f32
    %81 = vector.broadcast %cst_28 : f32 to vector<16x1xf32>
    %82 = arith.addf %80, %81 : vector<16x1xf32>
    %83 = math.rsqrt %82 : vector<16x1xf32>
    %84 = vector.broadcast %83 : vector<16x1xf32> to vector<16x128xf32>
    %85 = arith.mulf %75, %84 : vector<16x128xf32>
    %86 = vector.broadcast %66 : vector<1x128xf32> to vector<16x128xf32>
    %87 = arith.mulf %85, %86 : vector<16x128xf32>
    %88 = vector.broadcast %67 : vector<1x128xf32> to vector<16x128xf32>
    %89 = arith.addf %87, %88 : vector<16x128xf32>
    %c0_29 = arith.constant 0 : index
    %c0_30 = arith.constant 0 : index
    %c0_31 = arith.constant 0 : index
    %90 = vector.load %arg7[%c0_29, %c0_30, %c0_31] : memref<2x128x128xbf16, #tpu.memory_space<vmem>>, vector<1x128x128xbf16>
    %91 = vector.shape_cast %90 : vector<1x128x128xbf16> to vector<128x128xbf16>
    %92 = arith.truncf %89 : vector<16x128xf32> to vector<16x128xbf16>
    %cst_32 = arith.constant dense<0.000000e+00> : vector<16x128xf32>
    %93 = tpu.matmul %92, %91, %cst_32 {dimension_numbers = #tpu.dot_dimension_numbers<[1], [0], [0], [1], [0, 0, 1, 1], [], []>} : vector<16x128xbf16>, vector<128x128xbf16>, vector<16x128xf32> -> vector<16x128xf32>
    %c0_33 = arith.constant 0 : index
    %c0_34 = arith.constant 0 : index
    %c0_35 = arith.constant 0 : index
    %94 = vector.load %arg8[%c0_33, %c0_34, %c0_35] : memref<2x1x128xf32, #tpu.memory_space<vmem>>, vector<1x1x128xf32>
    %95 = vector.shape_cast %94 : vector<1x1x128xf32> to vector<1x128xf32>
    %96 = vector.broadcast %95 : vector<1x128xf32> to vector<16x128xf32>
    %97 = arith.addf %93, %96 : vector<16x128xf32>
    %cst_36 = arith.constant 0.000000e+00 : f32
    %98 = vector.broadcast %cst_36 : f32 to vector<16x128xf32>
    %99 = arith.maximumf %97, %98 : vector<16x128xf32>
    %c0_37 = arith.constant 0 : index
    %c0_38 = arith.constant 0 : index
    %c0_39 = arith.constant 0 : index
    %100 = vector.load %arg9[%c0_37, %c0_38, %c0_39] : memref<2x128x128xbf16, #tpu.memory_space<vmem>>, vector<1x128x128xbf16>
    %101 = vector.shape_cast %100 : vector<1x128x128xbf16> to vector<128x128xbf16>
    %102 = arith.truncf %99 : vector<16x128xf32> to vector<16x128xbf16>
    %cst_40 = arith.constant dense<0.000000e+00> : vector<16x128xf32>
    %103 = tpu.matmul %102, %101, %cst_40 {dimension_numbers = #tpu.dot_dimension_numbers<[1], [0], [0], [1], [0, 0, 1, 1], [], []>} : vector<16x128xbf16>, vector<128x128xbf16>, vector<16x128xf32> -> vector<16x128xf32>
    %c0_41 = arith.constant 0 : index
    %c0_42 = arith.constant 0 : index
    %c0_43 = arith.constant 0 : index
    %104 = vector.load %arg10[%c0_41, %c0_42, %c0_43] : memref<2x1x128xf32, #tpu.memory_space<vmem>>, vector<1x1x128xf32>
    %105 = vector.shape_cast %104 : vector<1x1x128xf32> to vector<1x128xf32>
    %106 = vector.broadcast %105 : vector<1x128xf32> to vector<16x128xf32>
    %107 = arith.addf %103, %106 : vector<16x128xf32>
    %108 = arith.addf %89, %107 : vector<16x128xf32>
    %109 = vector.extract_strided_slice %8 {offsets = [2, 0], sizes = [1, 128], strides = [1, 1]} : vector<4x128xf32> to vector<1x128xf32>
    %110 = vector.extract_strided_slice %8 {offsets = [3, 0], sizes = [1, 128], strides = [1, 1]} : vector<4x128xf32> to vector<1x128xf32>
    %cst_44 = arith.constant dense<0.000000e+00> : vector<16xf32>
    %111 = vector.multi_reduction <add>, %108, %cst_44 [1] : vector<16x128xf32> to vector<16xf32>
    %112 = vector.shape_cast %111 : vector<16xf32> to vector<16x1xf32>
    %cst_45 = arith.constant 3.125000e-02 : f32
    %113 = vector.broadcast %cst_45 : f32 to vector<16x1xf32>
    %114 = arith.mulf %112, %113 : vector<16x1xf32>
    %115 = vector.broadcast %114 : vector<16x1xf32> to vector<16x128xf32>
    %116 = arith.subf %108, %115 : vector<16x128xf32>
    %117 = vector.broadcast %5 : vector<1x128xf32> to vector<16x128xf32>
    %118 = arith.mulf %116, %117 : vector<16x128xf32>
    %119 = arith.mulf %118, %118 : vector<16x128xf32>
    %cst_46 = arith.constant dense<0.000000e+00> : vector<16xf32>
    %120 = vector.multi_reduction <add>, %119, %cst_46 [1] : vector<16x128xf32> to vector<16xf32>
    %121 = vector.shape_cast %120 : vector<16xf32> to vector<16x1xf32>
    %cst_47 = arith.constant 3.125000e-02 : f32
    %122 = vector.broadcast %cst_47 : f32 to vector<16x1xf32>
    %123 = arith.mulf %121, %122 : vector<16x1xf32>
    %cst_48 = arith.constant 9.99999974E-6 : f32
    %124 = vector.broadcast %cst_48 : f32 to vector<16x1xf32>
    %125 = arith.addf %123, %124 : vector<16x1xf32>
    %126 = math.rsqrt %125 : vector<16x1xf32>
    %127 = vector.broadcast %126 : vector<16x1xf32> to vector<16x128xf32>
    %128 = arith.mulf %118, %127 : vector<16x128xf32>
    %129 = vector.broadcast %109 : vector<1x128xf32> to vector<16x128xf32>
    %130 = arith.mulf %128, %129 : vector<16x128xf32>
    %131 = vector.broadcast %110 : vector<1x128xf32> to vector<16x128xf32>
    %132 = arith.addf %130, %131 : vector<16x128xf32>
    %c1 = arith.constant 1 : index
    %c0_49 = arith.constant 0 : index
    %c0_50 = arith.constant 0 : index
    %133 = vector.load %arg11[%c1, %c0_49, %c0_50] : memref<2x4x128xf32, #tpu.memory_space<vmem>>, vector<1x4x128xf32>
    %134 = vector.shape_cast %133 : vector<1x4x128xf32> to vector<4x128xf32>
    %c1_51 = arith.constant 1 : index
    %c0_52 = arith.constant 0 : index
    %c0_53 = arith.constant 0 : index
    %135 = vector.load %arg3[%c1_51, %c0_52, %c0_53] : memref<2x128x384xbf16, #tpu.memory_space<vmem>>, vector<1x128x384xbf16>
    %136 = vector.shape_cast %135 : vector<1x128x384xbf16> to vector<128x384xbf16>
    %137 = arith.truncf %132 : vector<16x128xf32> to vector<16x128xbf16>
    %cst_54 = arith.constant dense<0.000000e+00> : vector<16x384xf32>
    %138 = tpu.matmul %137, %136, %cst_54 {dimension_numbers = #tpu.dot_dimension_numbers<[1], [0], [0], [1], [0, 0, 1, 1], [], []>} : vector<16x128xbf16>, vector<128x384xbf16>, vector<16x384xf32> -> vector<16x384xf32>
    %c1_55 = arith.constant 1 : index
    %c0_56 = arith.constant 0 : index
    %c0_57 = arith.constant 0 : index
    %139 = vector.load %arg4[%c1_55, %c0_56, %c0_57] : memref<2x1x384xf32, #tpu.memory_space<vmem>>, vector<1x1x384xf32>
    %140 = vector.shape_cast %139 : vector<1x1x384xf32> to vector<1x384xf32>
    %141 = vector.broadcast %140 : vector<1x384xf32> to vector<16x384xf32>
    %142 = arith.addf %138, %141 : vector<16x384xf32>
    %143 = arith.truncf %142 : vector<16x384xf32> to vector<16x384xbf16>
    %144 = vector.extract_strided_slice %143 {offsets = [0, 0], sizes = [16, 128], strides = [1, 1]} : vector<16x384xbf16> to vector<16x128xbf16>
    %145 = vector.extract_strided_slice %143 {offsets = [0, 128], sizes = [16, 128], strides = [1, 1]} : vector<16x384xbf16> to vector<16x128xbf16>
    %146 = vector.extract_strided_slice %143 {offsets = [0, 256], sizes = [16, 128], strides = [1, 1]} : vector<16x384xbf16> to vector<16x128xbf16>
    %147 = vector.extract_strided_slice %144 {offsets = [0, 0], sizes = [16, 64], strides = [1, 1]} : vector<16x128xbf16> to vector<16x64xbf16>
    %148 = vector.shape_cast %147 : vector<16x64xbf16> to vector<2x8x64xbf16>
    %149 = vector.extract_strided_slice %144 {offsets = [0, 64], sizes = [16, 64], strides = [1, 1]} : vector<16x128xbf16> to vector<16x64xbf16>
    %150 = vector.shape_cast %149 : vector<16x64xbf16> to vector<2x8x64xbf16>
    %151 = tpu.concatenate %148, %150 in 0 : vector<2x8x64xbf16>, vector<2x8x64xbf16> -> vector<4x8x64xbf16>
    %152 = vector.extract_strided_slice %145 {offsets = [0, 0], sizes = [16, 64], strides = [1, 1]} : vector<16x128xbf16> to vector<16x64xbf16>
    %153 = vector.shape_cast %152 : vector<16x64xbf16> to vector<2x8x64xbf16>
    %154 = vector.extract_strided_slice %145 {offsets = [0, 64], sizes = [16, 64], strides = [1, 1]} : vector<16x128xbf16> to vector<16x64xbf16>
    %155 = vector.shape_cast %154 : vector<16x64xbf16> to vector<2x8x64xbf16>
    %156 = tpu.concatenate %153, %155 in 0 : vector<2x8x64xbf16>, vector<2x8x64xbf16> -> vector<4x8x64xbf16>
    %157 = vector.extract_strided_slice %146 {offsets = [0, 0], sizes = [16, 64], strides = [1, 1]} : vector<16x128xbf16> to vector<16x64xbf16>
    %158 = vector.shape_cast %157 : vector<16x64xbf16> to vector<2x8x64xbf16>
    %159 = vector.extract_strided_slice %146 {offsets = [0, 64], sizes = [16, 64], strides = [1, 1]} : vector<16x128xbf16> to vector<16x64xbf16>
    %160 = vector.shape_cast %159 : vector<16x64xbf16> to vector<2x8x64xbf16>
    %161 = tpu.concatenate %158, %160 in 0 : vector<2x8x64xbf16>, vector<2x8x64xbf16> -> vector<4x8x64xbf16>
    "tpu.trace_start"() <{level = 10 : i32, message = "bqd,bkd->bqk"}> : () -> ()
    %cst_58 = arith.constant dense<0.000000e+00> : vector<4x8x8xf32>
    %162 = tpu.matmul %151, %156, %cst_58 {dimension_numbers = #tpu.dot_dimension_numbers<[2], [2], [1], [1], [0, 0, 0, 1, 1, 1], [0], [0]>} : vector<4x8x64xbf16>, vector<4x8x64xbf16>, vector<4x8x8xf32> -> vector<4x8x8xf32>
    "tpu.trace_stop"() : () -> ()
    %cst_59 = arith.constant 2.500000e-01 : f32
    %163 = vector.broadcast %cst_59 : f32 to vector<4x8x8xf32>
    %164 = arith.mulf %162, %163 : vector<4x8x8xf32>
    %cst_60 = arith.constant dense<0xFF800000> : vector<4x8xf32>
    %165 = vector.multi_reduction <maximumf>, %164, %cst_60 [2] : vector<4x8x8xf32> to vector<4x8xf32>
    %166 = vector.shape_cast %165 : vector<4x8xf32> to vector<4x8x1xf32>
    %167 = vector.broadcast %166 : vector<4x8x1xf32> to vector<4x8x8xf32>
    %168 = arith.subf %164, %167 : vector<4x8x8xf32>
    %169 = math.exp %168 : vector<4x8x8xf32>
    %cst_61 = arith.constant dense<0.000000e+00> : vector<4x8xf32>
    %170 = vector.multi_reduction <add>, %169, %cst_61 [2] : vector<4x8x8xf32> to vector<4x8xf32>
    %171 = vector.shape_cast %170 : vector<4x8xf32> to vector<4x8x1xf32>
    %172 = tpu.reciprocal %171 {approx = true} : vector<4x8x1xf32> -> vector<4x8x1xf32>
    %173 = vector.broadcast %172 : vector<4x8x1xf32> to vector<4x8x8xf32>
    %174 = arith.mulf %169, %173 : vector<4x8x8xf32>
    %175 = arith.truncf %174 : vector<4x8x8xf32> to vector<4x8x8xbf16>
    "tpu.trace_start"() <{level = 10 : i32, message = "bqk,bkd->bqd"}> : () -> ()
    %cst_62 = arith.constant dense<0.000000e+00> : vector<4x8x64xf32>
    %176 = tpu.matmul %175, %161, %cst_62 {dimension_numbers = #tpu.dot_dimension_numbers<[2], [1], [1], [2], [0, 0, 0, 1, 1, 2], [0], [0]>} : vector<4x8x8xbf16>, vector<4x8x64xbf16>, vector<4x8x64xf32> -> vector<4x8x64xf32>
    "tpu.trace_stop"() : () -> ()
    %177 = vector.shape_cast %176 : vector<4x8x64xf32> to vector<2x16x64xf32>
    %178 = vector.extract_strided_slice %177 {offsets = [0, 0, 0], sizes = [1, 16, 64], strides = [1, 1, 1]} : vector<2x16x64xf32> to vector<1x16x64xf32>
    %179 = vector.shape_cast %178 : vector<1x16x64xf32> to vector<16x64xf32>
    %180 = vector.extract_strided_slice %177 {offsets = [1, 0, 0], sizes = [1, 16, 64], strides = [1, 1, 1]} : vector<2x16x64xf32> to vector<1x16x64xf32>
    %181 = vector.shape_cast %180 : vector<1x16x64xf32> to vector<16x64xf32>
    %182 = tpu.concatenate %179, %181 in 1 : vector<16x64xf32>, vector<16x64xf32> -> vector<16x128xf32>
    %c1_63 = arith.constant 1 : index
    %c0_64 = arith.constant 0 : index
    %c0_65 = arith.constant 0 : index
    %183 = vector.load %arg5[%c1_63, %c0_64, %c0_65] : memref<2x128x128xbf16, #tpu.memory_space<vmem>>, vector<1x128x128xbf16>
    %184 = vector.shape_cast %183 : vector<1x128x128xbf16> to vector<128x128xbf16>
    %185 = arith.truncf %182 : vector<16x128xf32> to vector<16x128xbf16>
    %cst_66 = arith.constant dense<0.000000e+00> : vector<16x128xf32>
    %186 = tpu.matmul %185, %184, %cst_66 {dimension_numbers = #tpu.dot_dimension_numbers<[1], [0], [0], [1], [0, 0, 1, 1], [], []>} : vector<16x128xbf16>, vector<128x128xbf16>, vector<16x128xf32> -> vector<16x128xf32>
    %c1_67 = arith.constant 1 : index
    %c0_68 = arith.constant 0 : index
    %c0_69 = arith.constant 0 : index
    %187 = vector.load %arg6[%c1_67, %c0_68, %c0_69] : memref<2x1x128xf32, #tpu.memory_space<vmem>>, vector<1x1x128xf32>
    %188 = vector.shape_cast %187 : vector<1x1x128xf32> to vector<1x128xf32>
    %189 = vector.broadcast %188 : vector<1x128xf32> to vector<16x128xf32>
    %190 = arith.addf %186, %189 : vector<16x128xf32>
    %191 = arith.addf %132, %190 : vector<16x128xf32>
    %192 = vector.extract_strided_slice %134 {offsets = [0, 0], sizes = [1, 128], strides = [1, 1]} : vector<4x128xf32> to vector<1x128xf32>
    %193 = vector.extract_strided_slice %134 {offsets = [1, 0], sizes = [1, 128], strides = [1, 1]} : vector<4x128xf32> to vector<1x128xf32>
    %cst_70 = arith.constant dense<0.000000e+00> : vector<16xf32>
    %194 = vector.multi_reduction <add>, %191, %cst_70 [1] : vector<16x128xf32> to vector<16xf32>
    %195 = vector.shape_cast %194 : vector<16xf32> to vector<16x1xf32>
    %cst_71 = arith.constant 3.125000e-02 : f32
    %196 = vector.broadcast %cst_71 : f32 to vector<16x1xf32>
    %197 = arith.mulf %195, %196 : vector<16x1xf32>
    %198 = vector.broadcast %197 : vector<16x1xf32> to vector<16x128xf32>
    %199 = arith.subf %191, %198 : vector<16x128xf32>
    %200 = vector.broadcast %5 : vector<1x128xf32> to vector<16x128xf32>
    %201 = arith.mulf %199, %200 : vector<16x128xf32>
    %202 = arith.mulf %201, %201 : vector<16x128xf32>
    %cst_72 = arith.constant dense<0.000000e+00> : vector<16xf32>
    %203 = vector.multi_reduction <add>, %202, %cst_72 [1] : vector<16x128xf32> to vector<16xf32>
    %204 = vector.shape_cast %203 : vector<16xf32> to vector<16x1xf32>
    %cst_73 = arith.constant 3.125000e-02 : f32
    %205 = vector.broadcast %cst_73 : f32 to vector<16x1xf32>
    %206 = arith.mulf %204, %205 : vector<16x1xf32>
    %cst_74 = arith.constant 9.99999974E-6 : f32
    %207 = vector.broadcast %cst_74 : f32 to vector<16x1xf32>
    %208 = arith.addf %206, %207 : vector<16x1xf32>
    %209 = math.rsqrt %208 : vector<16x1xf32>
    %210 = vector.broadcast %209 : vector<16x1xf32> to vector<16x128xf32>
    %211 = arith.mulf %201, %210 : vector<16x128xf32>
    %212 = vector.broadcast %192 : vector<1x128xf32> to vector<16x128xf32>
    %213 = arith.mulf %211, %212 : vector<16x128xf32>
    %214 = vector.broadcast %193 : vector<1x128xf32> to vector<16x128xf32>
    %215 = arith.addf %213, %214 : vector<16x128xf32>
    %c1_75 = arith.constant 1 : index
    %c0_76 = arith.constant 0 : index
    %c0_77 = arith.constant 0 : index
    %216 = vector.load %arg7[%c1_75, %c0_76, %c0_77] : memref<2x128x128xbf16, #tpu.memory_space<vmem>>, vector<1x128x128xbf16>
    %217 = vector.shape_cast %216 : vector<1x128x128xbf16> to vector<128x128xbf16>
    %218 = arith.truncf %215 : vector<16x128xf32> to vector<16x128xbf16>
    %cst_78 = arith.constant dense<0.000000e+00> : vector<16x128xf32>
    %219 = tpu.matmul %218, %217, %cst_78 {dimension_numbers = #tpu.dot_dimension_numbers<[1], [0], [0], [1], [0, 0, 1, 1], [], []>} : vector<16x128xbf16>, vector<128x128xbf16>, vector<16x128xf32> -> vector<16x128xf32>
    %c1_79 = arith.constant 1 : index
    %c0_80 = arith.constant 0 : index
    %c0_81 = arith.constant 0 : index
    %220 = vector.load %arg8[%c1_79, %c0_80, %c0_81] : memref<2x1x128xf32, #tpu.memory_space<vmem>>, vector<1x1x128xf32>
    %221 = vector.shape_cast %220 : vector<1x1x128xf32> to vector<1x128xf32>
    %222 = vector.broadcast %221 : vector<1x128xf32> to vector<16x128xf32>
    %223 = arith.addf %219, %222 : vector<16x128xf32>
    %cst_82 = arith.constant 0.000000e+00 : f32
    %224 = vector.broadcast %cst_82 : f32 to vector<16x128xf32>
    %225 = arith.maximumf %223, %224 : vector<16x128xf32>
    %c1_83 = arith.constant 1 : index
    %c0_84 = arith.constant 0 : index
    %c0_85 = arith.constant 0 : index
    %226 = vector.load %arg9[%c1_83, %c0_84, %c0_85] : memref<2x128x128xbf16, #tpu.memory_space<vmem>>, vector<1x128x128xbf16>
    %227 = vector.shape_cast %226 : vector<1x128x128xbf16> to vector<128x128xbf16>
    %228 = arith.truncf %225 : vector<16x128xf32> to vector<16x128xbf16>
    %cst_86 = arith.constant dense<0.000000e+00> : vector<16x128xf32>
    %229 = tpu.matmul %228, %227, %cst_86 {dimension_numbers = #tpu.dot_dimension_numbers<[1], [0], [0], [1], [0, 0, 1, 1], [], []>} : vector<16x128xbf16>, vector<128x128xbf16>, vector<16x128xf32> -> vector<16x128xf32>
    %c1_87 = arith.constant 1 : index
    %c0_88 = arith.constant 0 : index
    %c0_89 = arith.constant 0 : index
    %230 = vector.load %arg10[%c1_87, %c0_88, %c0_89] : memref<2x1x128xf32, #tpu.memory_space<vmem>>, vector<1x1x128xf32>
    %231 = vector.shape_cast %230 : vector<1x1x128xf32> to vector<1x128xf32>
    %232 = vector.broadcast %231 : vector<1x128xf32> to vector<16x128xf32>
    %233 = arith.addf %229, %232 : vector<16x128xf32>
    %234 = arith.addf %215, %233 : vector<16x128xf32>
    %235 = vector.extract_strided_slice %134 {offsets = [2, 0], sizes = [1, 128], strides = [1, 1]} : vector<4x128xf32> to vector<1x128xf32>
    %236 = vector.extract_strided_slice %134 {offsets = [3, 0], sizes = [1, 128], strides = [1, 1]} : vector<4x128xf32> to vector<1x128xf32>
    %cst_90 = arith.constant dense<0.000000e+00> : vector<16xf32>
    %237 = vector.multi_reduction <add>, %234, %cst_90 [1] : vector<16x128xf32> to vector<16xf32>
    %238 = vector.shape_cast %237 : vector<16xf32> to vector<16x1xf32>
    %cst_91 = arith.constant 3.125000e-02 : f32
    %239 = vector.broadcast %cst_91 : f32 to vector<16x1xf32>
    %240 = arith.mulf %238, %239 : vector<16x1xf32>
    %241 = vector.broadcast %240 : vector<16x1xf32> to vector<16x128xf32>
    %242 = arith.subf %234, %241 : vector<16x128xf32>
    %243 = vector.broadcast %5 : vector<1x128xf32> to vector<16x128xf32>
    %244 = arith.mulf %242, %243 : vector<16x128xf32>
    %245 = arith.mulf %244, %244 : vector<16x128xf32>
    %cst_92 = arith.constant dense<0.000000e+00> : vector<16xf32>
    %246 = vector.multi_reduction <add>, %245, %cst_92 [1] : vector<16x128xf32> to vector<16xf32>
    %247 = vector.shape_cast %246 : vector<16xf32> to vector<16x1xf32>
    %cst_93 = arith.constant 3.125000e-02 : f32
    %248 = vector.broadcast %cst_93 : f32 to vector<16x1xf32>
    %249 = arith.mulf %247, %248 : vector<16x1xf32>
    %cst_94 = arith.constant 9.99999974E-6 : f32
    %250 = vector.broadcast %cst_94 : f32 to vector<16x1xf32>
    %251 = arith.addf %249, %250 : vector<16x1xf32>
    %252 = math.rsqrt %251 : vector<16x1xf32>
    %253 = vector.broadcast %252 : vector<16x1xf32> to vector<16x128xf32>
    %254 = arith.mulf %244, %253 : vector<16x128xf32>
    %255 = vector.broadcast %235 : vector<1x128xf32> to vector<16x128xf32>
    %256 = arith.mulf %254, %255 : vector<16x128xf32>
    %257 = vector.broadcast %236 : vector<1x128xf32> to vector<16x128xf32>
    %258 = arith.addf %256, %257 : vector<16x128xf32>
    %c0_95 = arith.constant 0 : index
    %c0_96 = arith.constant 0 : index
    %259 = vector.load %arg27[%c0_95, %c0_96] : memref<16x128xf32, #tpu.memory_space<vmem>>, vector<16x128xf32>
    tpu.vector_store %arg27[%c0_95, %c0_96], %258 {strides = array<i32>} : memref<16x128xf32, #tpu.memory_space<vmem>>, vector<16x128xf32>,
    %c0_97 = arith.constant 0 : index
    %c0_98 = arith.constant 0 : index
    %260 = vector.load %arg1[%c0_97, %c0_98] : memref<16x128xf32, #tpu.memory_space<vmem>>, vector<16x128xf32>
    %c0_99 = arith.constant 0 : index
    %c0_100 = arith.constant 0 : index
    %c0_101 = arith.constant 0 : index
    %261 = vector.load %arg26[%c0_99, %c0_100, %c0_101] : memref<2x6x128xf32, #tpu.memory_space<vmem>>, vector<1x6x128xf32>
    %262 = vector.shape_cast %261 : vector<1x6x128xf32> to vector<6x128xf32>
    %c0_102 = arith.constant 0 : index
    %c0_103 = arith.constant 0 : index
    %c0_104 = arith.constant 0 : index
    %263 = vector.load %arg12[%c0_102, %c0_103, %c0_104] : memref<2x128x384xbf16, #tpu.memory_space<vmem>>, vector<1x128x384xbf16>
    %264 = vector.shape_cast %263 : vector<1x128x384xbf16> to vector<128x384xbf16>
    %265 = arith.truncf %260 : vector<16x128xf32> to vector<16x128xbf16>
    %cst_105 = arith.constant dense<0.000000e+00> : vector<16x384xf32>
    %266 = tpu.matmul %265, %264, %cst_105 {dimension_numbers = #tpu.dot_dimension_numbers<[1], [0], [0], [1], [0, 0, 1, 1], [], []>} : vector<16x128xbf16>, vector<128x384xbf16>, vector<16x384xf32> -> vector<16x384xf32>
    %c0_106 = arith.constant 0 : index
    %c0_107 = arith.constant 0 : index
    %c0_108 = arith.constant 0 : index
    %267 = vector.load %arg13[%c0_106, %c0_107, %c0_108] : memref<2x1x384xf32, #tpu.memory_space<vmem>>, vector<1x1x384xf32>
    %268 = vector.shape_cast %267 : vector<1x1x384xf32> to vector<1x384xf32>
    %269 = vector.broadcast %268 : vector<1x384xf32> to vector<16x384xf32>
    %270 = arith.addf %266, %269 : vector<16x384xf32>
    %271 = arith.truncf %270 : vector<16x384xf32> to vector<16x384xbf16>
    %272 = vector.extract_strided_slice %271 {offsets = [0, 0], sizes = [16, 128], strides = [1, 1]} : vector<16x384xbf16> to vector<16x128xbf16>
    %273 = vector.extract_strided_slice %271 {offsets = [0, 128], sizes = [16, 128], strides = [1, 1]} : vector<16x384xbf16> to vector<16x128xbf16>
    %274 = vector.extract_strided_slice %271 {offsets = [0, 256], sizes = [16, 128], strides = [1, 1]} : vector<16x384xbf16> to vector<16x128xbf16>
    %275 = vector.extract_strided_slice %272 {offsets = [0, 0], sizes = [16, 64], strides = [1, 1]} : vector<16x128xbf16> to vector<16x64xbf16>
    %276 = vector.shape_cast %275 : vector<16x64xbf16> to vector<2x8x64xbf16>
    %277 = vector.extract_strided_slice %272 {offsets = [0, 64], sizes = [16, 64], strides = [1, 1]} : vector<16x128xbf16> to vector<16x64xbf16>
    %278 = vector.shape_cast %277 : vector<16x64xbf16> to vector<2x8x64xbf16>
    %279 = tpu.concatenate %276, %278 in 0 : vector<2x8x64xbf16>, vector<2x8x64xbf16> -> vector<4x8x64xbf16>
    %280 = vector.extract_strided_slice %273 {offsets = [0, 0], sizes = [16, 64], strides = [1, 1]} : vector<16x128xbf16> to vector<16x64xbf16>
    %281 = vector.shape_cast %280 : vector<16x64xbf16> to vector<2x8x64xbf16>
    %282 = vector.extract_strided_slice %273 {offsets = [0, 64], sizes = [16, 64], strides = [1, 1]} : vector<16x128xbf16> to vector<16x64xbf16>
    %283 = vector.shape_cast %282 : vector<16x64xbf16> to vector<2x8x64xbf16>
    %284 = tpu.concatenate %281, %283 in 0 : vector<2x8x64xbf16>, vector<2x8x64xbf16> -> vector<4x8x64xbf16>
    %285 = vector.extract_strided_slice %274 {offsets = [0, 0], sizes = [16, 64], strides = [1, 1]} : vector<16x128xbf16> to vector<16x64xbf16>
    %286 = vector.shape_cast %285 : vector<16x64xbf16> to vector<2x8x64xbf16>
    %287 = vector.extract_strided_slice %274 {offsets = [0, 64], sizes = [16, 64], strides = [1, 1]} : vector<16x128xbf16> to vector<16x64xbf16>
    %288 = vector.shape_cast %287 : vector<16x64xbf16> to vector<2x8x64xbf16>
    %289 = tpu.concatenate %286, %288 in 0 : vector<2x8x64xbf16>, vector<2x8x64xbf16> -> vector<4x8x64xbf16>
    "tpu.trace_start"() <{level = 10 : i32, message = "bqd,bkd->bqk"}> : () -> ()
    %cst_109 = arith.constant dense<0.000000e+00> : vector<4x8x8xf32>
    %290 = tpu.matmul %279, %284, %cst_109 {dimension_numbers = #tpu.dot_dimension_numbers<[2], [2], [1], [1], [0, 0, 0, 1, 1, 1], [0], [0]>} : vector<4x8x64xbf16>, vector<4x8x64xbf16>, vector<4x8x8xf32> -> vector<4x8x8xf32>
    "tpu.trace_stop"() : () -> ()
    %cst_110 = arith.constant 2.500000e-01 : f32
    %291 = vector.broadcast %cst_110 : f32 to vector<4x8x8xf32>
    %292 = arith.mulf %290, %291 : vector<4x8x8xf32>
    %293 = vector.shape_cast %0 : vector<8x8xf32> to vector<1x8x8xf32>
    %294 = vector.broadcast %293 : vector<1x8x8xf32> to vector<4x8x8xf32>
    %295 = arith.addf %292, %294 : vector<4x8x8xf32>
    %cst_111 = arith.constant dense<0xFF800000> : vector<4x8xf32>
    %296 = vector.multi_reduction <maximumf>, %295, %cst_111 [2] : vector<4x8x8xf32> to vector<4x8xf32>
    %297 = vector.shape_cast %296 : vector<4x8xf32> to vector<4x8x1xf32>
    %298 = vector.broadcast %297 : vector<4x8x1xf32> to vector<4x8x8xf32>
    %299 = arith.subf %295, %298 : vector<4x8x8xf32>
    %300 = math.exp %299 : vector<4x8x8xf32>
    %cst_112 = arith.constant dense<0.000000e+00> : vector<4x8xf32>
    %301 = vector.multi_reduction <add>, %300, %cst_112 [2] : vector<4x8x8xf32> to vector<4x8xf32>
    %302 = vector.shape_cast %301 : vector<4x8xf32> to vector<4x8x1xf32>
    %303 = tpu.reciprocal %302 {approx = true} : vector<4x8x1xf32> -> vector<4x8x1xf32>
    %304 = vector.broadcast %303 : vector<4x8x1xf32> to vector<4x8x8xf32>
    %305 = arith.mulf %300, %304 : vector<4x8x8xf32>
    %306 = arith.truncf %305 : vector<4x8x8xf32> to vector<4x8x8xbf16>
    "tpu.trace_start"() <{level = 10 : i32, message = "bqk,bkd->bqd"}> : () -> ()
    %cst_113 = arith.constant dense<0.000000e+00> : vector<4x8x64xf32>
    %307 = tpu.matmul %306, %289, %cst_113 {dimension_numbers = #tpu.dot_dimension_numbers<[2], [1], [1], [2], [0, 0, 0, 1, 1, 2], [0], [0]>} : vector<4x8x8xbf16>, vector<4x8x64xbf16>, vector<4x8x64xf32> -> vector<4x8x64xf32>
    "tpu.trace_stop"() : () -> ()
    %308 = vector.shape_cast %307 : vector<4x8x64xf32> to vector<2x16x64xf32>
    %309 = vector.extract_strided_slice %308 {offsets = [0, 0, 0], sizes = [1, 16, 64], strides = [1, 1, 1]} : vector<2x16x64xf32> to vector<1x16x64xf32>
    %310 = vector.shape_cast %309 : vector<1x16x64xf32> to vector<16x64xf32>
    %311 = vector.extract_strided_slice %308 {offsets = [1, 0, 0], sizes = [1, 16, 64], strides = [1, 1, 1]} : vector<2x16x64xf32> to vector<1x16x64xf32>
    %312 = vector.shape_cast %311 : vector<1x16x64xf32> to vector<16x64xf32>
    %313 = tpu.concatenate %310, %312 in 1 : vector<16x64xf32>, vector<16x64xf32> -> vector<16x128xf32>
    %c0_114 = arith.constant 0 : index
    %c0_115 = arith.constant 0 : index
    %c0_116 = arith.constant 0 : index
    %314 = vector.load %arg14[%c0_114, %c0_115, %c0_116] : memref<2x128x128xbf16, #tpu.memory_space<vmem>>, vector<1x128x128xbf16>
    %315 = vector.shape_cast %314 : vector<1x128x128xbf16> to vector<128x128xbf16>
    %316 = arith.truncf %313 : vector<16x128xf32> to vector<16x128xbf16>
    %cst_117 = arith.constant dense<0.000000e+00> : vector<16x128xf32>
    %317 = tpu.matmul %316, %315, %cst_117 {dimension_numbers = #tpu.dot_dimension_numbers<[1], [0], [0], [1], [0, 0, 1, 1], [], []>} : vector<16x128xbf16>, vector<128x128xbf16>, vector<16x128xf32> -> vector<16x128xf32>
    %c0_118 = arith.constant 0 : index
    %c0_119 = arith.constant 0 : index
    %c0_120 = arith.constant 0 : index
    %318 = vector.load %arg15[%c0_118, %c0_119, %c0_120] : memref<2x1x128xf32, #tpu.memory_space<vmem>>, vector<1x1x128xf32>
    %319 = vector.shape_cast %318 : vector<1x1x128xf32> to vector<1x128xf32>
    %320 = vector.broadcast %319 : vector<1x128xf32> to vector<16x128xf32>
    %321 = arith.addf %317, %320 : vector<16x128xf32>
    %322 = arith.addf %260, %321 : vector<16x128xf32>
    %323 = vector.extract_strided_slice %262 {offsets = [0, 0], sizes = [1, 128], strides = [1, 1]} : vector<6x128xf32> to vector<1x128xf32>
    %324 = vector.extract_strided_slice %262 {offsets = [1, 0], sizes = [1, 128], strides = [1, 1]} : vector<6x128xf32> to vector<1x128xf32>
    %cst_121 = arith.constant dense<0.000000e+00> : vector<16xf32>
    %325 = vector.multi_reduction <add>, %322, %cst_121 [1] : vector<16x128xf32> to vector<16xf32>
    %326 = vector.shape_cast %325 : vector<16xf32> to vector<16x1xf32>
    %cst_122 = arith.constant 3.125000e-02 : f32
    %327 = vector.broadcast %cst_122 : f32 to vector<16x1xf32>
    %328 = arith.mulf %326, %327 : vector<16x1xf32>
    %329 = vector.broadcast %328 : vector<16x1xf32> to vector<16x128xf32>
    %330 = arith.subf %322, %329 : vector<16x128xf32>
    %331 = vector.broadcast %5 : vector<1x128xf32> to vector<16x128xf32>
    %332 = arith.mulf %330, %331 : vector<16x128xf32>
    %333 = arith.mulf %332, %332 : vector<16x128xf32>
    %cst_123 = arith.constant dense<0.000000e+00> : vector<16xf32>
    %334 = vector.multi_reduction <add>, %333, %cst_123 [1] : vector<16x128xf32> to vector<16xf32>
    %335 = vector.shape_cast %334 : vector<16xf32> to vector<16x1xf32>
    %cst_124 = arith.constant 3.125000e-02 : f32
    %336 = vector.broadcast %cst_124 : f32 to vector<16x1xf32>
    %337 = arith.mulf %335, %336 : vector<16x1xf32>
    %cst_125 = arith.constant 9.99999974E-6 : f32
    %338 = vector.broadcast %cst_125 : f32 to vector<16x1xf32>
    %339 = arith.addf %337, %338 : vector<16x1xf32>
    %340 = math.rsqrt %339 : vector<16x1xf32>
    %341 = vector.broadcast %340 : vector<16x1xf32> to vector<16x128xf32>
    %342 = arith.mulf %332, %341 : vector<16x128xf32>
    %343 = vector.broadcast %323 : vector<1x128xf32> to vector<16x128xf32>
    %344 = arith.mulf %342, %343 : vector<16x128xf32>
    %345 = vector.broadcast %324 : vector<1x128xf32> to vector<16x128xf32>
    %346 = arith.addf %344, %345 : vector<16x128xf32>
    %c0_126 = arith.constant 0 : index
    %c0_127 = arith.constant 0 : index
    %c0_128 = arith.constant 0 : index
    %347 = vector.load %arg16[%c0_126, %c0_127, %c0_128] : memref<2x128x128xbf16, #tpu.memory_space<vmem>>, vector<1x128x128xbf16>
    %348 = vector.shape_cast %347 : vector<1x128x128xbf16> to vector<128x128xbf16>
    %349 = arith.truncf %346 : vector<16x128xf32> to vector<16x128xbf16>
    %cst_129 = arith.constant dense<0.000000e+00> : vector<16x128xf32>
    %350 = tpu.matmul %349, %348, %cst_129 {dimension_numbers = #tpu.dot_dimension_numbers<[1], [0], [0], [1], [0, 0, 1, 1], [], []>} : vector<16x128xbf16>, vector<128x128xbf16>, vector<16x128xf32> -> vector<16x128xf32>
    %c0_130 = arith.constant 0 : index
    %c0_131 = arith.constant 0 : index
    %c0_132 = arith.constant 0 : index
    %351 = vector.load %arg17[%c0_130, %c0_131, %c0_132] : memref<2x1x128xf32, #tpu.memory_space<vmem>>, vector<1x1x128xf32>
    %352 = vector.shape_cast %351 : vector<1x1x128xf32> to vector<1x128xf32>
    %353 = vector.broadcast %352 : vector<1x128xf32> to vector<16x128xf32>
    %354 = arith.addf %350, %353 : vector<16x128xf32>
    %355 = arith.truncf %354 : vector<16x128xf32> to vector<16x128xbf16>
    %c0_133 = arith.constant 0 : index
    %c0_134 = arith.constant 0 : index
    %c0_135 = arith.constant 0 : index
    %356 = vector.load %arg18[%c0_133, %c0_134, %c0_135] : memref<2x128x256xbf16, #tpu.memory_space<vmem>>, vector<1x128x256xbf16>
    %357 = vector.shape_cast %356 : vector<1x128x256xbf16> to vector<128x256xbf16>
    %358 = arith.truncf %258 : vector<16x128xf32> to vector<16x128xbf16>
    %cst_136 = arith.constant dense<0.000000e+00> : vector<16x256xf32>
    %359 = tpu.matmul %358, %357, %cst_136 {dimension_numbers = #tpu.dot_dimension_numbers<[1], [0], [0], [1], [0, 0, 1, 1], [], []>} : vector<16x128xbf16>, vector<128x256xbf16>, vector<16x256xf32> -> vector<16x256xf32>
    %c0_137 = arith.constant 0 : index
    %c0_138 = arith.constant 0 : index
    %c0_139 = arith.constant 0 : index
    %360 = vector.load %arg19[%c0_137, %c0_138, %c0_139] : memref<2x1x256xf32, #tpu.memory_space<vmem>>, vector<1x1x256xf32>
    %361 = vector.shape_cast %360 : vector<1x1x256xf32> to vector<1x256xf32>
    %362 = vector.broadcast %361 : vector<1x256xf32> to vector<16x256xf32>
    %363 = arith.addf %359, %362 : vector<16x256xf32>
    %364 = arith.truncf %363 : vector<16x256xf32> to vector<16x256xbf16>
    %365 = vector.extract_strided_slice %364 {offsets = [0, 0], sizes = [16, 128], strides = [1, 1]} : vector<16x256xbf16> to vector<16x128xbf16>
    %366 = vector.extract_strided_slice %364 {offsets = [0, 128], sizes = [16, 128], strides = [1, 1]} : vector<16x256xbf16> to vector<16x128xbf16>
    %367 = vector.extract_strided_slice %355 {offsets = [0, 0], sizes = [16, 64], strides = [1, 1]} : vector<16x128xbf16> to vector<16x64xbf16>
    %368 = vector.shape_cast %367 : vector<16x64xbf16> to vector<2x8x64xbf16>
    %369 = vector.extract_strided_slice %355 {offsets = [0, 64], sizes = [16, 64], strides = [1, 1]} : vector<16x128xbf16> to vector<16x64xbf16>
    %370 = vector.shape_cast %369 : vector<16x64xbf16> to vector<2x8x64xbf16>
    %371 = tpu.concatenate %368, %370 in 0 : vector<2x8x64xbf16>, vector<2x8x64xbf16> -> vector<4x8x64xbf16>
    %372 = vector.extract_strided_slice %365 {offsets = [0, 0], sizes = [16, 64], strides = [1, 1]} : vector<16x128xbf16> to vector<16x64xbf16>
    %373 = vector.shape_cast %372 : vector<16x64xbf16> to vector<2x8x64xbf16>
    %374 = vector.extract_strided_slice %365 {offsets = [0, 64], sizes = [16, 64], strides = [1, 1]} : vector<16x128xbf16> to vector<16x64xbf16>
    %375 = vector.shape_cast %374 : vector<16x64xbf16> to vector<2x8x64xbf16>
    %376 = tpu.concatenate %373, %375 in 0 : vector<2x8x64xbf16>, vector<2x8x64xbf16> -> vector<4x8x64xbf16>
    %377 = vector.extract_strided_slice %366 {offsets = [0, 0], sizes = [16, 64], strides = [1, 1]} : vector<16x128xbf16> to vector<16x64xbf16>
    %378 = vector.shape_cast %377 : vector<16x64xbf16> to vector<2x8x64xbf16>
    %379 = vector.extract_strided_slice %366 {offsets = [0, 64], sizes = [16, 64], strides = [1, 1]} : vector<16x128xbf16> to vector<16x64xbf16>
    %380 = vector.shape_cast %379 : vector<16x64xbf16> to vector<2x8x64xbf16>
    %381 = tpu.concatenate %378, %380 in 0 : vector<2x8x64xbf16>, vector<2x8x64xbf16> -> vector<4x8x64xbf16>
    "tpu.trace_start"() <{level = 10 : i32, message = "bqd,bkd->bqk"}> : () -> ()
    %cst_140 = arith.constant dense<0.000000e+00> : vector<4x8x8xf32>
    %382 = tpu.matmul %371, %376, %cst_140 {dimension_numbers = #tpu.dot_dimension_numbers<[2], [2], [1], [1], [0, 0, 0, 1, 1, 1], [0], [0]>} : vector<4x8x64xbf16>, vector<4x8x64xbf16>, vector<4x8x8xf32> -> vector<4x8x8xf32>
    "tpu.trace_stop"() : () -> ()
    %cst_141 = arith.constant 2.500000e-01 : f32
    %383 = vector.broadcast %cst_141 : f32 to vector<4x8x8xf32>
    %384 = arith.mulf %382, %383 : vector<4x8x8xf32>
    %cst_142 = arith.constant dense<0xFF800000> : vector<4x8xf32>
    %385 = vector.multi_reduction <maximumf>, %384, %cst_142 [2] : vector<4x8x8xf32> to vector<4x8xf32>
    %386 = vector.shape_cast %385 : vector<4x8xf32> to vector<4x8x1xf32>
    %387 = vector.broadcast %386 : vector<4x8x1xf32> to vector<4x8x8xf32>
    %388 = arith.subf %384, %387 : vector<4x8x8xf32>
    %389 = math.exp %388 : vector<4x8x8xf32>
    %cst_143 = arith.constant dense<0.000000e+00> : vector<4x8xf32>
    %390 = vector.multi_reduction <add>, %389, %cst_143 [2] : vector<4x8x8xf32> to vector<4x8xf32>
    %391 = vector.shape_cast %390 : vector<4x8xf32> to vector<4x8x1xf32>
    %392 = tpu.reciprocal %391 {approx = true} : vector<4x8x1xf32> -> vector<4x8x1xf32>
    %393 = vector.broadcast %392 : vector<4x8x1xf32> to vector<4x8x8xf32>
    %394 = arith.mulf %389, %393 : vector<4x8x8xf32>
    %395 = arith.truncf %394 : vector<4x8x8xf32> to vector<4x8x8xbf16>
    "tpu.trace_start"() <{level = 10 : i32, message = "bqk,bkd->bqd"}> : () -> ()
    %cst_144 = arith.constant dense<0.000000e+00> : vector<4x8x64xf32>
    %396 = tpu.matmul %395, %381, %cst_144 {dimension_numbers = #tpu.dot_dimension_numbers<[2], [1], [1], [2], [0, 0, 0, 1, 1, 2], [0], [0]>} : vector<4x8x8xbf16>, vector<4x8x64xbf16>, vector<4x8x64xf32> -> vector<4x8x64xf32>
    "tpu.trace_stop"() : () -> ()
    %397 = vector.shape_cast %396 : vector<4x8x64xf32> to vector<2x16x64xf32>
    %398 = vector.extract_strided_slice %397 {offsets = [0, 0, 0], sizes = [1, 16, 64], strides = [1, 1, 1]} : vector<2x16x64xf32> to vector<1x16x64xf32>
    %399 = vector.shape_cast %398 : vector<1x16x64xf32> to vector<16x64xf32>
    %400 = vector.extract_strided_slice %397 {offsets = [1, 0, 0], sizes = [1, 16, 64], strides = [1, 1, 1]} : vector<2x16x64xf32> to vector<1x16x64xf32>
    %401 = vector.shape_cast %400 : vector<1x16x64xf32> to vector<16x64xf32>
    %402 = tpu.concatenate %399, %401 in 1 : vector<16x64xf32>, vector<16x64xf32> -> vector<16x128xf32>
    %c0_145 = arith.constant 0 : index
    %c0_146 = arith.constant 0 : index
    %c0_147 = arith.constant 0 : index
    %403 = vector.load %arg20[%c0_145, %c0_146, %c0_147] : memref<2x128x128xbf16, #tpu.memory_space<vmem>>, vector<1x128x128xbf16>
    %404 = vector.shape_cast %403 : vector<1x128x128xbf16> to vector<128x128xbf16>
    %405 = arith.truncf %402 : vector<16x128xf32> to vector<16x128xbf16>
    %cst_148 = arith.constant dense<0.000000e+00> : vector<16x128xf32>
    %406 = tpu.matmul %405, %404, %cst_148 {dimension_numbers = #tpu.dot_dimension_numbers<[1], [0], [0], [1], [0, 0, 1, 1], [], []>} : vector<16x128xbf16>, vector<128x128xbf16>, vector<16x128xf32> -> vector<16x128xf32>
    %c0_149 = arith.constant 0 : index
    %c0_150 = arith.constant 0 : index
    %c0_151 = arith.constant 0 : index
    %407 = vector.load %arg21[%c0_149, %c0_150, %c0_151] : memref<2x1x128xf32, #tpu.memory_space<vmem>>, vector<1x1x128xf32>
    %408 = vector.shape_cast %407 : vector<1x1x128xf32> to vector<1x128xf32>
    %409 = vector.broadcast %408 : vector<1x128xf32> to vector<16x128xf32>
    %410 = arith.addf %406, %409 : vector<16x128xf32>
    %411 = arith.addf %346, %410 : vector<16x128xf32>
    %412 = vector.extract_strided_slice %262 {offsets = [2, 0], sizes = [1, 128], strides = [1, 1]} : vector<6x128xf32> to vector<1x128xf32>
    %413 = vector.extract_strided_slice %262 {offsets = [3, 0], sizes = [1, 128], strides = [1, 1]} : vector<6x128xf32> to vector<1x128xf32>
    %cst_152 = arith.constant dense<0.000000e+00> : vector<16xf32>
    %414 = vector.multi_reduction <add>, %411, %cst_152 [1] : vector<16x128xf32> to vector<16xf32>
    %415 = vector.shape_cast %414 : vector<16xf32> to vector<16x1xf32>
    %cst_153 = arith.constant 3.125000e-02 : f32
    %416 = vector.broadcast %cst_153 : f32 to vector<16x1xf32>
    %417 = arith.mulf %415, %416 : vector<16x1xf32>
    %418 = vector.broadcast %417 : vector<16x1xf32> to vector<16x128xf32>
    %419 = arith.subf %411, %418 : vector<16x128xf32>
    %420 = vector.broadcast %5 : vector<1x128xf32> to vector<16x128xf32>
    %421 = arith.mulf %419, %420 : vector<16x128xf32>
    %422 = arith.mulf %421, %421 : vector<16x128xf32>
    %cst_154 = arith.constant dense<0.000000e+00> : vector<16xf32>
    %423 = vector.multi_reduction <add>, %422, %cst_154 [1] : vector<16x128xf32> to vector<16xf32>
    %424 = vector.shape_cast %423 : vector<16xf32> to vector<16x1xf32>
    %cst_155 = arith.constant 3.125000e-02 : f32
    %425 = vector.broadcast %cst_155 : f32 to vector<16x1xf32>
    %426 = arith.mulf %424, %425 : vector<16x1xf32>
    %cst_156 = arith.constant 9.99999974E-6 : f32
    %427 = vector.broadcast %cst_156 : f32 to vector<16x1xf32>
    %428 = arith.addf %426, %427 : vector<16x1xf32>
    %429 = math.rsqrt %428 : vector<16x1xf32>
    %430 = vector.broadcast %429 : vector<16x1xf32> to vector<16x128xf32>
    %431 = arith.mulf %421, %430 : vector<16x128xf32>
    %432 = vector.broadcast %412 : vector<1x128xf32> to vector<16x128xf32>
    %433 = arith.mulf %431, %432 : vector<16x128xf32>
    %434 = vector.broadcast %413 : vector<1x128xf32> to vector<16x128xf32>
    %435 = arith.addf %433, %434 : vector<16x128xf32>
    %c0_157 = arith.constant 0 : index
    %c0_158 = arith.constant 0 : index
    %c0_159 = arith.constant 0 : index
    %436 = vector.load %arg22[%c0_157, %c0_158, %c0_159] : memref<2x128x128xbf16, #tpu.memory_space<vmem>>, vector<1x128x128xbf16>
    %437 = vector.shape_cast %436 : vector<1x128x128xbf16> to vector<128x128xbf16>
    %438 = arith.truncf %435 : vector<16x128xf32> to vector<16x128xbf16>
    %cst_160 = arith.constant dense<0.000000e+00> : vector<16x128xf32>
    %439 = tpu.matmul %438, %437, %cst_160 {dimension_numbers = #tpu.dot_dimension_numbers<[1], [0], [0], [1], [0, 0, 1, 1], [], []>} : vector<16x128xbf16>, vector<128x128xbf16>, vector<16x128xf32> -> vector<16x128xf32>
    %c0_161 = arith.constant 0 : index
    %c0_162 = arith.constant 0 : index
    %c0_163 = arith.constant 0 : index
    %440 = vector.load %arg23[%c0_161, %c0_162, %c0_163] : memref<2x1x128xf32, #tpu.memory_space<vmem>>, vector<1x1x128xf32>
    %441 = vector.shape_cast %440 : vector<1x1x128xf32> to vector<1x128xf32>
    %442 = vector.broadcast %441 : vector<1x128xf32> to vector<16x128xf32>
    %443 = arith.addf %439, %442 : vector<16x128xf32>
    %cst_164 = arith.constant 0.000000e+00 : f32
    %444 = vector.broadcast %cst_164 : f32 to vector<16x128xf32>
    %445 = arith.maximumf %443, %444 : vector<16x128xf32>
    %c0_165 = arith.constant 0 : index
    %c0_166 = arith.constant 0 : index
    %c0_167 = arith.constant 0 : index
    %446 = vector.load %arg24[%c0_165, %c0_166, %c0_167] : memref<2x128x128xbf16, #tpu.memory_space<vmem>>, vector<1x128x128xbf16>
    %447 = vector.shape_cast %446 : vector<1x128x128xbf16> to vector<128x128xbf16>
    %448 = arith.truncf %445 : vector<16x128xf32> to vector<16x128xbf16>
    %cst_168 = arith.constant dense<0.000000e+00> : vector<16x128xf32>
    %449 = tpu.matmul %448, %447, %cst_168 {dimension_numbers = #tpu.dot_dimension_numbers<[1], [0], [0], [1], [0, 0, 1, 1], [], []>} : vector<16x128xbf16>, vector<128x128xbf16>, vector<16x128xf32> -> vector<16x128xf32>
    %c0_169 = arith.constant 0 : index
    %c0_170 = arith.constant 0 : index
    %c0_171 = arith.constant 0 : index
    %450 = vector.load %arg25[%c0_169, %c0_170, %c0_171] : memref<2x1x128xf32, #tpu.memory_space<vmem>>, vector<1x1x128xf32>
    %451 = vector.shape_cast %450 : vector<1x1x128xf32> to vector<1x128xf32>
    %452 = vector.broadcast %451 : vector<1x128xf32> to vector<16x128xf32>
    %453 = arith.addf %449, %452 : vector<16x128xf32>
    %454 = arith.addf %435, %453 : vector<16x128xf32>
    %455 = vector.extract_strided_slice %262 {offsets = [4, 0], sizes = [1, 128], strides = [1, 1]} : vector<6x128xf32> to vector<1x128xf32>
    %456 = vector.extract_strided_slice %262 {offsets = [5, 0], sizes = [1, 128], strides = [1, 1]} : vector<6x128xf32> to vector<1x128xf32>
    %cst_172 = arith.constant dense<0.000000e+00> : vector<16xf32>
    %457 = vector.multi_reduction <add>, %454, %cst_172 [1] : vector<16x128xf32> to vector<16xf32>
    %458 = vector.shape_cast %457 : vector<16xf32> to vector<16x1xf32>
    %cst_173 = arith.constant 3.125000e-02 : f32
    %459 = vector.broadcast %cst_173 : f32 to vector<16x1xf32>
    %460 = arith.mulf %458, %459 : vector<16x1xf32>
    %461 = vector.broadcast %460 : vector<16x1xf32> to vector<16x128xf32>
    %462 = arith.subf %454, %461 : vector<16x128xf32>
    %463 = vector.broadcast %5 : vector<1x128xf32> to vector<16x128xf32>
    %464 = arith.mulf %462, %463 : vector<16x128xf32>
    %465 = arith.mulf %464, %464 : vector<16x128xf32>
    %cst_174 = arith.constant dense<0.000000e+00> : vector<16xf32>
    %466 = vector.multi_reduction <add>, %465, %cst_174 [1] : vector<16x128xf32> to vector<16xf32>
    %467 = vector.shape_cast %466 : vector<16xf32> to vector<16x1xf32>
    %cst_175 = arith.constant 3.125000e-02 : f32
    %468 = vector.broadcast %cst_175 : f32 to vector<16x1xf32>
    %469 = arith.mulf %467, %468 : vector<16x1xf32>
    %cst_176 = arith.constant 9.99999974E-6 : f32
    %470 = vector.broadcast %cst_176 : f32 to vector<16x1xf32>
    %471 = arith.addf %469, %470 : vector<16x1xf32>
    %472 = math.rsqrt %471 : vector<16x1xf32>
    %473 = vector.broadcast %472 : vector<16x1xf32> to vector<16x128xf32>
    %474 = arith.mulf %464, %473 : vector<16x128xf32>
    %475 = vector.broadcast %455 : vector<1x128xf32> to vector<16x128xf32>
    %476 = arith.mulf %474, %475 : vector<16x128xf32>
    %477 = vector.broadcast %456 : vector<1x128xf32> to vector<16x128xf32>
    %478 = arith.addf %476, %477 : vector<16x128xf32>
    %c1_177 = arith.constant 1 : index
    %c0_178 = arith.constant 0 : index
    %c0_179 = arith.constant 0 : index
    %479 = vector.load %arg26[%c1_177, %c0_178, %c0_179] : memref<2x6x128xf32, #tpu.memory_space<vmem>>, vector<1x6x128xf32>
    %480 = vector.shape_cast %479 : vector<1x6x128xf32> to vector<6x128xf32>
    %c1_180 = arith.constant 1 : index
    %c0_181 = arith.constant 0 : index
    %c0_182 = arith.constant 0 : index
    %481 = vector.load %arg12[%c1_180, %c0_181, %c0_182] : memref<2x128x384xbf16, #tpu.memory_space<vmem>>, vector<1x128x384xbf16>
    %482 = vector.shape_cast %481 : vector<1x128x384xbf16> to vector<128x384xbf16>
    %483 = arith.truncf %478 : vector<16x128xf32> to vector<16x128xbf16>
    %cst_183 = arith.constant dense<0.000000e+00> : vector<16x384xf32>
    %484 = tpu.matmul %483, %482, %cst_183 {dimension_numbers = #tpu.dot_dimension_numbers<[1], [0], [0], [1], [0, 0, 1, 1], [], []>} : vector<16x128xbf16>, vector<128x384xbf16>, vector<16x384xf32> -> vector<16x384xf32>
    %c1_184 = arith.constant 1 : index
    %c0_185 = arith.constant 0 : index
    %c0_186 = arith.constant 0 : index
    %485 = vector.load %arg13[%c1_184, %c0_185, %c0_186] : memref<2x1x384xf32, #tpu.memory_space<vmem>>, vector<1x1x384xf32>
    %486 = vector.shape_cast %485 : vector<1x1x384xf32> to vector<1x384xf32>
    %487 = vector.broadcast %486 : vector<1x384xf32> to vector<16x384xf32>
    %488 = arith.addf %484, %487 : vector<16x384xf32>
    %489 = arith.truncf %488 : vector<16x384xf32> to vector<16x384xbf16>
    %490 = vector.extract_strided_slice %489 {offsets = [0, 0], sizes = [16, 128], strides = [1, 1]} : vector<16x384xbf16> to vector<16x128xbf16>
    %491 = vector.extract_strided_slice %489 {offsets = [0, 128], sizes = [16, 128], strides = [1, 1]} : vector<16x384xbf16> to vector<16x128xbf16>
    %492 = vector.extract_strided_slice %489 {offsets = [0, 256], sizes = [16, 128], strides = [1, 1]} : vector<16x384xbf16> to vector<16x128xbf16>
    %493 = vector.extract_strided_slice %490 {offsets = [0, 0], sizes = [16, 64], strides = [1, 1]} : vector<16x128xbf16> to vector<16x64xbf16>
    %494 = vector.shape_cast %493 : vector<16x64xbf16> to vector<2x8x64xbf16>
    %495 = vector.extract_strided_slice %490 {offsets = [0, 64], sizes = [16, 64], strides = [1, 1]} : vector<16x128xbf16> to vector<16x64xbf16>
    %496 = vector.shape_cast %495 : vector<16x64xbf16> to vector<2x8x64xbf16>
    %497 = tpu.concatenate %494, %496 in 0 : vector<2x8x64xbf16>, vector<2x8x64xbf16> -> vector<4x8x64xbf16>
    %498 = vector.extract_strided_slice %491 {offsets = [0, 0], sizes = [16, 64], strides = [1, 1]} : vector<16x128xbf16> to vector<16x64xbf16>
    %499 = vector.shape_cast %498 : vector<16x64xbf16> to vector<2x8x64xbf16>
    %500 = vector.extract_strided_slice %491 {offsets = [0, 64], sizes = [16, 64], strides = [1, 1]} : vector<16x128xbf16> to vector<16x64xbf16>
    %501 = vector.shape_cast %500 : vector<16x64xbf16> to vector<2x8x64xbf16>
    %502 = tpu.concatenate %499, %501 in 0 : vector<2x8x64xbf16>, vector<2x8x64xbf16> -> vector<4x8x64xbf16>
    %503 = vector.extract_strided_slice %492 {offsets = [0, 0], sizes = [16, 64], strides = [1, 1]} : vector<16x128xbf16> to vector<16x64xbf16>
    %504 = vector.shape_cast %503 : vector<16x64xbf16> to vector<2x8x64xbf16>
    %505 = vector.extract_strided_slice %492 {offsets = [0, 64], sizes = [16, 64], strides = [1, 1]} : vector<16x128xbf16> to vector<16x64xbf16>
    %506 = vector.shape_cast %505 : vector<16x64xbf16> to vector<2x8x64xbf16>
    %507 = tpu.concatenate %504, %506 in 0 : vector<2x8x64xbf16>, vector<2x8x64xbf16> -> vector<4x8x64xbf16>
    "tpu.trace_start"() <{level = 10 : i32, message = "bqd,bkd->bqk"}> : () -> ()
    %cst_187 = arith.constant dense<0.000000e+00> : vector<4x8x8xf32>
    %508 = tpu.matmul %497, %502, %cst_187 {dimension_numbers = #tpu.dot_dimension_numbers<[2], [2], [1], [1], [0, 0, 0, 1, 1, 1], [0], [0]>} : vector<4x8x64xbf16>, vector<4x8x64xbf16>, vector<4x8x8xf32> -> vector<4x8x8xf32>
    "tpu.trace_stop"() : () -> ()
    %cst_188 = arith.constant 2.500000e-01 : f32
    %509 = vector.broadcast %cst_188 : f32 to vector<4x8x8xf32>
    %510 = arith.mulf %508, %509 : vector<4x8x8xf32>
    %511 = vector.shape_cast %0 : vector<8x8xf32> to vector<1x8x8xf32>
    %512 = vector.broadcast %511 : vector<1x8x8xf32> to vector<4x8x8xf32>
    %513 = arith.addf %510, %512 : vector<4x8x8xf32>
    %cst_189 = arith.constant dense<0xFF800000> : vector<4x8xf32>
    %514 = vector.multi_reduction <maximumf>, %513, %cst_189 [2] : vector<4x8x8xf32> to vector<4x8xf32>
    %515 = vector.shape_cast %514 : vector<4x8xf32> to vector<4x8x1xf32>
    %516 = vector.broadcast %515 : vector<4x8x1xf32> to vector<4x8x8xf32>
    %517 = arith.subf %513, %516 : vector<4x8x8xf32>
    %518 = math.exp %517 : vector<4x8x8xf32>
    %cst_190 = arith.constant dense<0.000000e+00> : vector<4x8xf32>
    %519 = vector.multi_reduction <add>, %518, %cst_190 [2] : vector<4x8x8xf32> to vector<4x8xf32>
    %520 = vector.shape_cast %519 : vector<4x8xf32> to vector<4x8x1xf32>
    %521 = tpu.reciprocal %520 {approx = true} : vector<4x8x1xf32> -> vector<4x8x1xf32>
    %522 = vector.broadcast %521 : vector<4x8x1xf32> to vector<4x8x8xf32>
    %523 = arith.mulf %518, %522 : vector<4x8x8xf32>
    %524 = arith.truncf %523 : vector<4x8x8xf32> to vector<4x8x8xbf16>
    "tpu.trace_start"() <{level = 10 : i32, message = "bqk,bkd->bqd"}> : () -> ()
    %cst_191 = arith.constant dense<0.000000e+00> : vector<4x8x64xf32>
    %525 = tpu.matmul %524, %507, %cst_191 {dimension_numbers = #tpu.dot_dimension_numbers<[2], [1], [1], [2], [0, 0, 0, 1, 1, 2], [0], [0]>} : vector<4x8x8xbf16>, vector<4x8x64xbf16>, vector<4x8x64xf32> -> vector<4x8x64xf32>
    "tpu.trace_stop"() : () -> ()
    %526 = vector.shape_cast %525 : vector<4x8x64xf32> to vector<2x16x64xf32>
    %527 = vector.extract_strided_slice %526 {offsets = [0, 0, 0], sizes = [1, 16, 64], strides = [1, 1, 1]} : vector<2x16x64xf32> to vector<1x16x64xf32>
    %528 = vector.shape_cast %527 : vector<1x16x64xf32> to vector<16x64xf32>
    %529 = vector.extract_strided_slice %526 {offsets = [1, 0, 0], sizes = [1, 16, 64], strides = [1, 1, 1]} : vector<2x16x64xf32> to vector<1x16x64xf32>
    %530 = vector.shape_cast %529 : vector<1x16x64xf32> to vector<16x64xf32>
    %531 = tpu.concatenate %528, %530 in 1 : vector<16x64xf32>, vector<16x64xf32> -> vector<16x128xf32>
    %c1_192 = arith.constant 1 : index
    %c0_193 = arith.constant 0 : index
    %c0_194 = arith.constant 0 : index
    %532 = vector.load %arg14[%c1_192, %c0_193, %c0_194] : memref<2x128x128xbf16, #tpu.memory_space<vmem>>, vector<1x128x128xbf16>
    %533 = vector.shape_cast %532 : vector<1x128x128xbf16> to vector<128x128xbf16>
    %534 = arith.truncf %531 : vector<16x128xf32> to vector<16x128xbf16>
    %cst_195 = arith.constant dense<0.000000e+00> : vector<16x128xf32>
    %535 = tpu.matmul %534, %533, %cst_195 {dimension_numbers = #tpu.dot_dimension_numbers<[1], [0], [0], [1], [0, 0, 1, 1], [], []>} : vector<16x128xbf16>, vector<128x128xbf16>, vector<16x128xf32> -> vector<16x128xf32>
    %c1_196 = arith.constant 1 : index
    %c0_197 = arith.constant 0 : index
    %c0_198 = arith.constant 0 : index
    %536 = vector.load %arg15[%c1_196, %c0_197, %c0_198] : memref<2x1x128xf32, #tpu.memory_space<vmem>>, vector<1x1x128xf32>
    %537 = vector.shape_cast %536 : vector<1x1x128xf32> to vector<1x128xf32>
    %538 = vector.broadcast %537 : vector<1x128xf32> to vector<16x128xf32>
    %539 = arith.addf %535, %538 : vector<16x128xf32>
    %540 = arith.addf %478, %539 : vector<16x128xf32>
    %541 = vector.extract_strided_slice %480 {offsets = [0, 0], sizes = [1, 128], strides = [1, 1]} : vector<6x128xf32> to vector<1x128xf32>
    %542 = vector.extract_strided_slice %480 {offsets = [1, 0], sizes = [1, 128], strides = [1, 1]} : vector<6x128xf32> to vector<1x128xf32>
    %cst_199 = arith.constant dense<0.000000e+00> : vector<16xf32>
    %543 = vector.multi_reduction <add>, %540, %cst_199 [1] : vector<16x128xf32> to vector<16xf32>
    %544 = vector.shape_cast %543 : vector<16xf32> to vector<16x1xf32>
    %cst_200 = arith.constant 3.125000e-02 : f32
    %545 = vector.broadcast %cst_200 : f32 to vector<16x1xf32>
    %546 = arith.mulf %544, %545 : vector<16x1xf32>
    %547 = vector.broadcast %546 : vector<16x1xf32> to vector<16x128xf32>
    %548 = arith.subf %540, %547 : vector<16x128xf32>
    %549 = vector.broadcast %5 : vector<1x128xf32> to vector<16x128xf32>
    %550 = arith.mulf %548, %549 : vector<16x128xf32>
    %551 = arith.mulf %550, %550 : vector<16x128xf32>
    %cst_201 = arith.constant dense<0.000000e+00> : vector<16xf32>
    %552 = vector.multi_reduction <add>, %551, %cst_201 [1] : vector<16x128xf32> to vector<16xf32>
    %553 = vector.shape_cast %552 : vector<16xf32> to vector<16x1xf32>
    %cst_202 = arith.constant 3.125000e-02 : f32
    %554 = vector.broadcast %cst_202 : f32 to vector<16x1xf32>
    %555 = arith.mulf %553, %554 : vector<16x1xf32>
    %cst_203 = arith.constant 9.99999974E-6 : f32
    %556 = vector.broadcast %cst_203 : f32 to vector<16x1xf32>
    %557 = arith.addf %555, %556 : vector<16x1xf32>
    %558 = math.rsqrt %557 : vector<16x1xf32>
    %559 = vector.broadcast %558 : vector<16x1xf32> to vector<16x128xf32>
    %560 = arith.mulf %550, %559 : vector<16x128xf32>
    %561 = vector.broadcast %541 : vector<1x128xf32> to vector<16x128xf32>
    %562 = arith.mulf %560, %561 : vector<16x128xf32>
    %563 = vector.broadcast %542 : vector<1x128xf32> to vector<16x128xf32>
    %564 = arith.addf %562, %563 : vector<16x128xf32>
    %c1_204 = arith.constant 1 : index
    %c0_205 = arith.constant 0 : index
    %c0_206 = arith.constant 0 : index
    %565 = vector.load %arg16[%c1_204, %c0_205, %c0_206] : memref<2x128x128xbf16, #tpu.memory_space<vmem>>, vector<1x128x128xbf16>
    %566 = vector.shape_cast %565 : vector<1x128x128xbf16> to vector<128x128xbf16>
    %567 = arith.truncf %564 : vector<16x128xf32> to vector<16x128xbf16>
    %cst_207 = arith.constant dense<0.000000e+00> : vector<16x128xf32>
    %568 = tpu.matmul %567, %566, %cst_207 {dimension_numbers = #tpu.dot_dimension_numbers<[1], [0], [0], [1], [0, 0, 1, 1], [], []>} : vector<16x128xbf16>, vector<128x128xbf16>, vector<16x128xf32> -> vector<16x128xf32>
    %c1_208 = arith.constant 1 : index
    %c0_209 = arith.constant 0 : index
    %c0_210 = arith.constant 0 : index
    %569 = vector.load %arg17[%c1_208, %c0_209, %c0_210] : memref<2x1x128xf32, #tpu.memory_space<vmem>>, vector<1x1x128xf32>
    %570 = vector.shape_cast %569 : vector<1x1x128xf32> to vector<1x128xf32>
    %571 = vector.broadcast %570 : vector<1x128xf32> to vector<16x128xf32>
    %572 = arith.addf %568, %571 : vector<16x128xf32>
    %573 = arith.truncf %572 : vector<16x128xf32> to vector<16x128xbf16>
    %c1_211 = arith.constant 1 : index
    %c0_212 = arith.constant 0 : index
    %c0_213 = arith.constant 0 : index
    %574 = vector.load %arg18[%c1_211, %c0_212, %c0_213] : memref<2x128x256xbf16, #tpu.memory_space<vmem>>, vector<1x128x256xbf16>
    %575 = vector.shape_cast %574 : vector<1x128x256xbf16> to vector<128x256xbf16>
    %576 = arith.truncf %258 : vector<16x128xf32> to vector<16x128xbf16>
    %cst_214 = arith.constant dense<0.000000e+00> : vector<16x256xf32>
    %577 = tpu.matmul %576, %575, %cst_214 {dimension_numbers = #tpu.dot_dimension_numbers<[1], [0], [0], [1], [0, 0, 1, 1], [], []>} : vector<16x128xbf16>, vector<128x256xbf16>, vector<16x256xf32> -> vector<16x256xf32>
    %c1_215 = arith.constant 1 : index
    %c0_216 = arith.constant 0 : index
    %c0_217 = arith.constant 0 : index
    %578 = vector.load %arg19[%c1_215, %c0_216, %c0_217] : memref<2x1x256xf32, #tpu.memory_space<vmem>>, vector<1x1x256xf32>
    %579 = vector.shape_cast %578 : vector<1x1x256xf32> to vector<1x256xf32>
    %580 = vector.broadcast %579 : vector<1x256xf32> to vector<16x256xf32>
    %581 = arith.addf %577, %580 : vector<16x256xf32>
    %582 = arith.truncf %581 : vector<16x256xf32> to vector<16x256xbf16>
    %583 = vector.extract_strided_slice %582 {offsets = [0, 0], sizes = [16, 128], strides = [1, 1]} : vector<16x256xbf16> to vector<16x128xbf16>
    %584 = vector.extract_strided_slice %582 {offsets = [0, 128], sizes = [16, 128], strides = [1, 1]} : vector<16x256xbf16> to vector<16x128xbf16>
    %585 = vector.extract_strided_slice %573 {offsets = [0, 0], sizes = [16, 64], strides = [1, 1]} : vector<16x128xbf16> to vector<16x64xbf16>
    %586 = vector.shape_cast %585 : vector<16x64xbf16> to vector<2x8x64xbf16>
    %587 = vector.extract_strided_slice %573 {offsets = [0, 64], sizes = [16, 64], strides = [1, 1]} : vector<16x128xbf16> to vector<16x64xbf16>
    %588 = vector.shape_cast %587 : vector<16x64xbf16> to vector<2x8x64xbf16>
    %589 = tpu.concatenate %586, %588 in 0 : vector<2x8x64xbf16>, vector<2x8x64xbf16> -> vector<4x8x64xbf16>
    %590 = vector.extract_strided_slice %583 {offsets = [0, 0], sizes = [16, 64], strides = [1, 1]} : vector<16x128xbf16> to vector<16x64xbf16>
    %591 = vector.shape_cast %590 : vector<16x64xbf16> to vector<2x8x64xbf16>
    %592 = vector.extract_strided_slice %583 {offsets = [0, 64], sizes = [16, 64], strides = [1, 1]} : vector<16x128xbf16> to vector<16x64xbf16>
    %593 = vector.shape_cast %592 : vector<16x64xbf16> to vector<2x8x64xbf16>
    %594 = tpu.concatenate %591, %593 in 0 : vector<2x8x64xbf16>, vector<2x8x64xbf16> -> vector<4x8x64xbf16>
    %595 = vector.extract_strided_slice %584 {offsets = [0, 0], sizes = [16, 64], strides = [1, 1]} : vector<16x128xbf16> to vector<16x64xbf16>
    %596 = vector.shape_cast %595 : vector<16x64xbf16> to vector<2x8x64xbf16>
    %597 = vector.extract_strided_slice %584 {offsets = [0, 64], sizes = [16, 64], strides = [1, 1]} : vector<16x128xbf16> to vector<16x64xbf16>
    %598 = vector.shape_cast %597 : vector<16x64xbf16> to vector<2x8x64xbf16>
    %599 = tpu.concatenate %596, %598 in 0 : vector<2x8x64xbf16>, vector<2x8x64xbf16> -> vector<4x8x64xbf16>
    "tpu.trace_start"() <{level = 10 : i32, message = "bqd,bkd->bqk"}> : () -> ()
    %cst_218 = arith.constant dense<0.000000e+00> : vector<4x8x8xf32>
    %600 = tpu.matmul %589, %594, %cst_218 {dimension_numbers = #tpu.dot_dimension_numbers<[2], [2], [1], [1], [0, 0, 0, 1, 1, 1], [0], [0]>} : vector<4x8x64xbf16>, vector<4x8x64xbf16>, vector<4x8x8xf32> -> vector<4x8x8xf32>
    "tpu.trace_stop"() : () -> ()
    %cst_219 = arith.constant 2.500000e-01 : f32
    %601 = vector.broadcast %cst_219 : f32 to vector<4x8x8xf32>
    %602 = arith.mulf %600, %601 : vector<4x8x8xf32>
    %cst_220 = arith.constant dense<0xFF800000> : vector<4x8xf32>
    %603 = vector.multi_reduction <maximumf>, %602, %cst_220 [2] : vector<4x8x8xf32> to vector<4x8xf32>
    %604 = vector.shape_cast %603 : vector<4x8xf32> to vector<4x8x1xf32>
    %605 = vector.broadcast %604 : vector<4x8x1xf32> to vector<4x8x8xf32>
    %606 = arith.subf %602, %605 : vector<4x8x8xf32>
    %607 = math.exp %606 : vector<4x8x8xf32>
    %cst_221 = arith.constant dense<0.000000e+00> : vector<4x8xf32>
    %608 = vector.multi_reduction <add>, %607, %cst_221 [2] : vector<4x8x8xf32> to vector<4x8xf32>
    %609 = vector.shape_cast %608 : vector<4x8xf32> to vector<4x8x1xf32>
    %610 = tpu.reciprocal %609 {approx = true} : vector<4x8x1xf32> -> vector<4x8x1xf32>
    %611 = vector.broadcast %610 : vector<4x8x1xf32> to vector<4x8x8xf32>
    %612 = arith.mulf %607, %611 : vector<4x8x8xf32>
    %613 = arith.truncf %612 : vector<4x8x8xf32> to vector<4x8x8xbf16>
    "tpu.trace_start"() <{level = 10 : i32, message = "bqk,bkd->bqd"}> : () -> ()
    %cst_222 = arith.constant dense<0.000000e+00> : vector<4x8x64xf32>
    %614 = tpu.matmul %613, %599, %cst_222 {dimension_numbers = #tpu.dot_dimension_numbers<[2], [1], [1], [2], [0, 0, 0, 1, 1, 2], [0], [0]>} : vector<4x8x8xbf16>, vector<4x8x64xbf16>, vector<4x8x64xf32> -> vector<4x8x64xf32>
    "tpu.trace_stop"() : () -> ()
    %615 = vector.shape_cast %614 : vector<4x8x64xf32> to vector<2x16x64xf32>
    %616 = vector.extract_strided_slice %615 {offsets = [0, 0, 0], sizes = [1, 16, 64], strides = [1, 1, 1]} : vector<2x16x64xf32> to vector<1x16x64xf32>
    %617 = vector.shape_cast %616 : vector<1x16x64xf32> to vector<16x64xf32>
    %618 = vector.extract_strided_slice %615 {offsets = [1, 0, 0], sizes = [1, 16, 64], strides = [1, 1, 1]} : vector<2x16x64xf32> to vector<1x16x64xf32>
    %619 = vector.shape_cast %618 : vector<1x16x64xf32> to vector<16x64xf32>
    %620 = tpu.concatenate %617, %619 in 1 : vector<16x64xf32>, vector<16x64xf32> -> vector<16x128xf32>
    %c1_223 = arith.constant 1 : index
    %c0_224 = arith.constant 0 : index
    %c0_225 = arith.constant 0 : index
    %621 = vector.load %arg20[%c1_223, %c0_224, %c0_225] : memref<2x128x128xbf16, #tpu.memory_space<vmem>>, vector<1x128x128xbf16>
    %622 = vector.shape_cast %621 : vector<1x128x128xbf16> to vector<128x128xbf16>
    %623 = arith.truncf %620 : vector<16x128xf32> to vector<16x128xbf16>
    %cst_226 = arith.constant dense<0.000000e+00> : vector<16x128xf32>
    %624 = tpu.matmul %623, %622, %cst_226 {dimension_numbers = #tpu.dot_dimension_numbers<[1], [0], [0], [1], [0, 0, 1, 1], [], []>} : vector<16x128xbf16>, vector<128x128xbf16>, vector<16x128xf32> -> vector<16x128xf32>
    %c1_227 = arith.constant 1 : index
    %c0_228 = arith.constant 0 : index
    %c0_229 = arith.constant 0 : index
    %625 = vector.load %arg21[%c1_227, %c0_228, %c0_229] : memref<2x1x128xf32, #tpu.memory_space<vmem>>, vector<1x1x128xf32>
    %626 = vector.shape_cast %625 : vector<1x1x128xf32> to vector<1x128xf32>
    %627 = vector.broadcast %626 : vector<1x128xf32> to vector<16x128xf32>
    %628 = arith.addf %624, %627 : vector<16x128xf32>
    %629 = arith.addf %564, %628 : vector<16x128xf32>
    %630 = vector.extract_strided_slice %480 {offsets = [2, 0], sizes = [1, 128], strides = [1, 1]} : vector<6x128xf32> to vector<1x128xf32>
    %631 = vector.extract_strided_slice %480 {offsets = [3, 0], sizes = [1, 128], strides = [1, 1]} : vector<6x128xf32> to vector<1x128xf32>
    %cst_230 = arith.constant dense<0.000000e+00> : vector<16xf32>
    %632 = vector.multi_reduction <add>, %629, %cst_230 [1] : vector<16x128xf32> to vector<16xf32>
    %633 = vector.shape_cast %632 : vector<16xf32> to vector<16x1xf32>
    %cst_231 = arith.constant 3.125000e-02 : f32
    %634 = vector.broadcast %cst_231 : f32 to vector<16x1xf32>
    %635 = arith.mulf %633, %634 : vector<16x1xf32>
    %636 = vector.broadcast %635 : vector<16x1xf32> to vector<16x128xf32>
    %637 = arith.subf %629, %636 : vector<16x128xf32>
    %638 = vector.broadcast %5 : vector<1x128xf32> to vector<16x128xf32>
    %639 = arith.mulf %637, %638 : vector<16x128xf32>
    %640 = arith.mulf %639, %639 : vector<16x128xf32>
    %cst_232 = arith.constant dense<0.000000e+00> : vector<16xf32>
    %641 = vector.multi_reduction <add>, %640, %cst_232 [1] : vector<16x128xf32> to vector<16xf32>
    %642 = vector.shape_cast %641 : vector<16xf32> to vector<16x1xf32>
    %cst_233 = arith.constant 3.125000e-02 : f32
    %643 = vector.broadcast %cst_233 : f32 to vector<16x1xf32>
    %644 = arith.mulf %642, %643 : vector<16x1xf32>
    %cst_234 = arith.constant 9.99999974E-6 : f32
    %645 = vector.broadcast %cst_234 : f32 to vector<16x1xf32>
    %646 = arith.addf %644, %645 : vector<16x1xf32>
    %647 = math.rsqrt %646 : vector<16x1xf32>
    %648 = vector.broadcast %647 : vector<16x1xf32> to vector<16x128xf32>
    %649 = arith.mulf %639, %648 : vector<16x128xf32>
    %650 = vector.broadcast %630 : vector<1x128xf32> to vector<16x128xf32>
    %651 = arith.mulf %649, %650 : vector<16x128xf32>
    %652 = vector.broadcast %631 : vector<1x128xf32> to vector<16x128xf32>
    %653 = arith.addf %651, %652 : vector<16x128xf32>
    %c1_235 = arith.constant 1 : index
    %c0_236 = arith.constant 0 : index
    %c0_237 = arith.constant 0 : index
    %654 = vector.load %arg22[%c1_235, %c0_236, %c0_237] : memref<2x128x128xbf16, #tpu.memory_space<vmem>>, vector<1x128x128xbf16>
    %655 = vector.shape_cast %654 : vector<1x128x128xbf16> to vector<128x128xbf16>
    %656 = arith.truncf %653 : vector<16x128xf32> to vector<16x128xbf16>
    %cst_238 = arith.constant dense<0.000000e+00> : vector<16x128xf32>
    %657 = tpu.matmul %656, %655, %cst_238 {dimension_numbers = #tpu.dot_dimension_numbers<[1], [0], [0], [1], [0, 0, 1, 1], [], []>} : vector<16x128xbf16>, vector<128x128xbf16>, vector<16x128xf32> -> vector<16x128xf32>
    %c1_239 = arith.constant 1 : index
    %c0_240 = arith.constant 0 : index
    %c0_241 = arith.constant 0 : index
    %658 = vector.load %arg23[%c1_239, %c0_240, %c0_241] : memref<2x1x128xf32, #tpu.memory_space<vmem>>, vector<1x1x128xf32>
    %659 = vector.shape_cast %658 : vector<1x1x128xf32> to vector<1x128xf32>
    %660 = vector.broadcast %659 : vector<1x128xf32> to vector<16x128xf32>
    %661 = arith.addf %657, %660 : vector<16x128xf32>
    %cst_242 = arith.constant 0.000000e+00 : f32
    %662 = vector.broadcast %cst_242 : f32 to vector<16x128xf32>
    %663 = arith.maximumf %661, %662 : vector<16x128xf32>
    %c1_243 = arith.constant 1 : index
    %c0_244 = arith.constant 0 : index
    %c0_245 = arith.constant 0 : index
    %664 = vector.load %arg24[%c1_243, %c0_244, %c0_245] : memref<2x128x128xbf16, #tpu.memory_space<vmem>>, vector<1x128x128xbf16>
    %665 = vector.shape_cast %664 : vector<1x128x128xbf16> to vector<128x128xbf16>
    %666 = arith.truncf %663 : vector<16x128xf32> to vector<16x128xbf16>
    %cst_246 = arith.constant dense<0.000000e+00> : vector<16x128xf32>
    %667 = tpu.matmul %666, %665, %cst_246 {dimension_numbers = #tpu.dot_dimension_numbers<[1], [0], [0], [1], [0, 0, 1, 1], [], []>} : vector<16x128xbf16>, vector<128x128xbf16>, vector<16x128xf32> -> vector<16x128xf32>
    %c1_247 = arith.constant 1 : index
    %c0_248 = arith.constant 0 : index
    %c0_249 = arith.constant 0 : index
    %668 = vector.load %arg25[%c1_247, %c0_248, %c0_249] : memref<2x1x128xf32, #tpu.memory_space<vmem>>, vector<1x1x128xf32>
    %669 = vector.shape_cast %668 : vector<1x1x128xf32> to vector<1x128xf32>
    %670 = vector.broadcast %669 : vector<1x128xf32> to vector<16x128xf32>
    %671 = arith.addf %667, %670 : vector<16x128xf32>
    %672 = arith.addf %653, %671 : vector<16x128xf32>
    %673 = vector.extract_strided_slice %480 {offsets = [4, 0], sizes = [1, 128], strides = [1, 1]} : vector<6x128xf32> to vector<1x128xf32>
    %674 = vector.extract_strided_slice %480 {offsets = [5, 0], sizes = [1, 128], strides = [1, 1]} : vector<6x128xf32> to vector<1x128xf32>
    %cst_250 = arith.constant dense<0.000000e+00> : vector<16xf32>
    %675 = vector.multi_reduction <add>, %672, %cst_250 [1] : vector<16x128xf32> to vector<16xf32>
    %676 = vector.shape_cast %675 : vector<16xf32> to vector<16x1xf32>
    %cst_251 = arith.constant 3.125000e-02 : f32
    %677 = vector.broadcast %cst_251 : f32 to vector<16x1xf32>
    %678 = arith.mulf %676, %677 : vector<16x1xf32>
    %679 = vector.broadcast %678 : vector<16x1xf32> to vector<16x128xf32>
    %680 = arith.subf %672, %679 : vector<16x128xf32>
    %681 = vector.broadcast %5 : vector<1x128xf32> to vector<16x128xf32>
    %682 = arith.mulf %680, %681 : vector<16x128xf32>
    %683 = arith.mulf %682, %682 : vector<16x128xf32>
    %cst_252 = arith.constant dense<0.000000e+00> : vector<16xf32>
    %684 = vector.multi_reduction <add>, %683, %cst_252 [1] : vector<16x128xf32> to vector<16xf32>
    %685 = vector.shape_cast %684 : vector<16xf32> to vector<16x1xf32>
    %cst_253 = arith.constant 3.125000e-02 : f32
    %686 = vector.broadcast %cst_253 : f32 to vector<16x1xf32>
    %687 = arith.mulf %685, %686 : vector<16x1xf32>
    %cst_254 = arith.constant 9.99999974E-6 : f32
    %688 = vector.broadcast %cst_254 : f32 to vector<16x1xf32>
    %689 = arith.addf %687, %688 : vector<16x1xf32>
    %690 = math.rsqrt %689 : vector<16x1xf32>
    %691 = vector.broadcast %690 : vector<16x1xf32> to vector<16x128xf32>
    %692 = arith.mulf %682, %691 : vector<16x128xf32>
    %693 = vector.broadcast %673 : vector<1x128xf32> to vector<16x128xf32>
    %694 = arith.mulf %692, %693 : vector<16x128xf32>
    %695 = vector.broadcast %674 : vector<1x128xf32> to vector<16x128xf32>
    %696 = arith.addf %694, %695 : vector<16x128xf32>
    %c0_255 = arith.constant 0 : index
    %c0_256 = arith.constant 0 : index
    %697 = vector.load %arg28[%c0_255, %c0_256] : memref<16x128xf32, #tpu.memory_space<vmem>>, vector<16x128xf32>
    tpu.vector_store %arg28[%c0_255, %c0_256], %696 {strides = array<i32>} : memref<16x128xf32, #tpu.memory_space<vmem>>, vector<16x128xf32>,
    return
  }
}

</mosaic_0001>

<llo_original>
// kernel: transformer_forward.1
$region0: #{transformer_forward.1}
  #allocation0 [shape = 'u32[]', space=smem, size = 0x4, offset = 0x4, fixed_abs, tag = 'smem constant byte address 0x4 - core index']
  #allocation1 [shape = 'u32[144,128]{1,0:T(1,128)}', space=vmem, size = 0x12000, scoped, tag = 'internal scratch']
  %s0 = inlined_call_operand.vmem [shape: f32[16,128], index: 0, kind: input, shape index: {}]
  %s1 = inlined_call_operand.vmem [shape: f32[16,128], index: 1, kind: input, shape index: {}]
  %s2 = inlined_call_operand.vmem [shape: f32[8,8], index: 2, kind: input, shape index: {}]
  %s3 = inlined_call_operand.vmem [shape: bf16[2,128,384], index: 3, kind: input, shape index: {}]
  %s4 = inlined_call_operand.vmem [shape: f32[2,1,384], index: 4, kind: input, shape index: {}]
  %s5 = inlined_call_operand.vmem [shape: bf16[2,128,128], index: 5, kind: input, shape index: {}]
  %s6 = inlined_call_operand.vmem [shape: f32[2,1,128], index: 6, kind: input, shape index: {}]
  %s7 = inlined_call_operand.vmem [shape: bf16[2,128,128], index: 7, kind: input, shape index: {}]
  %s8 = inlined_call_operand.vmem [shape: f32[2,1,128], index: 8, kind: input, shape index: {}]
  %s9 = inlined_call_operand.vmem [shape: bf16[2,128,128], index: 9, kind: input, shape index: {}]
  %s10 = inlined_call_operand.vmem [shape: f32[2,1,128], index: 10, kind: input, shape index: {}]
  %s11 = inlined_call_operand.vmem [shape: f32[2,4,128], index: 11, kind: input, shape index: {}]
  %s12 = inlined_call_operand.vmem [shape: bf16[2,128,384], index: 12, kind: input, shape index: {}]
  %s13 = inlined_call_operand.vmem [shape: f32[2,1,384], index: 13, kind: input, shape index: {}]
  %s14 = inlined_call_operand.vmem [shape: bf16[2,128,128], index: 14, kind: input, shape index: {}]
  %s15 = inlined_call_operand.vmem [shape: f32[2,1,128], index: 15, kind: input, shape index: {}]
  %s16 = inlined_call_operand.vmem [shape: bf16[2,128,128], index: 16, kind: input, shape index: {}]
  %s17 = inlined_call_operand.vmem [shape: f32[2,1,128], index: 17, kind: input, shape index: {}]
  %s18 = inlined_call_operand.vmem [shape: bf16[2,128,256], index: 18, kind: input, shape index: {}]
  %s19 = inlined_call_operand.vmem [shape: f32[2,1,256], index: 19, kind: input, shape index: {}]
  %s20 = inlined_call_operand.vmem [shape: bf16[2,128,128], index: 20, kind: input, shape index: {}]
  %s21 = inlined_call_operand.vmem [shape: f32[2,1,128], index: 21, kind: input, shape index: {}]
  %s22 = inlined_call_operand.vmem [shape: bf16[2,128,128], index: 22, kind: input, shape index: {}]
  %s23 = inlined_call_operand.vmem [shape: f32[2,1,128], index: 23, kind: input, shape index: {}]
  %s24 = inlined_call_operand.hbm [shape: bf16[2,128,128], index: 24, kind: input, shape index: {}]
  %s25 = inlined_call_operand.vmem [shape: f32[2,1,128], index: 25, kind: input, shape index: {}]
  %s26 = inlined_call_operand.vmem [shape: f32[2,6,128], index: 26, kind: input, shape index: {}]
  %s27 = inlined_call_operand.hbm [shape: f32[16,128], index: 27, kind: output, shape index: {0}]
  %s28 = inlined_call_operand.hbm [shape: f32[16,128], index: 28, kind: output, shape index: {1}]
  %29 = xla_tuple %s27, %s28
  %s30 = sld [smem:[#allocation0]]
  $region130: #{transformer_forward.1} parent=0
    _
  %s32 = ssub.s32 1, %s30
  %s33 = scalar_select 0, %s32, %s30
  $region1: #{transformer_forward.1} parent=0
    #allocation2 [shape = 'u8[65536]{0}', space=vmem, size = 0x10000, scoped, tag = 'input window, operand 24, single buffered']
    #allocation3 [shape = 's32[1]{0}', space=sflag, size = 0x4, scoped, tag = 'scoped memory for transformer_forward.1']
    #allocation4 [shape = 's32[1]{0}', space=sflag, size = 0x4, scoped, tag = 'scoped memory for transformer_forward.1']
    #allocation5 [shape = 'u8[8192]{0}', space=vmem, size = 0x2000, scoped, tag = 'output window, operand 0, single buffered']
    #allocation6 [shape = 'u8[8192]{0}', space=vmem, size = 0x2000, scoped, tag = 'output window, operand 1, single buffered']
    #allocation7 [shape = 's32[1]{0}', space=sflag, size = 0x4, scoped, tag = 'scoped memory for transformer_forward.1']
    %34 = vsyncpa [#allocation3], 0
    %35 = vsyncpa [#allocation4], 0
    %36 = vsyncpa [#allocation7], 0
    // Predicated region
    $region2: #{transformer_forward.1} parent=1 // pred_check
      _
    $region3: #{transformer_forward.1} parent=1 // pred_check_branch
      %38 = sbr.rel (0) target = $region5
    $region4: #{transformer_forward.1} parent=1 // pred_region
      _
    $region5: #{transformer_forward.1} parent=1 // pred_fallthru
      _
    // Predicated region
    $region6: #{transformer_forward.1} parent=1 // pred_check
      _
    $region7: #{transformer_forward.1} parent=1 // pred_check_branch
      %40 = sbr.rel (0) target = $region9
    $region8: #{transformer_forward.1} parent=1 // pred_region
      _
    $region9: #{transformer_forward.1} parent=1 // pred_fallthru
      _
    // Predicated region
    $region10: #{transformer_forward.1} parent=1 // pred_check
      _
    $region11: #{transformer_forward.1} parent=1 // pred_check_branch
      %42 = sbr.rel (0) target = $region13
    $region12: #{transformer_forward.1} parent=1 // pred_region
      _
    $region13: #{transformer_forward.1} parent=1 // pred_fallthru
      _
    // Predicated region
    $region14: #{transformer_forward.1} parent=1 // pred_check
      _
    $region15: #{transformer_forward.1} parent=1 // pred_check_branch
      %44 = sbr.rel (0) target = $region17
    $region16: #{transformer_forward.1} parent=1 // pred_region
      _
    $region17: #{transformer_forward.1} parent=1 // pred_fallthru
      _
    // Predicated region
    $region18: #{transformer_forward.1} parent=1 // pred_check
      _
    $region19: #{transformer_forward.1} parent=1 // pred_check_branch
      %46 = sbr.rel (0) target = $region21
    $region20: #{transformer_forward.1} parent=1 // pred_region
      _
    $region21: #{transformer_forward.1} parent=1 // pred_fallthru
      _
    // Predicated region
    $region22: #{transformer_forward.1} parent=1 // pred_check
      _
    $region23: #{transformer_forward.1} parent=1 // pred_check_branch
      %48 = sbr.rel (0) target = $region25
    $region24: #{transformer_forward.1} parent=1 // pred_region
      _
    $region25: #{transformer_forward.1} parent=1 // pred_fallthru
      _
    // Predicated region
    $region26: #{transformer_forward.1} parent=1 // pred_check
      _
    $region27: #{transformer_forward.1} parent=1 // pred_check_branch
      %50 = sbr.rel (0) target = $region29
    $region28: #{transformer_forward.1} parent=1 // pred_region
      _
    $region29: #{transformer_forward.1} parent=1 // pred_fallthru
      _
    // Predicated region
    $region30: #{transformer_forward.1} parent=1 // pred_check
      _
    $region31: #{transformer_forward.1} parent=1 // pred_check_branch
      %52 = sbr.rel (0) target = $region33
    $region32: #{transformer_forward.1} parent=1 // pred_region
      _
    $region33: #{transformer_forward.1} parent=1 // pred_fallthru
      _
    // Predicated region
    $region34: #{transformer_forward.1} parent=1 // pred_check
      _
    $region35: #{transformer_forward.1} parent=1 // pred_check_branch
      %54 = sbr.rel (0) target = $region37
    $region36: #{transformer_forward.1} parent=1 // pred_region
      _
    $region37: #{transformer_forward.1} parent=1 // pred_fallthru
      _
    // Predicated region
    $region38: #{transformer_forward.1} parent=1 // pred_check
      _
    $region39: #{transformer_forward.1} parent=1 // pred_check_branch
      %56 = sbr.rel (0) target = $region41
    $region40: #{transformer_forward.1} parent=1 // pred_region
      _
    $region41: #{transformer_forward.1} parent=1 // pred_fallthru
      _
    // Predicated region
    $region42: #{transformer_forward.1} parent=1 // pred_check
      _
    $region43: #{transformer_forward.1} parent=1 // pred_check_branch
      %58 = sbr.rel (0) target = $region45
    $region44: #{transformer_forward.1} parent=1 // pred_region
      _
    $region45: #{transformer_forward.1} parent=1 // pred_fallthru
      _
    // Predicated region
    $region46: #{transformer_forward.1} parent=1 // pred_check
      _
    $region47: #{transformer_forward.1} parent=1 // pred_check_branch
      %60 = sbr.rel (0) target = $region49
    $region48: #{transformer_forward.1} parent=1 // pred_region
      _
    $region49: #{transformer_forward.1} parent=1 // pred_fallthru
      _
    // Predicated region
    $region50: #{transformer_forward.1} parent=1 // pred_check
      _
    $region51: #{transformer_forward.1} parent=1 // pred_check_branch
      %62 = sbr.rel (0) target = $region53
    $region52: #{transformer_forward.1} parent=1 // pred_region
      _
    $region53: #{transformer_forward.1} parent=1 // pred_fallthru
      _
    // Predicated region
    $region54: #{transformer_forward.1} parent=1 // pred_check
      _
    $region55: #{transformer_forward.1} parent=1 // pred_check_branch
      %64 = sbr.rel (0) target = $region57
    $region56: #{transformer_forward.1} parent=1 // pred_region
      _
    $region57: #{transformer_forward.1} parent=1 // pred_fallthru
      _
    // Predicated region
    $region58: #{transformer_forward.1} parent=1 // pred_check
      _
    $region59: #{transformer_forward.1} parent=1 // pred_check_branch
      %66 = sbr.rel (0) target = $region61
    $region60: #{transformer_forward.1} parent=1 // pred_region
      _
    $region61: #{transformer_forward.1} parent=1 // pred_fallthru
      _
    // Predicated region
    $region62: #{transformer_forward.1} parent=1 // pred_check
      _
    $region63: #{transformer_forward.1} parent=1 // pred_check_branch
      %68 = sbr.rel (0) target = $region65
    $region64: #{transformer_forward.1} parent=1 // pred_region
      _
    $region65: #{transformer_forward.1} parent=1 // pred_fallthru
      _
    // Predicated region
    $region66: #{transformer_forward.1} parent=1 // pred_check
      _
    $region67: #{transformer_forward.1} parent=1 // pred_check_branch
      %70 = sbr.rel (0) target = $region69
    $region68: #{transformer_forward.1} parent=1 // pred_region
      _
    $region69: #{transformer_forward.1} parent=1 // pred_fallthru
      _
    // Predicated region
    $region70: #{transformer_forward.1} parent=1 // pred_check
      _
    $region71: #{transformer_forward.1} parent=1 // pred_check_branch
      %72 = sbr.rel (0) target = $region73
    $region72: #{transformer_forward.1} parent=1 // pred_region
      _
    $region73: #{transformer_forward.1} parent=1 // pred_fallthru
      _
    // Predicated region
    $region74: #{transformer_forward.1} parent=1 // pred_check
      _
    $region75: #{transformer_forward.1} parent=1 // pred_check_branch
      %74 = sbr.rel (0) target = $region77
    $region76: #{transformer_forward.1} parent=1 // pred_region
      _
    $region77: #{transformer_forward.1} parent=1 // pred_fallthru
      _
    // Predicated region
    $region78: #{transformer_forward.1} parent=1 // pred_check
      _
    $region79: #{transformer_forward.1} parent=1 // pred_check_branch
      %76 = sbr.rel (0) target = $region81
    $region80: #{transformer_forward.1} parent=1 // pred_region
      _
    $region81: #{transformer_forward.1} parent=1 // pred_fallthru
      _
    // Predicated region
    $region82: #{transformer_forward.1} parent=1 // pred_check
      _
    $region83: #{transformer_forward.1} parent=1 // pred_check_branch
      %78 = sbr.rel (0) target = $region85
    $region84: #{transformer_forward.1} parent=1 // pred_region
      _
    $region85: #{transformer_forward.1} parent=1 // pred_fallthru
      _
    // Predicated region
    $region86: #{transformer_forward.1} parent=1 // pred_check
      _
    $region87: #{transformer_forward.1} parent=1 // pred_check_branch
      %80 = sbr.rel (0) target = $region89
    $region88: #{transformer_forward.1} parent=1 // pred_region
      _
    $region89: #{transformer_forward.1} parent=1 // pred_fallthru
      _
    // Predicated region
    $region90: #{transformer_forward.1} parent=1 // pred_check
      _
    $region91: #{transformer_forward.1} parent=1 // pred_check_branch
      %82 = sbr.rel (0) target = $region93
    $region92: #{transformer_forward.1} parent=1 // pred_region
      _
    $region93: #{transformer_forward.1} parent=1 // pred_fallthru
      _
    // Predicated region
    $region94: #{transformer_forward.1} parent=1 // pred_check
      _
    $region95: #{transformer_forward.1} parent=1 // pred_check_branch
      %84 = sbr.rel (0) target = $region97
    $region96: #{transformer_forward.1} parent=1 // pred_region
      _
    $region97: #{transformer_forward.1} parent=1 // pred_fallthru
      _
    // Predicated region
    $region98: #{transformer_forward.1} parent=1 // pred_check
      _
    $region99: #{transformer_forward.1} parent=1 // pred_check_branch
      %86 = sbr.rel (0) target = $region101
    $region100: #{transformer_forward.1} parent=1 // pred_region
      %s88 = ssub.s32 2048, 2048
      %89 = vsyncadd [#allocation3], %s88
      %s90 = sshll.u32 [#allocation2], 4
      %s91 = int_to_ptr.vmem [resolvable:$true] %s90
      %96 = dma.hbm_to_vmem [thread:$0]  %s24, 2048, %s91, [#allocation3], 64, 64, 4
    $region101: #{transformer_forward.1} parent=1 // pred_fallthru
      _
    // Predicated region
    $region102: #{transformer_forward.1} parent=1 // pred_check
      _
    $region103: #{transformer_forward.1} parent=1 // pred_check_branch
      %98 = sbr.rel (0) target = $region105
    $region104: #{transformer_forward.1} parent=1 // pred_region
      _
    $region105: #{transformer_forward.1} parent=1 // pred_fallthru
      _
    // Predicated region
    $region106: #{transformer_forward.1} parent=1 // pred_check
      _
    $region107: #{transformer_forward.1} parent=1 // pred_check_branch
      %100 = sbr.rel (0) target = $region109
    $region108: #{transformer_forward.1} parent=1 // pred_region
      _
    $region109: #{transformer_forward.1} parent=1 // pred_fallthru
      _
    // Predicated region
    $region110: #{transformer_forward.1} parent=1 // pred_check
      _
    $region111: #{transformer_forward.1} parent=1 // pred_check_branch
      %102 = sbr.rel (0) target = $region113
    $region112: #{transformer_forward.1} parent=1 // pred_region
      %103 = dma.done [#allocation3], 2048
    $region113: #{transformer_forward.1} parent=1 // pred_fallthru
      _
    %v105 = vld [vmem:[%s2] sm:$0xff]
    %v106 = vlaneseq
    %v107 = vand.u32 %v106, 127
    %vm108 = vcmp.lt.s32.totalorder %v107, 32
    %v109 = vsel %vm108, 1, 0
    %v110 = vcvt.s32.f32 %v109
    %v111 = vld [vmem:[%s0] sm:$0xff]
    %v112 = vld [vmem:[%s0 + $0x8] sm:$0xff]
    %v113 = vld [vmem:[%s11] sm:$0xf]
    %v114 = vld [vmem:[%s3] sm:$0xff]
    %v115 = vld [vmem:[%s3 + $0x8] sm:$0xf]
    %v116 = vld [vmem:[%s3 + $0xc] sm:$0xff]
    %v117 = vld [vmem:[%s3 + $0x14] sm:$0xf]
    %v118 = vld [vmem:[%s3 + $0x18] sm:$0xff]
    %v119 = vld [vmem:[%s3 + $0x20] sm:$0xf]
    %v120 = vld [vmem:[%s3 + $0x24] sm:$0xff]
    %v121 = vld [vmem:[%s3 + $0x2c] sm:$0xf]
    %v122 = vld [vmem:[%s3 + $0x30] sm:$0xff]
    %v123 = vld [vmem:[%s3 + $0x38] sm:$0xf]
    %v124 = vld [vmem:[%s3 + $0x3c] sm:$0xff]
    %v125 = vld [vmem:[%s3 + $0x44] sm:$0xf]
    %v126 = vld [vmem:[%s3 + $0x48] sm:$0xff]
    %v127 = vld [vmem:[%s3 + $0x50] sm:$0xf]
    %v128 = vld [vmem:[%s3 + $0x54] sm:$0xff]
    %v129 = vld [vmem:[%s3 + $0x5c] sm:$0xf]
    %v130 = vld [vmem:[%s3 + $0x60] sm:$0xff]
    %v131 = vld [vmem:[%s3 + $0x68] sm:$0xf]
    %v132 = vld [vmem:[%s3 + $0x6c] sm:$0xff]
    %v133 = vld [vmem:[%s3 + $0x74] sm:$0xf]
    %v134 = vld [vmem:[%s3 + $0x78] sm:$0xff]
    %v135 = vld [vmem:[%s3 + $0x80] sm:$0xf]
    %v136 = vld [vmem:[%s3 + $0x84] sm:$0xff]
    %v137 = vld [vmem:[%s3 + $0x8c] sm:$0xf]
    %v138 = vld [vmem:[%s3 + $0x90] sm:$0xff]
    %v139 = vld [vmem:[%s3 + $0x98] sm:$0xf]
    %v140 = vld [vmem:[%s3 + $0x9c] sm:$0xff]
    %v141 = vld [vmem:[%s3 + $0xa4] sm:$0xf]
    %v142 = vld [vmem:[%s3 + $0xa8] sm:$0xff]
    %v143 = vld [vmem:[%s3 + $0xb0] sm:$0xf]
    %v144 = vld [vmem:[%s3 + $0xb4] sm:$0xff]
    %v145 = vld [vmem:[%s3 + $0xbc] sm:$0xf]
    %v146 = vpack.c.bf16 %v112, %v111
    %v147 = vld [vmem:[%s4] sm:$0x7]
    %v149 = vlaneseq
    %v150 = vshrl.u32 %v149, 7
    %v151 = vsub.s32 0, %v150
    %v152 = vrot.slane %v147, %v151
    %v153 = vlaneseq
    %v154 = vshrl.u32 %v153, 7
    %v155 = vsub.s32 1, %v154
    %v156 = vrot.slane %v147, %v155
    %v157 = vlaneseq
    %v158 = vshrl.u32 %v157, 7
    %v159 = vsub.s32 2, %v158
    %v160 = vrot.slane %v147, %v159
    %v196 = vunpack.c.l.b16 %v114
    %v197 = vunpack.c.h.b16 %v114
    %v198 = vunpack.c.l.b16 %v115
    %v199 = vunpack.c.l.b16 %v116
    %v200 = vunpack.c.h.b16 %v116
    %v201 = vunpack.c.l.b16 %v117
    %v202 = vunpack.c.l.b16 %v118
    %v203 = vunpack.c.h.b16 %v118
    %v204 = vunpack.c.l.b16 %v119
    %v205 = vunpack.c.l.b16 %v120
    %v206 = vunpack.c.h.b16 %v120
    %v207 = vunpack.c.l.b16 %v121
    %v208 = vunpack.c.l.b16 %v122
    %v209 = vunpack.c.h.b16 %v122
    %v210 = vunpack.c.l.b16 %v123
    %v211 = vunpack.c.l.b16 %v124
    %v212 = vunpack.c.h.b16 %v124
    %v213 = vunpack.c.l.b16 %v125
    %v214 = vunpack.c.l.b16 %v126
    %v215 = vunpack.c.h.b16 %v126
    %v216 = vunpack.c.l.b16 %v127
    %v217 = vunpack.c.l.b16 %v128
    %v218 = vunpack.c.h.b16 %v128
    %v219 = vunpack.c.l.b16 %v129
    %v220 = vunpack.c.l.b16 %v130
    %v221 = vunpack.c.h.b16 %v130
    %v222 = vunpack.c.l.b16 %v131
    %v223 = vunpack.c.l.b16 %v132
    %v224 = vunpack.c.h.b16 %v132
    %v225 = vunpack.c.l.b16 %v133
    %v226 = vunpack.c.l.b16 %v134
    %v227 = vunpack.c.h.b16 %v134
    %v228 = vunpack.c.l.b16 %v135
    %v229 = vunpack.c.l.b16 %v136
    %v230 = vunpack.c.h.b16 %v136
    %v231 = vunpack.c.l.b16 %v137
    %v232 = vunpack.c.l.b16 %v138
    %v233 = vunpack.c.h.b16 %v138
    %v234 = vunpack.c.l.b16 %v139
    %v235 = vunpack.c.l.b16 %v140
    %v236 = vunpack.c.h.b16 %v140
    %v237 = vunpack.c.l.b16 %v141
    %v238 = vunpack.c.l.b16 %v142
    %v239 = vunpack.c.h.b16 %v142
    %v240 = vunpack.c.l.b16 %v143
    %v241 = vunpack.c.l.b16 %v144
    %v242 = vunpack.c.h.b16 %v144
    %v243 = vunpack.c.l.b16 %v145
    %v244 = vpack.c.b16 %v199, %v196
    %v245 = vpack.c.b16 %v200, %v197
    %v246 = vpack.c.b16 %v201, %v198
    %v247 = vpack.c.b16 %v205, %v202
    %v248 = vpack.c.b16 %v206, %v203
    %v249 = vpack.c.b16 %v207, %v204
    %v250 = vpack.c.b16 %v211, %v208
    %v251 = vpack.c.b16 %v212, %v209
    %v252 = vpack.c.b16 %v213, %v210
    %v253 = vpack.c.b16 %v217, %v214
    %v254 = vpack.c.b16 %v218, %v215
    %v255 = vpack.c.b16 %v219, %v216
    %v256 = vpack.c.b16 %v223, %v220
    %v257 = vpack.c.b16 %v224, %v221
    %v258 = vpack.c.b16 %v225, %v222
    %v259 = vpack.c.b16 %v229, %v226
    %v260 = vpack.c.b16 %v230, %v227
    %v261 = vpack.c.b16 %v231, %v228
    %v262 = vpack.c.b16 %v235, %v232
    %v263 = vpack.c.b16 %v236, %v233
    %v264 = vpack.c.b16 %v237, %v234
    %v265 = vpack.c.b16 %v241, %v238
    %v266 = vpack.c.b16 %v242, %v239
    %v267 = vpack.c.b16 %v243, %v240
    %292 = vmatprep.subr.bf16.mxu0 %v245
    %293 = vmatpush1.bf16.msra.mxu0 %v244
    %294 = vmatprep.subr.bf16.mxu0 %v248
    %295 = vmatpush1.bf16.msra.mxu0 %v247
    %296 = vmatprep.subr.bf16.mxu0 %v251
    %297 = vmatpush1.bf16.msra.mxu0 %v250
    %298 = vmatprep.subr.bf16.mxu0 %v254
    %299 = vmatpush1.bf16.msra.mxu0 %v253
    %300 = vmatprep.subr.bf16.mxu0 %v257
    %301 = vmatpush1.bf16.msra.mxu0 %v256
    %302 = vmatprep.subr.bf16.mxu0 %v260
    %303 = vmatpush1.bf16.msra.mxu0 %v259
    %304 = vmatprep.subr.bf16.mxu0 %v263
    %305 = vmatpush1.bf16.msra.mxu0 %v262
    %306 = vmatprep.subr.bf16.mxu0 %v266
    %307 = vmatpush1.bf16.msra.mxu0 %v265
    %308 = vmatprep.subr.bf16.mxu0 0
    %309 = vmatpush1.bf16.msra.mxu0 0
    %310 = vmatprep.subr.bf16.mxu0 0
    %311 = vmatpush1.bf16.msra.mxu0 0
    %312 = vmatprep.subr.bf16.mxu0 0
    %313 = vmatpush1.bf16.msra.mxu0 0
    %314 = vmatprep.subr.bf16.mxu0 0
    %315 = vmatpush1.bf16.msra.mxu0 0
    %316 = vmatprep.subr.bf16.mxu0 0
    %317 = vmatpush1.bf16.msra.mxu0 0
    %318 = vmatprep.subr.bf16.mxu0 0
    %319 = vmatpush1.bf16.msra.mxu0 0
    %320 = vmatprep.subr.bf16.mxu0 0
    %321 = vmatpush1.bf16.msra.mxu0 0
    %322 = vmatprep.subr.bf16.mxu0 0
    %323 = vmatpush1.bf16.msra.mxu0 0
    %324 = vmatprep.mubr.bf16.mxu0 0
    %325 = vmatmul.mubr.bf16.gmra.mrb[0].mxu0 %v146
    %v326 = vpop.f32.mrb[0].mxu0
    %v327 = vadd.f32 %v152, %v326
    %v328 = vpop.f32.mrb[0].mxu0
    %v329 = vadd.f32 %v156, %v328
    %v330 = vpop.f32.mrb[0].mxu0
    %v331 = vadd.f32 %v152, %v330
    %v332 = vpop.f32.mrb[0].mxu0
    %v333 = vadd.f32 %v156, %v332
    %334 = vdwg.mxu0
    %335 = vmatprep.subr.bf16.mxu0 0
    %336 = vmatpush1.bf16.msra.mxu0 %v246
    %337 = vmatprep.subr.bf16.mxu0 0
    %338 = vmatpush1.bf16.msra.mxu0 %v249
    %339 = vmatprep.subr.bf16.mxu0 0
    %340 = vmatpush1.bf16.msra.mxu0 %v252
    %341 = vmatprep.subr.bf16.mxu0 0
    %342 = vmatpush1.bf16.msra.mxu0 %v255
    %343 = vmatprep.subr.bf16.mxu0 0
    %344 = vmatpush1.bf16.msra.mxu0 %v258
    %345 = vmatprep.subr.bf16.mxu0 0
    %346 = vmatpush1.bf16.msra.mxu0 %v261
    %347 = vmatprep.subr.bf16.mxu0 0
    %348 = vmatpush1.bf16.msra.mxu0 %v264
    %349 = vmatprep.subr.bf16.mxu0 0
    %350 = vmatpush1.bf16.msra.mxu0 %v267
    %351 = vmatprep.subr.bf16.mxu0 0
    %352 = vmatpush1.bf16.msra.mxu0 0
    %353 = vmatprep.subr.bf16.mxu0 0
    %354 = vmatpush1.bf16.msra.mxu0 0
    %355 = vmatprep.subr.bf16.mxu0 0
    %356 = vmatpush1.bf16.msra.mxu0 0
    %357 = vmatprep.subr.bf16.mxu0 0
    %358 = vmatpush1.bf16.msra.mxu0 0
    %359 = vmatprep.subr.bf16.mxu0 0
    %360 = vmatpush1.bf16.msra.mxu0 0
    %361 = vmatprep.subr.bf16.mxu0 0
    %362 = vmatpush1.bf16.msra.mxu0 0
    %363 = vmatprep.subr.bf16.mxu0 0
    %364 = vmatpush1.bf16.msra.mxu0 0
    %365 = vmatprep.subr.bf16.mxu0 0
    %366 = vmatpush1.bf16.msra.mxu0 0
    %367 = vmatprep.mubr.bf16.mxu0 0
    %368 = vmatmul.mubr.bf16.gmra.mrb[0].mxu0 %v146
    %v369 = vpop.f32.mrb[0].mxu0
    %v370 = vadd.f32 %v160, %v369
    %v371 = vpop.f32.mrb[0].mxu0
    %v372 = vpop.f32.mrb[0].mxu0
    %v373 = vadd.f32 %v160, %v372
    %v374 = vpop.f32.mrb[0].mxu0
    %375 = vdwg.mxu0
    %v376 = vpack.c.bf16 %v331, %v327
    %v377 = vpack.c.bf16 %v333, %v329
    %v378 = vpack.c.bf16 %v373, %v370
    %v380 = vunpack.c.l.b16 %v376
    %v381 = vunpack.c.h.b16 %v376
    %v382 = vpack.c.b16 %v380, %v380
    %v383 = vpack.c.b16 %v381, %v381
    %384 = vrot.lane.b32.xlu0 %v382, 64
    %v385 = vpop.permute.xlu0 %384
    %386 = vrot.lane.b32.xlu0 %v383, 64
    %v387 = vpop.permute.xlu0 %386
    %v389 = vunpack.c.l.b16 %v377
    %v390 = vunpack.c.h.b16 %v377
    %v391 = vpack.c.b16 %v389, %v389
    %v392 = vpack.c.b16 %v390, %v390
    %393 = vrot.lane.b32.xlu0 %v391, 64
    %v394 = vpop.permute.xlu0 %393
    %395 = vrot.lane.b32.xlu0 %v392, 64
    %v396 = vpop.permute.xlu0 %395
    %v398 = vunpack.c.l.b16 %v378
    %v399 = vunpack.c.h.b16 %v378
    %v400 = vpack.c.b16 %v398, %v398
    %v401 = vpack.c.b16 %v399, %v399
    %402 = vrot.lane.b32.xlu0 %v400, 64
    %v403 = vpop.permute.xlu0 %402
    %404 = vrot.lane.b32.xlu0 %v401, 64
    %v405 = vpop.permute.xlu0 %404
    %vm406 = vcmask 523264
    %v408 = vsel %vm406, %v382, 0
    %v411 = vsel %vm406, %v391, 0
    %413 = vmatprep.subr.bf16.mxu0 0
    %414 = vmatpush1.bf16.xpose.msra.mxu0 %v411
    %415 = vmatprep.subr.bf16.mxu0 0
    %416 = vmatpush1.bf16.xpose.msra.mxu0 0
    %417 = vmatprep.subr.bf16.mxu0 0
    %418 = vmatpush1.bf16.xpose.msra.mxu0 0
    %419 = vmatprep.subr.bf16.mxu0 0
    %420 = vmatpush1.bf16.xpose.msra.mxu0 0
    %421 = vmatprep.subr.bf16.mxu0 0
    %422 = vmatpush1.bf16.xpose.msra.mxu0 0
    %423 = vmatprep.subr.bf16.mxu0 0
    %424 = vmatpush1.bf16.xpose.msra.mxu0 0
    %425 = vmatprep.subr.bf16.mxu0 0
    %426 = vmatpush1.bf16.xpose.msra.mxu0 0
    %427 = vmatprep.subr.bf16.mxu0 0
    %428 = vmatpush1.bf16.xpose.msra.mxu0 0
    %429 = vmatprep.subr.bf16.mxu0 0
    %430 = vmatpush1.bf16.xpose.msra.mxu0 0
    %431 = vmatprep.subr.bf16.mxu0 0
    %432 = vmatpush1.bf16.xpose.msra.mxu0 0
    %433 = vmatprep.subr.bf16.mxu0 0
    %434 = vmatpush1.bf16.xpose.msra.mxu0 0
    %435 = vmatprep.subr.bf16.mxu0 0
    %436 = vmatpush1.bf16.xpose.msra.mxu0 0
    %437 = vmatprep.subr.bf16.mxu0 0
    %438 = vmatpush1.bf16.xpose.msra.mxu0 0
    %439 = vmatprep.subr.bf16.mxu0 0
    %440 = vmatpush1.bf16.xpose.msra.mxu0 0
    %441 = vmatprep.subr.bf16.mxu0 0
    %442 = vmatpush1.bf16.xpose.msra.mxu0 0
    %443 = vmatprep.subr.bf16.mxu0 0
    %444 = vmatpush1.bf16.xpose.msra.mxu0 0
    %445 = vmatprep.mubr.bf16.mxu0 0
    %446 = vmatmul.mubr.bf16.gmra.mrb[0].mxu0 %v408
    %v447 = vpop.f32.mrb[0].mxu0
    %v448 = vadd.f32 0.0, %v447
    %v449 = vpop.f32.mrb[0].mxu0
    %v450 = vpop.f32.mrb[0].mxu0
    %v451 = vpop.f32.mrb[0].mxu0
    %452 = vdwg.mxu0
    %v454 = vsel %vm406, %v383, 0
    %v457 = vsel %vm406, %v392, 0
    %459 = vmatprep.subr.bf16.mxu0 0
    %460 = vmatpush1.bf16.xpose.msra.mxu0 %v457
    %461 = vmatprep.subr.bf16.mxu0 0
    %462 = vmatpush1.bf16.xpose.msra.mxu0 0
    %463 = vmatprep.subr.bf16.mxu0 0
    %464 = vmatpush1.bf16.xpose.msra.mxu0 0
    %465 = vmatprep.subr.bf16.mxu0 0
    %466 = vmatpush1.bf16.xpose.msra.mxu0 0
    %467 = vmatprep.subr.bf16.mxu0 0
    %468 = vmatpush1.bf16.xpose.msra.mxu0 0
    %469 = vmatprep.subr.bf16.mxu0 0
    %470 = vmatpush1.bf16.xpose.msra.mxu0 0
    %471 = vmatprep.subr.bf16.mxu0 0
    %472 = vmatpush1.bf16.xpose.msra.mxu0 0
    %473 = vmatprep.subr.bf16.mxu0 0
    %474 = vmatpush1.bf16.xpose.msra.mxu0 0
    %475 = vmatprep.subr.bf16.mxu0 0
    %476 = vmatpush1.bf16.xpose.msra.mxu0 0
    %477 = vmatprep.subr.bf16.mxu0 0
    %478 = vmatpush1.bf16.xpose.msra.mxu0 0
    %479 = vmatprep.subr.bf16.mxu0 0
    %480 = vmatpush1.bf16.xpose.msra.mxu0 0
    %481 = vmatprep.subr.bf16.mxu0 0
    %482 = vmatpush1.bf16.xpose.msra.mxu0 0
    %483 = vmatprep.subr.bf16.mxu0 0
    %484 = vmatpush1.bf16.xpose.msra.mxu0 0
    %485 = vmatprep.subr.bf16.mxu0 0
    %486 = vmatpush1.bf16.xpose.msra.mxu0 0
    %487 = vmatprep.subr.bf16.mxu0 0
    %488 = vmatpush1.bf16.xpose.msra.mxu0 0
    %489 = vmatprep.subr.bf16.mxu0 0
    %490 = vmatpush1.bf16.xpose.msra.mxu0 0
    %491 = vmatprep.mubr.bf16.mxu0 0
    %492 = vmatmul.mubr.bf16.gmra.mrb[0].mxu0 %v454
    %v493 = vpop.f32.mrb[0].mxu0
    %v494 = vadd.f32 0.0, %v493
    %v495 = vpop.f32.mrb[0].mxu0
    %v496 = vpop.f32.mrb[0].mxu0
    %v497 = vpop.f32.mrb[0].mxu0
    %498 = vdwg.mxu0
    %v500 = vsel %vm406, %v385, 0
    %v503 = vsel %vm406, %v394, 0
    %505 = vmatprep.subr.bf16.mxu0 0
    %506 = vmatpush1.bf16.xpose.msra.mxu0 %v503
    %507 = vmatprep.subr.bf16.mxu0 0
    %508 = vmatpush1.bf16.xpose.msra.mxu0 0
    %509 = vmatprep.subr.bf16.mxu0 0
    %510 = vmatpush1.bf16.xpose.msra.mxu0 0
    %511 = vmatprep.subr.bf16.mxu0 0
    %512 = vmatpush1.bf16.xpose.msra.mxu0 0
    %513 = vmatprep.subr.bf16.mxu0 0
    %514 = vmatpush1.bf16.xpose.msra.mxu0 0
    %515 = vmatprep.subr.bf16.mxu0 0
    %516 = vmatpush1.bf16.xpose.msra.mxu0 0
    %517 = vmatprep.subr.bf16.mxu0 0
    %518 = vmatpush1.bf16.xpose.msra.mxu0 0
    %519 = vmatprep.subr.bf16.mxu0 0
    %520 = vmatpush1.bf16.xpose.msra.mxu0 0
    %521 = vmatprep.subr.bf16.mxu0 0
    %522 = vmatpush1.bf16.xpose.msra.mxu0 0
    %523 = vmatprep.subr.bf16.mxu0 0
    %524 = vmatpush1.bf16.xpose.msra.mxu0 0
    %525 = vmatprep.subr.bf16.mxu0 0
    %526 = vmatpush1.bf16.xpose.msra.mxu0 0
    %527 = vmatprep.subr.bf16.mxu0 0
    %528 = vmatpush1.bf16.xpose.msra.mxu0 0
    %529 = vmatprep.subr.bf16.mxu0 0
    %530 = vmatpush1.bf16.xpose.msra.mxu0 0
    %531 = vmatprep.subr.bf16.mxu0 0
    %532 = vmatpush1.bf16.xpose.msra.mxu0 0
    %533 = vmatprep.subr.bf16.mxu0 0
    %534 = vmatpush1.bf16.xpose.msra.mxu0 0
    %535 = vmatprep.subr.bf16.mxu0 0
    %536 = vmatpush1.bf16.xpose.msra.mxu0 0
    %537 = vmatprep.mubr.bf16.mxu0 0
    %538 = vmatmul.mubr.bf16.gmra.mrb[0].mxu0 %v500
    %v539 = vpop.f32.mrb[0].mxu0
    %v540 = vadd.f32 0.0, %v539
    %v541 = vpop.f32.mrb[0].mxu0
    %v542 = vpop.f32.mrb[0].mxu0
    %v543 = vpop.f32.mrb[0].mxu0
    %544 = vdwg.mxu0
    %v546 = vsel %vm406, %v387, 0
    %v549 = vsel %vm406, %v396, 0
    %551 = vmatprep.subr.bf16.mxu0 0
    %552 = vmatpush1.bf16.xpose.msra.mxu0 %v549
    %553 = vmatprep.subr.bf16.mxu0 0
    %554 = vmatpush1.bf16.xpose.msra.mxu0 0
    %555 = vmatprep.subr.bf16.mxu0 0
    %556 = vmatpush1.bf16.xpose.msra.mxu0 0
    %557 = vmatprep.subr.bf16.mxu0 0
    %558 = vmatpush1.bf16.xpose.msra.mxu0 0
    %559 = vmatprep.subr.bf16.mxu0 0
    %560 = vmatpush1.bf16.xpose.msra.mxu0 0
    %561 = vmatprep.subr.bf16.mxu0 0
    %562 = vmatpush1.bf16.xpose.msra.mxu0 0
    %563 = vmatprep.subr.bf16.mxu0 0
    %564 = vmatpush1.bf16.xpose.msra.mxu0 0
    %565 = vmatprep.subr.bf16.mxu0 0
    %566 = vmatpush1.bf16.xpose.msra.mxu0 0
    %567 = vmatprep.subr.bf16.mxu0 0
    %568 = vmatpush1.bf16.xpose.msra.mxu0 0
    %569 = vmatprep.subr.bf16.mxu0 0
    %570 = vmatpush1.bf16.xpose.msra.mxu0 0
    %571 = vmatprep.subr.bf16.mxu0 0
    %572 = vmatpush1.bf16.xpose.msra.mxu0 0
    %573 = vmatprep.subr.bf16.mxu0 0
    %574 = vmatpush1.bf16.xpose.msra.mxu0 0
    %575 = vmatprep.subr.bf16.mxu0 0
    %576 = vmatpush1.bf16.xpose.msra.mxu0 0
    %577 = vmatprep.subr.bf16.mxu0 0
    %578 = vmatpush1.bf16.xpose.msra.mxu0 0
    %579 = vmatprep.subr.bf16.mxu0 0
    %580 = vmatpush1.bf16.xpose.msra.mxu0 0
    %581 = vmatprep.subr.bf16.mxu0 0
    %582 = vmatpush1.bf16.xpose.msra.mxu0 0
    %583 = vmatprep.mubr.bf16.mxu0 0
    %584 = vmatmul.mubr.bf16.gmra.mrb[0].mxu0 %v546
    %v585 = vpop.f32.mrb[0].mxu0
    %v586 = vadd.f32 0.0, %v585
    %v587 = vpop.f32.mrb[0].mxu0
    %v588 = vpop.f32.mrb[0].mxu0
    %v589 = vpop.f32.mrb[0].mxu0
    %590 = vdwg.mxu0
    %v591 = vmul.f32 %v448, 0.25
    %v592 = vmul.f32 %v494, 0.25
    %v593 = vmul.f32 %v540, 0.25
    %v594 = vmul.f32 %v586, 0.25
    %vm595 = vcmask 64512
    %v596 = vsel %vm595, %v591, -inf
    %597 = vmax.xlane.f32.xlu0 %v596
    %v598 = vpop.xlane.xlu0 %597
    %v599 = vsel %vm595, %v592, -inf
    %600 = vmax.xlane.f32.xlu0 %v599
    %v601 = vpop.xlane.xlu0 %600
    %v602 = vsel %vm595, %v593, -inf
    %603 = vmax.xlane.f32.xlu0 %v602
    %v604 = vpop.xlane.xlu0 %603
    %v605 = vsel %vm595, %v594, -inf
    %606 = vmax.xlane.f32.xlu0 %v605
    %v607 = vpop.xlane.xlu0 %606
    %v608 = vsub.f32 %v591, %v598
    %v609 = vsub.f32 %v592, %v601
    %v610 = vsub.f32 %v593, %v604
    %v611 = vsub.f32 %v594, %v607
    %v612 = vmul.f32 %v608, 1.442695
    %v613 = vpow.pop %v612
    %v614 = vmul.f32 %v609, 1.442695
    %v615 = vpow.pop %v614
    %v616 = vmul.f32 %v610, 1.442695
    %v617 = vpow.pop %v616
    %v618 = vmul.f32 %v611, 1.442695
    %v619 = vpow.pop %v618
    %v620 = vsel %vm595, %v613, 0.0
    %621 = vadd.xlane.f32.xlu0 %v620
    %v622 = vpop.xlane.xlu0 %621
    %v623 = vsel %vm595, %v615, 0.0
    %624 = vadd.xlane.f32.xlu0 %v623
    %v625 = vpop.xlane.xlu0 %624
    %v626 = vsel %vm595, %v617, 0.0
    %627 = vadd.xlane.f32.xlu0 %v626
    %v628 = vpop.xlane.xlu0 %627
    %v629 = vsel %vm595, %v619, 0.0
    %630 = vadd.xlane.f32.xlu0 %v629
    %v631 = vpop.xlane.xlu0 %630
    %v632 = vrcp.pop %v622
    %v633 = vrcp.pop %v625
    %v634 = vrcp.pop %v628
    %v635 = vrcp.pop %v631
    %v636 = vmul.f32 %v613, %v632
    %v637 = vmul.f32 %v615, %v633
    %v638 = vmul.f32 %v617, %v634
    %v639 = vmul.f32 %v619, %v635
    %v640 = vpack.c.bf16 %v636, %v636
    %v641 = vpack.c.bf16 %v637, %v637
    %v642 = vpack.c.bf16 %v638, %v638
    %v643 = vpack.c.bf16 %v639, %v639
    %v645 = vsel %vm595, %v640, 0
    %vm647 = vcmask 1043456
    %v649 = vsel %vm647, %v400, 0
    %651 = vmatprep.subr.bf16.mxu0 0
    %652 = vmatpush1.bf16.msra.mxu0 %v649
    %653 = vmatprep.subr.bf16.mxu0 0
    %654 = vmatpush1.bf16.msra.mxu0 0
    %655 = vmatprep.subr.bf16.mxu0 0
    %656 = vmatpush1.bf16.msra.mxu0 0
    %657 = vmatprep.subr.bf16.mxu0 0
    %658 = vmatpush1.bf16.msra.mxu0 0
    %659 = vmatprep.subr.bf16.mxu0 0
    %660 = vmatpush1.bf16.msra.mxu0 0
    %661 = vmatprep.subr.bf16.mxu0 0
    %662 = vmatpush1.bf16.msra.mxu0 0
    %663 = vmatprep.subr.bf16.mxu0 0
    %664 = vmatpush1.bf16.msra.mxu0 0
    %665 = vmatprep.subr.bf16.mxu0 0
    %666 = vmatpush1.bf16.msra.mxu0 0
    %667 = vmatprep.subr.bf16.mxu0 0
    %668 = vmatpush1.bf16.msra.mxu0 0
    %669 = vmatprep.subr.bf16.mxu0 0
    %670 = vmatpush1.bf16.msra.mxu0 0
    %671 = vmatprep.subr.bf16.mxu0 0
    %672 = vmatpush1.bf16.msra.mxu0 0
    %673 = vmatprep.subr.bf16.mxu0 0
    %674 = vmatpush1.bf16.msra.mxu0 0
    %675 = vmatprep.subr.bf16.mxu0 0
    %676 = vmatpush1.bf16.msra.mxu0 0
    %677 = vmatprep.subr.bf16.mxu0 0
    %678 = vmatpush1.bf16.msra.mxu0 0
    %679 = vmatprep.subr.bf16.mxu0 0
    %680 = vmatpush1.bf16.msra.mxu0 0
    %681 = vmatprep.subr.bf16.mxu0 0
    %682 = vmatpush1.bf16.msra.mxu0 0
    %683 = vmatprep.mubr.bf16.mxu0 0
    %684 = vmatmul.mubr.bf16.gmra.mrb[0].mxu0 %v645
    %v685 = vpop.f32.mrb[0].mxu0
    %v686 = vadd.f32 0.0, %v685
    %v687 = vpop.f32.mrb[0].mxu0
    %v688 = vpop.f32.mrb[0].mxu0
    %v689 = vpop.f32.mrb[0].mxu0
    %690 = vdwg.mxu0
    %v692 = vsel %vm595, %v641, 0
    %v695 = vsel %vm647, %v401, 0
    %697 = vmatprep.subr.bf16.mxu0 0
    %698 = vmatpush1.bf16.msra.mxu0 %v695
    %699 = vmatprep.subr.bf16.mxu0 0
    %700 = vmatpush1.bf16.msra.mxu0 0
    %701 = vmatprep.subr.bf16.mxu0 0
    %702 = vmatpush1.bf16.msra.mxu0 0
    %703 = vmatprep.subr.bf16.mxu0 0
    %704 = vmatpush1.bf16.msra.mxu0 0
    %705 = vmatprep.subr.bf16.mxu0 0
    %706 = vmatpush1.bf16.msra.mxu0 0
    %707 = vmatprep.subr.bf16.mxu0 0
    %708 = vmatpush1.bf16.msra.mxu0 0
    %709 = vmatprep.subr.bf16.mxu0 0
    %710 = vmatpush1.bf16.msra.mxu0 0
    %711 = vmatprep.subr.bf16.mxu0 0
    %712 = vmatpush1.bf16.msra.mxu0 0
    %713 = vmatprep.subr.bf16.mxu0 0
    %714 = vmatpush1.bf16.msra.mxu0 0
    %715 = vmatprep.subr.bf16.mxu0 0
    %716 = vmatpush1.bf16.msra.mxu0 0
    %717 = vmatprep.subr.bf16.mxu0 0
    %718 = vmatpush1.bf16.msra.mxu0 0
    %719 = vmatprep.subr.bf16.mxu0 0
    %720 = vmatpush1.bf16.msra.mxu0 0
    %721 = vmatprep.subr.bf16.mxu0 0
    %722 = vmatpush1.bf16.msra.mxu0 0
    %723 = vmatprep.subr.bf16.mxu0 0
    %724 = vmatpush1.bf16.msra.mxu0 0
    %725 = vmatprep.subr.bf16.mxu0 0
    %726 = vmatpush1.bf16.msra.mxu0 0
    %727 = vmatprep.subr.bf16.mxu0 0
    %728 = vmatpush1.bf16.msra.mxu0 0
    %729 = vmatprep.mubr.bf16.mxu0 0
    %730 = vmatmul.mubr.bf16.gmra.mrb[0].mxu0 %v692
    %v731 = vpop.f32.mrb[0].mxu0
    %v732 = vadd.f32 0.0, %v731
    %v733 = vpop.f32.mrb[0].mxu0
    %v734 = vpop.f32.mrb[0].mxu0
    %v735 = vpop.f32.mrb[0].mxu0
    %736 = vdwg.mxu0
    %v738 = vsel %vm595, %v642, 0
    %v741 = vsel %vm647, %v403, 0
    %743 = vmatprep.subr.bf16.mxu0 0
    %744 = vmatpush1.bf16.msra.mxu0 %v741
    %745 = vmatprep.subr.bf16.mxu0 0
    %746 = vmatpush1.bf16.msra.mxu0 0
    %747 = vmatprep.subr.bf16.mxu0 0
    %748 = vmatpush1.bf16.msra.mxu0 0
    %749 = vmatprep.subr.bf16.mxu0 0
    %750 = vmatpush1.bf16.msra.mxu0 0
    %751 = vmatprep.subr.bf16.mxu0 0
    %752 = vmatpush1.bf16.msra.mxu0 0
    %753 = vmatprep.subr.bf16.mxu0 0
    %754 = vmatpush1.bf16.msra.mxu0 0
    %755 = vmatprep.subr.bf16.mxu0 0
    %756 = vmatpush1.bf16.msra.mxu0 0
    %757 = vmatprep.subr.bf16.mxu0 0
    %758 = vmatpush1.bf16.msra.mxu0 0
    %759 = vmatprep.subr.bf16.mxu0 0
    %760 = vmatpush1.bf16.msra.mxu0 0
    %761 = vmatprep.subr.bf16.mxu0 0
    %762 = vmatpush1.bf16.msra.mxu0 0
    %763 = vmatprep.subr.bf16.mxu0 0
    %764 = vmatpush1.bf16.msra.mxu0 0
    %765 = vmatprep.subr.bf16.mxu0 0
    %766 = vmatpush1.bf16.msra.mxu0 0
    %767 = vmatprep.subr.bf16.mxu0 0
    %768 = vmatpush1.bf16.msra.mxu0 0
    %769 = vmatprep.subr.bf16.mxu0 0
    %770 = vmatpush1.bf16.msra.mxu0 0
    %771 = vmatprep.subr.bf16.mxu0 0
    %772 = vmatpush1.bf16.msra.mxu0 0
    %773 = vmatprep.subr.bf16.mxu0 0
    %774 = vmatpush1.bf16.msra.mxu0 0
    %775 = vmatprep.mubr.bf16.mxu0 0
    %776 = vmatmul.mubr.bf16.gmra.mrb[0].mxu0 %v738
    %v777 = vpop.f32.mrb[0].mxu0
    %v778 = vadd.f32 0.0, %v777
    %v779 = vpop.f32.mrb[0].mxu0
    %v780 = vpop.f32.mrb[0].mxu0
    %v781 = vpop.f32.mrb[0].mxu0
    %782 = vdwg.mxu0
    %v784 = vsel %vm595, %v643, 0
    %v787 = vsel %vm647, %v405, 0
    %789 = vmatprep.subr.bf16.mxu0 0
    %790 = vmatpush1.bf16.msra.mxu0 %v787
    %791 = vmatprep.subr.bf16.mxu0 0
    %792 = vmatpush1.bf16.msra.mxu0 0
    %793 = vmatprep.subr.bf16.mxu0 0
    %794 = vmatpush1.bf16.msra.mxu0 0
    %795 = vmatprep.subr.bf16.mxu0 0
    %796 = vmatpush1.bf16.msra.mxu0 0
    %797 = vmatprep.subr.bf16.mxu0 0
    %798 = vmatpush1.bf16.msra.mxu0 0
    %799 = vmatprep.subr.bf16.mxu0 0
    %800 = vmatpush1.bf16.msra.mxu0 0
    %801 = vmatprep.subr.bf16.mxu0 0
    %802 = vmatpush1.bf16.msra.mxu0 0
    %803 = vmatprep.subr.bf16.mxu0 0
    %804 = vmatpush1.bf16.msra.mxu0 0
    %805 = vmatprep.subr.bf16.mxu0 0
    %806 = vmatpush1.bf16.msra.mxu0 0
    %807 = vmatprep.subr.bf16.mxu0 0
    %808 = vmatpush1.bf16.msra.mxu0 0
    %809 = vmatprep.subr.bf16.mxu0 0
    %810 = vmatpush1.bf16.msra.mxu0 0
    %811 = vmatprep.subr.bf16.mxu0 0
    %812 = vmatpush1.bf16.msra.mxu0 0
    %813 = vmatprep.subr.bf16.mxu0 0
    %814 = vmatpush1.bf16.msra.mxu0 0
    %815 = vmatprep.subr.bf16.mxu0 0
    %816 = vmatpush1.bf16.msra.mxu0 0
    %817 = vmatprep.subr.bf16.mxu0 0
    %818 = vmatpush1.bf16.msra.mxu0 0
    %819 = vmatprep.subr.bf16.mxu0 0
    %820 = vmatpush1.bf16.msra.mxu0 0
    %821 = vmatprep.mubr.bf16.mxu0 0
    %822 = vmatmul.mubr.bf16.gmra.mrb[0].mxu0 %v784
    %v823 = vpop.f32.mrb[0].mxu0
    %v824 = vadd.f32 0.0, %v823
    %v825 = vpop.f32.mrb[0].mxu0
    %v826 = vpop.f32.mrb[0].mxu0
    %v827 = vpop.f32.mrb[0].mxu0
    %828 = vdwg.mxu0
    %831 = vrot.lane.b32.xlu0 %v778, 64
    %v832 = vpop.permute.xlu0 %831
    %833 = vrot.lane.b32.xlu0 %v824, 64
    %v834 = vpop.permute.xlu0 %833
    %v837 = vsel %vm406, %v686, %v832
    %v838 = vsel %vm406, %v732, %v834
    %v839 = vld [vmem:[%s5] sm:$0xf]
    %v840 = vld [vmem:[%s5 + $0x4] sm:$0xf]
    %v841 = vld [vmem:[%s5 + $0x8] sm:$0xf]
    %v842 = vld [vmem:[%s5 + $0xc] sm:$0xf]
    %v843 = vld [vmem:[%s5 + $0x10] sm:$0xf]
    %v844 = vld [vmem:[%s5 + $0x14] sm:$0xf]
    %v845 = vld [vmem:[%s5 + $0x18] sm:$0xf]
    %v846 = vld [vmem:[%s5 + $0x1c] sm:$0xf]
    %v847 = vld [vmem:[%s5 + $0x20] sm:$0xf]
    %v848 = vld [vmem:[%s5 + $0x24] sm:$0xf]
    %v849 = vld [vmem:[%s5 + $0x28] sm:$0xf]
    %v850 = vld [vmem:[%s5 + $0x2c] sm:$0xf]
    %v851 = vld [vmem:[%s5 + $0x30] sm:$0xf]
    %v852 = vld [vmem:[%s5 + $0x34] sm:$0xf]
    %v853 = vld [vmem:[%s5 + $0x38] sm:$0xf]
    %v854 = vld [vmem:[%s5 + $0x3c] sm:$0xf]
    %v855 = vpack.c.bf16 %v838, %v837
    %v856 = vld [vmem:[%s6] sm:$0x1]
    %v858 = vlaneseq
    %v859 = vshrl.u32 %v858, 7
    %v860 = vsub.s32 0, %v859
    %v861 = vrot.slane %v856, %v860
    %v879 = vunpack.c.l.b16 %v839
    %v880 = vunpack.c.l.b16 %v840
    %v881 = vunpack.c.l.b16 %v841
    %v882 = vunpack.c.l.b16 %v842
    %v883 = vunpack.c.l.b16 %v843
    %v884 = vunpack.c.l.b16 %v844
    %v885 = vunpack.c.l.b16 %v845
    %v886 = vunpack.c.l.b16 %v846
    %v887 = vunpack.c.l.b16 %v847
    %v888 = vunpack.c.l.b16 %v848
    %v889 = vunpack.c.l.b16 %v849
    %v890 = vunpack.c.l.b16 %v850
    %v891 = vunpack.c.l.b16 %v851
    %v892 = vunpack.c.l.b16 %v852
    %v893 = vunpack.c.l.b16 %v853
    %v894 = vunpack.c.l.b16 %v854
    %v895 = vpack.c.b16 %v880, %v879
    %v896 = vpack.c.b16 %v882, %v881
    %v897 = vpack.c.b16 %v884, %v883
    %v898 = vpack.c.b16 %v886, %v885
    %v899 = vpack.c.b16 %v888, %v887
    %v900 = vpack.c.b16 %v890, %v889
    %v901 = vpack.c.b16 %v892, %v891
    %v902 = vpack.c.b16 %v894, %v893
    %911 = vmatprep.subr.bf16.mxu0 0
    %912 = vmatpush1.bf16.msra.mxu0 %v895
    %913 = vmatprep.subr.bf16.mxu0 0
    %914 = vmatpush1.bf16.msra.mxu0 %v896
    %915 = vmatprep.subr.bf16.mxu0 0
    %916 = vmatpush1.bf16.msra.mxu0 %v897
    %917 = vmatprep.subr.bf16.mxu0 0
    %918 = vmatpush1.bf16.msra.mxu0 %v898
    %919 = vmatprep.subr.bf16.mxu0 0
    %920 = vmatpush1.bf16.msra.mxu0 %v899
    %921 = vmatprep.subr.bf16.mxu0 0
    %922 = vmatpush1.bf16.msra.mxu0 %v900
    %923 = vmatprep.subr.bf16.mxu0 0
    %924 = vmatpush1.bf16.msra.mxu0 %v901
    %925 = vmatprep.subr.bf16.mxu0 0
    %926 = vmatpush1.bf16.msra.mxu0 %v902
    %927 = vmatprep.subr.bf16.mxu0 0
    %928 = vmatpush1.bf16.msra.mxu0 0
    %929 = vmatprep.subr.bf16.mxu0 0
    %930 = vmatpush1.bf16.msra.mxu0 0
    %931 = vmatprep.subr.bf16.mxu0 0
    %932 = vmatpush1.bf16.msra.mxu0 0
    %933 = vmatprep.subr.bf16.mxu0 0
    %934 = vmatpush1.bf16.msra.mxu0 0
    %935 = vmatprep.subr.bf16.mxu0 0
    %936 = vmatpush1.bf16.msra.mxu0 0
    %937 = vmatprep.subr.bf16.mxu0 0
    %938 = vmatpush1.bf16.msra.mxu0 0
    %939 = vmatprep.subr.bf16.mxu0 0
    %940 = vmatpush1.bf16.msra.mxu0 0
    %941 = vmatprep.subr.bf16.mxu0 0
    %942 = vmatpush1.bf16.msra.mxu0 0
    %943 = vmatprep.mubr.bf16.mxu0 0
    %944 = vmatmul.mubr.bf16.gmra.mrb[0].mxu0 %v855
    %v945 = vpop.f32.mrb[0].mxu0
    %v946 = vadd.f32 %v861, %v945
    %v947 = vpop.f32.mrb[0].mxu0
    %v948 = vpop.f32.mrb[0].mxu0
    %v949 = vadd.f32 %v861, %v948
    %v950 = vpop.f32.mrb[0].mxu0
    %951 = vdwg.mxu0
    %v952 = vadd.f32 %v111, %v946
    %v953 = vadd.f32 %v112, %v949
    %954 = vadd.xlane.f32.xlu0 %v952
    %v955 = vpop.xlane.xlu0 %954
    %956 = vadd.xlane.f32.xlu0 %v953
    %v957 = vpop.xlane.xlu0 %956
    %v958 = vmul.f32 %v955, 0.03125
    %v959 = vmul.f32 %v957, 0.03125
    %v960 = vsub.f32 %v952, %v958
    %v961 = vsub.f32 %v953, %v959
    %v962 = vmul.f32 %v960, %v110
    %v963 = vmul.f32 %v961, %v110
    %v964 = vmul.f32 %v962, %v962
    %v965 = vmul.f32 %v963, %v963
    %966 = vadd.xlane.f32.xlu0 %v964
    %v967 = vpop.xlane.xlu0 %966
    %968 = vadd.xlane.f32.xlu0 %v965
    %v969 = vpop.xlane.xlu0 %968
    %v970 = vmul.f32 %v967, 0.03125
    %v971 = vmul.f32 %v969, 0.03125
    %v972 = vadd.f32 %v970, 1e-05
    %v973 = vadd.f32 %v971, 1e-05
    %v974 = vrsqrt.pop %v972
    %v975 = vrsqrt.pop %v973
    %v976 = vmul.f32 %v962, %v974
    %v977 = vmul.f32 %v963, %v975
    %v978 = vlaneseq
    %v979 = vshrl.u32 %v978, 7
    %v980 = vsub.s32 0, %v979
    %v981 = vrot.slane %v113, %v980
    %v982 = vmul.f32 %v976, %v981
    %v983 = vmul.f32 %v977, %v981
    %v984 = vlaneseq
    %v985 = vshrl.u32 %v984, 7
    %v986 = vsub.s32 1, %v985
    %v987 = vrot.slane %v113, %v986
    %v988 = vadd.f32 %v982, %v987
    %v989 = vadd.f32 %v983, %v987
    %v990 = vld [vmem:[%s7] sm:$0xf]
    %v991 = vld [vmem:[%s7 + $0x4] sm:$0xf]
    %v992 = vld [vmem:[%s7 + $0x8] sm:$0xf]
    %v993 = vld [vmem:[%s7 + $0xc] sm:$0xf]
    %v994 = vld [vmem:[%s7 + $0x10] sm:$0xf]
    %v995 = vld [vmem:[%s7 + $0x14] sm:$0xf]
    %v996 = vld [vmem:[%s7 + $0x18] sm:$0xf]
    %v997 = vld [vmem:[%s7 + $0x1c] sm:$0xf]
    %v998 = vld [vmem:[%s7 + $0x20] sm:$0xf]
    %v999 = vld [vmem:[%s7 + $0x24] sm:$0xf]
    %v1000 = vld [vmem:[%s7 + $0x28] sm:$0xf]
    %v1001 = vld [vmem:[%s7 + $0x2c] sm:$0xf]
    %v1002 = vld [vmem:[%s7 + $0x30] sm:$0xf]
    %v1003 = vld [vmem:[%s7 + $0x34] sm:$0xf]
    %v1004 = vld [vmem:[%s7 + $0x38] sm:$0xf]
    %v1005 = vld [vmem:[%s7 + $0x3c] sm:$0xf]
    %v1006 = vpack.c.bf16 %v989, %v988
    %v1007 = vld [vmem:[%s8] sm:$0x1]
    %v1009 = vlaneseq
    %v1010 = vshrl.u32 %v1009, 7
    %v1011 = vsub.s32 0, %v1010
    %v1012 = vrot.slane %v1007, %v1011
    %v1030 = vunpack.c.l.b16 %v990
    %v1031 = vunpack.c.l.b16 %v991
    %v1032 = vunpack.c.l.b16 %v992
    %v1033 = vunpack.c.l.b16 %v993
    %v1034 = vunpack.c.l.b16 %v994
    %v1035 = vunpack.c.l.b16 %v995
    %v1036 = vunpack.c.l.b16 %v996
    %v1037 = vunpack.c.l.b16 %v997
    %v1038 = vunpack.c.l.b16 %v998
    %v1039 = vunpack.c.l.b16 %v999
    %v1040 = vunpack.c.l.b16 %v1000
    %v1041 = vunpack.c.l.b16 %v1001
    %v1042 = vunpack.c.l.b16 %v1002
    %v1043 = vunpack.c.l.b16 %v1003
    %v1044 = vunpack.c.l.b16 %v1004
    %v1045 = vunpack.c.l.b16 %v1005
    %v1046 = vpack.c.b16 %v1031, %v1030
    %v1047 = vpack.c.b16 %v1033, %v1032
    %v1048 = vpack.c.b16 %v1035, %v1034
    %v1049 = vpack.c.b16 %v1037, %v1036
    %v1050 = vpack.c.b16 %v1039, %v1038
    %v1051 = vpack.c.b16 %v1041, %v1040
    %v1052 = vpack.c.b16 %v1043, %v1042
    %v1053 = vpack.c.b16 %v1045, %v1044
    %1062 = vmatprep.subr.bf16.mxu0 0
    %1063 = vmatpush1.bf16.msra.mxu0 %v1046
    %1064 = vmatprep.subr.bf16.mxu0 0
    %1065 = vmatpush1.bf16.msra.mxu0 %v1047
    %1066 = vmatprep.subr.bf16.mxu0 0
    %1067 = vmatpush1.bf16.msra.mxu0 %v1048
    %1068 = vmatprep.subr.bf16.mxu0 0
    %1069 = vmatpush1.bf16.msra.mxu0 %v1049
    %1070 = vmatprep.subr.bf16.mxu0 0
    %1071 = vmatpush1.bf16.msra.mxu0 %v1050
    %1072 = vmatprep.subr.bf16.mxu0 0
    %1073 = vmatpush1.bf16.msra.mxu0 %v1051
    %1074 = vmatprep.subr.bf16.mxu0 0
    %1075 = vmatpush1.bf16.msra.mxu0 %v1052
    %1076 = vmatprep.subr.bf16.mxu0 0
    %1077 = vmatpush1.bf16.msra.mxu0 %v1053
    %1078 = vmatprep.subr.bf16.mxu0 0
    %1079 = vmatpush1.bf16.msra.mxu0 0
    %1080 = vmatprep.subr.bf16.mxu0 0
    %1081 = vmatpush1.bf16.msra.mxu0 0
    %1082 = vmatprep.subr.bf16.mxu0 0
    %1083 = vmatpush1.bf16.msra.mxu0 0
    %1084 = vmatprep.subr.bf16.mxu0 0
    %1085 = vmatpush1.bf16.msra.mxu0 0
    %1086 = vmatprep.subr.bf16.mxu0 0
    %1087 = vmatpush1.bf16.msra.mxu0 0
    %1088 = vmatprep.subr.bf16.mxu0 0
    %1089 = vmatpush1.bf16.msra.mxu0 0
    %1090 = vmatprep.subr.bf16.mxu0 0
    %1091 = vmatpush1.bf16.msra.mxu0 0
    %1092 = vmatprep.subr.bf16.mxu0 0
    %1093 = vmatpush1.bf16.msra.mxu0 0
    %1094 = vmatprep.mubr.bf16.mxu0 0
    %1095 = vmatmul.mubr.bf16.gmra.mrb[0].mxu0 %v1006
    %v1096 = vpop.f32.mrb[0].mxu0
    %v1097 = vadd.f32 %v1012, %v1096
    %v1098 = vpop.f32.mrb[0].mxu0
    %v1099 = vpop.f32.mrb[0].mxu0
    %v1100 = vadd.f32 %v1012, %v1099
    %v1101 = vpop.f32.mrb[0].mxu0
    %1102 = vdwg.mxu0
    %v1103 = vmax.f32 %v1097, 0.0
    %v1104 = vmax.f32 %v1100, 0.0
    %v1105 = vld [vmem:[%s9] sm:$0xf]
    %v1106 = vld [vmem:[%s9 + $0x4] sm:$0xf]
    %v1107 = vld [vmem:[%s9 + $0x8] sm:$0xf]
    %v1108 = vld [vmem:[%s9 + $0xc] sm:$0xf]
    %v1109 = vld [vmem:[%s9 + $0x10] sm:$0xf]
    %v1110 = vld [vmem:[%s9 + $0x14] sm:$0xf]
    %v1111 = vld [vmem:[%s9 + $0x18] sm:$0xf]
    %v1112 = vld [vmem:[%s9 + $0x1c] sm:$0xf]
    %v1113 = vld [vmem:[%s9 + $0x20] sm:$0xf]
    %v1114 = vld [vmem:[%s9 + $0x24] sm:$0xf]
    %v1115 = vld [vmem:[%s9 + $0x28] sm:$0xf]
    %v1116 = vld [vmem:[%s9 + $0x2c] sm:$0xf]
    %v1117 = vld [vmem:[%s9 + $0x30] sm:$0xf]
    %v1118 = vld [vmem:[%s9 + $0x34] sm:$0xf]
    %v1119 = vld [vmem:[%s9 + $0x38] sm:$0xf]
    %v1120 = vld [vmem:[%s9 + $0x3c] sm:$0xf]
    %v1121 = vpack.c.bf16 %v1104, %v1103
    %v1122 = vld [vmem:[%s10] sm:$0x1]
    %v1124 = vlaneseq
    %v1125 = vshrl.u32 %v1124, 7
    %v1126 = vsub.s32 0, %v1125
    %v1127 = vrot.slane %v1122, %v1126
    %v1145 = vunpack.c.l.b16 %v1105
    %v1146 = vunpack.c.l.b16 %v1106
    %v1147 = vunpack.c.l.b16 %v1107
    %v1148 = vunpack.c.l.b16 %v1108
    %v1149 = vunpack.c.l.b16 %v1109
    %v1150 = vunpack.c.l.b16 %v1110
    %v1151 = vunpack.c.l.b16 %v1111
    %v1152 = vunpack.c.l.b16 %v1112
    %v1153 = vunpack.c.l.b16 %v1113
    %v1154 = vunpack.c.l.b16 %v1114
    %v1155 = vunpack.c.l.b16 %v1115
    %v1156 = vunpack.c.l.b16 %v1116
    %v1157 = vunpack.c.l.b16 %v1117
    %v1158 = vunpack.c.l.b16 %v1118
    %v1159 = vunpack.c.l.b16 %v1119
    %v1160 = vunpack.c.l.b16 %v1120
    %v1161 = vpack.c.b16 %v1146, %v1145
    %v1162 = vpack.c.b16 %v1148, %v1147
    %v1163 = vpack.c.b16 %v1150, %v1149
    %v1164 = vpack.c.b16 %v1152, %v1151
    %v1165 = vpack.c.b16 %v1154, %v1153
    %v1166 = vpack.c.b16 %v1156, %v1155
    %v1167 = vpack.c.b16 %v1158, %v1157
    %v1168 = vpack.c.b16 %v1160, %v1159
    %1177 = vmatprep.subr.bf16.mxu0 0
    %1178 = vmatpush1.bf16.msra.mxu0 %v1161
    %1179 = vmatprep.subr.bf16.mxu0 0
    %1180 = vmatpush1.bf16.msra.mxu0 %v1162
    %1181 = vmatprep.subr.bf16.mxu0 0
    %1182 = vmatpush1.bf16.msra.mxu0 %v1163
    %1183 = vmatprep.subr.bf16.mxu0 0
    %1184 = vmatpush1.bf16.msra.mxu0 %v1164
    %1185 = vmatprep.subr.bf16.mxu0 0
    %1186 = vmatpush1.bf16.msra.mxu0 %v1165
    %1187 = vmatprep.subr.bf16.mxu0 0
    %1188 = vmatpush1.bf16.msra.mxu0 %v1166
    %1189 = vmatprep.subr.bf16.mxu0 0
    %1190 = vmatpush1.bf16.msra.mxu0 %v1167
    %1191 = vmatprep.subr.bf16.mxu0 0
    %1192 = vmatpush1.bf16.msra.mxu0 %v1168
    %1193 = vmatprep.subr.bf16.mxu0 0
    %1194 = vmatpush1.bf16.msra.mxu0 0
    %1195 = vmatprep.subr.bf16.mxu0 0
    %1196 = vmatpush1.bf16.msra.mxu0 0
    %1197 = vmatprep.subr.bf16.mxu0 0
    %1198 = vmatpush1.bf16.msra.mxu0 0
    %1199 = vmatprep.subr.bf16.mxu0 0
    %1200 = vmatpush1.bf16.msra.mxu0 0
    %1201 = vmatprep.subr.bf16.mxu0 0
    %1202 = vmatpush1.bf16.msra.mxu0 0
    %1203 = vmatprep.subr.bf16.mxu0 0
    %1204 = vmatpush1.bf16.msra.mxu0 0
    %1205 = vmatprep.subr.bf16.mxu0 0
    %1206 = vmatpush1.bf16.msra.mxu0 0
    %1207 = vmatprep.subr.bf16.mxu0 0
    %1208 = vmatpush1.bf16.msra.mxu0 0
    %1209 = vmatprep.mubr.bf16.mxu0 0
    %1210 = vmatmul.mubr.bf16.gmra.mrb[0].mxu0 %v1121
    %v1211 = vpop.f32.mrb[0].mxu0
    %v1212 = vadd.f32 %v1127, %v1211
    %v1213 = vpop.f32.mrb[0].mxu0
    %v1214 = vpop.f32.mrb[0].mxu0
    %v1215 = vadd.f32 %v1127, %v1214
    %v1216 = vpop.f32.mrb[0].mxu0
    %1217 = vdwg.mxu0
    %v1218 = vadd.f32 %v988, %v1212
    %v1219 = vadd.f32 %v989, %v1215
    %1220 = vadd.xlane.f32.xlu0 %v1218
    %v1221 = vpop.xlane.xlu0 %1220
    %1222 = vadd.xlane.f32.xlu0 %v1219
    %v1223 = vpop.xlane.xlu0 %1222
    %v1224 = vmul.f32 %v1221, 0.03125
    %v1225 = vmul.f32 %v1223, 0.03125
    %v1226 = vsub.f32 %v1218, %v1224
    %v1227 = vsub.f32 %v1219, %v1225
    %v1228 = vmul.f32 %v1226, %v110
    %v1229 = vmul.f32 %v1227, %v110
    %v1230 = vmul.f32 %v1228, %v1228
    %v1231 = vmul.f32 %v1229, %v1229
    %1232 = vadd.xlane.f32.xlu0 %v1230
    %v1233 = vpop.xlane.xlu0 %1232
    %1234 = vadd.xlane.f32.xlu0 %v1231
    %v1235 = vpop.xlane.xlu0 %1234
    %v1236 = vmul.f32 %v1233, 0.03125
    %v1237 = vmul.f32 %v1235, 0.03125
    %v1238 = vadd.f32 %v1236, 1e-05
    %v1239 = vadd.f32 %v1237, 1e-05
    %v1240 = vrsqrt.pop %v1238
    %v1241 = vrsqrt.pop %v1239
    %v1242 = vmul.f32 %v1228, %v1240
    %v1243 = vmul.f32 %v1229, %v1241
    %v1244 = vlaneseq
    %v1245 = vshrl.u32 %v1244, 7
    %v1246 = vsub.s32 2, %v1245
    %v1247 = vrot.slane %v113, %v1246
    %v1248 = vmul.f32 %v1242, %v1247
    %v1249 = vmul.f32 %v1243, %v1247
    %v1250 = vlaneseq
    %v1251 = vshrl.u32 %v1250, 7
    %v1252 = vsub.s32 3, %v1251
    %v1253 = vrot.slane %v113, %v1252
    %v1254 = vadd.f32 %v1248, %v1253
    %v1255 = vadd.f32 %v1249, %v1253
    %s1256 = scalar_lea.vmem %s11, 4
    %v1257 = vld [vmem:[%s1256] sm:$0xf]
    %s1258 = scalar_lea.vmem %s3, 192
    %v1259 = vld [vmem:[%s1258] sm:$0xff]
    %v1260 = vld [vmem:[%s1258 + $0x8] sm:$0xf]
    %v1261 = vld [vmem:[%s1258 + $0xc] sm:$0xff]
    %v1262 = vld [vmem:[%s1258 + $0x14] sm:$0xf]
    %v1263 = vld [vmem:[%s1258 + $0x18] sm:$0xff]
    %v1264 = vld [vmem:[%s1258 + $0x20] sm:$0xf]
    %v1265 = vld [vmem:[%s1258 + $0x24] sm:$0xff]
    %v1266 = vld [vmem:[%s1258 + $0x2c] sm:$0xf]
    %v1267 = vld [vmem:[%s1258 + $0x30] sm:$0xff]
    %v1268 = vld [vmem:[%s1258 + $0x38] sm:$0xf]
    %v1269 = vld [vmem:[%s1258 + $0x3c] sm:$0xff]
    %v1270 = vld [vmem:[%s1258 + $0x44] sm:$0xf]
    %v1271 = vld [vmem:[%s1258 + $0x48] sm:$0xff]
    %v1272 = vld [vmem:[%s1258 + $0x50] sm:$0xf]
    %v1273 = vld [vmem:[%s1258 + $0x54] sm:$0xff]
    %v1274 = vld [vmem:[%s1258 + $0x5c] sm:$0xf]
    %v1275 = vld [vmem:[%s1258 + $0x60] sm:$0xff]
    %v1276 = vld [vmem:[%s1258 + $0x68] sm:$0xf]
    %v1277 = vld [vmem:[%s1258 + $0x6c] sm:$0xff]
    %v1278 = vld [vmem:[%s1258 + $0x74] sm:$0xf]
    %v1279 = vld [vmem:[%s1258 + $0x78] sm:$0xff]
    %v1280 = vld [vmem:[%s1258 + $0x80] sm:$0xf]
    %v1281 = vld [vmem:[%s1258 + $0x84] sm:$0xff]
    %v1282 = vld [vmem:[%s1258 + $0x8c] sm:$0xf]
    %v1283 = vld [vmem:[%s1258 + $0x90] sm:$0xff]
    %v1284 = vld [vmem:[%s1258 + $0x98] sm:$0xf]
    %v1285 = vld [vmem:[%s1258 + $0x9c] sm:$0xff]
    %v1286 = vld [vmem:[%s1258 + $0xa4] sm:$0xf]
    %v1287 = vld [vmem:[%s1258 + $0xa8] sm:$0xff]
    %v1288 = vld [vmem:[%s1258 + $0xb0] sm:$0xf]
    %v1289 = vld [vmem:[%s1258 + $0xb4] sm:$0xff]
    %v1290 = vld [vmem:[%s1258 + $0xbc] sm:$0xf]
    %v1291 = vpack.c.bf16 %v1255, %v1254
    %s1292 = scalar_lea.vmem %s4, 3
    %v1293 = vld [vmem:[%s1292] sm:$0x7]
    %v1295 = vlaneseq
    %v1296 = vshrl.u32 %v1295, 7
    %v1297 = vsub.s32 0, %v1296
    %v1298 = vrot.slane %v1293, %v1297
    %v1299 = vlaneseq
    %v1300 = vshrl.u32 %v1299, 7
    %v1301 = vsub.s32 1, %v1300
    %v1302 = vrot.slane %v1293, %v1301
    %v1303 = vlaneseq
    %v1304 = vshrl.u32 %v1303, 7
    %v1305 = vsub.s32 2, %v1304
    %v1306 = vrot.slane %v1293, %v1305
    %v1342 = vunpack.c.l.b16 %v1259
    %v1343 = vunpack.c.h.b16 %v1259
    %v1344 = vunpack.c.l.b16 %v1260
    %v1345 = vunpack.c.l.b16 %v1261
    %v1346 = vunpack.c.h.b16 %v1261
    %v1347 = vunpack.c.l.b16 %v1262
    %v1348 = vunpack.c.l.b16 %v1263
    %v1349 = vunpack.c.h.b16 %v1263
    %v1350 = vunpack.c.l.b16 %v1264
    %v1351 = vunpack.c.l.b16 %v1265
    %v1352 = vunpack.c.h.b16 %v1265
    %v1353 = vunpack.c.l.b16 %v1266
    %v1354 = vunpack.c.l.b16 %v1267
    %v1355 = vunpack.c.h.b16 %v1267
    %v1356 = vunpack.c.l.b16 %v1268
    %v1357 = vunpack.c.l.b16 %v1269
    %v1358 = vunpack.c.h.b16 %v1269
    %v1359 = vunpack.c.l.b16 %v1270
    %v1360 = vunpack.c.l.b16 %v1271
    %v1361 = vunpack.c.h.b16 %v1271
    %v1362 = vunpack.c.l.b16 %v1272
    %v1363 = vunpack.c.l.b16 %v1273
    %v1364 = vunpack.c.h.b16 %v1273
    %v1365 = vunpack.c.l.b16 %v1274
    %v1366 = vunpack.c.l.b16 %v1275
    %v1367 = vunpack.c.h.b16 %v1275
    %v1368 = vunpack.c.l.b16 %v1276
    %v1369 = vunpack.c.l.b16 %v1277
    %v1370 = vunpack.c.h.b16 %v1277
    %v1371 = vunpack.c.l.b16 %v1278
    %v1372 = vunpack.c.l.b16 %v1279
    %v1373 = vunpack.c.h.b16 %v1279
    %v1374 = vunpack.c.l.b16 %v1280
    %v1375 = vunpack.c.l.b16 %v1281
    %v1376 = vunpack.c.h.b16 %v1281
    %v1377 = vunpack.c.l.b16 %v1282
    %v1378 = vunpack.c.l.b16 %v1283
    %v1379 = vunpack.c.h.b16 %v1283
    %v1380 = vunpack.c.l.b16 %v1284
    %v1381 = vunpack.c.l.b16 %v1285
    %v1382 = vunpack.c.h.b16 %v1285
    %v1383 = vunpack.c.l.b16 %v1286
    %v1384 = vunpack.c.l.b16 %v1287
    %v1385 = vunpack.c.h.b16 %v1287
    %v1386 = vunpack.c.l.b16 %v1288
    %v1387 = vunpack.c.l.b16 %v1289
    %v1388 = vunpack.c.h.b16 %v1289
    %v1389 = vunpack.c.l.b16 %v1290
    %v1390 = vpack.c.b16 %v1345, %v1342
    %v1391 = vpack.c.b16 %v1346, %v1343
    %v1392 = vpack.c.b16 %v1347, %v1344
    %v1393 = vpack.c.b16 %v1351, %v1348
    %v1394 = vpack.c.b16 %v1352, %v1349
    %v1395 = vpack.c.b16 %v1353, %v1350
    %v1396 = vpack.c.b16 %v1357, %v1354
    %v1397 = vpack.c.b16 %v1358, %v1355
    %v1398 = vpack.c.b16 %v1359, %v1356
    %v1399 = vpack.c.b16 %v1363, %v1360
    %v1400 = vpack.c.b16 %v1364, %v1361
    %v1401 = vpack.c.b16 %v1365, %v1362
    %v1402 = vpack.c.b16 %v1369, %v1366
    %v1403 = vpack.c.b16 %v1370, %v1367
    %v1404 = vpack.c.b16 %v1371, %v1368
    %v1405 = vpack.c.b16 %v1375, %v1372
    %v1406 = vpack.c.b16 %v1376, %v1373
    %v1407 = vpack.c.b16 %v1377, %v1374
    %v1408 = vpack.c.b16 %v1381, %v1378
    %v1409 = vpack.c.b16 %v1382, %v1379
    %v1410 = vpack.c.b16 %v1383, %v1380
    %v1411 = vpack.c.b16 %v1387, %v1384
    %v1412 = vpack.c.b16 %v1388, %v1385
    %v1413 = vpack.c.b16 %v1389, %v1386
    %1438 = vmatprep.subr.bf16.mxu0 %v1391
    %1439 = vmatpush1.bf16.msra.mxu0 %v1390
    %1440 = vmatprep.subr.bf16.mxu0 %v1394
    %1441 = vmatpush1.bf16.msra.mxu0 %v1393
    %1442 = vmatprep.subr.bf16.mxu0 %v1397
    %1443 = vmatpush1.bf16.msra.mxu0 %v1396
    %1444 = vmatprep.subr.bf16.mxu0 %v1400
    %1445 = vmatpush1.bf16.msra.mxu0 %v1399
    %1446 = vmatprep.subr.bf16.mxu0 %v1403
    %1447 = vmatpush1.bf16.msra.mxu0 %v1402
    %1448 = vmatprep.subr.bf16.mxu0 %v1406
    %1449 = vmatpush1.bf16.msra.mxu0 %v1405
    %1450 = vmatprep.subr.bf16.mxu0 %v1409
    %1451 = vmatpush1.bf16.msra.mxu0 %v1408
    %1452 = vmatprep.subr.bf16.mxu0 %v1412
    %1453 = vmatpush1.bf16.msra.mxu0 %v1411
    %1454 = vmatprep.subr.bf16.mxu0 0
    %1455 = vmatpush1.bf16.msra.mxu0 0
    %1456 = vmatprep.subr.bf16.mxu0 0
    %1457 = vmatpush1.bf16.msra.mxu0 0
    %1458 = vmatprep.subr.bf16.mxu0 0
    %1459 = vmatpush1.bf16.msra.mxu0 0
    %1460 = vmatprep.subr.bf16.mxu0 0
    %1461 = vmatpush1.bf16.msra.mxu0 0
    %1462 = vmatprep.subr.bf16.mxu0 0
    %1463 = vmatpush1.bf16.msra.mxu0 0
    %1464 = vmatprep.subr.bf16.mxu0 0
    %1465 = vmatpush1.bf16.msra.mxu0 0
    %1466 = vmatprep.subr.bf16.mxu0 0
    %1467 = vmatpush1.bf16.msra.mxu0 0
    %1468 = vmatprep.subr.bf16.mxu0 0
    %1469 = vmatpush1.bf16.msra.mxu0 0
    %1470 = vmatprep.mubr.bf16.mxu0 0
    %1471 = vmatmul.mubr.bf16.gmra.mrb[0].mxu0 %v1291
    %v1472 = vpop.f32.mrb[0].mxu0
    %v1473 = vadd.f32 %v1298, %v1472
    %v1474 = vpop.f32.mrb[0].mxu0
    %v1475 = vadd.f32 %v1302, %v1474
    %v1476 = vpop.f32.mrb[0].mxu0
    %v1477 = vadd.f32 %v1298, %v1476
    %v1478 = vpop.f32.mrb[0].mxu0
    %v1479 = vadd.f32 %v1302, %v1478
    %1480 = vdwg.mxu0
    %1481 = vmatprep.subr.bf16.mxu0 0
    %1482 = vmatpush1.bf16.msra.mxu0 %v1392
    %1483 = vmatprep.subr.bf16.mxu0 0
    %1484 = vmatpush1.bf16.msra.mxu0 %v1395
    %1485 = vmatprep.subr.bf16.mxu0 0
    %1486 = vmatpush1.bf16.msra.mxu0 %v1398
    %1487 = vmatprep.subr.bf16.mxu0 0
    %1488 = vmatpush1.bf16.msra.mxu0 %v1401
    %1489 = vmatprep.subr.bf16.mxu0 0
    %1490 = vmatpush1.bf16.msra.mxu0 %v1404
    %1491 = vmatprep.subr.bf16.mxu0 0
    %1492 = vmatpush1.bf16.msra.mxu0 %v1407
    %1493 = vmatprep.subr.bf16.mxu0 0
    %1494 = vmatpush1.bf16.msra.mxu0 %v1410
    %1495 = vmatprep.subr.bf16.mxu0 0
    %1496 = vmatpush1.bf16.msra.mxu0 %v1413
    %1497 = vmatprep.subr.bf16.mxu0 0
    %1498 = vmatpush1.bf16.msra.mxu0 0
    %1499 = vmatprep.subr.bf16.mxu0 0
    %1500 = vmatpush1.bf16.msra.mxu0 0
    %1501 = vmatprep.subr.bf16.mxu0 0
    %1502 = vmatpush1.bf16.msra.mxu0 0
    %1503 = vmatprep.subr.bf16.mxu0 0
    %1504 = vmatpush1.bf16.msra.mxu0 0
    %1505 = vmatprep.subr.bf16.mxu0 0
    %1506 = vmatpush1.bf16.msra.mxu0 0
    %1507 = vmatprep.subr.bf16.mxu0 0
    %1508 = vmatpush1.bf16.msra.mxu0 0
    %1509 = vmatprep.subr.bf16.mxu0 0
    %1510 = vmatpush1.bf16.msra.mxu0 0
    %1511 = vmatprep.subr.bf16.mxu0 0
    %1512 = vmatpush1.bf16.msra.mxu0 0
    %1513 = vmatprep.mubr.bf16.mxu0 0
    %1514 = vmatmul.mubr.bf16.gmra.mrb[0].mxu0 %v1291
    %v1515 = vpop.f32.mrb[0].mxu0
    %v1516 = vadd.f32 %v1306, %v1515
    %v1517 = vpop.f32.mrb[0].mxu0
    %v1518 = vpop.f32.mrb[0].mxu0
    %v1519 = vadd.f32 %v1306, %v1518
    %v1520 = vpop.f32.mrb[0].mxu0
    %1521 = vdwg.mxu0
    %v1522 = vpack.c.bf16 %v1477, %v1473
    %v1523 = vpack.c.bf16 %v1479, %v1475
    %v1524 = vpack.c.bf16 %v1519, %v1516
    %v1526 = vunpack.c.l.b16 %v1522
    %v1527 = vunpack.c.h.b16 %v1522
    %v1528 = vpack.c.b16 %v1526, %v1526
    %v1529 = vpack.c.b16 %v1527, %v1527
    %1530 = vrot.lane.b32.xlu0 %v1528, 64
    %v1531 = vpop.permute.xlu0 %1530
    %1532 = vrot.lane.b32.xlu0 %v1529, 64
    %v1533 = vpop.permute.xlu0 %1532
    %v1535 = vunpack.c.l.b16 %v1523
    %v1536 = vunpack.c.h.b16 %v1523
    %v1537 = vpack.c.b16 %v1535, %v1535
    %v1538 = vpack.c.b16 %v1536, %v1536
    %1539 = vrot.lane.b32.xlu0 %v1537, 64
    %v1540 = vpop.permute.xlu0 %1539
    %1541 = vrot.lane.b32.xlu0 %v1538, 64
    %v1542 = vpop.permute.xlu0 %1541
    %v1544 = vunpack.c.l.b16 %v1524
    %v1545 = vunpack.c.h.b16 %v1524
    %v1546 = vpack.c.b16 %v1544, %v1544
    %v1547 = vpack.c.b16 %v1545, %v1545
    %1548 = vrot.lane.b32.xlu0 %v1546, 64
    %v1549 = vpop.permute.xlu0 %1548
    %1550 = vrot.lane.b32.xlu0 %v1547, 64
    %v1551 = vpop.permute.xlu0 %1550
    %v1553 = vsel %vm406, %v1528, 0
    %v1556 = vsel %vm406, %v1537, 0
    %1558 = vmatprep.subr.bf16.mxu0 0
    %1559 = vmatpush1.bf16.xpose.msra.mxu0 %v1556
    %1560 = vmatprep.subr.bf16.mxu0 0
    %1561 = vmatpush1.bf16.xpose.msra.mxu0 0
    %1562 = vmatprep.subr.bf16.mxu0 0
    %1563 = vmatpush1.bf16.xpose.msra.mxu0 0
    %1564 = vmatprep.subr.bf16.mxu0 0
    %1565 = vmatpush1.bf16.xpose.msra.mxu0 0
    %1566 = vmatprep.subr.bf16.mxu0 0
    %1567 = vmatpush1.bf16.xpose.msra.mxu0 0
    %1568 = vmatprep.subr.bf16.mxu0 0
    %1569 = vmatpush1.bf16.xpose.msra.mxu0 0
    %1570 = vmatprep.subr.bf16.mxu0 0
    %1571 = vmatpush1.bf16.xpose.msra.mxu0 0
    %1572 = vmatprep.subr.bf16.mxu0 0
    %1573 = vmatpush1.bf16.xpose.msra.mxu0 0
    %1574 = vmatprep.subr.bf16.mxu0 0
    %1575 = vmatpush1.bf16.xpose.msra.mxu0 0
    %1576 = vmatprep.subr.bf16.mxu0 0
    %1577 = vmatpush1.bf16.xpose.msra.mxu0 0
    %1578 = vmatprep.subr.bf16.mxu0 0
    %1579 = vmatpush1.bf16.xpose.msra.mxu0 0
    %1580 = vmatprep.subr.bf16.mxu0 0
    %1581 = vmatpush1.bf16.xpose.msra.mxu0 0
    %1582 = vmatprep.subr.bf16.mxu0 0
    %1583 = vmatpush1.bf16.xpose.msra.mxu0 0
    %1584 = vmatprep.subr.bf16.mxu0 0
    %1585 = vmatpush1.bf16.xpose.msra.mxu0 0
    %1586 = vmatprep.subr.bf16.mxu0 0
    %1587 = vmatpush1.bf16.xpose.msra.mxu0 0
    %1588 = vmatprep.subr.bf16.mxu0 0
    %1589 = vmatpush1.bf16.xpose.msra.mxu0 0
    %1590 = vmatprep.mubr.bf16.mxu0 0
    %1591 = vmatmul.mubr.bf16.gmra.mrb[0].mxu0 %v1553
    %v1592 = vpop.f32.mrb[0].mxu0
    %v1593 = vadd.f32 0.0, %v1592
    %v1594 = vpop.f32.mrb[0].mxu0
    %v1595 = vpop.f32.mrb[0].mxu0
    %v1596 = vpop.f32.mrb[0].mxu0
    %1597 = vdwg.mxu0
    %v1599 = vsel %vm406, %v1529, 0
    %v1602 = vsel %vm406, %v1538, 0
    %1604 = vmatprep.subr.bf16.mxu0 0
    %1605 = vmatpush1.bf16.xpose.msra.mxu0 %v1602
    %1606 = vmatprep.subr.bf16.mxu0 0
    %1607 = vmatpush1.bf16.xpose.msra.mxu0 0
    %1608 = vmatprep.subr.bf16.mxu0 0
    %1609 = vmatpush1.bf16.xpose.msra.mxu0 0
    %1610 = vmatprep.subr.bf16.mxu0 0
    %1611 = vmatpush1.bf16.xpose.msra.mxu0 0
    %1612 = vmatprep.subr.bf16.mxu0 0
    %1613 = vmatpush1.bf16.xpose.msra.mxu0 0
    %1614 = vmatprep.subr.bf16.mxu0 0
    %1615 = vmatpush1.bf16.xpose.msra.mxu0 0
    %1616 = vmatprep.subr.bf16.mxu0 0
    %1617 = vmatpush1.bf16.xpose.msra.mxu0 0
    %1618 = vmatprep.subr.bf16.mxu0 0
    %1619 = vmatpush1.bf16.xpose.msra.mxu0 0
    %1620 = vmatprep.subr.bf16.mxu0 0
    %1621 = vmatpush1.bf16.xpose.msra.mxu0 0
    %1622 = vmatprep.subr.bf16.mxu0 0
    %1623 = vmatpush1.bf16.xpose.msra.mxu0 0
    %1624 = vmatprep.subr.bf16.mxu0 0
    %1625 = vmatpush1.bf16.xpose.msra.mxu0 0
    %1626 = vmatprep.subr.bf16.mxu0 0
    %1627 = vmatpush1.bf16.xpose.msra.mxu0 0
    %1628 = vmatprep.subr.bf16.mxu0 0
    %1629 = vmatpush1.bf16.xpose.msra.mxu0 0
    %1630 = vmatprep.subr.bf16.mxu0 0
    %1631 = vmatpush1.bf16.xpose.msra.mxu0 0
    %1632 = vmatprep.subr.bf16.mxu0 0
    %1633 = vmatpush1.bf16.xpose.msra.mxu0 0
    %1634 = vmatprep.subr.bf16.mxu0 0
    %1635 = vmatpush1.bf16.xpose.msra.mxu0 0
    %1636 = vmatprep.mubr.bf16.mxu0 0
    %1637 = vmatmul.mubr.bf16.gmra.mrb[0].mxu0 %v1599
    %v1638 = vpop.f32.mrb[0].mxu0
    %v1639 = vadd.f32 0.0, %v1638
    %v1640 = vpop.f32.mrb[0].mxu0
    %v1641 = vpop.f32.mrb[0].mxu0
    %v1642 = vpop.f32.mrb[0].mxu0
    %1643 = vdwg.mxu0
    %v1645 = vsel %vm406, %v1531, 0
    %v1648 = vsel %vm406, %v1540, 0
    %1650 = vmatprep.subr.bf16.mxu0 0
    %1651 = vmatpush1.bf16.xpose.msra.mxu0 %v1648
    %1652 = vmatprep.subr.bf16.mxu0 0
    %1653 = vmatpush1.bf16.xpose.msra.mxu0 0
    %1654 = vmatprep.subr.bf16.mxu0 0
    %1655 = vmatpush1.bf16.xpose.msra.mxu0 0
    %1656 = vmatprep.subr.bf16.mxu0 0
    %1657 = vmatpush1.bf16.xpose.msra.mxu0 0
    %1658 = vmatprep.subr.bf16.mxu0 0
    %1659 = vmatpush1.bf16.xpose.msra.mxu0 0
    %1660 = vmatprep.subr.bf16.mxu0 0
    %1661 = vmatpush1.bf16.xpose.msra.mxu0 0
    %1662 = vmatprep.subr.bf16.mxu0 0
    %1663 = vmatpush1.bf16.xpose.msra.mxu0 0
    %1664 = vmatprep.subr.bf16.mxu0 0
    %1665 = vmatpush1.bf16.xpose.msra.mxu0 0
    %1666 = vmatprep.subr.bf16.mxu0 0
    %1667 = vmatpush1.bf16.xpose.msra.mxu0 0
    %1668 = vmatprep.subr.bf16.mxu0 0
    %1669 = vmatpush1.bf16.xpose.msra.mxu0 0
    %1670 = vmatprep.subr.bf16.mxu0 0
    %1671 = vmatpush1.bf16.xpose.msra.mxu0 0
    %1672 = vmatprep.subr.bf16.mxu0 0
    %1673 = vmatpush1.bf16.xpose.msra.mxu0 0
    %1674 = vmatprep.subr.bf16.mxu0 0
    %1675 = vmatpush1.bf16.xpose.msra.mxu0 0
    %1676 = vmatprep.subr.bf16.mxu0 0
    %1677 = vmatpush1.bf16.xpose.msra.mxu0 0
    %1678 = vmatprep.subr.bf16.mxu0 0
    %1679 = vmatpush1.bf16.xpose.msra.mxu0 0
    %1680 = vmatprep.subr.bf16.mxu0 0
    %1681 = vmatpush1.bf16.xpose.msra.mxu0 0
    %1682 = vmatprep.mubr.bf16.mxu0 0
    %1683 = vmatmul.mubr.bf16.gmra.mrb[0].mxu0 %v1645
    %v1684 = vpop.f32.mrb[0].mxu0
    %v1685 = vadd.f32 0.0, %v1684
    %v1686 = vpop.f32.mrb[0].mxu0
    %v1687 = vpop.f32.mrb[0].mxu0
    %v1688 = vpop.f32.mrb[0].mxu0
    %1689 = vdwg.mxu0
    %v1691 = vsel %vm406, %v1533, 0
    %v1694 = vsel %vm406, %v1542, 0
    %1696 = vmatprep.subr.bf16.mxu0 0
    %1697 = vmatpush1.bf16.xpose.msra.mxu0 %v1694
    %1698 = vmatprep.subr.bf16.mxu0 0
    %1699 = vmatpush1.bf16.xpose.msra.mxu0 0
    %1700 = vmatprep.subr.bf16.mxu0 0
    %1701 = vmatpush1.bf16.xpose.msra.mxu0 0
    %1702 = vmatprep.subr.bf16.mxu0 0
    %1703 = vmatpush1.bf16.xpose.msra.mxu0 0
    %1704 = vmatprep.subr.bf16.mxu0 0
    %1705 = vmatpush1.bf16.xpose.msra.mxu0 0
    %1706 = vmatprep.subr.bf16.mxu0 0
    %1707 = vmatpush1.bf16.xpose.msra.mxu0 0
    %1708 = vmatprep.subr.bf16.mxu0 0
    %1709 = vmatpush1.bf16.xpose.msra.mxu0 0
    %1710 = vmatprep.subr.bf16.mxu0 0
    %1711 = vmatpush1.bf16.xpose.msra.mxu0 0
    %1712 = vmatprep.subr.bf16.mxu0 0
    %1713 = vmatpush1.bf16.xpose.msra.mxu0 0
    %1714 = vmatprep.subr.bf16.mxu0 0
    %1715 = vmatpush1.bf16.xpose.msra.mxu0 0
    %1716 = vmatprep.subr.bf16.mxu0 0
    %1717 = vmatpush1.bf16.xpose.msra.mxu0 0
    %1718 = vmatprep.subr.bf16.mxu0 0
    %1719 = vmatpush1.bf16.xpose.msra.mxu0 0
    %1720 = vmatprep.subr.bf16.mxu0 0
    %1721 = vmatpush1.bf16.xpose.msra.mxu0 0
    %1722 = vmatprep.subr.bf16.mxu0 0
    %1723 = vmatpush1.bf16.xpose.msra.mxu0 0
    %1724 = vmatprep.subr.bf16.mxu0 0
    %1725 = vmatpush1.bf16.xpose.msra.mxu0 0
    %1726 = vmatprep.subr.bf16.mxu0 0
    %1727 = vmatpush1.bf16.xpose.msra.mxu0 0
    %1728 = vmatprep.mubr.bf16.mxu0 0
    %1729 = vmatmul.mubr.bf16.gmra.mrb[0].mxu0 %v1691
    %v1730 = vpop.f32.mrb[0].mxu0
    %v1731 = vadd.f32 0.0, %v1730
    %v1732 = vpop.f32.mrb[0].mxu0
    %v1733 = vpop.f32.mrb[0].mxu0
    %v1734 = vpop.f32.mrb[0].mxu0
    %1735 = vdwg.mxu0
    %v1736 = vmul.f32 %v1593, 0.25
    %v1737 = vmul.f32 %v1639, 0.25
    %v1738 = vmul.f32 %v1685, 0.25
    %v1739 = vmul.f32 %v1731, 0.25
    %v1740 = vsel %vm595, %v1736, -inf
    %1741 = vmax.xlane.f32.xlu0 %v1740
    %v1742 = vpop.xlane.xlu0 %1741
    %v1743 = vsel %vm595, %v1737, -inf
    %1744 = vmax.xlane.f32.xlu0 %v1743
    %v1745 = vpop.xlane.xlu0 %1744
    %v1746 = vsel %vm595, %v1738, -inf
    %1747 = vmax.xlane.f32.xlu0 %v1746
    %v1748 = vpop.xlane.xlu0 %1747
    %v1749 = vsel %vm595, %v1739, -inf
    %1750 = vmax.xlane.f32.xlu0 %v1749
    %v1751 = vpop.xlane.xlu0 %1750
    %v1752 = vsub.f32 %v1736, %v1742
    %v1753 = vsub.f32 %v1737, %v1745
    %v1754 = vsub.f32 %v1738, %v1748
    %v1755 = vsub.f32 %v1739, %v1751
    %v1756 = vmul.f32 %v1752, 1.442695
    %v1757 = vpow.pop %v1756
    %v1758 = vmul.f32 %v1753, 1.442695
    %v1759 = vpow.pop %v1758
    %v1760 = vmul.f32 %v1754, 1.442695
    %v1761 = vpow.pop %v1760
    %v1762 = vmul.f32 %v1755, 1.442695
    %v1763 = vpow.pop %v1762
    %v1764 = vsel %vm595, %v1757, 0.0
    %1765 = vadd.xlane.f32.xlu0 %v1764
    %v1766 = vpop.xlane.xlu0 %1765
    %v1767 = vsel %vm595, %v1759, 0.0
    %1768 = vadd.xlane.f32.xlu0 %v1767
    %v1769 = vpop.xlane.xlu0 %1768
    %v1770 = vsel %vm595, %v1761, 0.0
    %1771 = vadd.xlane.f32.xlu0 %v1770
    %v1772 = vpop.xlane.xlu0 %1771
    %v1773 = vsel %vm595, %v1763, 0.0
    %1774 = vadd.xlane.f32.xlu0 %v1773
    %v1775 = vpop.xlane.xlu0 %1774
    %v1776 = vrcp.pop %v1766
    %v1777 = vrcp.pop %v1769
    %v1778 = vrcp.pop %v1772
    %v1779 = vrcp.pop %v1775
    %v1780 = vmul.f32 %v1757, %v1776
    %v1781 = vmul.f32 %v1759, %v1777
    %v1782 = vmul.f32 %v1761, %v1778
    %v1783 = vmul.f32 %v1763, %v1779
    %v1784 = vpack.c.bf16 %v1780, %v1780
    %v1785 = vpack.c.bf16 %v1781, %v1781
    %v1786 = vpack.c.bf16 %v1782, %v1782
    %v1787 = vpack.c.bf16 %v1783, %v1783
    %v1789 = vsel %vm595, %v1784, 0
    %v1792 = vsel %vm647, %v1546, 0
    %1794 = vmatprep.subr.bf16.mxu0 0
    %1795 = vmatpush1.bf16.msra.mxu0 %v1792
    %1796 = vmatprep.subr.bf16.mxu0 0
    %1797 = vmatpush1.bf16.msra.mxu0 0
    %1798 = vmatprep.subr.bf16.mxu0 0
    %1799 = vmatpush1.bf16.msra.mxu0 0
    %1800 = vmatprep.subr.bf16.mxu0 0
    %1801 = vmatpush1.bf16.msra.mxu0 0
    %1802 = vmatprep.subr.bf16.mxu0 0
    %1803 = vmatpush1.bf16.msra.mxu0 0
    %1804 = vmatprep.subr.bf16.mxu0 0
    %1805 = vmatpush1.bf16.msra.mxu0 0
    %1806 = vmatprep.subr.bf16.mxu0 0
    %1807 = vmatpush1.bf16.msra.mxu0 0
    %1808 = vmatprep.subr.bf16.mxu0 0
    %1809 = vmatpush1.bf16.msra.mxu0 0
    %1810 = vmatprep.subr.bf16.mxu0 0
    %1811 = vmatpush1.bf16.msra.mxu0 0
    %1812 = vmatprep.subr.bf16.mxu0 0
    %1813 = vmatpush1.bf16.msra.mxu0 0
    %1814 = vmatprep.subr.bf16.mxu0 0
    %1815 = vmatpush1.bf16.msra.mxu0 0
    %1816 = vmatprep.subr.bf16.mxu0 0
    %1817 = vmatpush1.bf16.msra.mxu0 0
    %1818 = vmatprep.subr.bf16.mxu0 0
    %1819 = vmatpush1.bf16.msra.mxu0 0
    %1820 = vmatprep.subr.bf16.mxu0 0
    %1821 = vmatpush1.bf16.msra.mxu0 0
    %1822 = vmatprep.subr.bf16.mxu0 0
    %1823 = vmatpush1.bf16.msra.mxu0 0
    %1824 = vmatprep.subr.bf16.mxu0 0
    %1825 = vmatpush1.bf16.msra.mxu0 0
    %1826 = vmatprep.mubr.bf16.mxu0 0
    %1827 = vmatmul.mubr.bf16.gmra.mrb[0].mxu0 %v1789
    %v1828 = vpop.f32.mrb[0].mxu0
    %v1829 = vadd.f32 0.0, %v1828
    %v1830 = vpop.f32.mrb[0].mxu0
    %v1831 = vpop.f32.mrb[0].mxu0
    %v1832 = vpop.f32.mrb[0].mxu0
    %1833 = vdwg.mxu0
    %v1835 = vsel %vm595, %v1785, 0
    %v1838 = vsel %vm647, %v1547, 0
    %1840 = vmatprep.subr.bf16.mxu0 0
    %1841 = vmatpush1.bf16.msra.mxu0 %v1838
    %1842 = vmatprep.subr.bf16.mxu0 0
    %1843 = vmatpush1.bf16.msra.mxu0 0
    %1844 = vmatprep.subr.bf16.mxu0 0
    %1845 = vmatpush1.bf16.msra.mxu0 0
    %1846 = vmatprep.subr.bf16.mxu0 0
    %1847 = vmatpush1.bf16.msra.mxu0 0
    %1848 = vmatprep.subr.bf16.mxu0 0
    %1849 = vmatpush1.bf16.msra.mxu0 0
    %1850 = vmatprep.subr.bf16.mxu0 0
    %1851 = vmatpush1.bf16.msra.mxu0 0
    %1852 = vmatprep.subr.bf16.mxu0 0
    %1853 = vmatpush1.bf16.msra.mxu0 0
    %1854 = vmatprep.subr.bf16.mxu0 0
    %1855 = vmatpush1.bf16.msra.mxu0 0
    %1856 = vmatprep.subr.bf16.mxu0 0
    %1857 = vmatpush1.bf16.msra.mxu0 0
    %1858 = vmatprep.subr.bf16.mxu0 0
    %1859 = vmatpush1.bf16.msra.mxu0 0
    %1860 = vmatprep.subr.bf16.mxu0 0
    %1861 = vmatpush1.bf16.msra.mxu0 0
    %1862 = vmatprep.subr.bf16.mxu0 0
    %1863 = vmatpush1.bf16.msra.mxu0 0
    %1864 = vmatprep.subr.bf16.mxu0 0
    %1865 = vmatpush1.bf16.msra.mxu0 0
    %1866 = vmatprep.subr.bf16.mxu0 0
    %1867 = vmatpush1.bf16.msra.mxu0 0
    %1868 = vmatprep.subr.bf16.mxu0 0
    %1869 = vmatpush1.bf16.msra.mxu0 0
    %1870 = vmatprep.subr.bf16.mxu0 0
    %1871 = vmatpush1.bf16.msra.mxu0 0
    %1872 = vmatprep.mubr.bf16.mxu0 0
    %1873 = vmatmul.mubr.bf16.gmra.mrb[0].mxu0 %v1835
    %v1874 = vpop.f32.mrb[0].mxu0
    %v1875 = vadd.f32 0.0, %v1874
    %v1876 = vpop.f32.mrb[0].mxu0
    %v1877 = vpop.f32.mrb[0].mxu0
    %v1878 = vpop.f32.mrb[0].mxu0
    %1879 = vdwg.mxu0
    %v1881 = vsel %vm595, %v1786, 0
    %v1884 = vsel %vm647, %v1549, 0
    %1886 = vmatprep.subr.bf16.mxu0 0
    %1887 = vmatpush1.bf16.msra.mxu0 %v1884
    %1888 = vmatprep.subr.bf16.mxu0 0
    %1889 = vmatpush1.bf16.msra.mxu0 0
    %1890 = vmatprep.subr.bf16.mxu0 0
    %1891 = vmatpush1.bf16.msra.mxu0 0
    %1892 = vmatprep.subr.bf16.mxu0 0
    %1893 = vmatpush1.bf16.msra.mxu0 0
    %1894 = vmatprep.subr.bf16.mxu0 0
    %1895 = vmatpush1.bf16.msra.mxu0 0
    %1896 = vmatprep.subr.bf16.mxu0 0
    %1897 = vmatpush1.bf16.msra.mxu0 0
    %1898 = vmatprep.subr.bf16.mxu0 0
    %1899 = vmatpush1.bf16.msra.mxu0 0
    %1900 = vmatprep.subr.bf16.mxu0 0
    %1901 = vmatpush1.bf16.msra.mxu0 0
    %1902 = vmatprep.subr.bf16.mxu0 0
    %1903 = vmatpush1.bf16.msra.mxu0 0
    %1904 = vmatprep.subr.bf16.mxu0 0
    %1905 = vmatpush1.bf16.msra.mxu0 0
    %1906 = vmatprep.subr.bf16.mxu0 0
    %1907 = vmatpush1.bf16.msra.mxu0 0
    %1908 = vmatprep.subr.bf16.mxu0 0
    %1909 = vmatpush1.bf16.msra.mxu0 0
    %1910 = vmatprep.subr.bf16.mxu0 0
    %1911 = vmatpush1.bf16.msra.mxu0 0
    %1912 = vmatprep.subr.bf16.mxu0 0
    %1913 = vmatpush1.bf16.msra.mxu0 0
    %1914 = vmatprep.subr.bf16.mxu0 0
    %1915 = vmatpush1.bf16.msra.mxu0 0
    %1916 = vmatprep.subr.bf16.mxu0 0
    %1917 = vmatpush1.bf16.msra.mxu0 0
    %1918 = vmatprep.mubr.bf16.mxu0 0
    %1919 = vmatmul.mubr.bf16.gmra.mrb[0].mxu0 %v1881
    %v1920 = vpop.f32.mrb[0].mxu0
    %v1921 = vadd.f32 0.0, %v1920
    %v1922 = vpop.f32.mrb[0].mxu0
    %v1923 = vpop.f32.mrb[0].mxu0
    %v1924 = vpop.f32.mrb[0].mxu0
    %1925 = vdwg.mxu0
    %v1927 = vsel %vm595, %v1787, 0
    %v1930 = vsel %vm647, %v1551, 0
    %1932 = vmatprep.subr.bf16.mxu0 0
    %1933 = vmatpush1.bf16.msra.mxu0 %v1930
    %1934 = vmatprep.subr.bf16.mxu0 0
    %1935 = vmatpush1.bf16.msra.mxu0 0
    %1936 = vmatprep.subr.bf16.mxu0 0
    %1937 = vmatpush1.bf16.msra.mxu0 0
    %1938 = vmatprep.subr.bf16.mxu0 0
    %1939 = vmatpush1.bf16.msra.mxu0 0
    %1940 = vmatprep.subr.bf16.mxu0 0
    %1941 = vmatpush1.bf16.msra.mxu0 0
    %1942 = vmatprep.subr.bf16.mxu0 0
    %1943 = vmatpush1.bf16.msra.mxu0 0
    %1944 = vmatprep.subr.bf16.mxu0 0
    %1945 = vmatpush1.bf16.msra.mxu0 0
    %1946 = vmatprep.subr.bf16.mxu0 0
    %1947 = vmatpush1.bf16.msra.mxu0 0
    %1948 = vmatprep.subr.bf16.mxu0 0
    %1949 = vmatpush1.bf16.msra.mxu0 0
    %1950 = vmatprep.subr.bf16.mxu0 0
    %1951 = vmatpush1.bf16.msra.mxu0 0
    %1952 = vmatprep.subr.bf16.mxu0 0
    %1953 = vmatpush1.bf16.msra.mxu0 0
    %1954 = vmatprep.subr.bf16.mxu0 0
    %1955 = vmatpush1.bf16.msra.mxu0 0
    %1956 = vmatprep.subr.bf16.mxu0 0
    %1957 = vmatpush1.bf16.msra.mxu0 0
    %1958 = vmatprep.subr.bf16.mxu0 0
    %1959 = vmatpush1.bf16.msra.mxu0 0
    %1960 = vmatprep.subr.bf16.mxu0 0
    %1961 = vmatpush1.bf16.msra.mxu0 0
    %1962 = vmatprep.subr.bf16.mxu0 0
    %1963 = vmatpush1.bf16.msra.mxu0 0
    %1964 = vmatprep.mubr.bf16.mxu0 0
    %1965 = vmatmul.mubr.bf16.gmra.mrb[0].mxu0 %v1927
    %v1966 = vpop.f32.mrb[0].mxu0
    %v1967 = vadd.f32 0.0, %v1966
    %v1968 = vpop.f32.mrb[0].mxu0
    %v1969 = vpop.f32.mrb[0].mxu0
    %v1970 = vpop.f32.mrb[0].mxu0
    %1971 = vdwg.mxu0
    %1974 = vrot.lane.b32.xlu0 %v1921, 64
    %v1975 = vpop.permute.xlu0 %1974
    %1976 = vrot.lane.b32.xlu0 %v1967, 64
    %v1977 = vpop.permute.xlu0 %1976
    %v1980 = vsel %vm406, %v1829, %v1975
    %v1981 = vsel %vm406, %v1875, %v1977
    %s1982 = scalar_lea.vmem %s5, 64
    %v1983 = vld [vmem:[%s1982] sm:$0xf]
    %v1984 = vld [vmem:[%s1982 + $0x4] sm:$0xf]
    %v1985 = vld [vmem:[%s1982 + $0x8] sm:$0xf]
    %v1986 = vld [vmem:[%s1982 + $0xc] sm:$0xf]
    %v1987 = vld [vmem:[%s1982 + $0x10] sm:$0xf]
    %v1988 = vld [vmem:[%s1982 + $0x14] sm:$0xf]
    %v1989 = vld [vmem:[%s1982 + $0x18] sm:$0xf]
    %v1990 = vld [vmem:[%s1982 + $0x1c] sm:$0xf]
    %v1991 = vld [vmem:[%s1982 + $0x20] sm:$0xf]
    %v1992 = vld [vmem:[%s1982 + $0x24] sm:$0xf]
    %v1993 = vld [vmem:[%s1982 + $0x28] sm:$0xf]
    %v1994 = vld [vmem:[%s1982 + $0x2c] sm:$0xf]
    %v1995 = vld [vmem:[%s1982 + $0x30] sm:$0xf]
    %v1996 = vld [vmem:[%s1982 + $0x34] sm:$0xf]
    %v1997 = vld [vmem:[%s1982 + $0x38] sm:$0xf]
    %v1998 = vld [vmem:[%s1982 + $0x3c] sm:$0xf]
    %v1999 = vpack.c.bf16 %v1981, %v1980
    %s2000 = scalar_lea.vmem %s6, 1
    %v2001 = vld [vmem:[%s2000] sm:$0x1]
    %v2003 = vlaneseq
    %v2004 = vshrl.u32 %v2003, 7
    %v2005 = vsub.s32 0, %v2004
    %v2006 = vrot.slane %v2001, %v2005
    %v2024 = vunpack.c.l.b16 %v1983
    %v2025 = vunpack.c.l.b16 %v1984
    %v2026 = vunpack.c.l.b16 %v1985
    %v2027 = vunpack.c.l.b16 %v1986
    %v2028 = vunpack.c.l.b16 %v1987
    %v2029 = vunpack.c.l.b16 %v1988
    %v2030 = vunpack.c.l.b16 %v1989
    %v2031 = vunpack.c.l.b16 %v1990
    %v2032 = vunpack.c.l.b16 %v1991
    %v2033 = vunpack.c.l.b16 %v1992
    %v2034 = vunpack.c.l.b16 %v1993
    %v2035 = vunpack.c.l.b16 %v1994
    %v2036 = vunpack.c.l.b16 %v1995
    %v2037 = vunpack.c.l.b16 %v1996
    %v2038 = vunpack.c.l.b16 %v1997
    %v2039 = vunpack.c.l.b16 %v1998
    %v2040 = vpack.c.b16 %v2025, %v2024
    %v2041 = vpack.c.b16 %v2027, %v2026
    %v2042 = vpack.c.b16 %v2029, %v2028
    %v2043 = vpack.c.b16 %v2031, %v2030
    %v2044 = vpack.c.b16 %v2033, %v2032
    %v2045 = vpack.c.b16 %v2035, %v2034
    %v2046 = vpack.c.b16 %v2037, %v2036
    %v2047 = vpack.c.b16 %v2039, %v2038
    %2056 = vmatprep.subr.bf16.mxu0 0
    %2057 = vmatpush1.bf16.msra.mxu0 %v2040
    %2058 = vmatprep.subr.bf16.mxu0 0
    %2059 = vmatpush1.bf16.msra.mxu0 %v2041
    %2060 = vmatprep.subr.bf16.mxu0 0
    %2061 = vmatpush1.bf16.msra.mxu0 %v2042
    %2062 = vmatprep.subr.bf16.mxu0 0
    %2063 = vmatpush1.bf16.msra.mxu0 %v2043
    %2064 = vmatprep.subr.bf16.mxu0 0
    %2065 = vmatpush1.bf16.msra.mxu0 %v2044
    %2066 = vmatprep.subr.bf16.mxu0 0
    %2067 = vmatpush1.bf16.msra.mxu0 %v2045
    %2068 = vmatprep.subr.bf16.mxu0 0
    %2069 = vmatpush1.bf16.msra.mxu0 %v2046
    %2070 = vmatprep.subr.bf16.mxu0 0
    %2071 = vmatpush1.bf16.msra.mxu0 %v2047
    %2072 = vmatprep.subr.bf16.mxu0 0
    %2073 = vmatpush1.bf16.msra.mxu0 0
    %2074 = vmatprep.subr.bf16.mxu0 0
    %2075 = vmatpush1.bf16.msra.mxu0 0
    %2076 = vmatprep.subr.bf16.mxu0 0
    %2077 = vmatpush1.bf16.msra.mxu0 0
    %2078 = vmatprep.subr.bf16.mxu0 0
    %2079 = vmatpush1.bf16.msra.mxu0 0
    %2080 = vmatprep.subr.bf16.mxu0 0
    %2081 = vmatpush1.bf16.msra.mxu0 0
    %2082 = vmatprep.subr.bf16.mxu0 0
    %2083 = vmatpush1.bf16.msra.mxu0 0
    %2084 = vmatprep.subr.bf16.mxu0 0
    %2085 = vmatpush1.bf16.msra.mxu0 0
    %2086 = vmatprep.subr.bf16.mxu0 0
    %2087 = vmatpush1.bf16.msra.mxu0 0
    %2088 = vmatprep.mubr.bf16.mxu0 0
    %2089 = vmatmul.mubr.bf16.gmra.mrb[0].mxu0 %v1999
    %v2090 = vpop.f32.mrb[0].mxu0
    %v2091 = vadd.f32 %v2006, %v2090
    %v2092 = vpop.f32.mrb[0].mxu0
    %v2093 = vpop.f32.mrb[0].mxu0
    %v2094 = vadd.f32 %v2006, %v2093
    %v2095 = vpop.f32.mrb[0].mxu0
    %2096 = vdwg.mxu0
    %v2097 = vadd.f32 %v1254, %v2091
    %v2098 = vadd.f32 %v1255, %v2094
    %2099 = vadd.xlane.f32.xlu0 %v2097
    %v2100 = vpop.xlane.xlu0 %2099
    %2101 = vadd.xlane.f32.xlu0 %v2098
    %v2102 = vpop.xlane.xlu0 %2101
    %v2103 = vmul.f32 %v2100, 0.03125
    %v2104 = vmul.f32 %v2102, 0.03125
    %v2105 = vsub.f32 %v2097, %v2103
    %v2106 = vsub.f32 %v2098, %v2104
    %v2107 = vmul.f32 %v2105, %v110
    %v2108 = vmul.f32 %v2106, %v110
    %v2109 = vmul.f32 %v2107, %v2107
    %v2110 = vmul.f32 %v2108, %v2108
    %2111 = vadd.xlane.f32.xlu0 %v2109
    %v2112 = vpop.xlane.xlu0 %2111
    %2113 = vadd.xlane.f32.xlu0 %v2110
    %v2114 = vpop.xlane.xlu0 %2113
    %v2115 = vmul.f32 %v2112, 0.03125
    %v2116 = vmul.f32 %v2114, 0.03125
    %v2117 = vadd.f32 %v2115, 1e-05
    %v2118 = vadd.f32 %v2116, 1e-05
    %v2119 = vrsqrt.pop %v2117
    %v2120 = vrsqrt.pop %v2118
    %v2121 = vmul.f32 %v2107, %v2119
    %v2122 = vmul.f32 %v2108, %v2120
    %v2123 = vlaneseq
    %v2124 = vshrl.u32 %v2123, 7
    %v2125 = vsub.s32 0, %v2124
    %v2126 = vrot.slane %v1257, %v2125
    %v2127 = vmul.f32 %v2121, %v2126
    %v2128 = vmul.f32 %v2122, %v2126
    %v2129 = vlaneseq
    %v2130 = vshrl.u32 %v2129, 7
    %v2131 = vsub.s32 1, %v2130
    %v2132 = vrot.slane %v1257, %v2131
    %v2133 = vadd.f32 %v2127, %v2132
    %v2134 = vadd.f32 %v2128, %v2132
    %s2135 = scalar_lea.vmem %s7, 64
    %v2136 = vld [vmem:[%s2135] sm:$0xf]
    %v2137 = vld [vmem:[%s2135 + $0x4] sm:$0xf]
    %v2138 = vld [vmem:[%s2135 + $0x8] sm:$0xf]
    %v2139 = vld [vmem:[%s2135 + $0xc] sm:$0xf]
    %v2140 = vld [vmem:[%s2135 + $0x10] sm:$0xf]
    %v2141 = vld [vmem:[%s2135 + $0x14] sm:$0xf]
    %v2142 = vld [vmem:[%s2135 + $0x18] sm:$0xf]
    %v2143 = vld [vmem:[%s2135 + $0x1c] sm:$0xf]
    %v2144 = vld [vmem:[%s2135 + $0x20] sm:$0xf]
    %v2145 = vld [vmem:[%s2135 + $0x24] sm:$0xf]
    %v2146 = vld [vmem:[%s2135 + $0x28] sm:$0xf]
    %v2147 = vld [vmem:[%s2135 + $0x2c] sm:$0xf]
    %v2148 = vld [vmem:[%s2135 + $0x30] sm:$0xf]
    %v2149 = vld [vmem:[%s2135 + $0x34] sm:$0xf]
    %v2150 = vld [vmem:[%s2135 + $0x38] sm:$0xf]
    %v2151 = vld [vmem:[%s2135 + $0x3c] sm:$0xf]
    %v2152 = vpack.c.bf16 %v2134, %v2133
    %s2153 = scalar_lea.vmem %s8, 1
    %v2154 = vld [vmem:[%s2153] sm:$0x1]
    %v2156 = vlaneseq
    %v2157 = vshrl.u32 %v2156, 7
    %v2158 = vsub.s32 0, %v2157
    %v2159 = vrot.slane %v2154, %v2158
    %v2177 = vunpack.c.l.b16 %v2136
    %v2178 = vunpack.c.l.b16 %v2137
    %v2179 = vunpack.c.l.b16 %v2138
    %v2180 = vunpack.c.l.b16 %v2139
    %v2181 = vunpack.c.l.b16 %v2140
    %v2182 = vunpack.c.l.b16 %v2141
    %v2183 = vunpack.c.l.b16 %v2142
    %v2184 = vunpack.c.l.b16 %v2143
    %v2185 = vunpack.c.l.b16 %v2144
    %v2186 = vunpack.c.l.b16 %v2145
    %v2187 = vunpack.c.l.b16 %v2146
    %v2188 = vunpack.c.l.b16 %v2147
    %v2189 = vunpack.c.l.b16 %v2148
    %v2190 = vunpack.c.l.b16 %v2149
    %v2191 = vunpack.c.l.b16 %v2150
    %v2192 = vunpack.c.l.b16 %v2151
    %v2193 = vpack.c.b16 %v2178, %v2177
    %v2194 = vpack.c.b16 %v2180, %v2179
    %v2195 = vpack.c.b16 %v2182, %v2181
    %v2196 = vpack.c.b16 %v2184, %v2183
    %v2197 = vpack.c.b16 %v2186, %v2185
    %v2198 = vpack.c.b16 %v2188, %v2187
    %v2199 = vpack.c.b16 %v2190, %v2189
    %v2200 = vpack.c.b16 %v2192, %v2191
    %2209 = vmatprep.subr.bf16.mxu0 0
    %2210 = vmatpush1.bf16.msra.mxu0 %v2193
    %2211 = vmatprep.subr.bf16.mxu0 0
    %2212 = vmatpush1.bf16.msra.mxu0 %v2194
    %2213 = vmatprep.subr.bf16.mxu0 0
    %2214 = vmatpush1.bf16.msra.mxu0 %v2195
    %2215 = vmatprep.subr.bf16.mxu0 0
    %2216 = vmatpush1.bf16.msra.mxu0 %v2196
    %2217 = vmatprep.subr.bf16.mxu0 0
    %2218 = vmatpush1.bf16.msra.mxu0 %v2197
    %2219 = vmatprep.subr.bf16.mxu0 0
    %2220 = vmatpush1.bf16.msra.mxu0 %v2198
    %2221 = vmatprep.subr.bf16.mxu0 0
    %2222 = vmatpush1.bf16.msra.mxu0 %v2199
    %2223 = vmatprep.subr.bf16.mxu0 0
    %2224 = vmatpush1.bf16.msra.mxu0 %v2200
    %2225 = vmatprep.subr.bf16.mxu0 0
    %2226 = vmatpush1.bf16.msra.mxu0 0
    %2227 = vmatprep.subr.bf16.mxu0 0
    %2228 = vmatpush1.bf16.msra.mxu0 0
    %2229 = vmatprep.subr.bf16.mxu0 0
    %2230 = vmatpush1.bf16.msra.mxu0 0
    %2231 = vmatprep.subr.bf16.mxu0 0
    %2232 = vmatpush1.bf16.msra.mxu0 0
    %2233 = vmatprep.subr.bf16.mxu0 0
    %2234 = vmatpush1.bf16.msra.mxu0 0
    %2235 = vmatprep.subr.bf16.mxu0 0
    %2236 = vmatpush1.bf16.msra.mxu0 0
    %2237 = vmatprep.subr.bf16.mxu0 0
    %2238 = vmatpush1.bf16.msra.mxu0 0
    %2239 = vmatprep.subr.bf16.mxu0 0
    %2240 = vmatpush1.bf16.msra.mxu0 0
    %2241 = vmatprep.mubr.bf16.mxu0 0
    %2242 = vmatmul.mubr.bf16.gmra.mrb[0].mxu0 %v2152
    %v2243 = vpop.f32.mrb[0].mxu0
    %v2244 = vadd.f32 %v2159, %v2243
    %v2245 = vpop.f32.mrb[0].mxu0
    %v2246 = vpop.f32.mrb[0].mxu0
    %v2247 = vadd.f32 %v2159, %v2246
    %v2248 = vpop.f32.mrb[0].mxu0
    %2249 = vdwg.mxu0
    %v2250 = vmax.f32 %v2244, 0.0
    %v2251 = vmax.f32 %v2247, 0.0
    %s2252 = scalar_lea.vmem %s9, 64
    %v2253 = vld [vmem:[%s2252] sm:$0xf]
    %v2254 = vld [vmem:[%s2252 + $0x4] sm:$0xf]
    %v2255 = vld [vmem:[%s2252 + $0x8] sm:$0xf]
    %v2256 = vld [vmem:[%s2252 + $0xc] sm:$0xf]
    %v2257 = vld [vmem:[%s2252 + $0x10] sm:$0xf]
    %v2258 = vld [vmem:[%s2252 + $0x14] sm:$0xf]
    %v2259 = vld [vmem:[%s2252 + $0x18] sm:$0xf]
    %v2260 = vld [vmem:[%s2252 + $0x1c] sm:$0xf]
    %v2261 = vld [vmem:[%s2252 + $0x20] sm:$0xf]
    %v2262 = vld [vmem:[%s2252 + $0x24] sm:$0xf]
    %v2263 = vld [vmem:[%s2252 + $0x28] sm:$0xf]
    %v2264 = vld [vmem:[%s2252 + $0x2c] sm:$0xf]
    %v2265 = vld [vmem:[%s2252 + $0x30] sm:$0xf]
    %v2266 = vld [vmem:[%s2252 + $0x34] sm:$0xf]
    %v2267 = vld [vmem:[%s2252 + $0x38] sm:$0xf]
    %v2268 = vld [vmem:[%s2252 + $0x3c] sm:$0xf]
    %v2269 = vpack.c.bf16 %v2251, %v2250
    %s2270 = scalar_lea.vmem %s10, 1
    %v2271 = vld [vmem:[%s2270] sm:$0x1]
    %v2273 = vlaneseq
    %v2274 = vshrl.u32 %v2273, 7
    %v2275 = vsub.s32 0, %v2274
    %v2276 = vrot.slane %v2271, %v2275
    %v2294 = vunpack.c.l.b16 %v2253
    %v2295 = vunpack.c.l.b16 %v2254
    %v2296 = vunpack.c.l.b16 %v2255
    %v2297 = vunpack.c.l.b16 %v2256
    %v2298 = vunpack.c.l.b16 %v2257
    %v2299 = vunpack.c.l.b16 %v2258
    %v2300 = vunpack.c.l.b16 %v2259
    %v2301 = vunpack.c.l.b16 %v2260
    %v2302 = vunpack.c.l.b16 %v2261
    %v2303 = vunpack.c.l.b16 %v2262
    %v2304 = vunpack.c.l.b16 %v2263
    %v2305 = vunpack.c.l.b16 %v2264
    %v2306 = vunpack.c.l.b16 %v2265
    %v2307 = vunpack.c.l.b16 %v2266
    %v2308 = vunpack.c.l.b16 %v2267
    %v2309 = vunpack.c.l.b16 %v2268
    %v2310 = vpack.c.b16 %v2295, %v2294
    %v2311 = vpack.c.b16 %v2297, %v2296
    %v2312 = vpack.c.b16 %v2299, %v2298
    %v2313 = vpack.c.b16 %v2301, %v2300
    %v2314 = vpack.c.b16 %v2303, %v2302
    %v2315 = vpack.c.b16 %v2305, %v2304
    %v2316 = vpack.c.b16 %v2307, %v2306
    %v2317 = vpack.c.b16 %v2309, %v2308
    %2326 = vmatprep.subr.bf16.mxu0 0
    %2327 = vmatpush1.bf16.msra.mxu0 %v2310
    %2328 = vmatprep.subr.bf16.mxu0 0
    %2329 = vmatpush1.bf16.msra.mxu0 %v2311
    %2330 = vmatprep.subr.bf16.mxu0 0
    %2331 = vmatpush1.bf16.msra.mxu0 %v2312
    %2332 = vmatprep.subr.bf16.mxu0 0
    %2333 = vmatpush1.bf16.msra.mxu0 %v2313
    %2334 = vmatprep.subr.bf16.mxu0 0
    %2335 = vmatpush1.bf16.msra.mxu0 %v2314
    %2336 = vmatprep.subr.bf16.mxu0 0
    %2337 = vmatpush1.bf16.msra.mxu0 %v2315
    %2338 = vmatprep.subr.bf16.mxu0 0
    %2339 = vmatpush1.bf16.msra.mxu0 %v2316
    %2340 = vmatprep.subr.bf16.mxu0 0
    %2341 = vmatpush1.bf16.msra.mxu0 %v2317
    %2342 = vmatprep.subr.bf16.mxu0 0
    %2343 = vmatpush1.bf16.msra.mxu0 0
    %2344 = vmatprep.subr.bf16.mxu0 0
    %2345 = vmatpush1.bf16.msra.mxu0 0
    %2346 = vmatprep.subr.bf16.mxu0 0
    %2347 = vmatpush1.bf16.msra.mxu0 0
    %2348 = vmatprep.subr.bf16.mxu0 0
    %2349 = vmatpush1.bf16.msra.mxu0 0
    %2350 = vmatprep.subr.bf16.mxu0 0
    %2351 = vmatpush1.bf16.msra.mxu0 0
    %2352 = vmatprep.subr.bf16.mxu0 0
    %2353 = vmatpush1.bf16.msra.mxu0 0
    %2354 = vmatprep.subr.bf16.mxu0 0
    %2355 = vmatpush1.bf16.msra.mxu0 0
    %2356 = vmatprep.subr.bf16.mxu0 0
    %2357 = vmatpush1.bf16.msra.mxu0 0
    %2358 = vmatprep.mubr.bf16.mxu0 0
    %2359 = vmatmul.mubr.bf16.gmra.mrb[0].mxu0 %v2269
    %v2360 = vpop.f32.mrb[0].mxu0
    %v2361 = vadd.f32 %v2276, %v2360
    %v2362 = vpop.f32.mrb[0].mxu0
    %v2363 = vpop.f32.mrb[0].mxu0
    %v2364 = vadd.f32 %v2276, %v2363
    %v2365 = vpop.f32.mrb[0].mxu0
    %2366 = vdwg.mxu0
    %v2367 = vadd.f32 %v2133, %v2361
    %v2368 = vadd.f32 %v2134, %v2364
    %2369 = vadd.xlane.f32.xlu0 %v2367
    %v2370 = vpop.xlane.xlu0 %2369
    %2371 = vadd.xlane.f32.xlu0 %v2368
    %v2372 = vpop.xlane.xlu0 %2371
    %v2373 = vmul.f32 %v2370, 0.03125
    %v2374 = vmul.f32 %v2372, 0.03125
    %v2375 = vsub.f32 %v2367, %v2373
    %v2376 = vsub.f32 %v2368, %v2374
    %v2377 = vmul.f32 %v2375, %v110
    %v2378 = vmul.f32 %v2376, %v110
    %v2379 = vmul.f32 %v2377, %v2377
    %v2380 = vmul.f32 %v2378, %v2378
    %2381 = vadd.xlane.f32.xlu0 %v2379
    %v2382 = vpop.xlane.xlu0 %2381
    %2383 = vadd.xlane.f32.xlu0 %v2380
    %v2384 = vpop.xlane.xlu0 %2383
    %v2385 = vmul.f32 %v2382, 0.03125
    %v2386 = vmul.f32 %v2384, 0.03125
    %v2387 = vadd.f32 %v2385, 1e-05
    %v2388 = vadd.f32 %v2386, 1e-05
    %v2389 = vrsqrt.pop %v2387
    %v2390 = vrsqrt.pop %v2388
    %v2391 = vmul.f32 %v2377, %v2389
    %v2392 = vmul.f32 %v2378, %v2390
    %v2393 = vlaneseq
    %v2394 = vshrl.u32 %v2393, 7
    %v2395 = vsub.s32 2, %v2394
    %v2396 = vrot.slane %v1257, %v2395
    %v2397 = vmul.f32 %v2391, %v2396
    %v2398 = vmul.f32 %v2392, %v2396
    %v2399 = vlaneseq
    %v2400 = vshrl.u32 %v2399, 7
    %v2401 = vsub.s32 3, %v2400
    %v2402 = vrot.slane %v1257, %v2401
    %v2403 = vadd.f32 %v2397, %v2402
    %v2404 = vadd.f32 %v2398, %v2402
    %2405 = vst [vmem:[#allocation5] sm:$0xff] %v2403
    %2406 = vst [vmem:[#allocation5 + $0x8] sm:$0xff] %v2404
    %v2407 = vld [vmem:[%s1] sm:$0xff]
    %v2408 = vld [vmem:[%s1 + $0x8] sm:$0xff]
    %v2409 = vld [vmem:[%s26] sm:$0x3f]
    %v2410 = vld [vmem:[%s12] sm:$0xff]
    %v2411 = vld [vmem:[%s12 + $0x8] sm:$0xf]
    %v2412 = vld [vmem:[%s12 + $0xc] sm:$0xff]
    %v2413 = vld [vmem:[%s12 + $0x14] sm:$0xf]
    %v2414 = vld [vmem:[%s12 + $0x18] sm:$0xff]
    %v2415 = vld [vmem:[%s12 + $0x20] sm:$0xf]
    %v2416 = vld [vmem:[%s12 + $0x24] sm:$0xff]
    %v2417 = vld [vmem:[%s12 + $0x2c] sm:$0xf]
    %v2418 = vld [vmem:[%s12 + $0x30] sm:$0xff]
    %v2419 = vld [vmem:[%s12 + $0x38] sm:$0xf]
    %v2420 = vld [vmem:[%s12 + $0x3c] sm:$0xff]
    %v2421 = vld [vmem:[%s12 + $0x44] sm:$0xf]
    %v2422 = vld [vmem:[%s12 + $0x48] sm:$0xff]
    %v2423 = vld [vmem:[%s12 + $0x50] sm:$0xf]
    %v2424 = vld [vmem:[%s12 + $0x54] sm:$0xff]
    %v2425 = vld [vmem:[%s12 + $0x5c] sm:$0xf]
    %v2426 = vld [vmem:[%s12 + $0x60] sm:$0xff]
    %v2427 = vld [vmem:[%s12 + $0x68] sm:$0xf]
    %v2428 = vld [vmem:[%s12 + $0x6c] sm:$0xff]
    %v2429 = vld [vmem:[%s12 + $0x74] sm:$0xf]
    %v2430 = vld [vmem:[%s12 + $0x78] sm:$0xff]
    %v2431 = vld [vmem:[%s12 + $0x80] sm:$0xf]
    %v2432 = vld [vmem:[%s12 + $0x84] sm:$0xff]
    %v2433 = vld [vmem:[%s12 + $0x8c] sm:$0xf]
    %v2434 = vld [vmem:[%s12 + $0x90] sm:$0xff]
    %v2435 = vld [vmem:[%s12 + $0x98] sm:$0xf]
    %v2436 = vld [vmem:[%s12 + $0x9c] sm:$0xff]
    %v2437 = vld [vmem:[%s12 + $0xa4] sm:$0xf]
    %v2438 = vld [vmem:[%s12 + $0xa8] sm:$0xff]
    %v2439 = vld [vmem:[%s12 + $0xb0] sm:$0xf]
    %v2440 = vld [vmem:[%s12 + $0xb4] sm:$0xff]
    %v2441 = vld [vmem:[%s12 + $0xbc] sm:$0xf]
    %v2442 = vpack.c.bf16 %v2408, %v2407
    %v2443 = vld [vmem:[%s13] sm:$0x7]
    %v2445 = vlaneseq
    %v2446 = vshrl.u32 %v2445, 7
    %v2447 = vsub.s32 0, %v2446
    %v2448 = vrot.slane %v2443, %v2447
    %v2449 = vlaneseq
    %v2450 = vshrl.u32 %v2449, 7
    %v2451 = vsub.s32 1, %v2450
    %v2452 = vrot.slane %v2443, %v2451
    %v2453 = vlaneseq
    %v2454 = vshrl.u32 %v2453, 7
    %v2455 = vsub.s32 2, %v2454
    %v2456 = vrot.slane %v2443, %v2455
    %v2492 = vunpack.c.l.b16 %v2410
    %v2493 = vunpack.c.h.b16 %v2410
    %v2494 = vunpack.c.l.b16 %v2411
    %v2495 = vunpack.c.l.b16 %v2412
    %v2496 = vunpack.c.h.b16 %v2412
    %v2497 = vunpack.c.l.b16 %v2413
    %v2498 = vunpack.c.l.b16 %v2414
    %v2499 = vunpack.c.h.b16 %v2414
    %v2500 = vunpack.c.l.b16 %v2415
    %v2501 = vunpack.c.l.b16 %v2416
    %v2502 = vunpack.c.h.b16 %v2416
    %v2503 = vunpack.c.l.b16 %v2417
    %v2504 = vunpack.c.l.b16 %v2418
    %v2505 = vunpack.c.h.b16 %v2418
    %v2506 = vunpack.c.l.b16 %v2419
    %v2507 = vunpack.c.l.b16 %v2420
    %v2508 = vunpack.c.h.b16 %v2420
    %v2509 = vunpack.c.l.b16 %v2421
    %v2510 = vunpack.c.l.b16 %v2422
    %v2511 = vunpack.c.h.b16 %v2422
    %v2512 = vunpack.c.l.b16 %v2423
    %v2513 = vunpack.c.l.b16 %v2424
    %v2514 = vunpack.c.h.b16 %v2424
    %v2515 = vunpack.c.l.b16 %v2425
    %v2516 = vunpack.c.l.b16 %v2426
    %v2517 = vunpack.c.h.b16 %v2426
    %v2518 = vunpack.c.l.b16 %v2427
    %v2519 = vunpack.c.l.b16 %v2428
    %v2520 = vunpack.c.h.b16 %v2428
    %v2521 = vunpack.c.l.b16 %v2429
    %v2522 = vunpack.c.l.b16 %v2430
    %v2523 = vunpack.c.h.b16 %v2430
    %v2524 = vunpack.c.l.b16 %v2431
    %v2525 = vunpack.c.l.b16 %v2432
    %v2526 = vunpack.c.h.b16 %v2432
    %v2527 = vunpack.c.l.b16 %v2433
    %v2528 = vunpack.c.l.b16 %v2434
    %v2529 = vunpack.c.h.b16 %v2434
    %v2530 = vunpack.c.l.b16 %v2435
    %v2531 = vunpack.c.l.b16 %v2436
    %v2532 = vunpack.c.h.b16 %v2436
    %v2533 = vunpack.c.l.b16 %v2437
    %v2534 = vunpack.c.l.b16 %v2438
    %v2535 = vunpack.c.h.b16 %v2438
    %v2536 = vunpack.c.l.b16 %v2439
    %v2537 = vunpack.c.l.b16 %v2440
    %v2538 = vunpack.c.h.b16 %v2440
    %v2539 = vunpack.c.l.b16 %v2441
    %v2540 = vpack.c.b16 %v2495, %v2492
    %v2541 = vpack.c.b16 %v2496, %v2493
    %v2542 = vpack.c.b16 %v2497, %v2494
    %v2543 = vpack.c.b16 %v2501, %v2498
    %v2544 = vpack.c.b16 %v2502, %v2499
    %v2545 = vpack.c.b16 %v2503, %v2500
    %v2546 = vpack.c.b16 %v2507, %v2504
    %v2547 = vpack.c.b16 %v2508, %v2505
    %v2548 = vpack.c.b16 %v2509, %v2506
    %v2549 = vpack.c.b16 %v2513, %v2510
    %v2550 = vpack.c.b16 %v2514, %v2511
    %v2551 = vpack.c.b16 %v2515, %v2512
    %v2552 = vpack.c.b16 %v2519, %v2516
    %v2553 = vpack.c.b16 %v2520, %v2517
    %v2554 = vpack.c.b16 %v2521, %v2518
    %v2555 = vpack.c.b16 %v2525, %v2522
    %v2556 = vpack.c.b16 %v2526, %v2523
    %v2557 = vpack.c.b16 %v2527, %v2524
    %v2558 = vpack.c.b16 %v2531, %v2528
    %v2559 = vpack.c.b16 %v2532, %v2529
    %v2560 = vpack.c.b16 %v2533, %v2530
    %v2561 = vpack.c.b16 %v2537, %v2534
    %v2562 = vpack.c.b16 %v2538, %v2535
    %v2563 = vpack.c.b16 %v2539, %v2536
    %2588 = vmatprep.subr.bf16.mxu0 %v2541
    %2589 = vmatpush1.bf16.msra.mxu0 %v2540
    %2590 = vmatprep.subr.bf16.mxu0 %v2544
    %2591 = vmatpush1.bf16.msra.mxu0 %v2543
    %2592 = vmatprep.subr.bf16.mxu0 %v2547
    %2593 = vmatpush1.bf16.msra.mxu0 %v2546
    %2594 = vmatprep.subr.bf16.mxu0 %v2550
    %2595 = vmatpush1.bf16.msra.mxu0 %v2549
    %2596 = vmatprep.subr.bf16.mxu0 %v2553
    %2597 = vmatpush1.bf16.msra.mxu0 %v2552
    %2598 = vmatprep.subr.bf16.mxu0 %v2556
    %2599 = vmatpush1.bf16.msra.mxu0 %v2555
    %2600 = vmatprep.subr.bf16.mxu0 %v2559
    %2601 = vmatpush1.bf16.msra.mxu0 %v2558
    %2602 = vmatprep.subr.bf16.mxu0 %v2562
    %2603 = vmatpush1.bf16.msra.mxu0 %v2561
    %2604 = vmatprep.subr.bf16.mxu0 0
    %2605 = vmatpush1.bf16.msra.mxu0 0
    %2606 = vmatprep.subr.bf16.mxu0 0
    %2607 = vmatpush1.bf16.msra.mxu0 0
    %2608 = vmatprep.subr.bf16.mxu0 0
    %2609 = vmatpush1.bf16.msra.mxu0 0
    %2610 = vmatprep.subr.bf16.mxu0 0
    %2611 = vmatpush1.bf16.msra.mxu0 0
    %2612 = vmatprep.subr.bf16.mxu0 0
    %2613 = vmatpush1.bf16.msra.mxu0 0
    %2614 = vmatprep.subr.bf16.mxu0 0
    %2615 = vmatpush1.bf16.msra.mxu0 0
    %2616 = vmatprep.subr.bf16.mxu0 0
    %2617 = vmatpush1.bf16.msra.mxu0 0
    %2618 = vmatprep.subr.bf16.mxu0 0
    %2619 = vmatpush1.bf16.msra.mxu0 0
    %2620 = vmatprep.mubr.bf16.mxu0 0
    %2621 = vmatmul.mubr.bf16.gmra.mrb[0].mxu0 %v2442
    %v2622 = vpop.f32.mrb[0].mxu0
    %v2623 = vadd.f32 %v2448, %v2622
    %v2624 = vpop.f32.mrb[0].mxu0
    %v2625 = vadd.f32 %v2452, %v2624
    %v2626 = vpop.f32.mrb[0].mxu0
    %v2627 = vadd.f32 %v2448, %v2626
    %v2628 = vpop.f32.mrb[0].mxu0
    %v2629 = vadd.f32 %v2452, %v2628
    %2630 = vdwg.mxu0
    %2631 = vmatprep.subr.bf16.mxu0 0
    %2632 = vmatpush1.bf16.msra.mxu0 %v2542
    %2633 = vmatprep.subr.bf16.mxu0 0
    %2634 = vmatpush1.bf16.msra.mxu0 %v2545
    %2635 = vmatprep.subr.bf16.mxu0 0
    %2636 = vmatpush1.bf16.msra.mxu0 %v2548
    %2637 = vmatprep.subr.bf16.mxu0 0
    %2638 = vmatpush1.bf16.msra.mxu0 %v2551
    %2639 = vmatprep.subr.bf16.mxu0 0
    %2640 = vmatpush1.bf16.msra.mxu0 %v2554
    %2641 = vmatprep.subr.bf16.mxu0 0
    %2642 = vmatpush1.bf16.msra.mxu0 %v2557
    %2643 = vmatprep.subr.bf16.mxu0 0
    %2644 = vmatpush1.bf16.msra.mxu0 %v2560
    %2645 = vmatprep.subr.bf16.mxu0 0
    %2646 = vmatpush1.bf16.msra.mxu0 %v2563
    %2647 = vmatprep.subr.bf16.mxu0 0
    %2648 = vmatpush1.bf16.msra.mxu0 0
    %2649 = vmatprep.subr.bf16.mxu0 0
    %2650 = vmatpush1.bf16.msra.mxu0 0
    %2651 = vmatprep.subr.bf16.mxu0 0
    %2652 = vmatpush1.bf16.msra.mxu0 0
    %2653 = vmatprep.subr.bf16.mxu0 0
    %2654 = vmatpush1.bf16.msra.mxu0 0
    %2655 = vmatprep.subr.bf16.mxu0 0
    %2656 = vmatpush1.bf16.msra.mxu0 0
    %2657 = vmatprep.subr.bf16.mxu0 0
    %2658 = vmatpush1.bf16.msra.mxu0 0
    %2659 = vmatprep.subr.bf16.mxu0 0
    %2660 = vmatpush1.bf16.msra.mxu0 0
    %2661 = vmatprep.subr.bf16.mxu0 0
    %2662 = vmatpush1.bf16.msra.mxu0 0
    %2663 = vmatprep.mubr.bf16.mxu0 0
    %2664 = vmatmul.mubr.bf16.gmra.mrb[0].mxu0 %v2442
    %v2665 = vpop.f32.mrb[0].mxu0
    %v2666 = vadd.f32 %v2456, %v2665
    %v2667 = vpop.f32.mrb[0].mxu0
    %v2668 = vpop.f32.mrb[0].mxu0
    %v2669 = vadd.f32 %v2456, %v2668
    %v2670 = vpop.f32.mrb[0].mxu0
    %2671 = vdwg.mxu0
    %v2672 = vpack.c.bf16 %v2627, %v2623
    %v2673 = vpack.c.bf16 %v2629, %v2625
    %v2674 = vpack.c.bf16 %v2669, %v2666
    %v2676 = vunpack.c.l.b16 %v2672
    %v2677 = vunpack.c.h.b16 %v2672
    %v2678 = vpack.c.b16 %v2676, %v2676
    %v2679 = vpack.c.b16 %v2677, %v2677
    %2680 = vrot.lane.b32.xlu0 %v2678, 64
    %v2681 = vpop.permute.xlu0 %2680
    %2682 = vrot.lane.b32.xlu0 %v2679, 64
    %v2683 = vpop.permute.xlu0 %2682
    %v2685 = vunpack.c.l.b16 %v2673
    %v2686 = vunpack.c.h.b16 %v2673
    %v2687 = vpack.c.b16 %v2685, %v2685
    %v2688 = vpack.c.b16 %v2686, %v2686
    %2689 = vrot.lane.b32.xlu0 %v2687, 64
    %v2690 = vpop.permute.xlu0 %2689
    %2691 = vrot.lane.b32.xlu0 %v2688, 64
    %v2692 = vpop.permute.xlu0 %2691
    %v2694 = vunpack.c.l.b16 %v2674
    %v2695 = vunpack.c.h.b16 %v2674
    %v2696 = vpack.c.b16 %v2694, %v2694
    %v2697 = vpack.c.b16 %v2695, %v2695
    %2698 = vrot.lane.b32.xlu0 %v2696, 64
    %v2699 = vpop.permute.xlu0 %2698
    %2700 = vrot.lane.b32.xlu0 %v2697, 64
    %v2701 = vpop.permute.xlu0 %2700
    %v2703 = vsel %vm406, %v2678, 0
    %v2706 = vsel %vm406, %v2687, 0
    %2708 = vmatprep.subr.bf16.mxu0 0
    %2709 = vmatpush1.bf16.xpose.msra.mxu0 %v2706
    %2710 = vmatprep.subr.bf16.mxu0 0
    %2711 = vmatpush1.bf16.xpose.msra.mxu0 0
    %2712 = vmatprep.subr.bf16.mxu0 0
    %2713 = vmatpush1.bf16.xpose.msra.mxu0 0
    %2714 = vmatprep.subr.bf16.mxu0 0
    %2715 = vmatpush1.bf16.xpose.msra.mxu0 0
    %2716 = vmatprep.subr.bf16.mxu0 0
    %2717 = vmatpush1.bf16.xpose.msra.mxu0 0
    %2718 = vmatprep.subr.bf16.mxu0 0
    %2719 = vmatpush1.bf16.xpose.msra.mxu0 0
    %2720 = vmatprep.subr.bf16.mxu0 0
    %2721 = vmatpush1.bf16.xpose.msra.mxu0 0
    %2722 = vmatprep.subr.bf16.mxu0 0
    %2723 = vmatpush1.bf16.xpose.msra.mxu0 0
    %2724 = vmatprep.subr.bf16.mxu0 0
    %2725 = vmatpush1.bf16.xpose.msra.mxu0 0
    %2726 = vmatprep.subr.bf16.mxu0 0
    %2727 = vmatpush1.bf16.xpose.msra.mxu0 0
    %2728 = vmatprep.subr.bf16.mxu0 0
    %2729 = vmatpush1.bf16.xpose.msra.mxu0 0
    %2730 = vmatprep.subr.bf16.mxu0 0
    %2731 = vmatpush1.bf16.xpose.msra.mxu0 0
    %2732 = vmatprep.subr.bf16.mxu0 0
    %2733 = vmatpush1.bf16.xpose.msra.mxu0 0
    %2734 = vmatprep.subr.bf16.mxu0 0
    %2735 = vmatpush1.bf16.xpose.msra.mxu0 0
    %2736 = vmatprep.subr.bf16.mxu0 0
    %2737 = vmatpush1.bf16.xpose.msra.mxu0 0
    %2738 = vmatprep.subr.bf16.mxu0 0
    %2739 = vmatpush1.bf16.xpose.msra.mxu0 0
    %2740 = vmatprep.mubr.bf16.mxu0 0
    %2741 = vmatmul.mubr.bf16.gmra.mrb[0].mxu0 %v2703
    %v2742 = vpop.f32.mrb[0].mxu0
    %v2743 = vadd.f32 0.0, %v2742
    %v2744 = vpop.f32.mrb[0].mxu0
    %v2745 = vpop.f32.mrb[0].mxu0
    %v2746 = vpop.f32.mrb[0].mxu0
    %2747 = vdwg.mxu0
    %v2749 = vsel %vm406, %v2679, 0
    %v2752 = vsel %vm406, %v2688, 0
    %2754 = vmatprep.subr.bf16.mxu0 0
    %2755 = vmatpush1.bf16.xpose.msra.mxu0 %v2752
    %2756 = vmatprep.subr.bf16.mxu0 0
    %2757 = vmatpush1.bf16.xpose.msra.mxu0 0
    %2758 = vmatprep.subr.bf16.mxu0 0
    %2759 = vmatpush1.bf16.xpose.msra.mxu0 0
    %2760 = vmatprep.subr.bf16.mxu0 0
    %2761 = vmatpush1.bf16.xpose.msra.mxu0 0
    %2762 = vmatprep.subr.bf16.mxu0 0
    %2763 = vmatpush1.bf16.xpose.msra.mxu0 0
    %2764 = vmatprep.subr.bf16.mxu0 0
    %2765 = vmatpush1.bf16.xpose.msra.mxu0 0
    %2766 = vmatprep.subr.bf16.mxu0 0
    %2767 = vmatpush1.bf16.xpose.msra.mxu0 0
    %2768 = vmatprep.subr.bf16.mxu0 0
    %2769 = vmatpush1.bf16.xpose.msra.mxu0 0
    %2770 = vmatprep.subr.bf16.mxu0 0
    %2771 = vmatpush1.bf16.xpose.msra.mxu0 0
    %2772 = vmatprep.subr.bf16.mxu0 0
    %2773 = vmatpush1.bf16.xpose.msra.mxu0 0
    %2774 = vmatprep.subr.bf16.mxu0 0
    %2775 = vmatpush1.bf16.xpose.msra.mxu0 0
    %2776 = vmatprep.subr.bf16.mxu0 0
    %2777 = vmatpush1.bf16.xpose.msra.mxu0 0
    %2778 = vmatprep.subr.bf16.mxu0 0
    %2779 = vmatpush1.bf16.xpose.msra.mxu0 0
    %2780 = vmatprep.subr.bf16.mxu0 0
    %2781 = vmatpush1.bf16.xpose.msra.mxu0 0
    %2782 = vmatprep.subr.bf16.mxu0 0
    %2783 = vmatpush1.bf16.xpose.msra.mxu0 0
    %2784 = vmatprep.subr.bf16.mxu0 0
    %2785 = vmatpush1.bf16.xpose.msra.mxu0 0
    %2786 = vmatprep.mubr.bf16.mxu0 0
    %2787 = vmatmul.mubr.bf16.gmra.mrb[0].mxu0 %v2749
    %v2788 = vpop.f32.mrb[0].mxu0
    %v2789 = vadd.f32 0.0, %v2788
    %v2790 = vpop.f32.mrb[0].mxu0
    %v2791 = vpop.f32.mrb[0].mxu0
    %v2792 = vpop.f32.mrb[0].mxu0
    %2793 = vdwg.mxu0
    %v2795 = vsel %vm406, %v2681, 0
    %v2798 = vsel %vm406, %v2690, 0
    %2800 = vmatprep.subr.bf16.mxu0 0
    %2801 = vmatpush1.bf16.xpose.msra.mxu0 %v2798
    %2802 = vmatprep.subr.bf16.mxu0 0
    %2803 = vmatpush1.bf16.xpose.msra.mxu0 0
    %2804 = vmatprep.subr.bf16.mxu0 0
    %2805 = vmatpush1.bf16.xpose.msra.mxu0 0
    %2806 = vmatprep.subr.bf16.mxu0 0
    %2807 = vmatpush1.bf16.xpose.msra.mxu0 0
    %2808 = vmatprep.subr.bf16.mxu0 0
    %2809 = vmatpush1.bf16.xpose.msra.mxu0 0
    %2810 = vmatprep.subr.bf16.mxu0 0
    %2811 = vmatpush1.bf16.xpose.msra.mxu0 0
    %2812 = vmatprep.subr.bf16.mxu0 0
    %2813 = vmatpush1.bf16.xpose.msra.mxu0 0
    %2814 = vmatprep.subr.bf16.mxu0 0
    %2815 = vmatpush1.bf16.xpose.msra.mxu0 0
    %2816 = vmatprep.subr.bf16.mxu0 0
    %2817 = vmatpush1.bf16.xpose.msra.mxu0 0
    %2818 = vmatprep.subr.bf16.mxu0 0
    %2819 = vmatpush1.bf16.xpose.msra.mxu0 0
    %2820 = vmatprep.subr.bf16.mxu0 0
    %2821 = vmatpush1.bf16.xpose.msra.mxu0 0
    %2822 = vmatprep.subr.bf16.mxu0 0
    %2823 = vmatpush1.bf16.xpose.msra.mxu0 0
    %2824 = vmatprep.subr.bf16.mxu0 0
    %2825 = vmatpush1.bf16.xpose.msra.mxu0 0
    %2826 = vmatprep.subr.bf16.mxu0 0
    %2827 = vmatpush1.bf16.xpose.msra.mxu0 0
    %2828 = vmatprep.subr.bf16.mxu0 0
    %2829 = vmatpush1.bf16.xpose.msra.mxu0 0
    %2830 = vmatprep.subr.bf16.mxu0 0
    %2831 = vmatpush1.bf16.xpose.msra.mxu0 0
    %2832 = vmatprep.mubr.bf16.mxu0 0
    %2833 = vmatmul.mubr.bf16.gmra.mrb[0].mxu0 %v2795
    %v2834 = vpop.f32.mrb[0].mxu0
    %v2835 = vadd.f32 0.0, %v2834
    %v2836 = vpop.f32.mrb[0].mxu0
    %v2837 = vpop.f32.mrb[0].mxu0
    %v2838 = vpop.f32.mrb[0].mxu0
    %2839 = vdwg.mxu0
    %v2841 = vsel %vm406, %v2683, 0
    %v2844 = vsel %vm406, %v2692, 0
    %2846 = vmatprep.subr.bf16.mxu0 0
    %2847 = vmatpush1.bf16.xpose.msra.mxu0 %v2844
    %2848 = vmatprep.subr.bf16.mxu0 0
    %2849 = vmatpush1.bf16.xpose.msra.mxu0 0
    %2850 = vmatprep.subr.bf16.mxu0 0
    %2851 = vmatpush1.bf16.xpose.msra.mxu0 0
    %2852 = vmatprep.subr.bf16.mxu0 0
    %2853 = vmatpush1.bf16.xpose.msra.mxu0 0
    %2854 = vmatprep.subr.bf16.mxu0 0
    %2855 = vmatpush1.bf16.xpose.msra.mxu0 0
    %2856 = vmatprep.subr.bf16.mxu0 0
    %2857 = vmatpush1.bf16.xpose.msra.mxu0 0
    %2858 = vmatprep.subr.bf16.mxu0 0
    %2859 = vmatpush1.bf16.xpose.msra.mxu0 0
    %2860 = vmatprep.subr.bf16.mxu0 0
    %2861 = vmatpush1.bf16.xpose.msra.mxu0 0
    %2862 = vmatprep.subr.bf16.mxu0 0
    %2863 = vmatpush1.bf16.xpose.msra.mxu0 0
    %2864 = vmatprep.subr.bf16.mxu0 0
    %2865 = vmatpush1.bf16.xpose.msra.mxu0 0
    %2866 = vmatprep.subr.bf16.mxu0 0
    %2867 = vmatpush1.bf16.xpose.msra.mxu0 0
    %2868 = vmatprep.subr.bf16.mxu0 0
    %2869 = vmatpush1.bf16.xpose.msra.mxu0 0
    %2870 = vmatprep.subr.bf16.mxu0 0
    %2871 = vmatpush1.bf16.xpose.msra.mxu0 0
    %2872 = vmatprep.subr.bf16.mxu0 0
    %2873 = vmatpush1.bf16.xpose.msra.mxu0 0
    %2874 = vmatprep.subr.bf16.mxu0 0
    %2875 = vmatpush1.bf16.xpose.msra.mxu0 0
    %2876 = vmatprep.subr.bf16.mxu0 0
    %2877 = vmatpush1.bf16.xpose.msra.mxu0 0
    %2878 = vmatprep.mubr.bf16.mxu0 0
    %2879 = vmatmul.mubr.bf16.gmra.mrb[0].mxu0 %v2841
    %v2880 = vpop.f32.mrb[0].mxu0
    %v2881 = vadd.f32 0.0, %v2880
    %v2882 = vpop.f32.mrb[0].mxu0
    %v2883 = vpop.f32.mrb[0].mxu0
    %v2884 = vpop.f32.mrb[0].mxu0
    %2885 = vdwg.mxu0
    %v2886 = vmul.f32 %v2743, 0.25
    %v2887 = vmul.f32 %v2789, 0.25
    %v2888 = vmul.f32 %v2835, 0.25
    %v2889 = vmul.f32 %v2881, 0.25
    %v2890 = vadd.f32 %v2886, %v105
    %v2891 = vadd.f32 %v2887, %v105
    %v2892 = vadd.f32 %v2888, %v105
    %v2893 = vadd.f32 %v2889, %v105
    %v2894 = vsel %vm595, %v2890, -inf
    %2895 = vmax.xlane.f32.xlu0 %v2894
    %v2896 = vpop.xlane.xlu0 %2895
    %v2897 = vsel %vm595, %v2891, -inf
    %2898 = vmax.xlane.f32.xlu0 %v2897
    %v2899 = vpop.xlane.xlu0 %2898
    %v2900 = vsel %vm595, %v2892, -inf
    %2901 = vmax.xlane.f32.xlu0 %v2900
    %v2902 = vpop.xlane.xlu0 %2901
    %v2903 = vsel %vm595, %v2893, -inf
    %2904 = vmax.xlane.f32.xlu0 %v2903
    %v2905 = vpop.xlane.xlu0 %2904
    %v2906 = vsub.f32 %v2890, %v2896
    %v2907 = vsub.f32 %v2891, %v2899
    %v2908 = vsub.f32 %v2892, %v2902
    %v2909 = vsub.f32 %v2893, %v2905
    %v2910 = vmul.f32 %v2906, 1.442695
    %v2911 = vpow.pop %v2910
    %v2912 = vmul.f32 %v2907, 1.442695
    %v2913 = vpow.pop %v2912
    %v2914 = vmul.f32 %v2908, 1.442695
    %v2915 = vpow.pop %v2914
    %v2916 = vmul.f32 %v2909, 1.442695
    %v2917 = vpow.pop %v2916
    %v2918 = vsel %vm595, %v2911, 0.0
    %2919 = vadd.xlane.f32.xlu0 %v2918
    %v2920 = vpop.xlane.xlu0 %2919
    %v2921 = vsel %vm595, %v2913, 0.0
    %2922 = vadd.xlane.f32.xlu0 %v2921
    %v2923 = vpop.xlane.xlu0 %2922
    %v2924 = vsel %vm595, %v2915, 0.0
    %2925 = vadd.xlane.f32.xlu0 %v2924
    %v2926 = vpop.xlane.xlu0 %2925
    %v2927 = vsel %vm595, %v2917, 0.0
    %2928 = vadd.xlane.f32.xlu0 %v2927
    %v2929 = vpop.xlane.xlu0 %2928
    %v2930 = vrcp.pop %v2920
    %v2931 = vrcp.pop %v2923
    %v2932 = vrcp.pop %v2926
    %v2933 = vrcp.pop %v2929
    %v2934 = vmul.f32 %v2911, %v2930
    %v2935 = vmul.f32 %v2913, %v2931
    %v2936 = vmul.f32 %v2915, %v2932
    %v2937 = vmul.f32 %v2917, %v2933
    %v2938 = vpack.c.bf16 %v2934, %v2934
    %v2939 = vpack.c.bf16 %v2935, %v2935
    %v2940 = vpack.c.bf16 %v2936, %v2936
    %v2941 = vpack.c.bf16 %v2937, %v2937
    %v2943 = vsel %vm595, %v2938, 0
    %v2946 = vsel %vm647, %v2696, 0
    %2948 = vmatprep.subr.bf16.mxu0 0
    %2949 = vmatpush1.bf16.msra.mxu0 %v2946
    %2950 = vmatprep.subr.bf16.mxu0 0
    %2951 = vmatpush1.bf16.msra.mxu0 0
    %2952 = vmatprep.subr.bf16.mxu0 0
    %2953 = vmatpush1.bf16.msra.mxu0 0
    %2954 = vmatprep.subr.bf16.mxu0 0
    %2955 = vmatpush1.bf16.msra.mxu0 0
    %2956 = vmatprep.subr.bf16.mxu0 0
    %2957 = vmatpush1.bf16.msra.mxu0 0
    %2958 = vmatprep.subr.bf16.mxu0 0
    %2959 = vmatpush1.bf16.msra.mxu0 0
    %2960 = vmatprep.subr.bf16.mxu0 0
    %2961 = vmatpush1.bf16.msra.mxu0 0
    %2962 = vmatprep.subr.bf16.mxu0 0
    %2963 = vmatpush1.bf16.msra.mxu0 0
    %2964 = vmatprep.subr.bf16.mxu0 0
    %2965 = vmatpush1.bf16.msra.mxu0 0
    %2966 = vmatprep.subr.bf16.mxu0 0
    %2967 = vmatpush1.bf16.msra.mxu0 0
    %2968 = vmatprep.subr.bf16.mxu0 0
    %2969 = vmatpush1.bf16.msra.mxu0 0
    %2970 = vmatprep.subr.bf16.mxu0 0
    %2971 = vmatpush1.bf16.msra.mxu0 0
    %2972 = vmatprep.subr.bf16.mxu0 0
    %2973 = vmatpush1.bf16.msra.mxu0 0
    %2974 = vmatprep.subr.bf16.mxu0 0
    %2975 = vmatpush1.bf16.msra.mxu0 0
    %2976 = vmatprep.subr.bf16.mxu0 0
    %2977 = vmatpush1.bf16.msra.mxu0 0
    %2978 = vmatprep.subr.bf16.mxu0 0
    %2979 = vmatpush1.bf16.msra.mxu0 0
    %2980 = vmatprep.mubr.bf16.mxu0 0
    %2981 = vmatmul.mubr.bf16.gmra.mrb[0].mxu0 %v2943
    %v2982 = vpop.f32.mrb[0].mxu0
    %v2983 = vadd.f32 0.0, %v2982
    %v2984 = vpop.f32.mrb[0].mxu0
    %v2985 = vpop.f32.mrb[0].mxu0
    %v2986 = vpop.f32.mrb[0].mxu0
    %2987 = vdwg.mxu0
    %v2989 = vsel %vm595, %v2939, 0
    %v2992 = vsel %vm647, %v2697, 0
    %2994 = vmatprep.subr.bf16.mxu0 0
    %2995 = vmatpush1.bf16.msra.mxu0 %v2992
    %2996 = vmatprep.subr.bf16.mxu0 0
    %2997 = vmatpush1.bf16.msra.mxu0 0
    %2998 = vmatprep.subr.bf16.mxu0 0
    %2999 = vmatpush1.bf16.msra.mxu0 0
    %3000 = vmatprep.subr.bf16.mxu0 0
    %3001 = vmatpush1.bf16.msra.mxu0 0
    %3002 = vmatprep.subr.bf16.mxu0 0
    %3003 = vmatpush1.bf16.msra.mxu0 0
    %3004 = vmatprep.subr.bf16.mxu0 0
    %3005 = vmatpush1.bf16.msra.mxu0 0
    %3006 = vmatprep.subr.bf16.mxu0 0
    %3007 = vmatpush1.bf16.msra.mxu0 0
    %3008 = vmatprep.subr.bf16.mxu0 0
    %3009 = vmatpush1.bf16.msra.mxu0 0
    %3010 = vmatprep.subr.bf16.mxu0 0
    %3011 = vmatpush1.bf16.msra.mxu0 0
    %3012 = vmatprep.subr.bf16.mxu0 0
    %3013 = vmatpush1.bf16.msra.mxu0 0
    %3014 = vmatprep.subr.bf16.mxu0 0
    %3015 = vmatpush1.bf16.msra.mxu0 0
    %3016 = vmatprep.subr.bf16.mxu0 0
    %3017 = vmatpush1.bf16.msra.mxu0 0
    %3018 = vmatprep.subr.bf16.mxu0 0
    %3019 = vmatpush1.bf16.msra.mxu0 0
    %3020 = vmatprep.subr.bf16.mxu0 0
    %3021 = vmatpush1.bf16.msra.mxu0 0
    %3022 = vmatprep.subr.bf16.mxu0 0
    %3023 = vmatpush1.bf16.msra.mxu0 0
    %3024 = vmatprep.subr.bf16.mxu0 0
    %3025 = vmatpush1.bf16.msra.mxu0 0
    %3026 = vmatprep.mubr.bf16.mxu0 0
    %3027 = vmatmul.mubr.bf16.gmra.mrb[0].mxu0 %v2989
    %v3028 = vpop.f32.mrb[0].mxu0
    %v3029 = vadd.f32 0.0, %v3028
    %v3030 = vpop.f32.mrb[0].mxu0
    %v3031 = vpop.f32.mrb[0].mxu0
    %v3032 = vpop.f32.mrb[0].mxu0
    %3033 = vdwg.mxu0
    %v3035 = vsel %vm595, %v2940, 0
    %v3038 = vsel %vm647, %v2699, 0
    %3040 = vmatprep.subr.bf16.mxu0 0
    %3041 = vmatpush1.bf16.msra.mxu0 %v3038
    %3042 = vmatprep.subr.bf16.mxu0 0
    %3043 = vmatpush1.bf16.msra.mxu0 0
    %3044 = vmatprep.subr.bf16.mxu0 0
    %3045 = vmatpush1.bf16.msra.mxu0 0
    %3046 = vmatprep.subr.bf16.mxu0 0
    %3047 = vmatpush1.bf16.msra.mxu0 0
    %3048 = vmatprep.subr.bf16.mxu0 0
    %3049 = vmatpush1.bf16.msra.mxu0 0
    %3050 = vmatprep.subr.bf16.mxu0 0
    %3051 = vmatpush1.bf16.msra.mxu0 0
    %3052 = vmatprep.subr.bf16.mxu0 0
    %3053 = vmatpush1.bf16.msra.mxu0 0
    %3054 = vmatprep.subr.bf16.mxu0 0
    %3055 = vmatpush1.bf16.msra.mxu0 0
    %3056 = vmatprep.subr.bf16.mxu0 0
    %3057 = vmatpush1.bf16.msra.mxu0 0
    %3058 = vmatprep.subr.bf16.mxu0 0
    %3059 = vmatpush1.bf16.msra.mxu0 0
    %3060 = vmatprep.subr.bf16.mxu0 0
    %3061 = vmatpush1.bf16.msra.mxu0 0
    %3062 = vmatprep.subr.bf16.mxu0 0
    %3063 = vmatpush1.bf16.msra.mxu0 0
    %3064 = vmatprep.subr.bf16.mxu0 0
    %3065 = vmatpush1.bf16.msra.mxu0 0
    %3066 = vmatprep.subr.bf16.mxu0 0
    %3067 = vmatpush1.bf16.msra.mxu0 0
    %3068 = vmatprep.subr.bf16.mxu0 0
    %3069 = vmatpush1.bf16.msra.mxu0 0
    %3070 = vmatprep.subr.bf16.mxu0 0
    %3071 = vmatpush1.bf16.msra.mxu0 0
    %3072 = vmatprep.mubr.bf16.mxu0 0
    %3073 = vmatmul.mubr.bf16.gmra.mrb[0].mxu0 %v3035
    %v3074 = vpop.f32.mrb[0].mxu0
    %v3075 = vadd.f32 0.0, %v3074
    %v3076 = vpop.f32.mrb[0].mxu0
    %v3077 = vpop.f32.mrb[0].mxu0
    %v3078 = vpop.f32.mrb[0].mxu0
    %3079 = vdwg.mxu0
    %v3081 = vsel %vm595, %v2941, 0
    %v3084 = vsel %vm647, %v2701, 0
    %3086 = vmatprep.subr.bf16.mxu0 0
    %3087 = vmatpush1.bf16.msra.mxu0 %v3084
    %3088 = vmatprep.subr.bf16.mxu0 0
    %3089 = vmatpush1.bf16.msra.mxu0 0
    %3090 = vmatprep.subr.bf16.mxu0 0
    %3091 = vmatpush1.bf16.msra.mxu0 0
    %3092 = vmatprep.subr.bf16.mxu0 0
    %3093 = vmatpush1.bf16.msra.mxu0 0
    %3094 = vmatprep.subr.bf16.mxu0 0
    %3095 = vmatpush1.bf16.msra.mxu0 0
    %3096 = vmatprep.subr.bf16.mxu0 0
    %3097 = vmatpush1.bf16.msra.mxu0 0
    %3098 = vmatprep.subr.bf16.mxu0 0
    %3099 = vmatpush1.bf16.msra.mxu0 0
    %3100 = vmatprep.subr.bf16.mxu0 0
    %3101 = vmatpush1.bf16.msra.mxu0 0
    %3102 = vmatprep.subr.bf16.mxu0 0
    %3103 = vmatpush1.bf16.msra.mxu0 0
    %3104 = vmatprep.subr.bf16.mxu0 0
    %3105 = vmatpush1.bf16.msra.mxu0 0
    %3106 = vmatprep.subr.bf16.mxu0 0
    %3107 = vmatpush1.bf16.msra.mxu0 0
    %3108 = vmatprep.subr.bf16.mxu0 0
    %3109 = vmatpush1.bf16.msra.mxu0 0
    %3110 = vmatprep.subr.bf16.mxu0 0
    %3111 = vmatpush1.bf16.msra.mxu0 0
    %3112 = vmatprep.subr.bf16.mxu0 0
    %3113 = vmatpush1.bf16.msra.mxu0 0
    %3114 = vmatprep.subr.bf16.mxu0 0
    %3115 = vmatpush1.bf16.msra.mxu0 0
    %3116 = vmatprep.subr.bf16.mxu0 0
    %3117 = vmatpush1.bf16.msra.mxu0 0
    %3118 = vmatprep.mubr.bf16.mxu0 0
    %3119 = vmatmul.mubr.bf16.gmra.mrb[0].mxu0 %v3081
    %v3120 = vpop.f32.mrb[0].mxu0
    %v3121 = vadd.f32 0.0, %v3120
    %v3122 = vpop.f32.mrb[0].mxu0
    %v3123 = vpop.f32.mrb[0].mxu0
    %v3124 = vpop.f32.mrb[0].mxu0
    %3125 = vdwg.mxu0
    %3128 = vrot.lane.b32.xlu0 %v3075, 64
    %v3129 = vpop.permute.xlu0 %3128
    %3130 = vrot.lane.b32.xlu0 %v3121, 64
    %v3131 = vpop.permute.xlu0 %3130
    %v3134 = vsel %vm406, %v2983, %v3129
    %v3135 = vsel %vm406, %v3029, %v3131
    %v3136 = vld [vmem:[%s14] sm:$0xf]
    %v3137 = vld [vmem:[%s14 + $0x4] sm:$0xf]
    %v3138 = vld [vmem:[%s14 + $0x8] sm:$0xf]
    %v3139 = vld [vmem:[%s14 + $0xc] sm:$0xf]
    %v3140 = vld [vmem:[%s14 + $0x10] sm:$0xf]
    %v3141 = vld [vmem:[%s14 + $0x14] sm:$0xf]
    %v3142 = vld [vmem:[%s14 + $0x18] sm:$0xf]
    %v3143 = vld [vmem:[%s14 + $0x1c] sm:$0xf]
    %v3144 = vld [vmem:[%s14 + $0x20] sm:$0xf]
    %v3145 = vld [vmem:[%s14 + $0x24] sm:$0xf]
    %v3146 = vld [vmem:[%s14 + $0x28] sm:$0xf]
    %v3147 = vld [vmem:[%s14 + $0x2c] sm:$0xf]
    %v3148 = vld [vmem:[%s14 + $0x30] sm:$0xf]
    %v3149 = vld [vmem:[%s14 + $0x34] sm:$0xf]
    %v3150 = vld [vmem:[%s14 + $0x38] sm:$0xf]
    %v3151 = vld [vmem:[%s14 + $0x3c] sm:$0xf]
    %v3152 = vpack.c.bf16 %v3135, %v3134
    %v3153 = vld [vmem:[%s15] sm:$0x1]
    %v3155 = vlaneseq
    %v3156 = vshrl.u32 %v3155, 7
    %v3157 = vsub.s32 0, %v3156
    %v3158 = vrot.slane %v3153, %v3157
    %v3176 = vunpack.c.l.b16 %v3136
    %v3177 = vunpack.c.l.b16 %v3137
    %v3178 = vunpack.c.l.b16 %v3138
    %v3179 = vunpack.c.l.b16 %v3139
    %v3180 = vunpack.c.l.b16 %v3140
    %v3181 = vunpack.c.l.b16 %v3141
    %v3182 = vunpack.c.l.b16 %v3142
    %v3183 = vunpack.c.l.b16 %v3143
    %v3184 = vunpack.c.l.b16 %v3144
    %v3185 = vunpack.c.l.b16 %v3145
    %v3186 = vunpack.c.l.b16 %v3146
    %v3187 = vunpack.c.l.b16 %v3147
    %v3188 = vunpack.c.l.b16 %v3148
    %v3189 = vunpack.c.l.b16 %v3149
    %v3190 = vunpack.c.l.b16 %v3150
    %v3191 = vunpack.c.l.b16 %v3151
    %v3192 = vpack.c.b16 %v3177, %v3176
    %v3193 = vpack.c.b16 %v3179, %v3178
    %v3194 = vpack.c.b16 %v3181, %v3180
    %v3195 = vpack.c.b16 %v3183, %v3182
    %v3196 = vpack.c.b16 %v3185, %v3184
    %v3197 = vpack.c.b16 %v3187, %v3186
    %v3198 = vpack.c.b16 %v3189, %v3188
    %v3199 = vpack.c.b16 %v3191, %v3190
    %3208 = vmatprep.subr.bf16.mxu0 0
    %3209 = vmatpush1.bf16.msra.mxu0 %v3192
    %3210 = vmatprep.subr.bf16.mxu0 0
    %3211 = vmatpush1.bf16.msra.mxu0 %v3193
    %3212 = vmatprep.subr.bf16.mxu0 0
    %3213 = vmatpush1.bf16.msra.mxu0 %v3194
    %3214 = vmatprep.subr.bf16.mxu0 0
    %3215 = vmatpush1.bf16.msra.mxu0 %v3195
    %3216 = vmatprep.subr.bf16.mxu0 0
    %3217 = vmatpush1.bf16.msra.mxu0 %v3196
    %3218 = vmatprep.subr.bf16.mxu0 0
    %3219 = vmatpush1.bf16.msra.mxu0 %v3197
    %3220 = vmatprep.subr.bf16.mxu0 0
    %3221 = vmatpush1.bf16.msra.mxu0 %v3198
    %3222 = vmatprep.subr.bf16.mxu0 0
    %3223 = vmatpush1.bf16.msra.mxu0 %v3199
    %3224 = vmatprep.subr.bf16.mxu0 0
    %3225 = vmatpush1.bf16.msra.mxu0 0
    %3226 = vmatprep.subr.bf16.mxu0 0
    %3227 = vmatpush1.bf16.msra.mxu0 0
    %3228 = vmatprep.subr.bf16.mxu0 0
    %3229 = vmatpush1.bf16.msra.mxu0 0
    %3230 = vmatprep.subr.bf16.mxu0 0
    %3231 = vmatpush1.bf16.msra.mxu0 0
    %3232 = vmatprep.subr.bf16.mxu0 0
    %3233 = vmatpush1.bf16.msra.mxu0 0
    %3234 = vmatprep.subr.bf16.mxu0 0
    %3235 = vmatpush1.bf16.msra.mxu0 0
    %3236 = vmatprep.subr.bf16.mxu0 0
    %3237 = vmatpush1.bf16.msra.mxu0 0
    %3238 = vmatprep.subr.bf16.mxu0 0
    %3239 = vmatpush1.bf16.msra.mxu0 0
    %3240 = vmatprep.mubr.bf16.mxu0 0
    %3241 = vmatmul.mubr.bf16.gmra.mrb[0].mxu0 %v3152
    %v3242 = vpop.f32.mrb[0].mxu0
    %v3243 = vadd.f32 %v3158, %v3242
    %v3244 = vpop.f32.mrb[0].mxu0
    %v3245 = vpop.f32.mrb[0].mxu0
    %v3246 = vadd.f32 %v3158, %v3245
    %v3247 = vpop.f32.mrb[0].mxu0
    %3248 = vdwg.mxu0
    %v3249 = vadd.f32 %v2407, %v3243
    %v3250 = vadd.f32 %v2408, %v3246
    %3251 = vadd.xlane.f32.xlu0 %v3249
    %v3252 = vpop.xlane.xlu0 %3251
    %3253 = vadd.xlane.f32.xlu0 %v3250
    %v3254 = vpop.xlane.xlu0 %3253
    %v3255 = vmul.f32 %v3252, 0.03125
    %v3256 = vmul.f32 %v3254, 0.03125
    %v3257 = vsub.f32 %v3249, %v3255
    %v3258 = vsub.f32 %v3250, %v3256
    %v3259 = vmul.f32 %v3257, %v110
    %v3260 = vmul.f32 %v3258, %v110
    %v3261 = vmul.f32 %v3259, %v3259
    %v3262 = vmul.f32 %v3260, %v3260
    %3263 = vadd.xlane.f32.xlu0 %v3261
    %v3264 = vpop.xlane.xlu0 %3263
    %3265 = vadd.xlane.f32.xlu0 %v3262
    %v3266 = vpop.xlane.xlu0 %3265
    %v3267 = vmul.f32 %v3264, 0.03125
    %v3268 = vmul.f32 %v3266, 0.03125
    %v3269 = vadd.f32 %v3267, 1e-05
    %v3270 = vadd.f32 %v3268, 1e-05
    %v3271 = vrsqrt.pop %v3269
    %v3272 = vrsqrt.pop %v3270
    %v3273 = vmul.f32 %v3259, %v3271
    %v3274 = vmul.f32 %v3260, %v3272
    %v3275 = vlaneseq
    %v3276 = vshrl.u32 %v3275, 7
    %v3277 = vsub.s32 0, %v3276
    %v3278 = vrot.slane %v2409, %v3277
    %v3279 = vmul.f32 %v3273, %v3278
    %v3280 = vmul.f32 %v3274, %v3278
    %v3281 = vlaneseq
    %v3282 = vshrl.u32 %v3281, 7
    %v3283 = vsub.s32 1, %v3282
    %v3284 = vrot.slane %v2409, %v3283
    %v3285 = vadd.f32 %v3279, %v3284
    %v3286 = vadd.f32 %v3280, %v3284
    %v3287 = vld [vmem:[%s16] sm:$0xf]
    %v3288 = vld [vmem:[%s16 + $0x4] sm:$0xf]
    %v3289 = vld [vmem:[%s16 + $0x8] sm:$0xf]
    %v3290 = vld [vmem:[%s16 + $0xc] sm:$0xf]
    %v3291 = vld [vmem:[%s16 + $0x10] sm:$0xf]
    %v3292 = vld [vmem:[%s16 + $0x14] sm:$0xf]
    %v3293 = vld [vmem:[%s16 + $0x18] sm:$0xf]
    %v3294 = vld [vmem:[%s16 + $0x1c] sm:$0xf]
    %v3295 = vld [vmem:[%s16 + $0x20] sm:$0xf]
    %v3296 = vld [vmem:[%s16 + $0x24] sm:$0xf]
    %v3297 = vld [vmem:[%s16 + $0x28] sm:$0xf]
    %v3298 = vld [vmem:[%s16 + $0x2c] sm:$0xf]
    %v3299 = vld [vmem:[%s16 + $0x30] sm:$0xf]
    %v3300 = vld [vmem:[%s16 + $0x34] sm:$0xf]
    %v3301 = vld [vmem:[%s16 + $0x38] sm:$0xf]
    %v3302 = vld [vmem:[%s16 + $0x3c] sm:$0xf]
    %v3303 = vpack.c.bf16 %v3286, %v3285
    %v3304 = vld [vmem:[%s17] sm:$0x1]
    %v3306 = vlaneseq
    %v3307 = vshrl.u32 %v3306, 7
    %v3308 = vsub.s32 0, %v3307
    %v3309 = vrot.slane %v3304, %v3308
    %v3327 = vunpack.c.l.b16 %v3287
    %v3328 = vunpack.c.l.b16 %v3288
    %v3329 = vunpack.c.l.b16 %v3289
    %v3330 = vunpack.c.l.b16 %v3290
    %v3331 = vunpack.c.l.b16 %v3291
    %v3332 = vunpack.c.l.b16 %v3292
    %v3333 = vunpack.c.l.b16 %v3293
    %v3334 = vunpack.c.l.b16 %v3294
    %v3335 = vunpack.c.l.b16 %v3295
    %v3336 = vunpack.c.l.b16 %v3296
    %v3337 = vunpack.c.l.b16 %v3297
    %v3338 = vunpack.c.l.b16 %v3298
    %v3339 = vunpack.c.l.b16 %v3299
    %v3340 = vunpack.c.l.b16 %v3300
    %v3341 = vunpack.c.l.b16 %v3301
    %v3342 = vunpack.c.l.b16 %v3302
    %v3343 = vpack.c.b16 %v3328, %v3327
    %v3344 = vpack.c.b16 %v3330, %v3329
    %v3345 = vpack.c.b16 %v3332, %v3331
    %v3346 = vpack.c.b16 %v3334, %v3333
    %v3347 = vpack.c.b16 %v3336, %v3335
    %v3348 = vpack.c.b16 %v3338, %v3337
    %v3349 = vpack.c.b16 %v3340, %v3339
    %v3350 = vpack.c.b16 %v3342, %v3341
    %3359 = vmatprep.subr.bf16.mxu0 0
    %3360 = vmatpush1.bf16.msra.mxu0 %v3343
    %3361 = vmatprep.subr.bf16.mxu0 0
    %3362 = vmatpush1.bf16.msra.mxu0 %v3344
    %3363 = vmatprep.subr.bf16.mxu0 0
    %3364 = vmatpush1.bf16.msra.mxu0 %v3345
    %3365 = vmatprep.subr.bf16.mxu0 0
    %3366 = vmatpush1.bf16.msra.mxu0 %v3346
    %3367 = vmatprep.subr.bf16.mxu0 0
    %3368 = vmatpush1.bf16.msra.mxu0 %v3347
    %3369 = vmatprep.subr.bf16.mxu0 0
    %3370 = vmatpush1.bf16.msra.mxu0 %v3348
    %3371 = vmatprep.subr.bf16.mxu0 0
    %3372 = vmatpush1.bf16.msra.mxu0 %v3349
    %3373 = vmatprep.subr.bf16.mxu0 0
    %3374 = vmatpush1.bf16.msra.mxu0 %v3350
    %3375 = vmatprep.subr.bf16.mxu0 0
    %3376 = vmatpush1.bf16.msra.mxu0 0
    %3377 = vmatprep.subr.bf16.mxu0 0
    %3378 = vmatpush1.bf16.msra.mxu0 0
    %3379 = vmatprep.subr.bf16.mxu0 0
    %3380 = vmatpush1.bf16.msra.mxu0 0
    %3381 = vmatprep.subr.bf16.mxu0 0
    %3382 = vmatpush1.bf16.msra.mxu0 0
    %3383 = vmatprep.subr.bf16.mxu0 0
    %3384 = vmatpush1.bf16.msra.mxu0 0
    %3385 = vmatprep.subr.bf16.mxu0 0
    %3386 = vmatpush1.bf16.msra.mxu0 0
    %3387 = vmatprep.subr.bf16.mxu0 0
    %3388 = vmatpush1.bf16.msra.mxu0 0
    %3389 = vmatprep.subr.bf16.mxu0 0
    %3390 = vmatpush1.bf16.msra.mxu0 0
    %3391 = vmatprep.mubr.bf16.mxu0 0
    %3392 = vmatmul.mubr.bf16.gmra.mrb[0].mxu0 %v3303
    %v3393 = vpop.f32.mrb[0].mxu0
    %v3394 = vadd.f32 %v3309, %v3393
    %v3395 = vpop.f32.mrb[0].mxu0
    %v3396 = vpop.f32.mrb[0].mxu0
    %v3397 = vadd.f32 %v3309, %v3396
    %v3398 = vpop.f32.mrb[0].mxu0
    %3399 = vdwg.mxu0
    %v3400 = vpack.c.bf16 %v3397, %v3394
    %v3401 = vld [vmem:[%s18] sm:$0xff]
    %v3402 = vld [vmem:[%s18 + $0x8] sm:$0xff]
    %v3403 = vld [vmem:[%s18 + $0x10] sm:$0xff]
    %v3404 = vld [vmem:[%s18 + $0x18] sm:$0xff]
    %v3405 = vld [vmem:[%s18 + $0x20] sm:$0xff]
    %v3406 = vld [vmem:[%s18 + $0x28] sm:$0xff]
    %v3407 = vld [vmem:[%s18 + $0x30] sm:$0xff]
    %v3408 = vld [vmem:[%s18 + $0x38] sm:$0xff]
    %v3409 = vld [vmem:[%s18 + $0x40] sm:$0xff]
    %v3410 = vld [vmem:[%s18 + $0x48] sm:$0xff]
    %v3411 = vld [vmem:[%s18 + $0x50] sm:$0xff]
    %v3412 = vld [vmem:[%s18 + $0x58] sm:$0xff]
    %v3413 = vld [vmem:[%s18 + $0x60] sm:$0xff]
    %v3414 = vld [vmem:[%s18 + $0x68] sm:$0xff]
    %v3415 = vld [vmem:[%s18 + $0x70] sm:$0xff]
    %v3416 = vld [vmem:[%s18 + $0x78] sm:$0xff]
    %v3417 = vpack.c.bf16 %v2404, %v2403
    %v3418 = vld [vmem:[%s19] sm:$0x3]
    %v3420 = vlaneseq
    %v3421 = vshrl.u32 %v3420, 7
    %v3422 = vsub.s32 0, %v3421
    %v3423 = vrot.slane %v3418, %v3422
    %v3424 = vlaneseq
    %v3425 = vshrl.u32 %v3424, 7
    %v3426 = vsub.s32 1, %v3425
    %v3427 = vrot.slane %v3418, %v3426
    %v3446 = vunpack.c.l.b16 %v3401
    %v3447 = vunpack.c.h.b16 %v3401
    %v3448 = vunpack.c.l.b16 %v3402
    %v3449 = vunpack.c.h.b16 %v3402
    %v3450 = vunpack.c.l.b16 %v3403
    %v3451 = vunpack.c.h.b16 %v3403
    %v3452 = vunpack.c.l.b16 %v3404
    %v3453 = vunpack.c.h.b16 %v3404
    %v3454 = vunpack.c.l.b16 %v3405
    %v3455 = vunpack.c.h.b16 %v3405
    %v3456 = vunpack.c.l.b16 %v3406
    %v3457 = vunpack.c.h.b16 %v3406
    %v3458 = vunpack.c.l.b16 %v3407
    %v3459 = vunpack.c.h.b16 %v3407
    %v3460 = vunpack.c.l.b16 %v3408
    %v3461 = vunpack.c.h.b16 %v3408
    %v3462 = vunpack.c.l.b16 %v3409
    %v3463 = vunpack.c.h.b16 %v3409
    %v3464 = vunpack.c.l.b16 %v3410
    %v3465 = vunpack.c.h.b16 %v3410
    %v3466 = vunpack.c.l.b16 %v3411
    %v3467 = vunpack.c.h.b16 %v3411
    %v3468 = vunpack.c.l.b16 %v3412
    %v3469 = vunpack.c.h.b16 %v3412
    %v3470 = vunpack.c.l.b16 %v3413
    %v3471 = vunpack.c.h.b16 %v3413
    %v3472 = vunpack.c.l.b16 %v3414
    %v3473 = vunpack.c.h.b16 %v3414
    %v3474 = vunpack.c.l.b16 %v3415
    %v3475 = vunpack.c.h.b16 %v3415
    %v3476 = vunpack.c.l.b16 %v3416
    %v3477 = vunpack.c.h.b16 %v3416
    %v3478 = vpack.c.b16 %v3448, %v3446
    %v3479 = vpack.c.b16 %v3449, %v3447
    %v3480 = vpack.c.b16 %v3452, %v3450
    %v3481 = vpack.c.b16 %v3453, %v3451
    %v3482 = vpack.c.b16 %v3456, %v3454
    %v3483 = vpack.c.b16 %v3457, %v3455
    %v3484 = vpack.c.b16 %v3460, %v3458
    %v3485 = vpack.c.b16 %v3461, %v3459
    %v3486 = vpack.c.b16 %v3464, %v3462
    %v3487 = vpack.c.b16 %v3465, %v3463
    %v3488 = vpack.c.b16 %v3468, %v3466
    %v3489 = vpack.c.b16 %v3469, %v3467
    %v3490 = vpack.c.b16 %v3472, %v3470
    %v3491 = vpack.c.b16 %v3473, %v3471
    %v3492 = vpack.c.b16 %v3476, %v3474
    %v3493 = vpack.c.b16 %v3477, %v3475
    %3510 = vmatprep.subr.bf16.mxu0 %v3479
    %3511 = vmatpush1.bf16.msra.mxu0 %v3478
    %3512 = vmatprep.subr.bf16.mxu0 %v3481
    %3513 = vmatpush1.bf16.msra.mxu0 %v3480
    %3514 = vmatprep.subr.bf16.mxu0 %v3483
    %3515 = vmatpush1.bf16.msra.mxu0 %v3482
    %3516 = vmatprep.subr.bf16.mxu0 %v3485
    %3517 = vmatpush1.bf16.msra.mxu0 %v3484
    %3518 = vmatprep.subr.bf16.mxu0 %v3487
    %3519 = vmatpush1.bf16.msra.mxu0 %v3486
    %3520 = vmatprep.subr.bf16.mxu0 %v3489
    %3521 = vmatpush1.bf16.msra.mxu0 %v3488
    %3522 = vmatprep.subr.bf16.mxu0 %v3491
    %3523 = vmatpush1.bf16.msra.mxu0 %v3490
    %3524 = vmatprep.subr.bf16.mxu0 %v3493
    %3525 = vmatpush1.bf16.msra.mxu0 %v3492
    %3526 = vmatprep.subr.bf16.mxu0 0
    %3527 = vmatpush1.bf16.msra.mxu0 0
    %3528 = vmatprep.subr.bf16.mxu0 0
    %3529 = vmatpush1.bf16.msra.mxu0 0
    %3530 = vmatprep.subr.bf16.mxu0 0
    %3531 = vmatpush1.bf16.msra.mxu0 0
    %3532 = vmatprep.subr.bf16.mxu0 0
    %3533 = vmatpush1.bf16.msra.mxu0 0
    %3534 = vmatprep.subr.bf16.mxu0 0
    %3535 = vmatpush1.bf16.msra.mxu0 0
    %3536 = vmatprep.subr.bf16.mxu0 0
    %3537 = vmatpush1.bf16.msra.mxu0 0
    %3538 = vmatprep.subr.bf16.mxu0 0
    %3539 = vmatpush1.bf16.msra.mxu0 0
    %3540 = vmatprep.subr.bf16.mxu0 0
    %3541 = vmatpush1.bf16.msra.mxu0 0
    %3542 = vmatprep.mubr.bf16.mxu0 0
    %3543 = vmatmul.mubr.bf16.gmra.mrb[0].mxu0 %v3417
    %v3544 = vpop.f32.mrb[0].mxu0
    %v3545 = vadd.f32 %v3423, %v3544
    %v3546 = vpop.f32.mrb[0].mxu0
    %v3547 = vadd.f32 %v3427, %v3546
    %v3548 = vpop.f32.mrb[0].mxu0
    %v3549 = vadd.f32 %v3423, %v3548
    %v3550 = vpop.f32.mrb[0].mxu0
    %v3551 = vadd.f32 %v3427, %v3550
    %3552 = vdwg.mxu0
    %v3553 = vpack.c.bf16 %v3549, %v3545
    %v3554 = vpack.c.bf16 %v3551, %v3547
    %v3556 = vunpack.c.l.b16 %v3400
    %v3557 = vunpack.c.h.b16 %v3400
    %v3558 = vpack.c.b16 %v3556, %v3556
    %v3559 = vpack.c.b16 %v3557, %v3557
    %3560 = vrot.lane.b32.xlu0 %v3558, 64
    %v3561 = vpop.permute.xlu0 %3560
    %3562 = vrot.lane.b32.xlu0 %v3559, 64
    %v3563 = vpop.permute.xlu0 %3562
    %v3565 = vunpack.c.l.b16 %v3553
    %v3566 = vunpack.c.h.b16 %v3553
    %v3567 = vpack.c.b16 %v3565, %v3565
    %v3568 = vpack.c.b16 %v3566, %v3566
    %3569 = vrot.lane.b32.xlu0 %v3567, 64
    %v3570 = vpop.permute.xlu0 %3569
    %3571 = vrot.lane.b32.xlu0 %v3568, 64
    %v3572 = vpop.permute.xlu0 %3571
    %v3574 = vunpack.c.l.b16 %v3554
    %v3575 = vunpack.c.h.b16 %v3554
    %v3576 = vpack.c.b16 %v3574, %v3574
    %v3577 = vpack.c.b16 %v3575, %v3575
    %3578 = vrot.lane.b32.xlu0 %v3576, 64
    %v3579 = vpop.permute.xlu0 %3578
    %3580 = vrot.lane.b32.xlu0 %v3577, 64
    %v3581 = vpop.permute.xlu0 %3580
    %v3583 = vsel %vm406, %v3558, 0
    %v3586 = vsel %vm406, %v3567, 0
    %3588 = vmatprep.subr.bf16.mxu0 0
    %3589 = vmatpush1.bf16.xpose.msra.mxu0 %v3586
    %3590 = vmatprep.subr.bf16.mxu0 0
    %3591 = vmatpush1.bf16.xpose.msra.mxu0 0
    %3592 = vmatprep.subr.bf16.mxu0 0
    %3593 = vmatpush1.bf16.xpose.msra.mxu0 0
    %3594 = vmatprep.subr.bf16.mxu0 0
    %3595 = vmatpush1.bf16.xpose.msra.mxu0 0
    %3596 = vmatprep.subr.bf16.mxu0 0
    %3597 = vmatpush1.bf16.xpose.msra.mxu0 0
    %3598 = vmatprep.subr.bf16.mxu0 0
    %3599 = vmatpush1.bf16.xpose.msra.mxu0 0
    %3600 = vmatprep.subr.bf16.mxu0 0
    %3601 = vmatpush1.bf16.xpose.msra.mxu0 0
    %3602 = vmatprep.subr.bf16.mxu0 0
    %3603 = vmatpush1.bf16.xpose.msra.mxu0 0
    %3604 = vmatprep.subr.bf16.mxu0 0
    %3605 = vmatpush1.bf16.xpose.msra.mxu0 0
    %3606 = vmatprep.subr.bf16.mxu0 0
    %3607 = vmatpush1.bf16.xpose.msra.mxu0 0
    %3608 = vmatprep.subr.bf16.mxu0 0
    %3609 = vmatpush1.bf16.xpose.msra.mxu0 0
    %3610 = vmatprep.subr.bf16.mxu0 0
    %3611 = vmatpush1.bf16.xpose.msra.mxu0 0
    %3612 = vmatprep.subr.bf16.mxu0 0
    %3613 = vmatpush1.bf16.xpose.msra.mxu0 0
    %3614 = vmatprep.subr.bf16.mxu0 0
    %3615 = vmatpush1.bf16.xpose.msra.mxu0 0
    %3616 = vmatprep.subr.bf16.mxu0 0
    %3617 = vmatpush1.bf16.xpose.msra.mxu0 0
    %3618 = vmatprep.subr.bf16.mxu0 0
    %3619 = vmatpush1.bf16.xpose.msra.mxu0 0
    %3620 = vmatprep.mubr.bf16.mxu0 0
    %3621 = vmatmul.mubr.bf16.gmra.mrb[0].mxu0 %v3583
    %v3622 = vpop.f32.mrb[0].mxu0
    %v3623 = vadd.f32 0.0, %v3622
    %v3624 = vpop.f32.mrb[0].mxu0
    %v3625 = vpop.f32.mrb[0].mxu0
    %v3626 = vpop.f32.mrb[0].mxu0
    %3627 = vdwg.mxu0
    %v3629 = vsel %vm406, %v3559, 0
    %v3632 = vsel %vm406, %v3568, 0
    %3634 = vmatprep.subr.bf16.mxu0 0
    %3635 = vmatpush1.bf16.xpose.msra.mxu0 %v3632
    %3636 = vmatprep.subr.bf16.mxu0 0
    %3637 = vmatpush1.bf16.xpose.msra.mxu0 0
    %3638 = vmatprep.subr.bf16.mxu0 0
    %3639 = vmatpush1.bf16.xpose.msra.mxu0 0
    %3640 = vmatprep.subr.bf16.mxu0 0
    %3641 = vmatpush1.bf16.xpose.msra.mxu0 0
    %3642 = vmatprep.subr.bf16.mxu0 0
    %3643 = vmatpush1.bf16.xpose.msra.mxu0 0
    %3644 = vmatprep.subr.bf16.mxu0 0
    %3645 = vmatpush1.bf16.xpose.msra.mxu0 0
    %3646 = vmatprep.subr.bf16.mxu0 0
    %3647 = vmatpush1.bf16.xpose.msra.mxu0 0
    %3648 = vmatprep.subr.bf16.mxu0 0
    %3649 = vmatpush1.bf16.xpose.msra.mxu0 0
    %3650 = vmatprep.subr.bf16.mxu0 0
    %3651 = vmatpush1.bf16.xpose.msra.mxu0 0
    %3652 = vmatprep.subr.bf16.mxu0 0
    %3653 = vmatpush1.bf16.xpose.msra.mxu0 0
    %3654 = vmatprep.subr.bf16.mxu0 0
    %3655 = vmatpush1.bf16.xpose.msra.mxu0 0
    %3656 = vmatprep.subr.bf16.mxu0 0
    %3657 = vmatpush1.bf16.xpose.msra.mxu0 0
    %3658 = vmatprep.subr.bf16.mxu0 0
    %3659 = vmatpush1.bf16.xpose.msra.mxu0 0
    %3660 = vmatprep.subr.bf16.mxu0 0
    %3661 = vmatpush1.bf16.xpose.msra.mxu0 0
    %3662 = vmatprep.subr.bf16.mxu0 0
    %3663 = vmatpush1.bf16.xpose.msra.mxu0 0
    %3664 = vmatprep.subr.bf16.mxu0 0
    %3665 = vmatpush1.bf16.xpose.msra.mxu0 0
    %3666 = vmatprep.mubr.bf16.mxu0 0
    %3667 = vmatmul.mubr.bf16.gmra.mrb[0].mxu0 %v3629
    %v3668 = vpop.f32.mrb[0].mxu0
    %v3669 = vadd.f32 0.0, %v3668
    %v3670 = vpop.f32.mrb[0].mxu0
    %v3671 = vpop.f32.mrb[0].mxu0
    %v3672 = vpop.f32.mrb[0].mxu0
    %3673 = vdwg.mxu0
    %v3675 = vsel %vm406, %v3561, 0
    %v3678 = vsel %vm406, %v3570, 0
    %3680 = vmatprep.subr.bf16.mxu0 0
    %3681 = vmatpush1.bf16.xpose.msra.mxu0 %v3678
    %3682 = vmatprep.subr.bf16.mxu0 0
    %3683 = vmatpush1.bf16.xpose.msra.mxu0 0
    %3684 = vmatprep.subr.bf16.mxu0 0
    %3685 = vmatpush1.bf16.xpose.msra.mxu0 0
    %3686 = vmatprep.subr.bf16.mxu0 0
    %3687 = vmatpush1.bf16.xpose.msra.mxu0 0
    %3688 = vmatprep.subr.bf16.mxu0 0
    %3689 = vmatpush1.bf16.xpose.msra.mxu0 0
    %3690 = vmatprep.subr.bf16.mxu0 0
    %3691 = vmatpush1.bf16.xpose.msra.mxu0 0
    %3692 = vmatprep.subr.bf16.mxu0 0
    %3693 = vmatpush1.bf16.xpose.msra.mxu0 0
    %3694 = vmatprep.subr.bf16.mxu0 0
    %3695 = vmatpush1.bf16.xpose.msra.mxu0 0
    %3696 = vmatprep.subr.bf16.mxu0 0
    %3697 = vmatpush1.bf16.xpose.msra.mxu0 0
    %3698 = vmatprep.subr.bf16.mxu0 0
    %3699 = vmatpush1.bf16.xpose.msra.mxu0 0
    %3700 = vmatprep.subr.bf16.mxu0 0
    %3701 = vmatpush1.bf16.xpose.msra.mxu0 0
    %3702 = vmatprep.subr.bf16.mxu0 0
    %3703 = vmatpush1.bf16.xpose.msra.mxu0 0
    %3704 = vmatprep.subr.bf16.mxu0 0
    %3705 = vmatpush1.bf16.xpose.msra.mxu0 0
    %3706 = vmatprep.subr.bf16.mxu0 0
    %3707 = vmatpush1.bf16.xpose.msra.mxu0 0
    %3708 = vmatprep.subr.bf16.mxu0 0
    %3709 = vmatpush1.bf16.xpose.msra.mxu0 0
    %3710 = vmatprep.subr.bf16.mxu0 0
    %3711 = vmatpush1.bf16.xpose.msra.mxu0 0
    %3712 = vmatprep.mubr.bf16.mxu0 0
    %3713 = vmatmul.mubr.bf16.gmra.mrb[0].mxu0 %v3675
    %v3714 = vpop.f32.mrb[0].mxu0
    %v3715 = vadd.f32 0.0, %v3714
    %v3716 = vpop.f32.mrb[0].mxu0
    %v3717 = vpop.f32.mrb[0].mxu0
    %v3718 = vpop.f32.mrb[0].mxu0
    %3719 = vdwg.mxu0
    %v3721 = vsel %vm406, %v3563, 0
    %v3724 = vsel %vm406, %v3572, 0
    %3726 = vmatprep.subr.bf16.mxu0 0
    %3727 = vmatpush1.bf16.xpose.msra.mxu0 %v3724
    %3728 = vmatprep.subr.bf16.mxu0 0
    %3729 = vmatpush1.bf16.xpose.msra.mxu0 0
    %3730 = vmatprep.subr.bf16.mxu0 0
    %3731 = vmatpush1.bf16.xpose.msra.mxu0 0
    %3732 = vmatprep.subr.bf16.mxu0 0
    %3733 = vmatpush1.bf16.xpose.msra.mxu0 0
    %3734 = vmatprep.subr.bf16.mxu0 0
    %3735 = vmatpush1.bf16.xpose.msra.mxu0 0
    %3736 = vmatprep.subr.bf16.mxu0 0
    %3737 = vmatpush1.bf16.xpose.msra.mxu0 0
    %3738 = vmatprep.subr.bf16.mxu0 0
    %3739 = vmatpush1.bf16.xpose.msra.mxu0 0
    %3740 = vmatprep.subr.bf16.mxu0 0
    %3741 = vmatpush1.bf16.xpose.msra.mxu0 0
    %3742 = vmatprep.subr.bf16.mxu0 0
    %3743 = vmatpush1.bf16.xpose.msra.mxu0 0
    %3744 = vmatprep.subr.bf16.mxu0 0
    %3745 = vmatpush1.bf16.xpose.msra.mxu0 0
    %3746 = vmatprep.subr.bf16.mxu0 0
    %3747 = vmatpush1.bf16.xpose.msra.mxu0 0
    %3748 = vmatprep.subr.bf16.mxu0 0
    %3749 = vmatpush1.bf16.xpose.msra.mxu0 0
    %3750 = vmatprep.subr.bf16.mxu0 0
    %3751 = vmatpush1.bf16.xpose.msra.mxu0 0
    %3752 = vmatprep.subr.bf16.mxu0 0
    %3753 = vmatpush1.bf16.xpose.msra.mxu0 0
    %3754 = vmatprep.subr.bf16.mxu0 0
    %3755 = vmatpush1.bf16.xpose.msra.mxu0 0
    %3756 = vmatprep.subr.bf16.mxu0 0
    %3757 = vmatpush1.bf16.xpose.msra.mxu0 0
    %3758 = vmatprep.mubr.bf16.mxu0 0
    %3759 = vmatmul.mubr.bf16.gmra.mrb[0].mxu0 %v3721
    %v3760 = vpop.f32.mrb[0].mxu0
    %v3761 = vadd.f32 0.0, %v3760
    %v3762 = vpop.f32.mrb[0].mxu0
    %v3763 = vpop.f32.mrb[0].mxu0
    %v3764 = vpop.f32.mrb[0].mxu0
    %3765 = vdwg.mxu0
    %v3766 = vmul.f32 %v3623, 0.25
    %v3767 = vmul.f32 %v3669, 0.25
    %v3768 = vmul.f32 %v3715, 0.25
    %v3769 = vmul.f32 %v3761, 0.25
    %v3770 = vsel %vm595, %v3766, -inf
    %3771 = vmax.xlane.f32.xlu0 %v3770
    %v3772 = vpop.xlane.xlu0 %3771
    %v3773 = vsel %vm595, %v3767, -inf
    %3774 = vmax.xlane.f32.xlu0 %v3773
    %v3775 = vpop.xlane.xlu0 %3774
    %v3776 = vsel %vm595, %v3768, -inf
    %3777 = vmax.xlane.f32.xlu0 %v3776
    %v3778 = vpop.xlane.xlu0 %3777
    %v3779 = vsel %vm595, %v3769, -inf
    %3780 = vmax.xlane.f32.xlu0 %v3779
    %v3781 = vpop.xlane.xlu0 %3780
    %v3782 = vsub.f32 %v3766, %v3772
    %v3783 = vsub.f32 %v3767, %v3775
    %v3784 = vsub.f32 %v3768, %v3778
    %v3785 = vsub.f32 %v3769, %v3781
    %v3786 = vmul.f32 %v3782, 1.442695
    %v3787 = vpow.pop %v3786
    %v3788 = vmul.f32 %v3783, 1.442695
    %v3789 = vpow.pop %v3788
    %v3790 = vmul.f32 %v3784, 1.442695
    %v3791 = vpow.pop %v3790
    %v3792 = vmul.f32 %v3785, 1.442695
    %v3793 = vpow.pop %v3792
    %v3794 = vsel %vm595, %v3787, 0.0
    %3795 = vadd.xlane.f32.xlu0 %v3794
    %v3796 = vpop.xlane.xlu0 %3795
    %v3797 = vsel %vm595, %v3789, 0.0
    %3798 = vadd.xlane.f32.xlu0 %v3797
    %v3799 = vpop.xlane.xlu0 %3798
    %v3800 = vsel %vm595, %v3791, 0.0
    %3801 = vadd.xlane.f32.xlu0 %v3800
    %v3802 = vpop.xlane.xlu0 %3801
    %v3803 = vsel %vm595, %v3793, 0.0
    %3804 = vadd.xlane.f32.xlu0 %v3803
    %v3805 = vpop.xlane.xlu0 %3804
    %v3806 = vrcp.pop %v3796
    %v3807 = vrcp.pop %v3799
    %v3808 = vrcp.pop %v3802
    %v3809 = vrcp.pop %v3805
    %v3810 = vmul.f32 %v3787, %v3806
    %v3811 = vmul.f32 %v3789, %v3807
    %v3812 = vmul.f32 %v3791, %v3808
    %v3813 = vmul.f32 %v3793, %v3809
    %v3814 = vpack.c.bf16 %v3810, %v3810
    %v3815 = vpack.c.bf16 %v3811, %v3811
    %v3816 = vpack.c.bf16 %v3812, %v3812
    %v3817 = vpack.c.bf16 %v3813, %v3813
    %v3819 = vsel %vm595, %v3814, 0
    %v3822 = vsel %vm647, %v3576, 0
    %3824 = vmatprep.subr.bf16.mxu0 0
    %3825 = vmatpush1.bf16.msra.mxu0 %v3822
    %3826 = vmatprep.subr.bf16.mxu0 0
    %3827 = vmatpush1.bf16.msra.mxu0 0
    %3828 = vmatprep.subr.bf16.mxu0 0
    %3829 = vmatpush1.bf16.msra.mxu0 0
    %3830 = vmatprep.subr.bf16.mxu0 0
    %3831 = vmatpush1.bf16.msra.mxu0 0
    %3832 = vmatprep.subr.bf16.mxu0 0
    %3833 = vmatpush1.bf16.msra.mxu0 0
    %3834 = vmatprep.subr.bf16.mxu0 0
    %3835 = vmatpush1.bf16.msra.mxu0 0
    %3836 = vmatprep.subr.bf16.mxu0 0
    %3837 = vmatpush1.bf16.msra.mxu0 0
    %3838 = vmatprep.subr.bf16.mxu0 0
    %3839 = vmatpush1.bf16.msra.mxu0 0
    %3840 = vmatprep.subr.bf16.mxu0 0
    %3841 = vmatpush1.bf16.msra.mxu0 0
    %3842 = vmatprep.subr.bf16.mxu0 0
    %3843 = vmatpush1.bf16.msra.mxu0 0
    %3844 = vmatprep.subr.bf16.mxu0 0
    %3845 = vmatpush1.bf16.msra.mxu0 0
    %3846 = vmatprep.subr.bf16.mxu0 0
    %3847 = vmatpush1.bf16.msra.mxu0 0
    %3848 = vmatprep.subr.bf16.mxu0 0
    %3849 = vmatpush1.bf16.msra.mxu0 0
    %3850 = vmatprep.subr.bf16.mxu0 0
    %3851 = vmatpush1.bf16.msra.mxu0 0
    %3852 = vmatprep.subr.bf16.mxu0 0
    %3853 = vmatpush1.bf16.msra.mxu0 0
    %3854 = vmatprep.subr.bf16.mxu0 0
    %3855 = vmatpush1.bf16.msra.mxu0 0
    %3856 = vmatprep.mubr.bf16.mxu0 0
    %3857 = vmatmul.mubr.bf16.gmra.mrb[0].mxu0 %v3819
    %v3858 = vpop.f32.mrb[0].mxu0
    %v3859 = vadd.f32 0.0, %v3858
    %v3860 = vpop.f32.mrb[0].mxu0
    %v3861 = vpop.f32.mrb[0].mxu0
    %v3862 = vpop.f32.mrb[0].mxu0
    %3863 = vdwg.mxu0
    %v3865 = vsel %vm595, %v3815, 0
    %v3868 = vsel %vm647, %v3577, 0
    %3870 = vmatprep.subr.bf16.mxu0 0
    %3871 = vmatpush1.bf16.msra.mxu0 %v3868
    %3872 = vmatprep.subr.bf16.mxu0 0
    %3873 = vmatpush1.bf16.msra.mxu0 0
    %3874 = vmatprep.subr.bf16.mxu0 0
    %3875 = vmatpush1.bf16.msra.mxu0 0
    %3876 = vmatprep.subr.bf16.mxu0 0
    %3877 = vmatpush1.bf16.msra.mxu0 0
    %3878 = vmatprep.subr.bf16.mxu0 0
    %3879 = vmatpush1.bf16.msra.mxu0 0
    %3880 = vmatprep.subr.bf16.mxu0 0
    %3881 = vmatpush1.bf16.msra.mxu0 0
    %3882 = vmatprep.subr.bf16.mxu0 0
    %3883 = vmatpush1.bf16.msra.mxu0 0
    %3884 = vmatprep.subr.bf16.mxu0 0
    %3885 = vmatpush1.bf16.msra.mxu0 0
    %3886 = vmatprep.subr.bf16.mxu0 0
    %3887 = vmatpush1.bf16.msra.mxu0 0
    %3888 = vmatprep.subr.bf16.mxu0 0
    %3889 = vmatpush1.bf16.msra.mxu0 0
    %3890 = vmatprep.subr.bf16.mxu0 0
    %3891 = vmatpush1.bf16.msra.mxu0 0
    %3892 = vmatprep.subr.bf16.mxu0 0
    %3893 = vmatpush1.bf16.msra.mxu0 0
    %3894 = vmatprep.subr.bf16.mxu0 0
    %3895 = vmatpush1.bf16.msra.mxu0 0
    %3896 = vmatprep.subr.bf16.mxu0 0
    %3897 = vmatpush1.bf16.msra.mxu0 0
    %3898 = vmatprep.subr.bf16.mxu0 0
    %3899 = vmatpush1.bf16.msra.mxu0 0
    %3900 = vmatprep.subr.bf16.mxu0 0
    %3901 = vmatpush1.bf16.msra.mxu0 0
    %3902 = vmatprep.mubr.bf16.mxu0 0
    %3903 = vmatmul.mubr.bf16.gmra.mrb[0].mxu0 %v3865
    %v3904 = vpop.f32.mrb[0].mxu0
    %v3905 = vadd.f32 0.0, %v3904
    %v3906 = vpop.f32.mrb[0].mxu0
    %v3907 = vpop.f32.mrb[0].mxu0
    %v3908 = vpop.f32.mrb[0].mxu0
    %3909 = vdwg.mxu0
    %v3911 = vsel %vm595, %v3816, 0
    %v3914 = vsel %vm647, %v3579, 0
    %3916 = vmatprep.subr.bf16.mxu0 0
    %3917 = vmatpush1.bf16.msra.mxu0 %v3914
    %3918 = vmatprep.subr.bf16.mxu0 0
    %3919 = vmatpush1.bf16.msra.mxu0 0
    %3920 = vmatprep.subr.bf16.mxu0 0
    %3921 = vmatpush1.bf16.msra.mxu0 0
    %3922 = vmatprep.subr.bf16.mxu0 0
    %3923 = vmatpush1.bf16.msra.mxu0 0
    %3924 = vmatprep.subr.bf16.mxu0 0
    %3925 = vmatpush1.bf16.msra.mxu0 0
    %3926 = vmatprep.subr.bf16.mxu0 0
    %3927 = vmatpush1.bf16.msra.mxu0 0
    %3928 = vmatprep.subr.bf16.mxu0 0
    %3929 = vmatpush1.bf16.msra.mxu0 0
    %3930 = vmatprep.subr.bf16.mxu0 0
    %3931 = vmatpush1.bf16.msra.mxu0 0
    %3932 = vmatprep.subr.bf16.mxu0 0
    %3933 = vmatpush1.bf16.msra.mxu0 0
    %3934 = vmatprep.subr.bf16.mxu0 0
    %3935 = vmatpush1.bf16.msra.mxu0 0
    %3936 = vmatprep.subr.bf16.mxu0 0
    %3937 = vmatpush1.bf16.msra.mxu0 0
    %3938 = vmatprep.subr.bf16.mxu0 0
    %3939 = vmatpush1.bf16.msra.mxu0 0
    %3940 = vmatprep.subr.bf16.mxu0 0
    %3941 = vmatpush1.bf16.msra.mxu0 0
    %3942 = vmatprep.subr.bf16.mxu0 0
    %3943 = vmatpush1.bf16.msra.mxu0 0
    %3944 = vmatprep.subr.bf16.mxu0 0
    %3945 = vmatpush1.bf16.msra.mxu0 0
    %3946 = vmatprep.subr.bf16.mxu0 0
    %3947 = vmatpush1.bf16.msra.mxu0 0
    %3948 = vmatprep.mubr.bf16.mxu0 0
    %3949 = vmatmul.mubr.bf16.gmra.mrb[0].mxu0 %v3911
    %v3950 = vpop.f32.mrb[0].mxu0
    %v3951 = vadd.f32 0.0, %v3950
    %v3952 = vpop.f32.mrb[0].mxu0
    %v3953 = vpop.f32.mrb[0].mxu0
    %v3954 = vpop.f32.mrb[0].mxu0
    %3955 = vdwg.mxu0
    %v3957 = vsel %vm595, %v3817, 0
    %v3960 = vsel %vm647, %v3581, 0
    %3962 = vmatprep.subr.bf16.mxu0 0
    %3963 = vmatpush1.bf16.msra.mxu0 %v3960
    %3964 = vmatprep.subr.bf16.mxu0 0
    %3965 = vmatpush1.bf16.msra.mxu0 0
    %3966 = vmatprep.subr.bf16.mxu0 0
    %3967 = vmatpush1.bf16.msra.mxu0 0
    %3968 = vmatprep.subr.bf16.mxu0 0
    %3969 = vmatpush1.bf16.msra.mxu0 0
    %3970 = vmatprep.subr.bf16.mxu0 0
    %3971 = vmatpush1.bf16.msra.mxu0 0
    %3972 = vmatprep.subr.bf16.mxu0 0
    %3973 = vmatpush1.bf16.msra.mxu0 0
    %3974 = vmatprep.subr.bf16.mxu0 0
    %3975 = vmatpush1.bf16.msra.mxu0 0
    %3976 = vmatprep.subr.bf16.mxu0 0
    %3977 = vmatpush1.bf16.msra.mxu0 0
    %3978 = vmatprep.subr.bf16.mxu0 0
    %3979 = vmatpush1.bf16.msra.mxu0 0
    %3980 = vmatprep.subr.bf16.mxu0 0
    %3981 = vmatpush1.bf16.msra.mxu0 0
    %3982 = vmatprep.subr.bf16.mxu0 0
    %3983 = vmatpush1.bf16.msra.mxu0 0
    %3984 = vmatprep.subr.bf16.mxu0 0
    %3985 = vmatpush1.bf16.msra.mxu0 0
    %3986 = vmatprep.subr.bf16.mxu0 0
    %3987 = vmatpush1.bf16.msra.mxu0 0
    %3988 = vmatprep.subr.bf16.mxu0 0
    %3989 = vmatpush1.bf16.msra.mxu0 0
    %3990 = vmatprep.subr.bf16.mxu0 0
    %3991 = vmatpush1.bf16.msra.mxu0 0
    %3992 = vmatprep.subr.bf16.mxu0 0
    %3993 = vmatpush1.bf16.msra.mxu0 0
    %3994 = vmatprep.mubr.bf16.mxu0 0
    %3995 = vmatmul.mubr.bf16.gmra.mrb[0].mxu0 %v3957
    %v3996 = vpop.f32.mrb[0].mxu0
    %v3997 = vadd.f32 0.0, %v3996
    %v3998 = vpop.f32.mrb[0].mxu0
    %v3999 = vpop.f32.mrb[0].mxu0
    %v4000 = vpop.f32.mrb[0].mxu0
    %4001 = vdwg.mxu0
    %4004 = vrot.lane.b32.xlu0 %v3951, 64
    %v4005 = vpop.permute.xlu0 %4004
    %4006 = vrot.lane.b32.xlu0 %v3997, 64
    %v4007 = vpop.permute.xlu0 %4006
    %v4010 = vsel %vm406, %v3859, %v4005
    %v4011 = vsel %vm406, %v3905, %v4007
    %v4012 = vld [vmem:[%s20] sm:$0xf]
    %v4013 = vld [vmem:[%s20 + $0x4] sm:$0xf]
    %v4014 = vld [vmem:[%s20 + $0x8] sm:$0xf]
    %v4015 = vld [vmem:[%s20 + $0xc] sm:$0xf]
    %v4016 = vld [vmem:[%s20 + $0x10] sm:$0xf]
    %v4017 = vld [vmem:[%s20 + $0x14] sm:$0xf]
    %v4018 = vld [vmem:[%s20 + $0x18] sm:$0xf]
    %v4019 = vld [vmem:[%s20 + $0x1c] sm:$0xf]
    %v4020 = vld [vmem:[%s20 + $0x20] sm:$0xf]
    %v4021 = vld [vmem:[%s20 + $0x24] sm:$0xf]
    %v4022 = vld [vmem:[%s20 + $0x28] sm:$0xf]
    %v4023 = vld [vmem:[%s20 + $0x2c] sm:$0xf]
    %v4024 = vld [vmem:[%s20 + $0x30] sm:$0xf]
    %v4025 = vld [vmem:[%s20 + $0x34] sm:$0xf]
    %v4026 = vld [vmem:[%s20 + $0x38] sm:$0xf]
    %v4027 = vld [vmem:[%s20 + $0x3c] sm:$0xf]
    %v4028 = vpack.c.bf16 %v4011, %v4010
    %v4029 = vld [vmem:[%s21] sm:$0x1]
    %v4031 = vlaneseq
    %v4032 = vshrl.u32 %v4031, 7
    %v4033 = vsub.s32 0, %v4032
    %v4034 = vrot.slane %v4029, %v4033
    %v4052 = vunpack.c.l.b16 %v4012
    %v4053 = vunpack.c.l.b16 %v4013
    %v4054 = vunpack.c.l.b16 %v4014
    %v4055 = vunpack.c.l.b16 %v4015
    %v4056 = vunpack.c.l.b16 %v4016
    %v4057 = vunpack.c.l.b16 %v4017
    %v4058 = vunpack.c.l.b16 %v4018
    %v4059 = vunpack.c.l.b16 %v4019
    %v4060 = vunpack.c.l.b16 %v4020
    %v4061 = vunpack.c.l.b16 %v4021
    %v4062 = vunpack.c.l.b16 %v4022
    %v4063 = vunpack.c.l.b16 %v4023
    %v4064 = vunpack.c.l.b16 %v4024
    %v4065 = vunpack.c.l.b16 %v4025
    %v4066 = vunpack.c.l.b16 %v4026
    %v4067 = vunpack.c.l.b16 %v4027
    %v4068 = vpack.c.b16 %v4053, %v4052
    %v4069 = vpack.c.b16 %v4055, %v4054
    %v4070 = vpack.c.b16 %v4057, %v4056
    %v4071 = vpack.c.b16 %v4059, %v4058
    %v4072 = vpack.c.b16 %v4061, %v4060
    %v4073 = vpack.c.b16 %v4063, %v4062
    %v4074 = vpack.c.b16 %v4065, %v4064
    %v4075 = vpack.c.b16 %v4067, %v4066
    %4084 = vmatprep.subr.bf16.mxu0 0
    %4085 = vmatpush1.bf16.msra.mxu0 %v4068
    %4086 = vmatprep.subr.bf16.mxu0 0
    %4087 = vmatpush1.bf16.msra.mxu0 %v4069
    %4088 = vmatprep.subr.bf16.mxu0 0
    %4089 = vmatpush1.bf16.msra.mxu0 %v4070
    %4090 = vmatprep.subr.bf16.mxu0 0
    %4091 = vmatpush1.bf16.msra.mxu0 %v4071
    %4092 = vmatprep.subr.bf16.mxu0 0
    %4093 = vmatpush1.bf16.msra.mxu0 %v4072
    %4094 = vmatprep.subr.bf16.mxu0 0
    %4095 = vmatpush1.bf16.msra.mxu0 %v4073
    %4096 = vmatprep.subr.bf16.mxu0 0
    %4097 = vmatpush1.bf16.msra.mxu0 %v4074
    %4098 = vmatprep.subr.bf16.mxu0 0
    %4099 = vmatpush1.bf16.msra.mxu0 %v4075
    %4100 = vmatprep.subr.bf16.mxu0 0
    %4101 = vmatpush1.bf16.msra.mxu0 0
    %4102 = vmatprep.subr.bf16.mxu0 0
    %4103 = vmatpush1.bf16.msra.mxu0 0
    %4104 = vmatprep.subr.bf16.mxu0 0
    %4105 = vmatpush1.bf16.msra.mxu0 0
    %4106 = vmatprep.subr.bf16.mxu0 0
    %4107 = vmatpush1.bf16.msra.mxu0 0
    %4108 = vmatprep.subr.bf16.mxu0 0
    %4109 = vmatpush1.bf16.msra.mxu0 0
    %4110 = vmatprep.subr.bf16.mxu0 0
    %4111 = vmatpush1.bf16.msra.mxu0 0
    %4112 = vmatprep.subr.bf16.mxu0 0
    %4113 = vmatpush1.bf16.msra.mxu0 0
    %4114 = vmatprep.subr.bf16.mxu0 0
    %4115 = vmatpush1.bf16.msra.mxu0 0
    %4116 = vmatprep.mubr.bf16.mxu0 0
    %4117 = vmatmul.mubr.bf16.gmra.mrb[0].mxu0 %v4028
    %v4118 = vpop.f32.mrb[0].mxu0
    %v4119 = vadd.f32 %v4034, %v4118
    %v4120 = vpop.f32.mrb[0].mxu0
    %v4121 = vpop.f32.mrb[0].mxu0
    %v4122 = vadd.f32 %v4034, %v4121
    %v4123 = vpop.f32.mrb[0].mxu0
    %4124 = vdwg.mxu0
    %v4125 = vadd.f32 %v3285, %v4119
    %v4126 = vadd.f32 %v3286, %v4122
    %4127 = vadd.xlane.f32.xlu0 %v4125
    %v4128 = vpop.xlane.xlu0 %4127
    %4129 = vadd.xlane.f32.xlu0 %v4126
    %v4130 = vpop.xlane.xlu0 %4129
    %v4131 = vmul.f32 %v4128, 0.03125
    %v4132 = vmul.f32 %v4130, 0.03125
    %v4133 = vsub.f32 %v4125, %v4131
    %v4134 = vsub.f32 %v4126, %v4132
    %v4135 = vmul.f32 %v4133, %v110
    %v4136 = vmul.f32 %v4134, %v110
    %v4137 = vmul.f32 %v4135, %v4135
    %v4138 = vmul.f32 %v4136, %v4136
    %4139 = vadd.xlane.f32.xlu0 %v4137
    %v4140 = vpop.xlane.xlu0 %4139
    %4141 = vadd.xlane.f32.xlu0 %v4138
    %v4142 = vpop.xlane.xlu0 %4141
    %v4143 = vmul.f32 %v4140, 0.03125
    %v4144 = vmul.f32 %v4142, 0.03125
    %v4145 = vadd.f32 %v4143, 1e-05
    %v4146 = vadd.f32 %v4144, 1e-05
    %v4147 = vrsqrt.pop %v4145
    %v4148 = vrsqrt.pop %v4146
    %v4149 = vmul.f32 %v4135, %v4147
    %v4150 = vmul.f32 %v4136, %v4148
    %v4151 = vlaneseq
    %v4152 = vshrl.u32 %v4151, 7
    %v4153 = vsub.s32 2, %v4152
    %v4154 = vrot.slane %v2409, %v4153
    %v4155 = vmul.f32 %v4149, %v4154
    %v4156 = vmul.f32 %v4150, %v4154
    %v4157 = vlaneseq
    %v4158 = vshrl.u32 %v4157, 7
    %v4159 = vsub.s32 3, %v4158
    %v4160 = vrot.slane %v2409, %v4159
    %v4161 = vadd.f32 %v4155, %v4160
    %v4162 = vadd.f32 %v4156, %v4160
    %v4163 = vld [vmem:[%s22] sm:$0xf]
    %v4164 = vld [vmem:[%s22 + $0x4] sm:$0xf]
    %v4165 = vld [vmem:[%s22 + $0x8] sm:$0xf]
    %v4166 = vld [vmem:[%s22 + $0xc] sm:$0xf]
    %v4167 = vld [vmem:[%s22 + $0x10] sm:$0xf]
    %v4168 = vld [vmem:[%s22 + $0x14] sm:$0xf]
    %v4169 = vld [vmem:[%s22 + $0x18] sm:$0xf]
    %v4170 = vld [vmem:[%s22 + $0x1c] sm:$0xf]
    %v4171 = vld [vmem:[%s22 + $0x20] sm:$0xf]
    %v4172 = vld [vmem:[%s22 + $0x24] sm:$0xf]
    %v4173 = vld [vmem:[%s22 + $0x28] sm:$0xf]
    %v4174 = vld [vmem:[%s22 + $0x2c] sm:$0xf]
    %v4175 = vld [vmem:[%s22 + $0x30] sm:$0xf]
    %v4176 = vld [vmem:[%s22 + $0x34] sm:$0xf]
    %v4177 = vld [vmem:[%s22 + $0x38] sm:$0xf]
    %v4178 = vld [vmem:[%s22 + $0x3c] sm:$0xf]
    %v4179 = vpack.c.bf16 %v4162, %v4161
    %v4180 = vld [vmem:[%s23] sm:$0x1]
    %v4182 = vlaneseq
    %v4183 = vshrl.u32 %v4182, 7
    %v4184 = vsub.s32 0, %v4183
    %v4185 = vrot.slane %v4180, %v4184
    %v4203 = vunpack.c.l.b16 %v4163
    %v4204 = vunpack.c.l.b16 %v4164
    %v4205 = vunpack.c.l.b16 %v4165
    %v4206 = vunpack.c.l.b16 %v4166
    %v4207 = vunpack.c.l.b16 %v4167
    %v4208 = vunpack.c.l.b16 %v4168
    %v4209 = vunpack.c.l.b16 %v4169
    %v4210 = vunpack.c.l.b16 %v4170
    %v4211 = vunpack.c.l.b16 %v4171
    %v4212 = vunpack.c.l.b16 %v4172
    %v4213 = vunpack.c.l.b16 %v4173
    %v4214 = vunpack.c.l.b16 %v4174
    %v4215 = vunpack.c.l.b16 %v4175
    %v4216 = vunpack.c.l.b16 %v4176
    %v4217 = vunpack.c.l.b16 %v4177
    %v4218 = vunpack.c.l.b16 %v4178
    %v4219 = vpack.c.b16 %v4204, %v4203
    %v4220 = vpack.c.b16 %v4206, %v4205
    %v4221 = vpack.c.b16 %v4208, %v4207
    %v4222 = vpack.c.b16 %v4210, %v4209
    %v4223 = vpack.c.b16 %v4212, %v4211
    %v4224 = vpack.c.b16 %v4214, %v4213
    %v4225 = vpack.c.b16 %v4216, %v4215
    %v4226 = vpack.c.b16 %v4218, %v4217
    %4235 = vmatprep.subr.bf16.mxu0 0
    %4236 = vmatpush1.bf16.msra.mxu0 %v4219
    %4237 = vmatprep.subr.bf16.mxu0 0
    %4238 = vmatpush1.bf16.msra.mxu0 %v4220
    %4239 = vmatprep.subr.bf16.mxu0 0
    %4240 = vmatpush1.bf16.msra.mxu0 %v4221
    %4241 = vmatprep.subr.bf16.mxu0 0
    %4242 = vmatpush1.bf16.msra.mxu0 %v4222
    %4243 = vmatprep.subr.bf16.mxu0 0
    %4244 = vmatpush1.bf16.msra.mxu0 %v4223
    %4245 = vmatprep.subr.bf16.mxu0 0
    %4246 = vmatpush1.bf16.msra.mxu0 %v4224
    %4247 = vmatprep.subr.bf16.mxu0 0
    %4248 = vmatpush1.bf16.msra.mxu0 %v4225
    %4249 = vmatprep.subr.bf16.mxu0 0
    %4250 = vmatpush1.bf16.msra.mxu0 %v4226
    %4251 = vmatprep.subr.bf16.mxu0 0
    %4252 = vmatpush1.bf16.msra.mxu0 0
    %4253 = vmatprep.subr.bf16.mxu0 0
    %4254 = vmatpush1.bf16.msra.mxu0 0
    %4255 = vmatprep.subr.bf16.mxu0 0
    %4256 = vmatpush1.bf16.msra.mxu0 0
    %4257 = vmatprep.subr.bf16.mxu0 0
    %4258 = vmatpush1.bf16.msra.mxu0 0
    %4259 = vmatprep.subr.bf16.mxu0 0
    %4260 = vmatpush1.bf16.msra.mxu0 0
    %4261 = vmatprep.subr.bf16.mxu0 0
    %4262 = vmatpush1.bf16.msra.mxu0 0
    %4263 = vmatprep.subr.bf16.mxu0 0
    %4264 = vmatpush1.bf16.msra.mxu0 0
    %4265 = vmatprep.subr.bf16.mxu0 0
    %4266 = vmatpush1.bf16.msra.mxu0 0
    %4267 = vmatprep.mubr.bf16.mxu0 0
    %4268 = vmatmul.mubr.bf16.gmra.mrb[0].mxu0 %v4179
    %v4269 = vpop.f32.mrb[0].mxu0
    %v4270 = vadd.f32 %v4185, %v4269
    %v4271 = vpop.f32.mrb[0].mxu0
    %v4272 = vpop.f32.mrb[0].mxu0
    %v4273 = vadd.f32 %v4185, %v4272
    %v4274 = vpop.f32.mrb[0].mxu0
    %4275 = vdwg.mxu0
    %v4276 = vmax.f32 %v4270, 0.0
    %v4277 = vmax.f32 %v4273, 0.0
    %v4278 = vld [vmem:[#allocation2] sm:$0xf]
    %v4279 = vld [vmem:[#allocation2 + $0x4] sm:$0xf]
    %v4280 = vld [vmem:[#allocation2 + $0x8] sm:$0xf]
    %v4281 = vld [vmem:[#allocation2 + $0xc] sm:$0xf]
    %v4282 = vld [vmem:[#allocation2 + $0x10] sm:$0xf]
    %v4283 = vld [vmem:[#allocation2 + $0x14] sm:$0xf]
    %v4284 = vld [vmem:[#allocation2 + $0x18] sm:$0xf]
    %v4285 = vld [vmem:[#allocation2 + $0x1c] sm:$0xf]
    %v4286 = vld [vmem:[#allocation2 + $0x20] sm:$0xf]
    %v4287 = vld [vmem:[#allocation2 + $0x24] sm:$0xf]
    %v4288 = vld [vmem:[#allocation2 + $0x28] sm:$0xf]
    %v4289 = vld [vmem:[#allocation2 + $0x2c] sm:$0xf]
    %v4290 = vld [vmem:[#allocation2 + $0x30] sm:$0xf]
    %v4291 = vld [vmem:[#allocation2 + $0x34] sm:$0xf]
    %v4292 = vld [vmem:[#allocation2 + $0x38] sm:$0xf]
    %v4293 = vld [vmem:[#allocation2 + $0x3c] sm:$0xf]
    %v4294 = vpack.c.bf16 %v4277, %v4276
    %v4295 = vld [vmem:[%s25] sm:$0x1]
    %v4297 = vlaneseq
    %v4298 = vshrl.u32 %v4297, 7
    %v4299 = vsub.s32 0, %v4298
    %v4300 = vrot.slane %v4295, %v4299
    %v4318 = vunpack.c.l.b16 %v4278
    %v4319 = vunpack.c.l.b16 %v4279
    %v4320 = vunpack.c.l.b16 %v4280
    %v4321 = vunpack.c.l.b16 %v4281
    %v4322 = vunpack.c.l.b16 %v4282
    %v4323 = vunpack.c.l.b16 %v4283
    %v4324 = vunpack.c.l.b16 %v4284
    %v4325 = vunpack.c.l.b16 %v4285
    %v4326 = vunpack.c.l.b16 %v4286
    %v4327 = vunpack.c.l.b16 %v4287
    %v4328 = vunpack.c.l.b16 %v4288
    %v4329 = vunpack.c.l.b16 %v4289
    %v4330 = vunpack.c.l.b16 %v4290
    %v4331 = vunpack.c.l.b16 %v4291
    %v4332 = vunpack.c.l.b16 %v4292
    %v4333 = vunpack.c.l.b16 %v4293
    %v4334 = vpack.c.b16 %v4319, %v4318
    %v4335 = vpack.c.b16 %v4321, %v4320
    %v4336 = vpack.c.b16 %v4323, %v4322
    %v4337 = vpack.c.b16 %v4325, %v4324
    %v4338 = vpack.c.b16 %v4327, %v4326
    %v4339 = vpack.c.b16 %v4329, %v4328
    %v4340 = vpack.c.b16 %v4331, %v4330
    %v4341 = vpack.c.b16 %v4333, %v4332
    %4350 = vmatprep.subr.bf16.mxu0 0
    %4351 = vmatpush1.bf16.msra.mxu0 %v4334
    %4352 = vmatprep.subr.bf16.mxu0 0
    %4353 = vmatpush1.bf16.msra.mxu0 %v4335
    %4354 = vmatprep.subr.bf16.mxu0 0
    %4355 = vmatpush1.bf16.msra.mxu0 %v4336
    %4356 = vmatprep.subr.bf16.mxu0 0
    %4357 = vmatpush1.bf16.msra.mxu0 %v4337
    %4358 = vmatprep.subr.bf16.mxu0 0
    %4359 = vmatpush1.bf16.msra.mxu0 %v4338
    %4360 = vmatprep.subr.bf16.mxu0 0
    %4361 = vmatpush1.bf16.msra.mxu0 %v4339
    %4362 = vmatprep.subr.bf16.mxu0 0
    %4363 = vmatpush1.bf16.msra.mxu0 %v4340
    %4364 = vmatprep.subr.bf16.mxu0 0
    %4365 = vmatpush1.bf16.msra.mxu0 %v4341
    %4366 = vmatprep.subr.bf16.mxu0 0
    %4367 = vmatpush1.bf16.msra.mxu0 0
    %4368 = vmatprep.subr.bf16.mxu0 0
    %4369 = vmatpush1.bf16.msra.mxu0 0
    %4370 = vmatprep.subr.bf16.mxu0 0
    %4371 = vmatpush1.bf16.msra.mxu0 0
    %4372 = vmatprep.subr.bf16.mxu0 0
    %4373 = vmatpush1.bf16.msra.mxu0 0
    %4374 = vmatprep.subr.bf16.mxu0 0
    %4375 = vmatpush1.bf16.msra.mxu0 0
    %4376 = vmatprep.subr.bf16.mxu0 0
    %4377 = vmatpush1.bf16.msra.mxu0 0
    %4378 = vmatprep.subr.bf16.mxu0 0
    %4379 = vmatpush1.bf16.msra.mxu0 0
    %4380 = vmatprep.subr.bf16.mxu0 0
    %4381 = vmatpush1.bf16.msra.mxu0 0
    %4382 = vmatprep.mubr.bf16.mxu0 0
    %4383 = vmatmul.mubr.bf16.gmra.mrb[0].mxu0 %v4294
    %v4384 = vpop.f32.mrb[0].mxu0
    %v4385 = vadd.f32 %v4300, %v4384
    %v4386 = vpop.f32.mrb[0].mxu0
    %v4387 = vpop.f32.mrb[0].mxu0
    %v4388 = vadd.f32 %v4300, %v4387
    %v4389 = vpop.f32.mrb[0].mxu0
    %4390 = vdwg.mxu0
    %v4391 = vadd.f32 %v4161, %v4385
    %v4392 = vadd.f32 %v4162, %v4388
    %4393 = vadd.xlane.f32.xlu0 %v4391
    %v4394 = vpop.xlane.xlu0 %4393
    %4395 = vadd.xlane.f32.xlu0 %v4392
    %v4396 = vpop.xlane.xlu0 %4395
    %v4397 = vmul.f32 %v4394, 0.03125
    %v4398 = vmul.f32 %v4396, 0.03125
    %v4399 = vsub.f32 %v4391, %v4397
    %v4400 = vsub.f32 %v4392, %v4398
    %v4401 = vmul.f32 %v4399, %v110
    %v4402 = vmul.f32 %v4400, %v110
    %v4403 = vmul.f32 %v4401, %v4401
    %v4404 = vmul.f32 %v4402, %v4402
    %4405 = vadd.xlane.f32.xlu0 %v4403
    %v4406 = vpop.xlane.xlu0 %4405
    %4407 = vadd.xlane.f32.xlu0 %v4404
    %v4408 = vpop.xlane.xlu0 %4407
    %v4409 = vmul.f32 %v4406, 0.03125
    %v4410 = vmul.f32 %v4408, 0.03125
    %v4411 = vadd.f32 %v4409, 1e-05
    %v4412 = vadd.f32 %v4410, 1e-05
    %v4413 = vrsqrt.pop %v4411
    %v4414 = vrsqrt.pop %v4412
    %v4415 = vmul.f32 %v4401, %v4413
    %v4416 = vmul.f32 %v4402, %v4414
    %v4417 = vlaneseq
    %v4418 = vshrl.u32 %v4417, 7
    %v4419 = vsub.s32 4, %v4418
    %v4420 = vrot.slane %v2409, %v4419
    %v4421 = vmul.f32 %v4415, %v4420
    %v4422 = vmul.f32 %v4416, %v4420
    %v4423 = vlaneseq
    %v4424 = vshrl.u32 %v4423, 7
    %v4425 = vsub.s32 5, %v4424
    %v4426 = vrot.slane %v2409, %v4425
    %v4427 = vadd.f32 %v4421, %v4426
    %v4428 = vadd.f32 %v4422, %v4426
    %s4429 = scalar_lea.vmem %s26, 8
    %v4430 = vld [vmem:[%s4429] sm:$0x3f]
    %s4431 = scalar_lea.vmem %s12, 192
    %v4432 = vld [vmem:[%s4431] sm:$0xff]
    %v4433 = vld [vmem:[%s4431 + $0x8] sm:$0xf]
    %v4434 = vld [vmem:[%s4431 + $0xc] sm:$0xff]
    %v4435 = vld [vmem:[%s4431 + $0x14] sm:$0xf]
    %v4436 = vld [vmem:[%s4431 + $0x18] sm:$0xff]
    %v4437 = vld [vmem:[%s4431 + $0x20] sm:$0xf]
    %v4438 = vld [vmem:[%s4431 + $0x24] sm:$0xff]
    %v4439 = vld [vmem:[%s4431 + $0x2c] sm:$0xf]
    %v4440 = vld [vmem:[%s4431 + $0x30] sm:$0xff]
    %v4441 = vld [vmem:[%s4431 + $0x38] sm:$0xf]
    %v4442 = vld [vmem:[%s4431 + $0x3c] sm:$0xff]
    %v4443 = vld [vmem:[%s4431 + $0x44] sm:$0xf]
    %v4444 = vld [vmem:[%s4431 + $0x48] sm:$0xff]
    %v4445 = vld [vmem:[%s4431 + $0x50] sm:$0xf]
    %v4446 = vld [vmem:[%s4431 + $0x54] sm:$0xff]
    %v4447 = vld [vmem:[%s4431 + $0x5c] sm:$0xf]
    %v4448 = vld [vmem:[%s4431 + $0x60] sm:$0xff]
    %v4449 = vld [vmem:[%s4431 + $0x68] sm:$0xf]
    %v4450 = vld [vmem:[%s4431 + $0x6c] sm:$0xff]
    %v4451 = vld [vmem:[%s4431 + $0x74] sm:$0xf]
    %v4452 = vld [vmem:[%s4431 + $0x78] sm:$0xff]
    %v4453 = vld [vmem:[%s4431 + $0x80] sm:$0xf]
    %v4454 = vld [vmem:[%s4431 + $0x84] sm:$0xff]
    %v4455 = vld [vmem:[%s4431 + $0x8c] sm:$0xf]
    %v4456 = vld [vmem:[%s4431 + $0x90] sm:$0xff]
    %v4457 = vld [vmem:[%s4431 + $0x98] sm:$0xf]
    %v4458 = vld [vmem:[%s4431 + $0x9c] sm:$0xff]
    %v4459 = vld [vmem:[%s4431 + $0xa4] sm:$0xf]
    %v4460 = vld [vmem:[%s4431 + $0xa8] sm:$0xff]
    %v4461 = vld [vmem:[%s4431 + $0xb0] sm:$0xf]
    %v4462 = vld [vmem:[%s4431 + $0xb4] sm:$0xff]
    %v4463 = vld [vmem:[%s4431 + $0xbc] sm:$0xf]
    %v4464 = vpack.c.bf16 %v4428, %v4427
    %s4465 = scalar_lea.vmem %s13, 3
    %v4466 = vld [vmem:[%s4465] sm:$0x7]
    %v4468 = vlaneseq
    %v4469 = vshrl.u32 %v4468, 7
    %v4470 = vsub.s32 0, %v4469
    %v4471 = vrot.slane %v4466, %v4470
    %v4472 = vlaneseq
    %v4473 = vshrl.u32 %v4472, 7
    %v4474 = vsub.s32 1, %v4473
    %v4475 = vrot.slane %v4466, %v4474
    %v4476 = vlaneseq
    %v4477 = vshrl.u32 %v4476, 7
    %v4478 = vsub.s32 2, %v4477
    %v4479 = vrot.slane %v4466, %v4478
    %v4515 = vunpack.c.l.b16 %v4432
    %v4516 = vunpack.c.h.b16 %v4432
    %v4517 = vunpack.c.l.b16 %v4433
    %v4518 = vunpack.c.l.b16 %v4434
    %v4519 = vunpack.c.h.b16 %v4434
    %v4520 = vunpack.c.l.b16 %v4435
    %v4521 = vunpack.c.l.b16 %v4436
    %v4522 = vunpack.c.h.b16 %v4436
    %v4523 = vunpack.c.l.b16 %v4437
    %v4524 = vunpack.c.l.b16 %v4438
    %v4525 = vunpack.c.h.b16 %v4438
    %v4526 = vunpack.c.l.b16 %v4439
    %v4527 = vunpack.c.l.b16 %v4440
    %v4528 = vunpack.c.h.b16 %v4440
    %v4529 = vunpack.c.l.b16 %v4441
    %v4530 = vunpack.c.l.b16 %v4442
    %v4531 = vunpack.c.h.b16 %v4442
    %v4532 = vunpack.c.l.b16 %v4443
    %v4533 = vunpack.c.l.b16 %v4444
    %v4534 = vunpack.c.h.b16 %v4444
    %v4535 = vunpack.c.l.b16 %v4445
    %v4536 = vunpack.c.l.b16 %v4446
    %v4537 = vunpack.c.h.b16 %v4446
    %v4538 = vunpack.c.l.b16 %v4447
    %v4539 = vunpack.c.l.b16 %v4448
    %v4540 = vunpack.c.h.b16 %v4448
    %v4541 = vunpack.c.l.b16 %v4449
    %v4542 = vunpack.c.l.b16 %v4450
    %v4543 = vunpack.c.h.b16 %v4450
    %v4544 = vunpack.c.l.b16 %v4451
    %v4545 = vunpack.c.l.b16 %v4452
    %v4546 = vunpack.c.h.b16 %v4452
    %v4547 = vunpack.c.l.b16 %v4453
    %v4548 = vunpack.c.l.b16 %v4454
    %v4549 = vunpack.c.h.b16 %v4454
    %v4550 = vunpack.c.l.b16 %v4455
    %v4551 = vunpack.c.l.b16 %v4456
    %v4552 = vunpack.c.h.b16 %v4456
    %v4553 = vunpack.c.l.b16 %v4457
    %v4554 = vunpack.c.l.b16 %v4458
    %v4555 = vunpack.c.h.b16 %v4458
    %v4556 = vunpack.c.l.b16 %v4459
    %v4557 = vunpack.c.l.b16 %v4460
    %v4558 = vunpack.c.h.b16 %v4460
    %v4559 = vunpack.c.l.b16 %v4461
    %v4560 = vunpack.c.l.b16 %v4462
    %v4561 = vunpack.c.h.b16 %v4462
    %v4562 = vunpack.c.l.b16 %v4463
    %v4563 = vpack.c.b16 %v4518, %v4515
    %v4564 = vpack.c.b16 %v4519, %v4516
    %v4565 = vpack.c.b16 %v4520, %v4517
    %v4566 = vpack.c.b16 %v4524, %v4521
    %v4567 = vpack.c.b16 %v4525, %v4522
    %v4568 = vpack.c.b16 %v4526, %v4523
    %v4569 = vpack.c.b16 %v4530, %v4527
    %v4570 = vpack.c.b16 %v4531, %v4528
    %v4571 = vpack.c.b16 %v4532, %v4529
    %v4572 = vpack.c.b16 %v4536, %v4533
    %v4573 = vpack.c.b16 %v4537, %v4534
    %v4574 = vpack.c.b16 %v4538, %v4535
    %v4575 = vpack.c.b16 %v4542, %v4539
    %v4576 = vpack.c.b16 %v4543, %v4540
    %v4577 = vpack.c.b16 %v4544, %v4541
    %v4578 = vpack.c.b16 %v4548, %v4545
    %v4579 = vpack.c.b16 %v4549, %v4546
    %v4580 = vpack.c.b16 %v4550, %v4547
    %v4581 = vpack.c.b16 %v4554, %v4551
    %v4582 = vpack.c.b16 %v4555, %v4552
    %v4583 = vpack.c.b16 %v4556, %v4553
    %v4584 = vpack.c.b16 %v4560, %v4557
    %v4585 = vpack.c.b16 %v4561, %v4558
    %v4586 = vpack.c.b16 %v4562, %v4559
    %4611 = vmatprep.subr.bf16.mxu0 %v4564
    %4612 = vmatpush1.bf16.msra.mxu0 %v4563
    %4613 = vmatprep.subr.bf16.mxu0 %v4567
    %4614 = vmatpush1.bf16.msra.mxu0 %v4566
    %4615 = vmatprep.subr.bf16.mxu0 %v4570
    %4616 = vmatpush1.bf16.msra.mxu0 %v4569
    %4617 = vmatprep.subr.bf16.mxu0 %v4573
    %4618 = vmatpush1.bf16.msra.mxu0 %v4572
    %4619 = vmatprep.subr.bf16.mxu0 %v4576
    %4620 = vmatpush1.bf16.msra.mxu0 %v4575
    %4621 = vmatprep.subr.bf16.mxu0 %v4579
    %4622 = vmatpush1.bf16.msra.mxu0 %v4578
    %4623 = vmatprep.subr.bf16.mxu0 %v4582
    %4624 = vmatpush1.bf16.msra.mxu0 %v4581
    %4625 = vmatprep.subr.bf16.mxu0 %v4585
    %4626 = vmatpush1.bf16.msra.mxu0 %v4584
    %4627 = vmatprep.subr.bf16.mxu0 0
    %4628 = vmatpush1.bf16.msra.mxu0 0
    %4629 = vmatprep.subr.bf16.mxu0 0
    %4630 = vmatpush1.bf16.msra.mxu0 0
    %4631 = vmatprep.subr.bf16.mxu0 0
    %4632 = vmatpush1.bf16.msra.mxu0 0
    %4633 = vmatprep.subr.bf16.mxu0 0
    %4634 = vmatpush1.bf16.msra.mxu0 0
    %4635 = vmatprep.subr.bf16.mxu0 0
    %4636 = vmatpush1.bf16.msra.mxu0 0
    %4637 = vmatprep.subr.bf16.mxu0 0
    %4638 = vmatpush1.bf16.msra.mxu0 0
    %4639 = vmatprep.subr.bf16.mxu0 0
    %4640 = vmatpush1.bf16.msra.mxu0 0
    %4641 = vmatprep.subr.bf16.mxu0 0
    %4642 = vmatpush1.bf16.msra.mxu0 0
    %4643 = vmatprep.mubr.bf16.mxu0 0
    %4644 = vmatmul.mubr.bf16.gmra.mrb[0].mxu0 %v4464
    %v4645 = vpop.f32.mrb[0].mxu0
    %v4646 = vadd.f32 %v4471, %v4645
    %v4647 = vpop.f32.mrb[0].mxu0
    %v4648 = vadd.f32 %v4475, %v4647
    %v4649 = vpop.f32.mrb[0].mxu0
    %v4650 = vadd.f32 %v4471, %v4649
    %v4651 = vpop.f32.mrb[0].mxu0
    %v4652 = vadd.f32 %v4475, %v4651
    %4653 = vdwg.mxu0
    %4654 = vmatprep.subr.bf16.mxu0 0
    %4655 = vmatpush1.bf16.msra.mxu0 %v4565
    %4656 = vmatprep.subr.bf16.mxu0 0
    %4657 = vmatpush1.bf16.msra.mxu0 %v4568
    %4658 = vmatprep.subr.bf16.mxu0 0
    %4659 = vmatpush1.bf16.msra.mxu0 %v4571
    %4660 = vmatprep.subr.bf16.mxu0 0
    %4661 = vmatpush1.bf16.msra.mxu0 %v4574
    %4662 = vmatprep.subr.bf16.mxu0 0
    %4663 = vmatpush1.bf16.msra.mxu0 %v4577
    %4664 = vmatprep.subr.bf16.mxu0 0
    %4665 = vmatpush1.bf16.msra.mxu0 %v4580
    %4666 = vmatprep.subr.bf16.mxu0 0
    %4667 = vmatpush1.bf16.msra.mxu0 %v4583
    %4668 = vmatprep.subr.bf16.mxu0 0
    %4669 = vmatpush1.bf16.msra.mxu0 %v4586
    %4670 = vmatprep.subr.bf16.mxu0 0
    %4671 = vmatpush1.bf16.msra.mxu0 0
    %4672 = vmatprep.subr.bf16.mxu0 0
    %4673 = vmatpush1.bf16.msra.mxu0 0
    %4674 = vmatprep.subr.bf16.mxu0 0
    %4675 = vmatpush1.bf16.msra.mxu0 0
    %4676 = vmatprep.subr.bf16.mxu0 0
    %4677 = vmatpush1.bf16.msra.mxu0 0
    %4678 = vmatprep.subr.bf16.mxu0 0
    %4679 = vmatpush1.bf16.msra.mxu0 0
    %4680 = vmatprep.subr.bf16.mxu0 0
    %4681 = vmatpush1.bf16.msra.mxu0 0
    %4682 = vmatprep.subr.bf16.mxu0 0
    %4683 = vmatpush1.bf16.msra.mxu0 0
    %4684 = vmatprep.subr.bf16.mxu0 0
    %4685 = vmatpush1.bf16.msra.mxu0 0
    %4686 = vmatprep.mubr.bf16.mxu0 0
    %4687 = vmatmul.mubr.bf16.gmra.mrb[0].mxu0 %v4464
    %v4688 = vpop.f32.mrb[0].mxu0
    %v4689 = vadd.f32 %v4479, %v4688
    %v4690 = vpop.f32.mrb[0].mxu0
    %v4691 = vpop.f32.mrb[0].mxu0
    %v4692 = vadd.f32 %v4479, %v4691
    %v4693 = vpop.f32.mrb[0].mxu0
    %4694 = vdwg.mxu0
    %v4695 = vpack.c.bf16 %v4650, %v4646
    %v4696 = vpack.c.bf16 %v4652, %v4648
    %v4697 = vpack.c.bf16 %v4692, %v4689
    %v4699 = vunpack.c.l.b16 %v4695
    %v4700 = vunpack.c.h.b16 %v4695
    %v4701 = vpack.c.b16 %v4699, %v4699
    %v4702 = vpack.c.b16 %v4700, %v4700
    %4703 = vrot.lane.b32.xlu0 %v4701, 64
    %v4704 = vpop.permute.xlu0 %4703
    %4705 = vrot.lane.b32.xlu0 %v4702, 64
    %v4706 = vpop.permute.xlu0 %4705
    %v4708 = vunpack.c.l.b16 %v4696
    %v4709 = vunpack.c.h.b16 %v4696
    %v4710 = vpack.c.b16 %v4708, %v4708
    %v4711 = vpack.c.b16 %v4709, %v4709
    %4712 = vrot.lane.b32.xlu0 %v4710, 64
    %v4713 = vpop.permute.xlu0 %4712
    %4714 = vrot.lane.b32.xlu0 %v4711, 64
    %v4715 = vpop.permute.xlu0 %4714
    %v4717 = vunpack.c.l.b16 %v4697
    %v4718 = vunpack.c.h.b16 %v4697
    %v4719 = vpack.c.b16 %v4717, %v4717
    %v4720 = vpack.c.b16 %v4718, %v4718
    %4721 = vrot.lane.b32.xlu0 %v4719, 64
    %v4722 = vpop.permute.xlu0 %4721
    %4723 = vrot.lane.b32.xlu0 %v4720, 64
    %v4724 = vpop.permute.xlu0 %4723
    %v4726 = vsel %vm406, %v4701, 0
    %v4729 = vsel %vm406, %v4710, 0
    %4731 = vmatprep.subr.bf16.mxu0 0
    %4732 = vmatpush1.bf16.xpose.msra.mxu0 %v4729
    %4733 = vmatprep.subr.bf16.mxu0 0
    %4734 = vmatpush1.bf16.xpose.msra.mxu0 0
    %4735 = vmatprep.subr.bf16.mxu0 0
    %4736 = vmatpush1.bf16.xpose.msra.mxu0 0
    %4737 = vmatprep.subr.bf16.mxu0 0
    %4738 = vmatpush1.bf16.xpose.msra.mxu0 0
    %4739 = vmatprep.subr.bf16.mxu0 0
    %4740 = vmatpush1.bf16.xpose.msra.mxu0 0
    %4741 = vmatprep.subr.bf16.mxu0 0
    %4742 = vmatpush1.bf16.xpose.msra.mxu0 0
    %4743 = vmatprep.subr.bf16.mxu0 0
    %4744 = vmatpush1.bf16.xpose.msra.mxu0 0
    %4745 = vmatprep.subr.bf16.mxu0 0
    %4746 = vmatpush1.bf16.xpose.msra.mxu0 0
    %4747 = vmatprep.subr.bf16.mxu0 0
    %4748 = vmatpush1.bf16.xpose.msra.mxu0 0
    %4749 = vmatprep.subr.bf16.mxu0 0
    %4750 = vmatpush1.bf16.xpose.msra.mxu0 0
    %4751 = vmatprep.subr.bf16.mxu0 0
    %4752 = vmatpush1.bf16.xpose.msra.mxu0 0
    %4753 = vmatprep.subr.bf16.mxu0 0
    %4754 = vmatpush1.bf16.xpose.msra.mxu0 0
    %4755 = vmatprep.subr.bf16.mxu0 0
    %4756 = vmatpush1.bf16.xpose.msra.mxu0 0
    %4757 = vmatprep.subr.bf16.mxu0 0
    %4758 = vmatpush1.bf16.xpose.msra.mxu0 0
    %4759 = vmatprep.subr.bf16.mxu0 0
    %4760 = vmatpush1.bf16.xpose.msra.mxu0 0
    %4761 = vmatprep.subr.bf16.mxu0 0
    %4762 = vmatpush1.bf16.xpose.msra.mxu0 0
    %4763 = vmatprep.mubr.bf16.mxu0 0
    %4764 = vmatmul.mubr.bf16.gmra.mrb[0].mxu0 %v4726
    %v4765 = vpop.f32.mrb[0].mxu0
    %v4766 = vadd.f32 0.0, %v4765
    %v4767 = vpop.f32.mrb[0].mxu0
    %v4768 = vpop.f32.mrb[0].mxu0
    %v4769 = vpop.f32.mrb[0].mxu0
    %4770 = vdwg.mxu0
    %v4772 = vsel %vm406, %v4702, 0
    %v4775 = vsel %vm406, %v4711, 0
    %4777 = vmatprep.subr.bf16.mxu0 0
    %4778 = vmatpush1.bf16.xpose.msra.mxu0 %v4775
    %4779 = vmatprep.subr.bf16.mxu0 0
    %4780 = vmatpush1.bf16.xpose.msra.mxu0 0
    %4781 = vmatprep.subr.bf16.mxu0 0
    %4782 = vmatpush1.bf16.xpose.msra.mxu0 0
    %4783 = vmatprep.subr.bf16.mxu0 0
    %4784 = vmatpush1.bf16.xpose.msra.mxu0 0
    %4785 = vmatprep.subr.bf16.mxu0 0
    %4786 = vmatpush1.bf16.xpose.msra.mxu0 0
    %4787 = vmatprep.subr.bf16.mxu0 0
    %4788 = vmatpush1.bf16.xpose.msra.mxu0 0
    %4789 = vmatprep.subr.bf16.mxu0 0
    %4790 = vmatpush1.bf16.xpose.msra.mxu0 0
    %4791 = vmatprep.subr.bf16.mxu0 0
    %4792 = vmatpush1.bf16.xpose.msra.mxu0 0
    %4793 = vmatprep.subr.bf16.mxu0 0
    %4794 = vmatpush1.bf16.xpose.msra.mxu0 0
    %4795 = vmatprep.subr.bf16.mxu0 0
    %4796 = vmatpush1.bf16.xpose.msra.mxu0 0
    %4797 = vmatprep.subr.bf16.mxu0 0
    %4798 = vmatpush1.bf16.xpose.msra.mxu0 0
    %4799 = vmatprep.subr.bf16.mxu0 0
    %4800 = vmatpush1.bf16.xpose.msra.mxu0 0
    %4801 = vmatprep.subr.bf16.mxu0 0
    %4802 = vmatpush1.bf16.xpose.msra.mxu0 0
    %4803 = vmatprep.subr.bf16.mxu0 0
    %4804 = vmatpush1.bf16.xpose.msra.mxu0 0
    %4805 = vmatprep.subr.bf16.mxu0 0
    %4806 = vmatpush1.bf16.xpose.msra.mxu0 0
    %4807 = vmatprep.subr.bf16.mxu0 0
    %4808 = vmatpush1.bf16.xpose.msra.mxu0 0
    %4809 = vmatprep.mubr.bf16.mxu0 0
    %4810 = vmatmul.mubr.bf16.gmra.mrb[0].mxu0 %v4772
    %v4811 = vpop.f32.mrb[0].mxu0
    %v4812 = vadd.f32 0.0, %v4811
    %v4813 = vpop.f32.mrb[0].mxu0
    %v4814 = vpop.f32.mrb[0].mxu0
    %v4815 = vpop.f32.mrb[0].mxu0
    %4816 = vdwg.mxu0
    %v4818 = vsel %vm406, %v4704, 0
    %v4821 = vsel %vm406, %v4713, 0
    %4823 = vmatprep.subr.bf16.mxu0 0
    %4824 = vmatpush1.bf16.xpose.msra.mxu0 %v4821
    %4825 = vmatprep.subr.bf16.mxu0 0
    %4826 = vmatpush1.bf16.xpose.msra.mxu0 0
    %4827 = vmatprep.subr.bf16.mxu0 0
    %4828 = vmatpush1.bf16.xpose.msra.mxu0 0
    %4829 = vmatprep.subr.bf16.mxu0 0
    %4830 = vmatpush1.bf16.xpose.msra.mxu0 0
    %4831 = vmatprep.subr.bf16.mxu0 0
    %4832 = vmatpush1.bf16.xpose.msra.mxu0 0
    %4833 = vmatprep.subr.bf16.mxu0 0
    %4834 = vmatpush1.bf16.xpose.msra.mxu0 0
    %4835 = vmatprep.subr.bf16.mxu0 0
    %4836 = vmatpush1.bf16.xpose.msra.mxu0 0
    %4837 = vmatprep.subr.bf16.mxu0 0
    %4838 = vmatpush1.bf16.xpose.msra.mxu0 0
    %4839 = vmatprep.subr.bf16.mxu0 0
    %4840 = vmatpush1.bf16.xpose.msra.mxu0 0
    %4841 = vmatprep.subr.bf16.mxu0 0
    %4842 = vmatpush1.bf16.xpose.msra.mxu0 0
    %4843 = vmatprep.subr.bf16.mxu0 0
    %4844 = vmatpush1.bf16.xpose.msra.mxu0 0
    %4845 = vmatprep.subr.bf16.mxu0 0
    %4846 = vmatpush1.bf16.xpose.msra.mxu0 0
    %4847 = vmatprep.subr.bf16.mxu0 0
    %4848 = vmatpush1.bf16.xpose.msra.mxu0 0
    %4849 = vmatprep.subr.bf16.mxu0 0
    %4850 = vmatpush1.bf16.xpose.msra.mxu0 0
    %4851 = vmatprep.subr.bf16.mxu0 0
    %4852 = vmatpush1.bf16.xpose.msra.mxu0 0
    %4853 = vmatprep.subr.bf16.mxu0 0
    %4854 = vmatpush1.bf16.xpose.msra.mxu0 0
    %4855 = vmatprep.mubr.bf16.mxu0 0
    %4856 = vmatmul.mubr.bf16.gmra.mrb[0].mxu0 %v4818
    %v4857 = vpop.f32.mrb[0].mxu0
    %v4858 = vadd.f32 0.0, %v4857
    %v4859 = vpop.f32.mrb[0].mxu0
    %v4860 = vpop.f32.mrb[0].mxu0
    %v4861 = vpop.f32.mrb[0].mxu0
    %4862 = vdwg.mxu0
    %v4864 = vsel %vm406, %v4706, 0
    %v4867 = vsel %vm406, %v4715, 0
    %4869 = vmatprep.subr.bf16.mxu0 0
    %4870 = vmatpush1.bf16.xpose.msra.mxu0 %v4867
    %4871 = vmatprep.subr.bf16.mxu0 0
    %4872 = vmatpush1.bf16.xpose.msra.mxu0 0
    %4873 = vmatprep.subr.bf16.mxu0 0
    %4874 = vmatpush1.bf16.xpose.msra.mxu0 0
    %4875 = vmatprep.subr.bf16.mxu0 0
    %4876 = vmatpush1.bf16.xpose.msra.mxu0 0
    %4877 = vmatprep.subr.bf16.mxu0 0
    %4878 = vmatpush1.bf16.xpose.msra.mxu0 0
    %4879 = vmatprep.subr.bf16.mxu0 0
    %4880 = vmatpush1.bf16.xpose.msra.mxu0 0
    %4881 = vmatprep.subr.bf16.mxu0 0
    %4882 = vmatpush1.bf16.xpose.msra.mxu0 0
    %4883 = vmatprep.subr.bf16.mxu0 0
    %4884 = vmatpush1.bf16.xpose.msra.mxu0 0
    %4885 = vmatprep.subr.bf16.mxu0 0
    %4886 = vmatpush1.bf16.xpose.msra.mxu0 0
    %4887 = vmatprep.subr.bf16.mxu0 0
    %4888 = vmatpush1.bf16.xpose.msra.mxu0 0
    %4889 = vmatprep.subr.bf16.mxu0 0
    %4890 = vmatpush1.bf16.xpose.msra.mxu0 0
    %4891 = vmatprep.subr.bf16.mxu0 0
    %4892 = vmatpush1.bf16.xpose.msra.mxu0 0
    %4893 = vmatprep.subr.bf16.mxu0 0
    %4894 = vmatpush1.bf16.xpose.msra.mxu0 0
    %4895 = vmatprep.subr.bf16.mxu0 0
    %4896 = vmatpush1.bf16.xpose.msra.mxu0 0
    %4897 = vmatprep.subr.bf16.mxu0 0
    %4898 = vmatpush1.bf16.xpose.msra.mxu0 0
    %4899 = vmatprep.subr.bf16.mxu0 0
    %4900 = vmatpush1.bf16.xpose.msra.mxu0 0
    %4901 = vmatprep.mubr.bf16.mxu0 0
    %4902 = vmatmul.mubr.bf16.gmra.mrb[0].mxu0 %v4864
    %v4903 = vpop.f32.mrb[0].mxu0
    %v4904 = vadd.f32 0.0, %v4903
    %v4905 = vpop.f32.mrb[0].mxu0
    %v4906 = vpop.f32.mrb[0].mxu0
    %v4907 = vpop.f32.mrb[0].mxu0
    %4908 = vdwg.mxu0
    %v4909 = vmul.f32 %v4766, 0.25
    %v4910 = vmul.f32 %v4812, 0.25
    %v4911 = vmul.f32 %v4858, 0.25
    %v4912 = vmul.f32 %v4904, 0.25
    %v4913 = vadd.f32 %v4909, %v105
    %v4914 = vadd.f32 %v4910, %v105
    %v4915 = vadd.f32 %v4911, %v105
    %v4916 = vadd.f32 %v4912, %v105
    %v4917 = vsel %vm595, %v4913, -inf
    %4918 = vmax.xlane.f32.xlu0 %v4917
    %v4919 = vpop.xlane.xlu0 %4918
    %v4920 = vsel %vm595, %v4914, -inf
    %4921 = vmax.xlane.f32.xlu0 %v4920
    %v4922 = vpop.xlane.xlu0 %4921
    %v4923 = vsel %vm595, %v4915, -inf
    %4924 = vmax.xlane.f32.xlu0 %v4923
    %v4925 = vpop.xlane.xlu0 %4924
    %v4926 = vsel %vm595, %v4916, -inf
    %4927 = vmax.xlane.f32.xlu0 %v4926
    %v4928 = vpop.xlane.xlu0 %4927
    %v4929 = vsub.f32 %v4913, %v4919
    %v4930 = vsub.f32 %v4914, %v4922
    %v4931 = vsub.f32 %v4915, %v4925
    %v4932 = vsub.f32 %v4916, %v4928
    %v4933 = vmul.f32 %v4929, 1.442695
    %v4934 = vpow.pop %v4933
    %v4935 = vmul.f32 %v4930, 1.442695
    %v4936 = vpow.pop %v4935
    %v4937 = vmul.f32 %v4931, 1.442695
    %v4938 = vpow.pop %v4937
    %v4939 = vmul.f32 %v4932, 1.442695
    %v4940 = vpow.pop %v4939
    %v4941 = vsel %vm595, %v4934, 0.0
    %4942 = vadd.xlane.f32.xlu0 %v4941
    %v4943 = vpop.xlane.xlu0 %4942
    %v4944 = vsel %vm595, %v4936, 0.0
    %4945 = vadd.xlane.f32.xlu0 %v4944
    %v4946 = vpop.xlane.xlu0 %4945
    %v4947 = vsel %vm595, %v4938, 0.0
    %4948 = vadd.xlane.f32.xlu0 %v4947
    %v4949 = vpop.xlane.xlu0 %4948
    %v4950 = vsel %vm595, %v4940, 0.0
    %4951 = vadd.xlane.f32.xlu0 %v4950
    %v4952 = vpop.xlane.xlu0 %4951
    %v4953 = vrcp.pop %v4943
    %v4954 = vrcp.pop %v4946
    %v4955 = vrcp.pop %v4949
    %v4956 = vrcp.pop %v4952
    %v4957 = vmul.f32 %v4934, %v4953
    %v4958 = vmul.f32 %v4936, %v4954
    %v4959 = vmul.f32 %v4938, %v4955
    %v4960 = vmul.f32 %v4940, %v4956
    %v4961 = vpack.c.bf16 %v4957, %v4957
    %v4962 = vpack.c.bf16 %v4958, %v4958
    %v4963 = vpack.c.bf16 %v4959, %v4959
    %v4964 = vpack.c.bf16 %v4960, %v4960
    %v4966 = vsel %vm595, %v4961, 0
    %v4969 = vsel %vm647, %v4719, 0
    %4971 = vmatprep.subr.bf16.mxu0 0
    %4972 = vmatpush1.bf16.msra.mxu0 %v4969
    %4973 = vmatprep.subr.bf16.mxu0 0
    %4974 = vmatpush1.bf16.msra.mxu0 0
    %4975 = vmatprep.subr.bf16.mxu0 0
    %4976 = vmatpush1.bf16.msra.mxu0 0
    %4977 = vmatprep.subr.bf16.mxu0 0
    %4978 = vmatpush1.bf16.msra.mxu0 0
    %4979 = vmatprep.subr.bf16.mxu0 0
    %4980 = vmatpush1.bf16.msra.mxu0 0
    %4981 = vmatprep.subr.bf16.mxu0 0
    %4982 = vmatpush1.bf16.msra.mxu0 0
    %4983 = vmatprep.subr.bf16.mxu0 0
    %4984 = vmatpush1.bf16.msra.mxu0 0
    %4985 = vmatprep.subr.bf16.mxu0 0
    %4986 = vmatpush1.bf16.msra.mxu0 0
    %4987 = vmatprep.subr.bf16.mxu0 0
    %4988 = vmatpush1.bf16.msra.mxu0 0
    %4989 = vmatprep.subr.bf16.mxu0 0
    %4990 = vmatpush1.bf16.msra.mxu0 0
    %4991 = vmatprep.subr.bf16.mxu0 0
    %4992 = vmatpush1.bf16.msra.mxu0 0
    %4993 = vmatprep.subr.bf16.mxu0 0
    %4994 = vmatpush1.bf16.msra.mxu0 0
    %4995 = vmatprep.subr.bf16.mxu0 0
    %4996 = vmatpush1.bf16.msra.mxu0 0
    %4997 = vmatprep.subr.bf16.mxu0 0
    %4998 = vmatpush1.bf16.msra.mxu0 0
    %4999 = vmatprep.subr.bf16.mxu0 0
    %5000 = vmatpush1.bf16.msra.mxu0 0
    %5001 = vmatprep.subr.bf16.mxu0 0
    %5002 = vmatpush1.bf16.msra.mxu0 0
    %5003 = vmatprep.mubr.bf16.mxu0 0
    %5004 = vmatmul.mubr.bf16.gmra.mrb[0].mxu0 %v4966
    %v5005 = vpop.f32.mrb[0].mxu0
    %v5006 = vadd.f32 0.0, %v5005
    %v5007 = vpop.f32.mrb[0].mxu0
    %v5008 = vpop.f32.mrb[0].mxu0
    %v5009 = vpop.f32.mrb[0].mxu0
    %5010 = vdwg.mxu0
    %v5012 = vsel %vm595, %v4962, 0
    %v5015 = vsel %vm647, %v4720, 0
    %5017 = vmatprep.subr.bf16.mxu0 0
    %5018 = vmatpush1.bf16.msra.mxu0 %v5015
    %5019 = vmatprep.subr.bf16.mxu0 0
    %5020 = vmatpush1.bf16.msra.mxu0 0
    %5021 = vmatprep.subr.bf16.mxu0 0
    %5022 = vmatpush1.bf16.msra.mxu0 0
    %5023 = vmatprep.subr.bf16.mxu0 0
    %5024 = vmatpush1.bf16.msra.mxu0 0
    %5025 = vmatprep.subr.bf16.mxu0 0
    %5026 = vmatpush1.bf16.msra.mxu0 0
    %5027 = vmatprep.subr.bf16.mxu0 0
    %5028 = vmatpush1.bf16.msra.mxu0 0
    %5029 = vmatprep.subr.bf16.mxu0 0
    %5030 = vmatpush1.bf16.msra.mxu0 0
    %5031 = vmatprep.subr.bf16.mxu0 0
    %5032 = vmatpush1.bf16.msra.mxu0 0
    %5033 = vmatprep.subr.bf16.mxu0 0
    %5034 = vmatpush1.bf16.msra.mxu0 0
    %5035 = vmatprep.subr.bf16.mxu0 0
    %5036 = vmatpush1.bf16.msra.mxu0 0
    %5037 = vmatprep.subr.bf16.mxu0 0
    %5038 = vmatpush1.bf16.msra.mxu0 0
    %5039 = vmatprep.subr.bf16.mxu0 0
    %5040 = vmatpush1.bf16.msra.mxu0 0
    %5041 = vmatprep.subr.bf16.mxu0 0
    %5042 = vmatpush1.bf16.msra.mxu0 0
    %5043 = vmatprep.subr.bf16.mxu0 0
    %5044 = vmatpush1.bf16.msra.mxu0 0
    %5045 = vmatprep.subr.bf16.mxu0 0
    %5046 = vmatpush1.bf16.msra.mxu0 0
    %5047 = vmatprep.subr.bf16.mxu0 0
    %5048 = vmatpush1.bf16.msra.mxu0 0
    %5049 = vmatprep.mubr.bf16.mxu0 0
    %5050 = vmatmul.mubr.bf16.gmra.mrb[0].mxu0 %v5012
    %v5051 = vpop.f32.mrb[0].mxu0
    %v5052 = vadd.f32 0.0, %v5051
    %v5053 = vpop.f32.mrb[0].mxu0
    %v5054 = vpop.f32.mrb[0].mxu0
    %v5055 = vpop.f32.mrb[0].mxu0
    %5056 = vdwg.mxu0
    %v5058 = vsel %vm595, %v4963, 0
    %v5061 = vsel %vm647, %v4722, 0
    %5063 = vmatprep.subr.bf16.mxu0 0
    %5064 = vmatpush1.bf16.msra.mxu0 %v5061
    %5065 = vmatprep.subr.bf16.mxu0 0
    %5066 = vmatpush1.bf16.msra.mxu0 0
    %5067 = vmatprep.subr.bf16.mxu0 0
    %5068 = vmatpush1.bf16.msra.mxu0 0
    %5069 = vmatprep.subr.bf16.mxu0 0
    %5070 = vmatpush1.bf16.msra.mxu0 0
    %5071 = vmatprep.subr.bf16.mxu0 0
    %5072 = vmatpush1.bf16.msra.mxu0 0
    %5073 = vmatprep.subr.bf16.mxu0 0
    %5074 = vmatpush1.bf16.msra.mxu0 0
    %5075 = vmatprep.subr.bf16.mxu0 0
    %5076 = vmatpush1.bf16.msra.mxu0 0
    %5077 = vmatprep.subr.bf16.mxu0 0
    %5078 = vmatpush1.bf16.msra.mxu0 0
    %5079 = vmatprep.subr.bf16.mxu0 0
    %5080 = vmatpush1.bf16.msra.mxu0 0
    %5081 = vmatprep.subr.bf16.mxu0 0
    %5082 = vmatpush1.bf16.msra.mxu0 0
    %5083 = vmatprep.subr.bf16.mxu0 0
    %5084 = vmatpush1.bf16.msra.mxu0 0
    %5085 = vmatprep.subr.bf16.mxu0 0
    %5086 = vmatpush1.bf16.msra.mxu0 0
    %5087 = vmatprep.subr.bf16.mxu0 0
    %5088 = vmatpush1.bf16.msra.mxu0 0
    %5089 = vmatprep.subr.bf16.mxu0 0
    %5090 = vmatpush1.bf16.msra.mxu0 0
    %5091 = vmatprep.subr.bf16.mxu0 0
    %5092 = vmatpush1.bf16.msra.mxu0 0
    %5093 = vmatprep.subr.bf16.mxu0 0
    %5094 = vmatpush1.bf16.msra.mxu0 0
    %5095 = vmatprep.mubr.bf16.mxu0 0
    %5096 = vmatmul.mubr.bf16.gmra.mrb[0].mxu0 %v5058
    %v5097 = vpop.f32.mrb[0].mxu0
    %v5098 = vadd.f32 0.0, %v5097
    %v5099 = vpop.f32.mrb[0].mxu0
    %v5100 = vpop.f32.mrb[0].mxu0
    %v5101 = vpop.f32.mrb[0].mxu0
    %5102 = vdwg.mxu0
    %v5104 = vsel %vm595, %v4964, 0
    %v5107 = vsel %vm647, %v4724, 0
    %5109 = vmatprep.subr.bf16.mxu0 0
    %5110 = vmatpush1.bf16.msra.mxu0 %v5107
    %5111 = vmatprep.subr.bf16.mxu0 0
    %5112 = vmatpush1.bf16.msra.mxu0 0
    %5113 = vmatprep.subr.bf16.mxu0 0
    %5114 = vmatpush1.bf16.msra.mxu0 0
    %5115 = vmatprep.subr.bf16.mxu0 0
    %5116 = vmatpush1.bf16.msra.mxu0 0
    %5117 = vmatprep.subr.bf16.mxu0 0
    %5118 = vmatpush1.bf16.msra.mxu0 0
    %5119 = vmatprep.subr.bf16.mxu0 0
    %5120 = vmatpush1.bf16.msra.mxu0 0
    %5121 = vmatprep.subr.bf16.mxu0 0
    %5122 = vmatpush1.bf16.msra.mxu0 0
    %5123 = vmatprep.subr.bf16.mxu0 0
    %5124 = vmatpush1.bf16.msra.mxu0 0
    %5125 = vmatprep.subr.bf16.mxu0 0
    %5126 = vmatpush1.bf16.msra.mxu0 0
    %5127 = vmatprep.subr.bf16.mxu0 0
    %5128 = vmatpush1.bf16.msra.mxu0 0
    %5129 = vmatprep.subr.bf16.mxu0 0
    %5130 = vmatpush1.bf16.msra.mxu0 0
    %5131 = vmatprep.subr.bf16.mxu0 0
    %5132 = vmatpush1.bf16.msra.mxu0 0
    %5133 = vmatprep.subr.bf16.mxu0 0
    %5134 = vmatpush1.bf16.msra.mxu0 0
    %5135 = vmatprep.subr.bf16.mxu0 0
    %5136 = vmatpush1.bf16.msra.mxu0 0
    %5137 = vmatprep.subr.bf16.mxu0 0
    %5138 = vmatpush1.bf16.msra.mxu0 0
    %5139 = vmatprep.subr.bf16.mxu0 0
    %5140 = vmatpush1.bf16.msra.mxu0 0
    %5141 = vmatprep.mubr.bf16.mxu0 0
    %5142 = vmatmul.mubr.bf16.gmra.mrb[0].mxu0 %v5104
    %v5143 = vpop.f32.mrb[0].mxu0
    %v5144 = vadd.f32 0.0, %v5143
    %v5145 = vpop.f32.mrb[0].mxu0
    %v5146 = vpop.f32.mrb[0].mxu0
    %v5147 = vpop.f32.mrb[0].mxu0
    %5148 = vdwg.mxu0
    %5151 = vrot.lane.b32.xlu0 %v5098, 64
    %v5152 = vpop.permute.xlu0 %5151
    %5153 = vrot.lane.b32.xlu0 %v5144, 64
    %v5154 = vpop.permute.xlu0 %5153
    %v5157 = vsel %vm406, %v5006, %v5152
    %v5158 = vsel %vm406, %v5052, %v5154
    %s5159 = scalar_lea.vmem %s14, 64
    %v5160 = vld [vmem:[%s5159] sm:$0xf]
    %v5161 = vld [vmem:[%s5159 + $0x4] sm:$0xf]
    %v5162 = vld [vmem:[%s5159 + $0x8] sm:$0xf]
    %v5163 = vld [vmem:[%s5159 + $0xc] sm:$0xf]
    %v5164 = vld [vmem:[%s5159 + $0x10] sm:$0xf]
    %v5165 = vld [vmem:[%s5159 + $0x14] sm:$0xf]
    %v5166 = vld [vmem:[%s5159 + $0x18] sm:$0xf]
    %v5167 = vld [vmem:[%s5159 + $0x1c] sm:$0xf]
    %v5168 = vld [vmem:[%s5159 + $0x20] sm:$0xf]
    %v5169 = vld [vmem:[%s5159 + $0x24] sm:$0xf]
    %v5170 = vld [vmem:[%s5159 + $0x28] sm:$0xf]
    %v5171 = vld [vmem:[%s5159 + $0x2c] sm:$0xf]
    %v5172 = vld [vmem:[%s5159 + $0x30] sm:$0xf]
    %v5173 = vld [vmem:[%s5159 + $0x34] sm:$0xf]
    %v5174 = vld [vmem:[%s5159 + $0x38] sm:$0xf]
    %v5175 = vld [vmem:[%s5159 + $0x3c] sm:$0xf]
    %v5176 = vpack.c.bf16 %v5158, %v5157
    %s5177 = scalar_lea.vmem %s15, 1
    %v5178 = vld [vmem:[%s5177] sm:$0x1]
    %v5180 = vlaneseq
    %v5181 = vshrl.u32 %v5180, 7
    %v5182 = vsub.s32 0, %v5181
    %v5183 = vrot.slane %v5178, %v5182
    %v5201 = vunpack.c.l.b16 %v5160
    %v5202 = vunpack.c.l.b16 %v5161
    %v5203 = vunpack.c.l.b16 %v5162
    %v5204 = vunpack.c.l.b16 %v5163
    %v5205 = vunpack.c.l.b16 %v5164
    %v5206 = vunpack.c.l.b16 %v5165
    %v5207 = vunpack.c.l.b16 %v5166
    %v5208 = vunpack.c.l.b16 %v5167
    %v5209 = vunpack.c.l.b16 %v5168
    %v5210 = vunpack.c.l.b16 %v5169
    %v5211 = vunpack.c.l.b16 %v5170
    %v5212 = vunpack.c.l.b16 %v5171
    %v5213 = vunpack.c.l.b16 %v5172
    %v5214 = vunpack.c.l.b16 %v5173
    %v5215 = vunpack.c.l.b16 %v5174
    %v5216 = vunpack.c.l.b16 %v5175
    %v5217 = vpack.c.b16 %v5202, %v5201
    %v5218 = vpack.c.b16 %v5204, %v5203
    %v5219 = vpack.c.b16 %v5206, %v5205
    %v5220 = vpack.c.b16 %v5208, %v5207
    %v5221 = vpack.c.b16 %v5210, %v5209
    %v5222 = vpack.c.b16 %v5212, %v5211
    %v5223 = vpack.c.b16 %v5214, %v5213
    %v5224 = vpack.c.b16 %v5216, %v5215
    %5233 = vmatprep.subr.bf16.mxu0 0
    %5234 = vmatpush1.bf16.msra.mxu0 %v5217
    %5235 = vmatprep.subr.bf16.mxu0 0
    %5236 = vmatpush1.bf16.msra.mxu0 %v5218
    %5237 = vmatprep.subr.bf16.mxu0 0
    %5238 = vmatpush1.bf16.msra.mxu0 %v5219
    %5239 = vmatprep.subr.bf16.mxu0 0
    %5240 = vmatpush1.bf16.msra.mxu0 %v5220
    %5241 = vmatprep.subr.bf16.mxu0 0
    %5242 = vmatpush1.bf16.msra.mxu0 %v5221
    %5243 = vmatprep.subr.bf16.mxu0 0
    %5244 = vmatpush1.bf16.msra.mxu0 %v5222
    %5245 = vmatprep.subr.bf16.mxu0 0
    %5246 = vmatpush1.bf16.msra.mxu0 %v5223
    %5247 = vmatprep.subr.bf16.mxu0 0
    %5248 = vmatpush1.bf16.msra.mxu0 %v5224
    %5249 = vmatprep.subr.bf16.mxu0 0
    %5250 = vmatpush1.bf16.msra.mxu0 0
    %5251 = vmatprep.subr.bf16.mxu0 0
    %5252 = vmatpush1.bf16.msra.mxu0 0
    %5253 = vmatprep.subr.bf16.mxu0 0
    %5254 = vmatpush1.bf16.msra.mxu0 0
    %5255 = vmatprep.subr.bf16.mxu0 0
    %5256 = vmatpush1.bf16.msra.mxu0 0
    %5257 = vmatprep.subr.bf16.mxu0 0
    %5258 = vmatpush1.bf16.msra.mxu0 0
    %5259 = vmatprep.subr.bf16.mxu0 0
    %5260 = vmatpush1.bf16.msra.mxu0 0
    %5261 = vmatprep.subr.bf16.mxu0 0
    %5262 = vmatpush1.bf16.msra.mxu0 0
    %5263 = vmatprep.subr.bf16.mxu0 0
    %5264 = vmatpush1.bf16.msra.mxu0 0
    %5265 = vmatprep.mubr.bf16.mxu0 0
    %5266 = vmatmul.mubr.bf16.gmra.mrb[0].mxu0 %v5176
    %v5267 = vpop.f32.mrb[0].mxu0
    %v5268 = vadd.f32 %v5183, %v5267
    %v5269 = vpop.f32.mrb[0].mxu0
    %v5270 = vpop.f32.mrb[0].mxu0
    %v5271 = vadd.f32 %v5183, %v5270
    %v5272 = vpop.f32.mrb[0].mxu0
    %5273 = vdwg.mxu0
    %v5274 = vadd.f32 %v4427, %v5268
    %v5275 = vadd.f32 %v4428, %v5271
    %5276 = vadd.xlane.f32.xlu0 %v5274
    %v5277 = vpop.xlane.xlu0 %5276
    %5278 = vadd.xlane.f32.xlu0 %v5275
    %v5279 = vpop.xlane.xlu0 %5278
    %v5280 = vmul.f32 %v5277, 0.03125
    %v5281 = vmul.f32 %v5279, 0.03125
    %v5282 = vsub.f32 %v5274, %v5280
    %v5283 = vsub.f32 %v5275, %v5281
    %v5284 = vmul.f32 %v5282, %v110
    %v5285 = vmul.f32 %v5283, %v110
    %v5286 = vmul.f32 %v5284, %v5284
    %v5287 = vmul.f32 %v5285, %v5285
    %5288 = vadd.xlane.f32.xlu0 %v5286
    %v5289 = vpop.xlane.xlu0 %5288
    %5290 = vadd.xlane.f32.xlu0 %v5287
    %v5291 = vpop.xlane.xlu0 %5290
    %v5292 = vmul.f32 %v5289, 0.03125
    %v5293 = vmul.f32 %v5291, 0.03125
    %v5294 = vadd.f32 %v5292, 1e-05
    %v5295 = vadd.f32 %v5293, 1e-05
    %v5296 = vrsqrt.pop %v5294
    %v5297 = vrsqrt.pop %v5295
    %v5298 = vmul.f32 %v5284, %v5296
    %v5299 = vmul.f32 %v5285, %v5297
    %v5300 = vlaneseq
    %v5301 = vshrl.u32 %v5300, 7
    %v5302 = vsub.s32 0, %v5301
    %v5303 = vrot.slane %v4430, %v5302
    %v5304 = vmul.f32 %v5298, %v5303
    %v5305 = vmul.f32 %v5299, %v5303
    %v5306 = vlaneseq
    %v5307 = vshrl.u32 %v5306, 7
    %v5308 = vsub.s32 1, %v5307
    %v5309 = vrot.slane %v4430, %v5308
    %v5310 = vadd.f32 %v5304, %v5309
    %v5311 = vadd.f32 %v5305, %v5309
    %s5312 = scalar_lea.vmem %s16, 64
    %v5313 = vld [vmem:[%s5312] sm:$0xf]
    %v5314 = vld [vmem:[%s5312 + $0x4] sm:$0xf]
    %v5315 = vld [vmem:[%s5312 + $0x8] sm:$0xf]
    %v5316 = vld [vmem:[%s5312 + $0xc] sm:$0xf]
    %v5317 = vld [vmem:[%s5312 + $0x10] sm:$0xf]
    %v5318 = vld [vmem:[%s5312 + $0x14] sm:$0xf]
    %v5319 = vld [vmem:[%s5312 + $0x18] sm:$0xf]
    %v5320 = vld [vmem:[%s5312 + $0x1c] sm:$0xf]
    %v5321 = vld [vmem:[%s5312 + $0x20] sm:$0xf]
    %v5322 = vld [vmem:[%s5312 + $0x24] sm:$0xf]
    %v5323 = vld [vmem:[%s5312 + $0x28] sm:$0xf]
    %v5324 = vld [vmem:[%s5312 + $0x2c] sm:$0xf]
    %v5325 = vld [vmem:[%s5312 + $0x30] sm:$0xf]
    %v5326 = vld [vmem:[%s5312 + $0x34] sm:$0xf]
    %v5327 = vld [vmem:[%s5312 + $0x38] sm:$0xf]
    %v5328 = vld [vmem:[%s5312 + $0x3c] sm:$0xf]
    %v5329 = vpack.c.bf16 %v5311, %v5310
    %s5330 = scalar_lea.vmem %s17, 1
    %v5331 = vld [vmem:[%s5330] sm:$0x1]
    %v5333 = vlaneseq
    %v5334 = vshrl.u32 %v5333, 7
    %v5335 = vsub.s32 0, %v5334
    %v5336 = vrot.slane %v5331, %v5335
    %v5354 = vunpack.c.l.b16 %v5313
    %v5355 = vunpack.c.l.b16 %v5314
    %v5356 = vunpack.c.l.b16 %v5315
    %v5357 = vunpack.c.l.b16 %v5316
    %v5358 = vunpack.c.l.b16 %v5317
    %v5359 = vunpack.c.l.b16 %v5318
    %v5360 = vunpack.c.l.b16 %v5319
    %v5361 = vunpack.c.l.b16 %v5320
    %v5362 = vunpack.c.l.b16 %v5321
    %v5363 = vunpack.c.l.b16 %v5322
    %v5364 = vunpack.c.l.b16 %v5323
    %v5365 = vunpack.c.l.b16 %v5324
    %v5366 = vunpack.c.l.b16 %v5325
    %v5367 = vunpack.c.l.b16 %v5326
    %v5368 = vunpack.c.l.b16 %v5327
    %v5369 = vunpack.c.l.b16 %v5328
    %v5370 = vpack.c.b16 %v5355, %v5354
    %v5371 = vpack.c.b16 %v5357, %v5356
    %v5372 = vpack.c.b16 %v5359, %v5358
    %v5373 = vpack.c.b16 %v5361, %v5360
    %v5374 = vpack.c.b16 %v5363, %v5362
    %v5375 = vpack.c.b16 %v5365, %v5364
    %v5376 = vpack.c.b16 %v5367, %v5366
    %v5377 = vpack.c.b16 %v5369, %v5368
    %5386 = vmatprep.subr.bf16.mxu0 0
    %5387 = vmatpush1.bf16.msra.mxu0 %v5370
    %5388 = vmatprep.subr.bf16.mxu0 0
    %5389 = vmatpush1.bf16.msra.mxu0 %v5371
    %5390 = vmatprep.subr.bf16.mxu0 0
    %5391 = vmatpush1.bf16.msra.mxu0 %v5372
    %5392 = vmatprep.subr.bf16.mxu0 0
    %5393 = vmatpush1.bf16.msra.mxu0 %v5373
    %5394 = vmatprep.subr.bf16.mxu0 0
    %5395 = vmatpush1.bf16.msra.mxu0 %v5374
    %5396 = vmatprep.subr.bf16.mxu0 0
    %5397 = vmatpush1.bf16.msra.mxu0 %v5375
    %5398 = vmatprep.subr.bf16.mxu0 0
    %5399 = vmatpush1.bf16.msra.mxu0 %v5376
    %5400 = vmatprep.subr.bf16.mxu0 0
    %5401 = vmatpush1.bf16.msra.mxu0 %v5377
    %5402 = vmatprep.subr.bf16.mxu0 0
    %5403 = vmatpush1.bf16.msra.mxu0 0
    %5404 = vmatprep.subr.bf16.mxu0 0
    %5405 = vmatpush1.bf16.msra.mxu0 0
    %5406 = vmatprep.subr.bf16.mxu0 0
    %5407 = vmatpush1.bf16.msra.mxu0 0
    %5408 = vmatprep.subr.bf16.mxu0 0
    %5409 = vmatpush1.bf16.msra.mxu0 0
    %5410 = vmatprep.subr.bf16.mxu0 0
    %5411 = vmatpush1.bf16.msra.mxu0 0
    %5412 = vmatprep.subr.bf16.mxu0 0
    %5413 = vmatpush1.bf16.msra.mxu0 0
    %5414 = vmatprep.subr.bf16.mxu0 0
    %5415 = vmatpush1.bf16.msra.mxu0 0
    %5416 = vmatprep.subr.bf16.mxu0 0
    %5417 = vmatpush1.bf16.msra.mxu0 0
    %5418 = vmatprep.mubr.bf16.mxu0 0
    %5419 = vmatmul.mubr.bf16.gmra.mrb[0].mxu0 %v5329
    %v5420 = vpop.f32.mrb[0].mxu0
    %v5421 = vadd.f32 %v5336, %v5420
    %v5422 = vpop.f32.mrb[0].mxu0
    %v5423 = vpop.f32.mrb[0].mxu0
    %v5424 = vadd.f32 %v5336, %v5423
    %v5425 = vpop.f32.mrb[0].mxu0
    %5426 = vdwg.mxu0
    %v5427 = vpack.c.bf16 %v5424, %v5421
    %s5428 = scalar_lea.vmem %s18, 128
    %v5429 = vld [vmem:[%s5428] sm:$0xff]
    %v5430 = vld [vmem:[%s5428 + $0x8] sm:$0xff]
    %v5431 = vld [vmem:[%s5428 + $0x10] sm:$0xff]
    %v5432 = vld [vmem:[%s5428 + $0x18] sm:$0xff]
    %v5433 = vld [vmem:[%s5428 + $0x20] sm:$0xff]
    %v5434 = vld [vmem:[%s5428 + $0x28] sm:$0xff]
    %v5435 = vld [vmem:[%s5428 + $0x30] sm:$0xff]
    %v5436 = vld [vmem:[%s5428 + $0x38] sm:$0xff]
    %v5437 = vld [vmem:[%s5428 + $0x40] sm:$0xff]
    %v5438 = vld [vmem:[%s5428 + $0x48] sm:$0xff]
    %v5439 = vld [vmem:[%s5428 + $0x50] sm:$0xff]
    %v5440 = vld [vmem:[%s5428 + $0x58] sm:$0xff]
    %v5441 = vld [vmem:[%s5428 + $0x60] sm:$0xff]
    %v5442 = vld [vmem:[%s5428 + $0x68] sm:$0xff]
    %v5443 = vld [vmem:[%s5428 + $0x70] sm:$0xff]
    %v5444 = vld [vmem:[%s5428 + $0x78] sm:$0xff]
    %s5445 = scalar_lea.vmem %s19, 2
    %v5446 = vld [vmem:[%s5445] sm:$0x3]
    %v5448 = vlaneseq
    %v5449 = vshrl.u32 %v5448, 7
    %v5450 = vsub.s32 0, %v5449
    %v5451 = vrot.slane %v5446, %v5450
    %v5452 = vlaneseq
    %v5453 = vshrl.u32 %v5452, 7
    %v5454 = vsub.s32 1, %v5453
    %v5455 = vrot.slane %v5446, %v5454
    %v5474 = vunpack.c.l.b16 %v5429
    %v5475 = vunpack.c.h.b16 %v5429
    %v5476 = vunpack.c.l.b16 %v5430
    %v5477 = vunpack.c.h.b16 %v5430
    %v5478 = vunpack.c.l.b16 %v5431
    %v5479 = vunpack.c.h.b16 %v5431
    %v5480 = vunpack.c.l.b16 %v5432
    %v5481 = vunpack.c.h.b16 %v5432
    %v5482 = vunpack.c.l.b16 %v5433
    %v5483 = vunpack.c.h.b16 %v5433
    %v5484 = vunpack.c.l.b16 %v5434
    %v5485 = vunpack.c.h.b16 %v5434
    %v5486 = vunpack.c.l.b16 %v5435
    %v5487 = vunpack.c.h.b16 %v5435
    %v5488 = vunpack.c.l.b16 %v5436
    %v5489 = vunpack.c.h.b16 %v5436
    %v5490 = vunpack.c.l.b16 %v5437
    %v5491 = vunpack.c.h.b16 %v5437
    %v5492 = vunpack.c.l.b16 %v5438
    %v5493 = vunpack.c.h.b16 %v5438
    %v5494 = vunpack.c.l.b16 %v5439
    %v5495 = vunpack.c.h.b16 %v5439
    %v5496 = vunpack.c.l.b16 %v5440
    %v5497 = vunpack.c.h.b16 %v5440
    %v5498 = vunpack.c.l.b16 %v5441
    %v5499 = vunpack.c.h.b16 %v5441
    %v5500 = vunpack.c.l.b16 %v5442
    %v5501 = vunpack.c.h.b16 %v5442
    %v5502 = vunpack.c.l.b16 %v5443
    %v5503 = vunpack.c.h.b16 %v5443
    %v5504 = vunpack.c.l.b16 %v5444
    %v5505 = vunpack.c.h.b16 %v5444
    %v5506 = vpack.c.b16 %v5476, %v5474
    %v5507 = vpack.c.b16 %v5477, %v5475
    %v5508 = vpack.c.b16 %v5480, %v5478
    %v5509 = vpack.c.b16 %v5481, %v5479
    %v5510 = vpack.c.b16 %v5484, %v5482
    %v5511 = vpack.c.b16 %v5485, %v5483
    %v5512 = vpack.c.b16 %v5488, %v5486
    %v5513 = vpack.c.b16 %v5489, %v5487
    %v5514 = vpack.c.b16 %v5492, %v5490
    %v5515 = vpack.c.b16 %v5493, %v5491
    %v5516 = vpack.c.b16 %v5496, %v5494
    %v5517 = vpack.c.b16 %v5497, %v5495
    %v5518 = vpack.c.b16 %v5500, %v5498
    %v5519 = vpack.c.b16 %v5501, %v5499
    %v5520 = vpack.c.b16 %v5504, %v5502
    %v5521 = vpack.c.b16 %v5505, %v5503
    %5538 = vmatprep.subr.bf16.mxu0 %v5507
    %5539 = vmatpush1.bf16.msra.mxu0 %v5506
    %5540 = vmatprep.subr.bf16.mxu0 %v5509
    %5541 = vmatpush1.bf16.msra.mxu0 %v5508
    %5542 = vmatprep.subr.bf16.mxu0 %v5511
    %5543 = vmatpush1.bf16.msra.mxu0 %v5510
    %5544 = vmatprep.subr.bf16.mxu0 %v5513
    %5545 = vmatpush1.bf16.msra.mxu0 %v5512
    %5546 = vmatprep.subr.bf16.mxu0 %v5515
    %5547 = vmatpush1.bf16.msra.mxu0 %v5514
    %5548 = vmatprep.subr.bf16.mxu0 %v5517
    %5549 = vmatpush1.bf16.msra.mxu0 %v5516
    %5550 = vmatprep.subr.bf16.mxu0 %v5519
    %5551 = vmatpush1.bf16.msra.mxu0 %v5518
    %5552 = vmatprep.subr.bf16.mxu0 %v5521
    %5553 = vmatpush1.bf16.msra.mxu0 %v5520
    %5554 = vmatprep.subr.bf16.mxu0 0
    %5555 = vmatpush1.bf16.msra.mxu0 0
    %5556 = vmatprep.subr.bf16.mxu0 0
    %5557 = vmatpush1.bf16.msra.mxu0 0
    %5558 = vmatprep.subr.bf16.mxu0 0
    %5559 = vmatpush1.bf16.msra.mxu0 0
    %5560 = vmatprep.subr.bf16.mxu0 0
    %5561 = vmatpush1.bf16.msra.mxu0 0
    %5562 = vmatprep.subr.bf16.mxu0 0
    %5563 = vmatpush1.bf16.msra.mxu0 0
    %5564 = vmatprep.subr.bf16.mxu0 0
    %5565 = vmatpush1.bf16.msra.mxu0 0
    %5566 = vmatprep.subr.bf16.mxu0 0
    %5567 = vmatpush1.bf16.msra.mxu0 0
    %5568 = vmatprep.subr.bf16.mxu0 0
    %5569 = vmatpush1.bf16.msra.mxu0 0
    %5570 = vmatprep.mubr.bf16.mxu0 0
    %5571 = vmatmul.mubr.bf16.gmra.mrb[0].mxu0 %v3417
    %v5572 = vpop.f32.mrb[0].mxu0
    %v5573 = vadd.f32 %v5451, %v5572
    %v5574 = vpop.f32.mrb[0].mxu0
    %v5575 = vadd.f32 %v5455, %v5574
    %v5576 = vpop.f32.mrb[0].mxu0
    %v5577 = vadd.f32 %v5451, %v5576
    %v5578 = vpop.f32.mrb[0].mxu0
    %v5579 = vadd.f32 %v5455, %v5578
    %5580 = vdwg.mxu0
    %v5581 = vpack.c.bf16 %v5577, %v5573
    %v5582 = vpack.c.bf16 %v5579, %v5575
    %v5584 = vunpack.c.l.b16 %v5427
    %v5585 = vunpack.c.h.b16 %v5427
    %v5586 = vpack.c.b16 %v5584, %v5584
    %v5587 = vpack.c.b16 %v5585, %v5585
    %5588 = vrot.lane.b32.xlu0 %v5586, 64
    %v5589 = vpop.permute.xlu0 %5588
    %5590 = vrot.lane.b32.xlu0 %v5587, 64
    %v5591 = vpop.permute.xlu0 %5590
    %v5593 = vunpack.c.l.b16 %v5581
    %v5594 = vunpack.c.h.b16 %v5581
    %v5595 = vpack.c.b16 %v5593, %v5593
    %v5596 = vpack.c.b16 %v5594, %v5594
    %5597 = vrot.lane.b32.xlu0 %v5595, 64
    %v5598 = vpop.permute.xlu0 %5597
    %5599 = vrot.lane.b32.xlu0 %v5596, 64
    %v5600 = vpop.permute.xlu0 %5599
    %v5602 = vunpack.c.l.b16 %v5582
    %v5603 = vunpack.c.h.b16 %v5582
    %v5604 = vpack.c.b16 %v5602, %v5602
    %v5605 = vpack.c.b16 %v5603, %v5603
    %5606 = vrot.lane.b32.xlu0 %v5604, 64
    %v5607 = vpop.permute.xlu0 %5606
    %5608 = vrot.lane.b32.xlu0 %v5605, 64
    %v5609 = vpop.permute.xlu0 %5608
    %v5611 = vsel %vm406, %v5586, 0
    %v5614 = vsel %vm406, %v5595, 0
    %5616 = vmatprep.subr.bf16.mxu0 0
    %5617 = vmatpush1.bf16.xpose.msra.mxu0 %v5614
    %5618 = vmatprep.subr.bf16.mxu0 0
    %5619 = vmatpush1.bf16.xpose.msra.mxu0 0
    %5620 = vmatprep.subr.bf16.mxu0 0
    %5621 = vmatpush1.bf16.xpose.msra.mxu0 0
    %5622 = vmatprep.subr.bf16.mxu0 0
    %5623 = vmatpush1.bf16.xpose.msra.mxu0 0
    %5624 = vmatprep.subr.bf16.mxu0 0
    %5625 = vmatpush1.bf16.xpose.msra.mxu0 0
    %5626 = vmatprep.subr.bf16.mxu0 0
    %5627 = vmatpush1.bf16.xpose.msra.mxu0 0
    %5628 = vmatprep.subr.bf16.mxu0 0
    %5629 = vmatpush1.bf16.xpose.msra.mxu0 0
    %5630 = vmatprep.subr.bf16.mxu0 0
    %5631 = vmatpush1.bf16.xpose.msra.mxu0 0
    %5632 = vmatprep.subr.bf16.mxu0 0
    %5633 = vmatpush1.bf16.xpose.msra.mxu0 0
    %5634 = vmatprep.subr.bf16.mxu0 0
    %5635 = vmatpush1.bf16.xpose.msra.mxu0 0
    %5636 = vmatprep.subr.bf16.mxu0 0
    %5637 = vmatpush1.bf16.xpose.msra.mxu0 0
    %5638 = vmatprep.subr.bf16.mxu0 0
    %5639 = vmatpush1.bf16.xpose.msra.mxu0 0
    %5640 = vmatprep.subr.bf16.mxu0 0
    %5641 = vmatpush1.bf16.xpose.msra.mxu0 0
    %5642 = vmatprep.subr.bf16.mxu0 0
    %5643 = vmatpush1.bf16.xpose.msra.mxu0 0
    %5644 = vmatprep.subr.bf16.mxu0 0
    %5645 = vmatpush1.bf16.xpose.msra.mxu0 0
    %5646 = vmatprep.subr.bf16.mxu0 0
    %5647 = vmatpush1.bf16.xpose.msra.mxu0 0
    %5648 = vmatprep.mubr.bf16.mxu0 0
    %5649 = vmatmul.mubr.bf16.gmra.mrb[0].mxu0 %v5611
    %v5650 = vpop.f32.mrb[0].mxu0
    %v5651 = vadd.f32 0.0, %v5650
    %v5652 = vpop.f32.mrb[0].mxu0
    %v5653 = vpop.f32.mrb[0].mxu0
    %v5654 = vpop.f32.mrb[0].mxu0
    %5655 = vdwg.mxu0
    %v5657 = vsel %vm406, %v5587, 0
    %v5660 = vsel %vm406, %v5596, 0
    %5662 = vmatprep.subr.bf16.mxu0 0
    %5663 = vmatpush1.bf16.xpose.msra.mxu0 %v5660
    %5664 = vmatprep.subr.bf16.mxu0 0
    %5665 = vmatpush1.bf16.xpose.msra.mxu0 0
    %5666 = vmatprep.subr.bf16.mxu0 0
    %5667 = vmatpush1.bf16.xpose.msra.mxu0 0
    %5668 = vmatprep.subr.bf16.mxu0 0
    %5669 = vmatpush1.bf16.xpose.msra.mxu0 0
    %5670 = vmatprep.subr.bf16.mxu0 0
    %5671 = vmatpush1.bf16.xpose.msra.mxu0 0
    %5672 = vmatprep.subr.bf16.mxu0 0
    %5673 = vmatpush1.bf16.xpose.msra.mxu0 0
    %5674 = vmatprep.subr.bf16.mxu0 0
    %5675 = vmatpush1.bf16.xpose.msra.mxu0 0
    %5676 = vmatprep.subr.bf16.mxu0 0
    %5677 = vmatpush1.bf16.xpose.msra.mxu0 0
    %5678 = vmatprep.subr.bf16.mxu0 0
    %5679 = vmatpush1.bf16.xpose.msra.mxu0 0
    %5680 = vmatprep.subr.bf16.mxu0 0
    %5681 = vmatpush1.bf16.xpose.msra.mxu0 0
    %5682 = vmatprep.subr.bf16.mxu0 0
    %5683 = vmatpush1.bf16.xpose.msra.mxu0 0
    %5684 = vmatprep.subr.bf16.mxu0 0
    %5685 = vmatpush1.bf16.xpose.msra.mxu0 0
    %5686 = vmatprep.subr.bf16.mxu0 0
    %5687 = vmatpush1.bf16.xpose.msra.mxu0 0
    %5688 = vmatprep.subr.bf16.mxu0 0
    %5689 = vmatpush1.bf16.xpose.msra.mxu0 0
    %5690 = vmatprep.subr.bf16.mxu0 0
    %5691 = vmatpush1.bf16.xpose.msra.mxu0 0
    %5692 = vmatprep.subr.bf16.mxu0 0
    %5693 = vmatpush1.bf16.xpose.msra.mxu0 0
    %5694 = vmatprep.mubr.bf16.mxu0 0
    %5695 = vmatmul.mubr.bf16.gmra.mrb[0].mxu0 %v5657
    %v5696 = vpop.f32.mrb[0].mxu0
    %v5697 = vadd.f32 0.0, %v5696
    %v5698 = vpop.f32.mrb[0].mxu0
    %v5699 = vpop.f32.mrb[0].mxu0
    %v5700 = vpop.f32.mrb[0].mxu0
    %5701 = vdwg.mxu0
    %v5703 = vsel %vm406, %v5589, 0
    %v5706 = vsel %vm406, %v5598, 0
    %5708 = vmatprep.subr.bf16.mxu0 0
    %5709 = vmatpush1.bf16.xpose.msra.mxu0 %v5706
    %5710 = vmatprep.subr.bf16.mxu0 0
    %5711 = vmatpush1.bf16.xpose.msra.mxu0 0
    %5712 = vmatprep.subr.bf16.mxu0 0
    %5713 = vmatpush1.bf16.xpose.msra.mxu0 0
    %5714 = vmatprep.subr.bf16.mxu0 0
    %5715 = vmatpush1.bf16.xpose.msra.mxu0 0
    %5716 = vmatprep.subr.bf16.mxu0 0
    %5717 = vmatpush1.bf16.xpose.msra.mxu0 0
    %5718 = vmatprep.subr.bf16.mxu0 0
    %5719 = vmatpush1.bf16.xpose.msra.mxu0 0
    %5720 = vmatprep.subr.bf16.mxu0 0
    %5721 = vmatpush1.bf16.xpose.msra.mxu0 0
    %5722 = vmatprep.subr.bf16.mxu0 0
    %5723 = vmatpush1.bf16.xpose.msra.mxu0 0
    %5724 = vmatprep.subr.bf16.mxu0 0
    %5725 = vmatpush1.bf16.xpose.msra.mxu0 0
    %5726 = vmatprep.subr.bf16.mxu0 0
    %5727 = vmatpush1.bf16.xpose.msra.mxu0 0
    %5728 = vmatprep.subr.bf16.mxu0 0
    %5729 = vmatpush1.bf16.xpose.msra.mxu0 0
    %5730 = vmatprep.subr.bf16.mxu0 0
    %5731 = vmatpush1.bf16.xpose.msra.mxu0 0
    %5732 = vmatprep.subr.bf16.mxu0 0
    %5733 = vmatpush1.bf16.xpose.msra.mxu0 0
    %5734 = vmatprep.subr.bf16.mxu0 0
    %5735 = vmatpush1.bf16.xpose.msra.mxu0 0
    %5736 = vmatprep.subr.bf16.mxu0 0
    %5737 = vmatpush1.bf16.xpose.msra.mxu0 0
    %5738 = vmatprep.subr.bf16.mxu0 0
    %5739 = vmatpush1.bf16.xpose.msra.mxu0 0
    %5740 = vmatprep.mubr.bf16.mxu0 0
    %5741 = vmatmul.mubr.bf16.gmra.mrb[0].mxu0 %v5703
    %v5742 = vpop.f32.mrb[0].mxu0
    %v5743 = vadd.f32 0.0, %v5742
    %v5744 = vpop.f32.mrb[0].mxu0
    %v5745 = vpop.f32.mrb[0].mxu0
    %v5746 = vpop.f32.mrb[0].mxu0
    %5747 = vdwg.mxu0
    %v5749 = vsel %vm406, %v5591, 0
    %v5752 = vsel %vm406, %v5600, 0
    %5754 = vmatprep.subr.bf16.mxu0 0
    %5755 = vmatpush1.bf16.xpose.msra.mxu0 %v5752
    %5756 = vmatprep.subr.bf16.mxu0 0
    %5757 = vmatpush1.bf16.xpose.msra.mxu0 0
    %5758 = vmatprep.subr.bf16.mxu0 0
    %5759 = vmatpush1.bf16.xpose.msra.mxu0 0
    %5760 = vmatprep.subr.bf16.mxu0 0
    %5761 = vmatpush1.bf16.xpose.msra.mxu0 0
    %5762 = vmatprep.subr.bf16.mxu0 0
    %5763 = vmatpush1.bf16.xpose.msra.mxu0 0
    %5764 = vmatprep.subr.bf16.mxu0 0
    %5765 = vmatpush1.bf16.xpose.msra.mxu0 0
    %5766 = vmatprep.subr.bf16.mxu0 0
    %5767 = vmatpush1.bf16.xpose.msra.mxu0 0
    %5768 = vmatprep.subr.bf16.mxu0 0
    %5769 = vmatpush1.bf16.xpose.msra.mxu0 0
    %5770 = vmatprep.subr.bf16.mxu0 0
    %5771 = vmatpush1.bf16.xpose.msra.mxu0 0
    %5772 = vmatprep.subr.bf16.mxu0 0
    %5773 = vmatpush1.bf16.xpose.msra.mxu0 0
    %5774 = vmatprep.subr.bf16.mxu0 0
    %5775 = vmatpush1.bf16.xpose.msra.mxu0 0
    %5776 = vmatprep.subr.bf16.mxu0 0
    %5777 = vmatpush1.bf16.xpose.msra.mxu0 0
    %5778 = vmatprep.subr.bf16.mxu0 0
    %5779 = vmatpush1.bf16.xpose.msra.mxu0 0
    %5780 = vmatprep.subr.bf16.mxu0 0
    %5781 = vmatpush1.bf16.xpose.msra.mxu0 0
    %5782 = vmatprep.subr.bf16.mxu0 0
    %5783 = vmatpush1.bf16.xpose.msra.mxu0 0
    %5784 = vmatprep.subr.bf16.mxu0 0
    %5785 = vmatpush1.bf16.xpose.msra.mxu0 0
    %5786 = vmatprep.mubr.bf16.mxu0 0
    %5787 = vmatmul.mubr.bf16.gmra.mrb[0].mxu0 %v5749
    %v5788 = vpop.f32.mrb[0].mxu0
    %v5789 = vadd.f32 0.0, %v5788
    %v5790 = vpop.f32.mrb[0].mxu0
    %v5791 = vpop.f32.mrb[0].mxu0
    %v5792 = vpop.f32.mrb[0].mxu0
    %5793 = vdwg.mxu0
    %v5794 = vmul.f32 %v5651, 0.25
    %v5795 = vmul.f32 %v5697, 0.25
    %v5796 = vmul.f32 %v5743, 0.25
    %v5797 = vmul.f32 %v5789, 0.25
    %v5798 = vsel %vm595, %v5794, -inf
    %5799 = vmax.xlane.f32.xlu0 %v5798
    %v5800 = vpop.xlane.xlu0 %5799
    %v5801 = vsel %vm595, %v5795, -inf
    %5802 = vmax.xlane.f32.xlu0 %v5801
    %v5803 = vpop.xlane.xlu0 %5802
    %v5804 = vsel %vm595, %v5796, -inf
    %5805 = vmax.xlane.f32.xlu0 %v5804
    %v5806 = vpop.xlane.xlu0 %5805
    %v5807 = vsel %vm595, %v5797, -inf
    %5808 = vmax.xlane.f32.xlu0 %v5807
    %v5809 = vpop.xlane.xlu0 %5808
    %v5810 = vsub.f32 %v5794, %v5800
    %v5811 = vsub.f32 %v5795, %v5803
    %v5812 = vsub.f32 %v5796, %v5806
    %v5813 = vsub.f32 %v5797, %v5809
    %v5814 = vmul.f32 %v5810, 1.442695
    %v5815 = vpow.pop %v5814
    %v5816 = vmul.f32 %v5811, 1.442695
    %v5817 = vpow.pop %v5816
    %v5818 = vmul.f32 %v5812, 1.442695
    %v5819 = vpow.pop %v5818
    %v5820 = vmul.f32 %v5813, 1.442695
    %v5821 = vpow.pop %v5820
    %v5822 = vsel %vm595, %v5815, 0.0
    %5823 = vadd.xlane.f32.xlu0 %v5822
    %v5824 = vpop.xlane.xlu0 %5823
    %v5825 = vsel %vm595, %v5817, 0.0
    %5826 = vadd.xlane.f32.xlu0 %v5825
    %v5827 = vpop.xlane.xlu0 %5826
    %v5828 = vsel %vm595, %v5819, 0.0
    %5829 = vadd.xlane.f32.xlu0 %v5828
    %v5830 = vpop.xlane.xlu0 %5829
    %v5831 = vsel %vm595, %v5821, 0.0
    %5832 = vadd.xlane.f32.xlu0 %v5831
    %v5833 = vpop.xlane.xlu0 %5832
    %v5834 = vrcp.pop %v5824
    %v5835 = vrcp.pop %v5827
    %v5836 = vrcp.pop %v5830
    %v5837 = vrcp.pop %v5833
    %v5838 = vmul.f32 %v5815, %v5834
    %v5839 = vmul.f32 %v5817, %v5835
    %v5840 = vmul.f32 %v5819, %v5836
    %v5841 = vmul.f32 %v5821, %v5837
    %v5842 = vpack.c.bf16 %v5838, %v5838
    %v5843 = vpack.c.bf16 %v5839, %v5839
    %v5844 = vpack.c.bf16 %v5840, %v5840
    %v5845 = vpack.c.bf16 %v5841, %v5841
    %v5847 = vsel %vm595, %v5842, 0
    %v5850 = vsel %vm647, %v5604, 0
    %5852 = vmatprep.subr.bf16.mxu0 0
    %5853 = vmatpush1.bf16.msra.mxu0 %v5850
    %5854 = vmatprep.subr.bf16.mxu0 0
    %5855 = vmatpush1.bf16.msra.mxu0 0
    %5856 = vmatprep.subr.bf16.mxu0 0
    %5857 = vmatpush1.bf16.msra.mxu0 0
    %5858 = vmatprep.subr.bf16.mxu0 0
    %5859 = vmatpush1.bf16.msra.mxu0 0
    %5860 = vmatprep.subr.bf16.mxu0 0
    %5861 = vmatpush1.bf16.msra.mxu0 0
    %5862 = vmatprep.subr.bf16.mxu0 0
    %5863 = vmatpush1.bf16.msra.mxu0 0
    %5864 = vmatprep.subr.bf16.mxu0 0
    %5865 = vmatpush1.bf16.msra.mxu0 0
    %5866 = vmatprep.subr.bf16.mxu0 0
    %5867 = vmatpush1.bf16.msra.mxu0 0
    %5868 = vmatprep.subr.bf16.mxu0 0
    %5869 = vmatpush1.bf16.msra.mxu0 0
    %5870 = vmatprep.subr.bf16.mxu0 0
    %5871 = vmatpush1.bf16.msra.mxu0 0
    %5872 = vmatprep.subr.bf16.mxu0 0
    %5873 = vmatpush1.bf16.msra.mxu0 0
    %5874 = vmatprep.subr.bf16.mxu0 0
    %5875 = vmatpush1.bf16.msra.mxu0 0
    %5876 = vmatprep.subr.bf16.mxu0 0
    %5877 = vmatpush1.bf16.msra.mxu0 0
    %5878 = vmatprep.subr.bf16.mxu0 0
    %5879 = vmatpush1.bf16.msra.mxu0 0
    %5880 = vmatprep.subr.bf16.mxu0 0
    %5881 = vmatpush1.bf16.msra.mxu0 0
    %5882 = vmatprep.subr.bf16.mxu0 0
    %5883 = vmatpush1.bf16.msra.mxu0 0
    %5884 = vmatprep.mubr.bf16.mxu0 0
    %5885 = vmatmul.mubr.bf16.gmra.mrb[0].mxu0 %v5847
    %v5886 = vpop.f32.mrb[0].mxu0
    %v5887 = vadd.f32 0.0, %v5886
    %v5888 = vpop.f32.mrb[0].mxu0
    %v5889 = vpop.f32.mrb[0].mxu0
    %v5890 = vpop.f32.mrb[0].mxu0
    %5891 = vdwg.mxu0
    %v5893 = vsel %vm595, %v5843, 0
    %v5896 = vsel %vm647, %v5605, 0
    %5898 = vmatprep.subr.bf16.mxu0 0
    %5899 = vmatpush1.bf16.msra.mxu0 %v5896
    %5900 = vmatprep.subr.bf16.mxu0 0
    %5901 = vmatpush1.bf16.msra.mxu0 0
    %5902 = vmatprep.subr.bf16.mxu0 0
    %5903 = vmatpush1.bf16.msra.mxu0 0
    %5904 = vmatprep.subr.bf16.mxu0 0
    %5905 = vmatpush1.bf16.msra.mxu0 0
    %5906 = vmatprep.subr.bf16.mxu0 0
    %5907 = vmatpush1.bf16.msra.mxu0 0
    %5908 = vmatprep.subr.bf16.mxu0 0
    %5909 = vmatpush1.bf16.msra.mxu0 0
    %5910 = vmatprep.subr.bf16.mxu0 0
    %5911 = vmatpush1.bf16.msra.mxu0 0
    %5912 = vmatprep.subr.bf16.mxu0 0
    %5913 = vmatpush1.bf16.msra.mxu0 0
    %5914 = vmatprep.subr.bf16.mxu0 0
    %5915 = vmatpush1.bf16.msra.mxu0 0
    %5916 = vmatprep.subr.bf16.mxu0 0
    %5917 = vmatpush1.bf16.msra.mxu0 0
    %5918 = vmatprep.subr.bf16.mxu0 0
    %5919 = vmatpush1.bf16.msra.mxu0 0
    %5920 = vmatprep.subr.bf16.mxu0 0
    %5921 = vmatpush1.bf16.msra.mxu0 0
    %5922 = vmatprep.subr.bf16.mxu0 0
    %5923 = vmatpush1.bf16.msra.mxu0 0
    %5924 = vmatprep.subr.bf16.mxu0 0
    %5925 = vmatpush1.bf16.msra.mxu0 0
    %5926 = vmatprep.subr.bf16.mxu0 0
    %5927 = vmatpush1.bf16.msra.mxu0 0
    %5928 = vmatprep.subr.bf16.mxu0 0
    %5929 = vmatpush1.bf16.msra.mxu0 0
    %5930 = vmatprep.mubr.bf16.mxu0 0
    %5931 = vmatmul.mubr.bf16.gmra.mrb[0].mxu0 %v5893
    %v5932 = vpop.f32.mrb[0].mxu0
    %v5933 = vadd.f32 0.0, %v5932
    %v5934 = vpop.f32.mrb[0].mxu0
    %v5935 = vpop.f32.mrb[0].mxu0
    %v5936 = vpop.f32.mrb[0].mxu0
    %5937 = vdwg.mxu0
    %v5939 = vsel %vm595, %v5844, 0
    %v5942 = vsel %vm647, %v5607, 0
    %5944 = vmatprep.subr.bf16.mxu0 0
    %5945 = vmatpush1.bf16.msra.mxu0 %v5942
    %5946 = vmatprep.subr.bf16.mxu0 0
    %5947 = vmatpush1.bf16.msra.mxu0 0
    %5948 = vmatprep.subr.bf16.mxu0 0
    %5949 = vmatpush1.bf16.msra.mxu0 0
    %5950 = vmatprep.subr.bf16.mxu0 0
    %5951 = vmatpush1.bf16.msra.mxu0 0
    %5952 = vmatprep.subr.bf16.mxu0 0
    %5953 = vmatpush1.bf16.msra.mxu0 0
    %5954 = vmatprep.subr.bf16.mxu0 0
    %5955 = vmatpush1.bf16.msra.mxu0 0
    %5956 = vmatprep.subr.bf16.mxu0 0
    %5957 = vmatpush1.bf16.msra.mxu0 0
    %5958 = vmatprep.subr.bf16.mxu0 0
    %5959 = vmatpush1.bf16.msra.mxu0 0
    %5960 = vmatprep.subr.bf16.mxu0 0
    %5961 = vmatpush1.bf16.msra.mxu0 0
    %5962 = vmatprep.subr.bf16.mxu0 0
    %5963 = vmatpush1.bf16.msra.mxu0 0
    %5964 = vmatprep.subr.bf16.mxu0 0
    %5965 = vmatpush1.bf16.msra.mxu0 0
    %5966 = vmatprep.subr.bf16.mxu0 0
    %5967 = vmatpush1.bf16.msra.mxu0 0
    %5968 = vmatprep.subr.bf16.mxu0 0
    %5969 = vmatpush1.bf16.msra.mxu0 0
    %5970 = vmatprep.subr.bf16.mxu0 0
    %5971 = vmatpush1.bf16.msra.mxu0 0
    %5972 = vmatprep.subr.bf16.mxu0 0
    %5973 = vmatpush1.bf16.msra.mxu0 0
    %5974 = vmatprep.subr.bf16.mxu0 0
    %5975 = vmatpush1.bf16.msra.mxu0 0
    %5976 = vmatprep.mubr.bf16.mxu0 0
    %5977 = vmatmul.mubr.bf16.gmra.mrb[0].mxu0 %v5939
    %v5978 = vpop.f32.mrb[0].mxu0
    %v5979 = vadd.f32 0.0, %v5978
    %v5980 = vpop.f32.mrb[0].mxu0
    %v5981 = vpop.f32.mrb[0].mxu0
    %v5982 = vpop.f32.mrb[0].mxu0
    %5983 = vdwg.mxu0
    %v5985 = vsel %vm595, %v5845, 0
    %v5988 = vsel %vm647, %v5609, 0
    %5990 = vmatprep.subr.bf16.mxu0 0
    %5991 = vmatpush1.bf16.msra.mxu0 %v5988
    %5992 = vmatprep.subr.bf16.mxu0 0
    %5993 = vmatpush1.bf16.msra.mxu0 0
    %5994 = vmatprep.subr.bf16.mxu0 0
    %5995 = vmatpush1.bf16.msra.mxu0 0
    %5996 = vmatprep.subr.bf16.mxu0 0
    %5997 = vmatpush1.bf16.msra.mxu0 0
    %5998 = vmatprep.subr.bf16.mxu0 0
    %5999 = vmatpush1.bf16.msra.mxu0 0
    %6000 = vmatprep.subr.bf16.mxu0 0
    %6001 = vmatpush1.bf16.msra.mxu0 0
    %6002 = vmatprep.subr.bf16.mxu0 0
    %6003 = vmatpush1.bf16.msra.mxu0 0
    %6004 = vmatprep.subr.bf16.mxu0 0
    %6005 = vmatpush1.bf16.msra.mxu0 0
    %6006 = vmatprep.subr.bf16.mxu0 0
    %6007 = vmatpush1.bf16.msra.mxu0 0
    %6008 = vmatprep.subr.bf16.mxu0 0
    %6009 = vmatpush1.bf16.msra.mxu0 0
    %6010 = vmatprep.subr.bf16.mxu0 0
    %6011 = vmatpush1.bf16.msra.mxu0 0
    %6012 = vmatprep.subr.bf16.mxu0 0
    %6013 = vmatpush1.bf16.msra.mxu0 0
    %6014 = vmatprep.subr.bf16.mxu0 0
    %6015 = vmatpush1.bf16.msra.mxu0 0
    %6016 = vmatprep.subr.bf16.mxu0 0
    %6017 = vmatpush1.bf16.msra.mxu0 0
    %6018 = vmatprep.subr.bf16.mxu0 0
    %6019 = vmatpush1.bf16.msra.mxu0 0
    %6020 = vmatprep.subr.bf16.mxu0 0
    %6021 = vmatpush1.bf16.msra.mxu0 0
    %6022 = vmatprep.mubr.bf16.mxu0 0
    %6023 = vmatmul.mubr.bf16.gmra.mrb[0].mxu0 %v5985
    %v6024 = vpop.f32.mrb[0].mxu0
    %v6025 = vadd.f32 0.0, %v6024
    %v6026 = vpop.f32.mrb[0].mxu0
    %v6027 = vpop.f32.mrb[0].mxu0
    %v6028 = vpop.f32.mrb[0].mxu0
    %6029 = vdwg.mxu0
    %6032 = vrot.lane.b32.xlu0 %v5979, 64
    %v6033 = vpop.permute.xlu0 %6032
    %6034 = vrot.lane.b32.xlu0 %v6025, 64
    %v6035 = vpop.permute.xlu0 %6034
    %v6038 = vsel %vm406, %v5887, %v6033
    %v6039 = vsel %vm406, %v5933, %v6035
    %s6040 = scalar_lea.vmem %s20, 64
    %v6041 = vld [vmem:[%s6040] sm:$0xf]
    %v6042 = vld [vmem:[%s6040 + $0x4] sm:$0xf]
    %v6043 = vld [vmem:[%s6040 + $0x8] sm:$0xf]
    %v6044 = vld [vmem:[%s6040 + $0xc] sm:$0xf]
    %v6045 = vld [vmem:[%s6040 + $0x10] sm:$0xf]
    %v6046 = vld [vmem:[%s6040 + $0x14] sm:$0xf]
    %v6047 = vld [vmem:[%s6040 + $0x18] sm:$0xf]
    %v6048 = vld [vmem:[%s6040 + $0x1c] sm:$0xf]
    %v6049 = vld [vmem:[%s6040 + $0x20] sm:$0xf]
    %v6050 = vld [vmem:[%s6040 + $0x24] sm:$0xf]
    %v6051 = vld [vmem:[%s6040 + $0x28] sm:$0xf]
    %v6052 = vld [vmem:[%s6040 + $0x2c] sm:$0xf]
    %v6053 = vld [vmem:[%s6040 + $0x30] sm:$0xf]
    %v6054 = vld [vmem:[%s6040 + $0x34] sm:$0xf]
    %v6055 = vld [vmem:[%s6040 + $0x38] sm:$0xf]
    %v6056 = vld [vmem:[%s6040 + $0x3c] sm:$0xf]
    %v6057 = vpack.c.bf16 %v6039, %v6038
    %s6058 = scalar_lea.vmem %s21, 1
    %v6059 = vld [vmem:[%s6058] sm:$0x1]
    %v6061 = vlaneseq
    %v6062 = vshrl.u32 %v6061, 7
    %v6063 = vsub.s32 0, %v6062
    %v6064 = vrot.slane %v6059, %v6063
    %v6082 = vunpack.c.l.b16 %v6041
    %v6083 = vunpack.c.l.b16 %v6042
    %v6084 = vunpack.c.l.b16 %v6043
    %v6085 = vunpack.c.l.b16 %v6044
    %v6086 = vunpack.c.l.b16 %v6045
    %v6087 = vunpack.c.l.b16 %v6046
    %v6088 = vunpack.c.l.b16 %v6047
    %v6089 = vunpack.c.l.b16 %v6048
    %v6090 = vunpack.c.l.b16 %v6049
    %v6091 = vunpack.c.l.b16 %v6050
    %v6092 = vunpack.c.l.b16 %v6051
    %v6093 = vunpack.c.l.b16 %v6052
    %v6094 = vunpack.c.l.b16 %v6053
    %v6095 = vunpack.c.l.b16 %v6054
    %v6096 = vunpack.c.l.b16 %v6055
    %v6097 = vunpack.c.l.b16 %v6056
    %v6098 = vpack.c.b16 %v6083, %v6082
    %v6099 = vpack.c.b16 %v6085, %v6084
    %v6100 = vpack.c.b16 %v6087, %v6086
    %v6101 = vpack.c.b16 %v6089, %v6088
    %v6102 = vpack.c.b16 %v6091, %v6090
    %v6103 = vpack.c.b16 %v6093, %v6092
    %v6104 = vpack.c.b16 %v6095, %v6094
    %v6105 = vpack.c.b16 %v6097, %v6096
    %6114 = vmatprep.subr.bf16.mxu0 0
    %6115 = vmatpush1.bf16.msra.mxu0 %v6098
    %6116 = vmatprep.subr.bf16.mxu0 0
    %6117 = vmatpush1.bf16.msra.mxu0 %v6099
    %6118 = vmatprep.subr.bf16.mxu0 0
    %6119 = vmatpush1.bf16.msra.mxu0 %v6100
    %6120 = vmatprep.subr.bf16.mxu0 0
    %6121 = vmatpush1.bf16.msra.mxu0 %v6101
    %6122 = vmatprep.subr.bf16.mxu0 0
    %6123 = vmatpush1.bf16.msra.mxu0 %v6102
    %6124 = vmatprep.subr.bf16.mxu0 0
    %6125 = vmatpush1.bf16.msra.mxu0 %v6103
    %6126 = vmatprep.subr.bf16.mxu0 0
    %6127 = vmatpush1.bf16.msra.mxu0 %v6104
    %6128 = vmatprep.subr.bf16.mxu0 0
    %6129 = vmatpush1.bf16.msra.mxu0 %v6105
    %6130 = vmatprep.subr.bf16.mxu0 0
    %6131 = vmatpush1.bf16.msra.mxu0 0
    %6132 = vmatprep.subr.bf16.mxu0 0
    %6133 = vmatpush1.bf16.msra.mxu0 0
    %6134 = vmatprep.subr.bf16.mxu0 0
    %6135 = vmatpush1.bf16.msra.mxu0 0
    %6136 = vmatprep.subr.bf16.mxu0 0
    %6137 = vmatpush1.bf16.msra.mxu0 0
    %6138 = vmatprep.subr.bf16.mxu0 0
    %6139 = vmatpush1.bf16.msra.mxu0 0
    %6140 = vmatprep.subr.bf16.mxu0 0
    %6141 = vmatpush1.bf16.msra.mxu0 0
    %6142 = vmatprep.subr.bf16.mxu0 0
    %6143 = vmatpush1.bf16.msra.mxu0 0
    %6144 = vmatprep.subr.bf16.mxu0 0
    %6145 = vmatpush1.bf16.msra.mxu0 0
    %6146 = vmatprep.mubr.bf16.mxu0 0
    %6147 = vmatmul.mubr.bf16.gmra.mrb[0].mxu0 %v6057
    %v6148 = vpop.f32.mrb[0].mxu0
    %v6149 = vadd.f32 %v6064, %v6148
    %v6150 = vpop.f32.mrb[0].mxu0
    %v6151 = vpop.f32.mrb[0].mxu0
    %v6152 = vadd.f32 %v6064, %v6151
    %v6153 = vpop.f32.mrb[0].mxu0
    %6154 = vdwg.mxu0
    %v6155 = vadd.f32 %v5310, %v6149
    %v6156 = vadd.f32 %v5311, %v6152
    %6157 = vadd.xlane.f32.xlu0 %v6155
    %v6158 = vpop.xlane.xlu0 %6157
    %6159 = vadd.xlane.f32.xlu0 %v6156
    %v6160 = vpop.xlane.xlu0 %6159
    %v6161 = vmul.f32 %v6158, 0.03125
    %v6162 = vmul.f32 %v6160, 0.03125
    %v6163 = vsub.f32 %v6155, %v6161
    %v6164 = vsub.f32 %v6156, %v6162
    %v6165 = vmul.f32 %v6163, %v110
    %v6166 = vmul.f32 %v6164, %v110
    %v6167 = vmul.f32 %v6165, %v6165
    %v6168 = vmul.f32 %v6166, %v6166
    %6169 = vadd.xlane.f32.xlu0 %v6167
    %v6170 = vpop.xlane.xlu0 %6169
    %6171 = vadd.xlane.f32.xlu0 %v6168
    %v6172 = vpop.xlane.xlu0 %6171
    %v6173 = vmul.f32 %v6170, 0.03125
    %v6174 = vmul.f32 %v6172, 0.03125
    %v6175 = vadd.f32 %v6173, 1e-05
    %v6176 = vadd.f32 %v6174, 1e-05
    %v6177 = vrsqrt.pop %v6175
    %v6178 = vrsqrt.pop %v6176
    %v6179 = vmul.f32 %v6165, %v6177
    %v6180 = vmul.f32 %v6166, %v6178
    %v6181 = vlaneseq
    %v6182 = vshrl.u32 %v6181, 7
    %v6183 = vsub.s32 2, %v6182
    %v6184 = vrot.slane %v4430, %v6183
    %v6185 = vmul.f32 %v6179, %v6184
    %v6186 = vmul.f32 %v6180, %v6184
    %v6187 = vlaneseq
    %v6188 = vshrl.u32 %v6187, 7
    %v6189 = vsub.s32 3, %v6188
    %v6190 = vrot.slane %v4430, %v6189
    %v6191 = vadd.f32 %v6185, %v6190
    %v6192 = vadd.f32 %v6186, %v6190
    %s6193 = scalar_lea.vmem %s22, 64
    %v6194 = vld [vmem:[%s6193] sm:$0xf]
    %v6195 = vld [vmem:[%s6193 + $0x4] sm:$0xf]
    %v6196 = vld [vmem:[%s6193 + $0x8] sm:$0xf]
    %v6197 = vld [vmem:[%s6193 + $0xc] sm:$0xf]
    %v6198 = vld [vmem:[%s6193 + $0x10] sm:$0xf]
    %v6199 = vld [vmem:[%s6193 + $0x14] sm:$0xf]
    %v6200 = vld [vmem:[%s6193 + $0x18] sm:$0xf]
    %v6201 = vld [vmem:[%s6193 + $0x1c] sm:$0xf]
    %v6202 = vld [vmem:[%s6193 + $0x20] sm:$0xf]
    %v6203 = vld [vmem:[%s6193 + $0x24] sm:$0xf]
    %v6204 = vld [vmem:[%s6193 + $0x28] sm:$0xf]
    %v6205 = vld [vmem:[%s6193 + $0x2c] sm:$0xf]
    %v6206 = vld [vmem:[%s6193 + $0x30] sm:$0xf]
    %v6207 = vld [vmem:[%s6193 + $0x34] sm:$0xf]
    %v6208 = vld [vmem:[%s6193 + $0x38] sm:$0xf]
    %v6209 = vld [vmem:[%s6193 + $0x3c] sm:$0xf]
    %v6210 = vpack.c.bf16 %v6192, %v6191
    %s6211 = scalar_lea.vmem %s23, 1
    %v6212 = vld [vmem:[%s6211] sm:$0x1]
    %v6214 = vlaneseq
    %v6215 = vshrl.u32 %v6214, 7
    %v6216 = vsub.s32 0, %v6215
    %v6217 = vrot.slane %v6212, %v6216
    %v6235 = vunpack.c.l.b16 %v6194
    %v6236 = vunpack.c.l.b16 %v6195
    %v6237 = vunpack.c.l.b16 %v6196
    %v6238 = vunpack.c.l.b16 %v6197
    %v6239 = vunpack.c.l.b16 %v6198
    %v6240 = vunpack.c.l.b16 %v6199
    %v6241 = vunpack.c.l.b16 %v6200
    %v6242 = vunpack.c.l.b16 %v6201
    %v6243 = vunpack.c.l.b16 %v6202
    %v6244 = vunpack.c.l.b16 %v6203
    %v6245 = vunpack.c.l.b16 %v6204
    %v6246 = vunpack.c.l.b16 %v6205
    %v6247 = vunpack.c.l.b16 %v6206
    %v6248 = vunpack.c.l.b16 %v6207
    %v6249 = vunpack.c.l.b16 %v6208
    %v6250 = vunpack.c.l.b16 %v6209
    %v6251 = vpack.c.b16 %v6236, %v6235
    %v6252 = vpack.c.b16 %v6238, %v6237
    %v6253 = vpack.c.b16 %v6240, %v6239
    %v6254 = vpack.c.b16 %v6242, %v6241
    %v6255 = vpack.c.b16 %v6244, %v6243
    %v6256 = vpack.c.b16 %v6246, %v6245
    %v6257 = vpack.c.b16 %v6248, %v6247
    %v6258 = vpack.c.b16 %v6250, %v6249
    %6267 = vmatprep.subr.bf16.mxu0 0
    %6268 = vmatpush1.bf16.msra.mxu0 %v6251
    %6269 = vmatprep.subr.bf16.mxu0 0
    %6270 = vmatpush1.bf16.msra.mxu0 %v6252
    %6271 = vmatprep.subr.bf16.mxu0 0
    %6272 = vmatpush1.bf16.msra.mxu0 %v6253
    %6273 = vmatprep.subr.bf16.mxu0 0
    %6274 = vmatpush1.bf16.msra.mxu0 %v6254
    %6275 = vmatprep.subr.bf16.mxu0 0
    %6276 = vmatpush1.bf16.msra.mxu0 %v6255
    %6277 = vmatprep.subr.bf16.mxu0 0
    %6278 = vmatpush1.bf16.msra.mxu0 %v6256
    %6279 = vmatprep.subr.bf16.mxu0 0
    %6280 = vmatpush1.bf16.msra.mxu0 %v6257
    %6281 = vmatprep.subr.bf16.mxu0 0
    %6282 = vmatpush1.bf16.msra.mxu0 %v6258
    %6283 = vmatprep.subr.bf16.mxu0 0
    %6284 = vmatpush1.bf16.msra.mxu0 0
    %6285 = vmatprep.subr.bf16.mxu0 0
    %6286 = vmatpush1.bf16.msra.mxu0 0
    %6287 = vmatprep.subr.bf16.mxu0 0
    %6288 = vmatpush1.bf16.msra.mxu0 0
    %6289 = vmatprep.subr.bf16.mxu0 0
    %6290 = vmatpush1.bf16.msra.mxu0 0
    %6291 = vmatprep.subr.bf16.mxu0 0
    %6292 = vmatpush1.bf16.msra.mxu0 0
    %6293 = vmatprep.subr.bf16.mxu0 0
    %6294 = vmatpush1.bf16.msra.mxu0 0
    %6295 = vmatprep.subr.bf16.mxu0 0
    %6296 = vmatpush1.bf16.msra.mxu0 0
    %6297 = vmatprep.subr.bf16.mxu0 0
    %6298 = vmatpush1.bf16.msra.mxu0 0
    %6299 = vmatprep.mubr.bf16.mxu0 0
    %6300 = vmatmul.mubr.bf16.gmra.mrb[0].mxu0 %v6210
    %v6301 = vpop.f32.mrb[0].mxu0
    %v6302 = vadd.f32 %v6217, %v6301
    %v6303 = vpop.f32.mrb[0].mxu0
    %v6304 = vpop.f32.mrb[0].mxu0
    %v6305 = vadd.f32 %v6217, %v6304
    %v6306 = vpop.f32.mrb[0].mxu0
    %6307 = vdwg.mxu0
    %v6308 = vmax.f32 %v6302, 0.0
    %v6309 = vmax.f32 %v6305, 0.0
    %s6310 = scalar_lea.vmem [#allocation2], 64
    %v6311 = vld [vmem:[%s6310] sm:$0xf]
    %v6312 = vld [vmem:[%s6310 + $0x4] sm:$0xf]
    %v6313 = vld [vmem:[%s6310 + $0x8] sm:$0xf]
    %v6314 = vld [vmem:[%s6310 + $0xc] sm:$0xf]
    %v6315 = vld [vmem:[%s6310 + $0x10] sm:$0xf]
    %v6316 = vld [vmem:[%s6310 + $0x14] sm:$0xf]
    %v6317 = vld [vmem:[%s6310 + $0x18] sm:$0xf]
    %v6318 = vld [vmem:[%s6310 + $0x1c] sm:$0xf]
    %v6319 = vld [vmem:[%s6310 + $0x20] sm:$0xf]
    %v6320 = vld [vmem:[%s6310 + $0x24] sm:$0xf]
    %v6321 = vld [vmem:[%s6310 + $0x28] sm:$0xf]
    %v6322 = vld [vmem:[%s6310 + $0x2c] sm:$0xf]
    %v6323 = vld [vmem:[%s6310 + $0x30] sm:$0xf]
    %v6324 = vld [vmem:[%s6310 + $0x34] sm:$0xf]
    %v6325 = vld [vmem:[%s6310 + $0x38] sm:$0xf]
    %v6326 = vld [vmem:[%s6310 + $0x3c] sm:$0xf]
    %v6327 = vpack.c.bf16 %v6309, %v6308
    %s6328 = scalar_lea.vmem %s25, 1
    %v6329 = vld [vmem:[%s6328] sm:$0x1]
    %v6331 = vlaneseq
    %v6332 = vshrl.u32 %v6331, 7
    %v6333 = vsub.s32 0, %v6332
    %v6334 = vrot.slane %v6329, %v6333
    %v6352 = vunpack.c.l.b16 %v6311
    %v6353 = vunpack.c.l.b16 %v6312
    %v6354 = vunpack.c.l.b16 %v6313
    %v6355 = vunpack.c.l.b16 %v6314
    %v6356 = vunpack.c.l.b16 %v6315
    %v6357 = vunpack.c.l.b16 %v6316
    %v6358 = vunpack.c.l.b16 %v6317
    %v6359 = vunpack.c.l.b16 %v6318
    %v6360 = vunpack.c.l.b16 %v6319
    %v6361 = vunpack.c.l.b16 %v6320
    %v6362 = vunpack.c.l.b16 %v6321
    %v6363 = vunpack.c.l.b16 %v6322
    %v6364 = vunpack.c.l.b16 %v6323
    %v6365 = vunpack.c.l.b16 %v6324
    %v6366 = vunpack.c.l.b16 %v6325
    %v6367 = vunpack.c.l.b16 %v6326
    %v6368 = vpack.c.b16 %v6353, %v6352
    %v6369 = vpack.c.b16 %v6355, %v6354
    %v6370 = vpack.c.b16 %v6357, %v6356
    %v6371 = vpack.c.b16 %v6359, %v6358
    %v6372 = vpack.c.b16 %v6361, %v6360
    %v6373 = vpack.c.b16 %v6363, %v6362
    %v6374 = vpack.c.b16 %v6365, %v6364
    %v6375 = vpack.c.b16 %v6367, %v6366
    %6384 = vmatprep.subr.bf16.mxu0 0
    %6385 = vmatpush1.bf16.msra.mxu0 %v6368
    %6386 = vmatprep.subr.bf16.mxu0 0
    %6387 = vmatpush1.bf16.msra.mxu0 %v6369
    %6388 = vmatprep.subr.bf16.mxu0 0
    %6389 = vmatpush1.bf16.msra.mxu0 %v6370
    %6390 = vmatprep.subr.bf16.mxu0 0
    %6391 = vmatpush1.bf16.msra.mxu0 %v6371
    %6392 = vmatprep.subr.bf16.mxu0 0
    %6393 = vmatpush1.bf16.msra.mxu0 %v6372
    %6394 = vmatprep.subr.bf16.mxu0 0
    %6395 = vmatpush1.bf16.msra.mxu0 %v6373
    %6396 = vmatprep.subr.bf16.mxu0 0
    %6397 = vmatpush1.bf16.msra.mxu0 %v6374
    %6398 = vmatprep.subr.bf16.mxu0 0
    %6399 = vmatpush1.bf16.msra.mxu0 %v6375
    %6400 = vmatprep.subr.bf16.mxu0 0
    %6401 = vmatpush1.bf16.msra.mxu0 0
    %6402 = vmatprep.subr.bf16.mxu0 0
    %6403 = vmatpush1.bf16.msra.mxu0 0
    %6404 = vmatprep.subr.bf16.mxu0 0
    %6405 = vmatpush1.bf16.msra.mxu0 0
    %6406 = vmatprep.subr.bf16.mxu0 0
    %6407 = vmatpush1.bf16.msra.mxu0 0
    %6408 = vmatprep.subr.bf16.mxu0 0
    %6409 = vmatpush1.bf16.msra.mxu0 0
    %6410 = vmatprep.subr.bf16.mxu0 0
    %6411 = vmatpush1.bf16.msra.mxu0 0
    %6412 = vmatprep.subr.bf16.mxu0 0
    %6413 = vmatpush1.bf16.msra.mxu0 0
    %6414 = vmatprep.subr.bf16.mxu0 0
    %6415 = vmatpush1.bf16.msra.mxu0 0
    %6416 = vmatprep.mubr.bf16.mxu0 0
    %6417 = vmatmul.mubr.bf16.gmra.mrb[0].mxu0 %v6327
    %v6418 = vpop.f32.mrb[0].mxu0
    %v6419 = vadd.f32 %v6334, %v6418
    %v6420 = vpop.f32.mrb[0].mxu0
    %v6421 = vpop.f32.mrb[0].mxu0
    %v6422 = vadd.f32 %v6334, %v6421
    %v6423 = vpop.f32.mrb[0].mxu0
    %6424 = vdwg.mxu0
    %v6425 = vadd.f32 %v6191, %v6419
    %v6426 = vadd.f32 %v6192, %v6422
    %6427 = vadd.xlane.f32.xlu0 %v6425
    %v6428 = vpop.xlane.xlu0 %6427
    %6429 = vadd.xlane.f32.xlu0 %v6426
    %v6430 = vpop.xlane.xlu0 %6429
    %v6431 = vmul.f32 %v6428, 0.03125
    %v6432 = vmul.f32 %v6430, 0.03125
    %v6433 = vsub.f32 %v6425, %v6431
    %v6434 = vsub.f32 %v6426, %v6432
    %v6435 = vmul.f32 %v6433, %v110
    %v6436 = vmul.f32 %v6434, %v110
    %v6437 = vmul.f32 %v6435, %v6435
    %v6438 = vmul.f32 %v6436, %v6436
    %6439 = vadd.xlane.f32.xlu0 %v6437
    %v6440 = vpop.xlane.xlu0 %6439
    %6441 = vadd.xlane.f32.xlu0 %v6438
    %v6442 = vpop.xlane.xlu0 %6441
    %v6443 = vmul.f32 %v6440, 0.03125
    %v6444 = vmul.f32 %v6442, 0.03125
    %v6445 = vadd.f32 %v6443, 1e-05
    %v6446 = vadd.f32 %v6444, 1e-05
    %v6447 = vrsqrt.pop %v6445
    %v6448 = vrsqrt.pop %v6446
    %v6449 = vmul.f32 %v6435, %v6447
    %v6450 = vmul.f32 %v6436, %v6448
    %v6451 = vlaneseq
    %v6452 = vshrl.u32 %v6451, 7
    %v6453 = vsub.s32 4, %v6452
    %v6454 = vrot.slane %v4430, %v6453
    %v6455 = vmul.f32 %v6449, %v6454
    %v6456 = vmul.f32 %v6450, %v6454
    %v6457 = vlaneseq
    %v6458 = vshrl.u32 %v6457, 7
    %v6459 = vsub.s32 5, %v6458
    %v6460 = vrot.slane %v4430, %v6459
    %v6461 = vadd.f32 %v6455, %v6460
    %v6462 = vadd.f32 %v6456, %v6460
    %6463 = vst [vmem:[#allocation6] sm:$0xff] %v6461
    %6464 = vst [vmem:[#allocation6 + $0x8] sm:$0xff] %v6462
    // Predicated region
    $region114: #{transformer_forward.1} parent=1 // pred_check
      _
    $region115: #{transformer_forward.1} parent=1 // pred_check_branch
      %6466 = sbr.rel (0) target = $region117
    $region116: #{transformer_forward.1} parent=1 // pred_region
      %s6468 = ssub.s32 256, 256
      %6469 = vsyncadd [#allocation4], %s6468
      %s6470 = sshll.u32 [#allocation5], 4
      %s6471 = int_to_ptr.vmem [resolvable:$true] %s6470
      %6476 = dma.vmem_to_hbm [thread:$0]  %s6471, 256, %s27, [#allocation4], 128, 128, 8
    $region117: #{transformer_forward.1} parent=1 // pred_fallthru
      _
    // Predicated region
    $region118: #{transformer_forward.1} parent=1 // pred_check
      _
    $region119: #{transformer_forward.1} parent=1 // pred_check_branch
      %6478 = sbr.rel (0) target = $region121
    $region120: #{transformer_forward.1} parent=1 // pred_region
      %s6480 = ssub.s32 256, 256
      %6481 = vsyncadd [#allocation7], %s6480
      %s6482 = sshll.u32 [#allocation6], 4
      %s6483 = int_to_ptr.vmem [resolvable:$true] %s6482
      %6488 = dma.vmem_to_hbm [thread:$0]  %s6483, 256, %s28, [#allocation7], 128, 128, 8
    $region121: #{transformer_forward.1} parent=1 // pred_fallthru
      _
    // Predicated region
    $region122: #{transformer_forward.1} parent=1 // pred_check
      _
    $region123: #{transformer_forward.1} parent=1 // pred_check_branch
      %6490 = sbr.rel (0) target = $region125
    $region124: #{transformer_forward.1} parent=1 // pred_region
      %6491 = dma.done [#allocation4], 256
    $region125: #{transformer_forward.1} parent=1 // pred_fallthru
      _
    // Predicated region
    $region126: #{transformer_forward.1} parent=1 // pred_check
      _
    $region127: #{transformer_forward.1} parent=1 // pred_check_branch
      %6493 = sbr.rel (0) target = $region129
    $region128: #{transformer_forward.1} parent=1 // pred_region
      %6494 = dma.done [#allocation7], 256
    $region129: #{transformer_forward.1} parent=1 // pred_fallthru
      _
    %6495 = vsyncpa [#allocation3], 1
    %6496 = vsyncpa [#allocation4], 1
    %6497 = vsyncpa [#allocation7], 1

</llo_original>
